<compile_context>
chip_gen: v5e
topology: v5e:2x2
jax: 0.10.0
libtpu: 0.0.40
codegen_flags: <defaults>
</compile_context>

<pallas_src>
import functools
import math

import jax
import jax.numpy as jnp
import numpy as np
from jax.experimental import pallas as pl
from jax.experimental.pallas import tpu as pltpu

EPS = 1e-6
_COMPUTE_DTYPE = jnp.bfloat16          # MXU input dtype; stats/softmax/residual stay f32
_VMEM_LIMIT = 64 * 1024 * 1024         # explicit scoped-VMEM cap (fits v7x physical budget)
_NEG_BIG = -1e9                        # matches masked_fill(mask==0, -1e9) in the reference


# ------------------------------ shared helpers ------------------------------ #

def _layer_norm(x, a, b, eps):
    """annotated-transformer LayerNorm: unbiased std (D-1), eps added to std. f32."""
    d = x.shape[-1]
    mean = jnp.mean(x, axis=-1, keepdims=True)
    diff = x - mean
    var = jnp.sum(diff * diff, axis=-1, keepdims=True) * (1.0 / (d - 1))
    inv = 1.0 / (jnp.sqrt(var) + eps)          # divide only on the (rows, 1) tensor
    return a * (diff * inv) + b


def _pick_tile(n, target, min_steps=1):
    """Largest divisor of n <= target, preferring multiples of 16 (then 8); optionally
    capped so the resulting grid has >= min_steps steps.  Falls back to n."""
    cap = min(target, n)
    if min_steps > 1:
        cap = min(cap, max(8, n // min_steps))
    for mult in (16, 8):
        start = cap - cap % mult
        for t in range(start, mult - 1, -mult):
            if n % t == 0:
                return t
    return n  # TODO(synk): pad + masked last tile for awkward sizes instead


def _pick_kv_tile(n, target=1024):
    """Key/value tile: full extent if small, otherwise a divisor that is a multiple of 128
    (lane width) so the mask / kv blocks stay (8,128)-legal."""
    if n <= target:
        return n
    start = target - target % 128
    for t in range(start, 127, -128):
        if n % t == 0:
            return t
    return n


# ----------------------------- Pallas kernels ------------------------------ #

def _kv_proj_kernel(x_ref, lna_ref, lnb_ref, wkv_ref, bkv_ref, o_ref, *, eps, normalize):
    """Packed K|V projection of the (optionally pre-normed) K/V source; bf16 output."""
    cd = _COMPUTE_DTYPE
    x = x_ref[...]
    if normalize:
        xn = _layer_norm(x.astype(jnp.float32), lna_ref[...], lnb_ref[...], eps).astype(cd)
    else:
        xn = x.astype(cd)
    kv = jnp.dot(xn, wkv_ref[...], preferred_element_type=jnp.float32) + bkv_ref[...]
    o_ref[...] = kv.astype(o_ref.dtype)


def _attn_sublayer_kernel(x_ref, kv_ref, bias_ref, lna_ref, lnb_ref,
                          wq_ref, bq_ref, wo_ref, bo_ref, o_ref,
                          q_sc, m_sc, l_sc, acc_sc, *, num_heads, d_k, eps):
    """out = x + MHA(LayerNorm(x), K, V) with flash-style online softmax over kv tiles.

    Grid: (batch, query-tile, kv-tile).  Scratch (persistent per (b, q-tile)):
      q_sc  (tq, D)  bf16 : pre-scaled projected queries
      m_sc  (H, tq, 1) f32: running row max per head
      l_sc  (H, tq, 1) f32: running denominator per head
      acc_sc(tq, D)  f32  : running context, head h in columns [h*d_k, (h+1)*d_k)
    """
    cd = _COMPUTE_DTYPE
    d_model = num_heads * d_k
    k_step = pl.program_id(2)
    nk = pl.num_programs(2)

    @pl.when(k_step == 0)
    def _init():
        xq = x_ref[0]                                              # (tq, D) f32 residual
        xq_n = _layer_norm(xq, lna_ref[...], lnb_ref[...], eps)
        q = jnp.dot(xq_n.astype(cd), wq_ref[...],
                    preferred_element_type=jnp.float32) + bq_ref[...]
        q_sc[...] = (q * (1.0 / math.sqrt(d_k))).astype(cd)        # scale once, O(tq*D)
        m_sc[...] = jnp.full_like(m_sc, -1e30)
        l_sc[...] = jnp.zeros_like(l_sc)
        acc_sc[...] = jnp.zeros_like(acc_sc)

    kv = kv_ref[0]                                                 # (tk, 2D) bf16
    bias = bias_ref[0]                                             # (1 or tq, tk) f32 additive

    # Unrolled per-head loop; all slices are lane-aligned (d_k multiple of 128 in practice),
    # so there are no relayout copies -- each head is a plain 2-D MXU matmul.
    for h in range(num_heads):
        hs = slice(h * d_k, (h + 1) * d_k)
        vs = slice(d_model + h * d_k, d_model + (h + 1) * d_k)
        q_h = q_sc[:, hs]                                          # (tq, d_k) bf16
        k_h = kv[:, hs]                                            # (tk, d_k) bf16
        v_h = kv[:, vs]                                            # (tk, d_k) bf16

        s = jax.lax.dot_general(q_h, k_h, (((1,), (1,)), ((), ())),
                                preferred_element_type=jnp.float32)  # (tq, tk) f32
        s = s + bias                                               # single add, no select

        m_prev = m_sc[h]                                           # (tq, 1)
        m_new = jnp.maximum(m_prev, jnp.max(s, axis=-1, keepdims=True))
        alpha = jnp.exp(m_prev - m_new)
        p = jnp.exp(s - m_new)
        l_sc[h] = alpha * l_sc[h] + jnp.sum(p, axis=-1, keepdims=True)
        acc_sc[:, hs] = alpha * acc_sc[:, hs] + jnp.dot(
            p.astype(cd), v_h, preferred_element_type=jnp.float32)
        m_sc[h] = m_new

    @pl.when(k_step == nk - 1)
    def _finalize():
        # per-head normalization (EUP reciprocal), heads already live in their output columns
        ctx = jnp.concatenate(
            [acc_sc[:, slice(h * d_k, (h + 1) * d_k)]
             * pl.reciprocal(l_sc[h], approx=True)
             for h in range(num_heads)], axis=-1)                  # (tq, D) f32
        out = jnp.dot(ctx.astype(cd), wo_ref[...],
                      preferred_element_type=jnp.float32) + bo_ref[...]
        o_ref[0] = x_ref[0] + out                                  # fused residual add (f32)


def _ffn_sublayer_kernel(x_ref, lna_ref, lnb_ref, w1_ref, b1_ref, w2_ref, b2_ref,
                         fa_ref, fb_ref, o_ref, *, eps, final_norm):
    """out = x + W2 @ relu(W1 @ LayerNorm(x)); optionally applies the decoder's final
    LayerNorm to the result (fused into the last layer)."""
    cd = _COMPUTE_DTYPE
    x = x_ref[...]                                                 # (R, D) f32
    xn = _layer_norm(x, lna_ref[...], lnb_ref[...], eps)
    h = jnp.dot(xn.astype(cd), w1_ref[...],
                preferred_element_type=jnp.float32) + b1_ref[...]
    h = jnp.maximum(h, 0.0)
    y = jnp.dot(h.astype(cd), w2_ref[...],
                preferred_element_type=jnp.float32) + b2_ref[...]
    res = x + y
    if final_norm:
        res = _layer_norm(res, fa_ref[...], fb_ref[...], eps)
    o_ref[...] = res


# ------------------------------ Pallas wrappers ----------------------------- #

def kv_projection(kv_src, ln_a, ln_b, wkv, bkv, *, normalize):
    """(B, Tk, D) source -> (B, Tk, 2D) packed bf16 K|V, computed once per layer."""
    B, Tk, D = kv_src.shape
    D2 = wkv.shape[1]
    rows = B * Tk
    rt = _pick_tile(rows, 512, min_steps=2)
    const = lambda i: (0, 0)
    out = pl.pallas_call(
        functools.partial(_kv_proj_kernel, eps=EPS, normalize=normalize),
        out_shape=jax.ShapeDtypeStruct((rows, D2), _COMPUTE_DTYPE),
        grid=(rows // rt,),
        in_specs=[pl.BlockSpec((rt, D), lambda i: (i, 0)),
                  pl.BlockSpec((1, D), const), pl.BlockSpec((1, D), const),
                  pl.BlockSpec((D, D2), const), pl.BlockSpec((1, D2), const)],
        out_specs=pl.BlockSpec((rt, D2), lambda i: (i, 0)),
        compiler_params=pltpu.CompilerParams(
            dimension_semantics=("parallel",), vmem_limit_bytes=_VMEM_LIMIT),
    )(kv_src.reshape(rows, D), ln_a, ln_b, wkv, bkv)
    return out.reshape(B, Tk, D2)


def attention_sublayer(x, kv, bias, ln_a, ln_b, p, num_heads):
    """x + MHA(LN(x), K, V) over pre-projected packed bf16 kv, flash-tiled over Tk."""
    B, Tq, D = x.shape
    Tk = kv.shape[1]
    d_k = D // num_heads

    tq = _pick_tile(Tq, 128)           # v7x-friendly query tile (<=128 rows)
    nq = Tq // tq
    tk = _pick_kv_tile(Tk, 1024)
    nk = Tk // tk

    # bias carries broadcast dims: batch in {1, B}, query in {1, Tq}; stream un-broadcast.
    assert bias.shape[0] in (1, B) and bias.shape[1] in (1, Tq) and bias.shape[2] == Tk
    mb = bias.shape[0] != 1
    mq = bias.shape[1] != 1
    m_block = (1, tq if mq else 1, tk)
    m_idx = lambda i, j, k: (i if mb else 0, j if mq else 0, k)

    const = lambda i, j, k: (0, 0)
    kernel = functools.partial(_attn_sublayer_kernel,
                               num_heads=num_heads, d_k=d_k, eps=EPS)
    return pl.pallas_call(
        kernel,
        out_shape=jax.ShapeDtypeStruct((B, Tq, D), x.dtype),
        grid=(B, nq, nk),
        in_specs=[
            pl.BlockSpec((1, tq, D), lambda i, j, k: (i, j, 0)),        # x (residual/query)
            pl.BlockSpec((1, tk, 2 * D), lambda i, j, k: (i, k, 0)),    # packed K|V (bf16)
            pl.BlockSpec(m_block, m_idx),                               # additive mask bias
            pl.BlockSpec((1, D), const), pl.BlockSpec((1, D), const),   # ln a, b
            pl.BlockSpec((D, D), const), pl.BlockSpec((1, D), const),   # wq, bq
            pl.BlockSpec((D, D), const), pl.BlockSpec((1, D), const),   # wo, bo
        ],
        out_specs=pl.BlockSpec((1, tq, D), lambda i, j, k: (i, j, 0)),
        scratch_shapes=[
            pltpu.VMEM((tq, D), _COMPUTE_DTYPE),              # projected, pre-scaled q
            pltpu.VMEM((num_heads, tq, 1), jnp.float32),      # running max
            pltpu.VMEM((num_heads, tq, 1), jnp.float32),      # running denominator
            pltpu.VMEM((tq, D), jnp.float32),                 # context accumulator
        ],
        input_output_aliases={0: 0},   # x tile is only read/written by its own grid step
        compiler_params=pltpu.CompilerParams(
            dimension_semantics=("parallel", "parallel", "arbitrary"),
            vmem_limit_bytes=_VMEM_LIMIT),
    )(x, kv, bias, ln_a, ln_b, p["wq"], p["bq"], p["wo"], p["bo"])


def ffn_sublayer(x, ln_a, ln_b, p, final_a, final_b, *, final_norm):
    """x + FFN(LN(x)) over the flattened (B*T, D) slab; optionally fuses the final LN."""
    B, T, D = x.shape
    Dff = p["w1"].shape[1]
    rows = B * T
    rt = _pick_tile(rows, 256, min_steps=2)   # >=2 parallel steps so both TCs get work
    const = lambda i: (0, 0)
    out = pl.pallas_call(
        functools.partial(_ffn_sublayer_kernel, eps=EPS, final_norm=final_norm),
        out_shape=jax.ShapeDtypeStruct((rows, D), x.dtype),
        grid=(rows // rt,),
        in_specs=[pl.BlockSpec((rt, D), lambda i: (i, 0)),
                  pl.BlockSpec((1, D), const), pl.BlockSpec((1, D), const),
                  pl.BlockSpec((D, Dff), const), pl.BlockSpec((1, Dff), const),
                  pl.BlockSpec((Dff, D), const), pl.BlockSpec((1, D), const),
                  pl.BlockSpec((1, D), const), pl.BlockSpec((1, D), const)],
        out_specs=pl.BlockSpec((rt, D), lambda i: (i, 0)),
        input_output_aliases={0: 0},
        compiler_params=pltpu.CompilerParams(
            dimension_semantics=("parallel",), vmem_limit_bytes=_VMEM_LIMIT),
    )(x.reshape(rows, D), ln_a, ln_b, p["w1"], p["b1"], p["w2"], p["b2"],
      final_a, final_b)
    return out.reshape(B, T, D)


# --------------------------- weight pre-packing ----------------------------- #

def _pack_attention(p):
    cd = _COMPUTE_DTYPE
    D = p["wq"].shape[0]
    return dict(
        wq=p["wq"].astype(cd),
        bq=p["bq"].reshape(1, D).astype(jnp.float32),
        wkv=jnp.concatenate([p["wk"], p["wv"]], axis=1).astype(cd),
        bkv=jnp.concatenate([p["bk"], p["bv"]]).reshape(1, 2 * D).astype(jnp.float32),
        wo=p["wo"].astype(cd),
        bo=p["bo"].reshape(1, D).astype(jnp.float32),
    )


def pack_params(params):
    """One-time packing: bf16 weight copies, fused K|V, (1, D) biases / LN params."""
    cd = _COMPUTE_DTYPE
    D = params["norm_a"].shape[0]
    layers = []
    for lp in params["layers"]:
        Dff = lp["ffn"]["w1"].shape[1]
        layers.append(dict(
            self_attn=_pack_attention(lp["self_attn"]),
            src_attn=_pack_attention(lp["src_attn"]),
            ffn=dict(w1=lp["ffn"]["w1"].astype(cd), b1=lp["ffn"]["b1"].reshape(1, Dff),
                     w2=lp["ffn"]["w2"].astype(cd), b2=lp["ffn"]["b2"].reshape(1, D)),
            ln0_a=lp["ln0_a"].reshape(1, D), ln0_b=lp["ln0_b"].reshape(1, D),
            ln1_a=lp["ln1_a"].reshape(1, D), ln1_b=lp["ln1_b"].reshape(1, D),
            ln2_a=lp["ln2_a"].reshape(1, D), ln2_b=lp["ln2_b"].reshape(1, D),
        ))
    return dict(layers=layers,
                norm_a=params["norm_a"].reshape(1, D),
                norm_b=params["norm_b"].reshape(1, D))


# ------------------------------ decoder forward ----------------------------- #

def decoder_forward(x, memory, src_mask, tgt_mask, packed, num_heads):
    """Pallas-backed Decoder.forward(x, memory, src_mask, tgt_mask) (eval, dropout=0)."""
    # Masks -> additive score biases, built ONCE per forward (shared by all layers).
    # NOTE: adding -1e9 (vs masked_fill) is numerically identical unless a row is fully
    # masked, which the annotated-transformer masks never produce.
    tgt_bias = (tgt_mask.astype(jnp.float32) - 1.0) * (-_NEG_BIG) * -1.0 \
        if False else (tgt_mask.astype(jnp.float32) - 1.0) * (-_NEG_BIG) * 0 + \
        (tgt_mask.astype(jnp.float32) - 1.0) * 1e9
    tgt_bias = (tgt_mask.astype(jnp.float32) - 1.0) * 1e9
    src_bias = (src_mask.astype(jnp.float32) - 1.0) * 1e9
    # `memory` is only ever an MXU input (src-attn does not LayerNorm its K/V source):
    # stream it from HBM as bf16 once per forward.
    memory_c = memory.astype(_COMPUTE_DTYPE)

    n_layers = len(packed["layers"])
    for li, lp in enumerate(packed["layers"]):
        # sublayer 0: x + self_attn(LN(x), LN(x), LN(x), tgt_mask)
        sa = lp["self_attn"]
        kv = kv_projection(x, lp["ln0_a"], lp["ln0_b"], sa["wkv"], sa["bkv"], normalize=True)
        x = attention_sublayer(x, kv, tgt_bias, lp["ln0_a"], lp["ln0_b"], sa, num_heads)

        # sublayer 1: x + src_attn(LN(x), memory, memory, src_mask)
        ca = lp["src_attn"]
        kv = kv_projection(memory_c, lp["ln1_a"], lp["ln1_b"], ca["wkv"], ca["bkv"],
                           normalize=False)
        x = attention_sublayer(x, kv, src_bias, lp["ln1_a"], lp["ln1_b"], ca, num_heads)

        # sublayer 2: x + FFN(LN(x))  [+ fused final decoder LayerNorm on the last layer]
        x = ffn_sublayer(x, lp["ln2_a"], lp["ln2_b"], lp["ffn"],
                         packed["norm_a"], packed["norm_b"],
                         final_norm=(li == n_layers - 1))
    return x


# ------------------------ pure-JAX reference (checking) --------------------- #

def _ref_layernorm(x, a, b, eps=EPS):
    mean = x.mean(-1, keepdims=True)
    diff = x - mean
    std = jnp.sqrt(jnp.sum(diff * diff, -1, keepdims=True) / (x.shape[-1] - 1))
    return a * diff / (std + eps) + b


def _ref_attention(xq, xkv, mask, p, num_heads):
    B, Tq, D = xq.shape
    Tk = xkv.shape[1]
    d_k = D // num_heads
    q = (xq @ p["wq"] + p["bq"]).reshape(B, Tq, num_heads, d_k).transpose(0, 2, 1, 3)
    k = (xkv @ p["wk"] + p["bk"]).reshape(B, Tk, num_heads, d_k).transpose(0, 2, 1, 3)
    v = (xkv @ p["wv"] + p["bv"]).reshape(B, Tk, num_heads, d_k).transpose(0, 2, 1, 3)
    scores = jnp.einsum("bhqd,bhkd->bhqk", q, k) / math.sqrt(d_k)
    scores = jnp.where(mask[:, None, :, :] == 0.0, -1e9, scores)
    attn = jax.nn.softmax(scores, axis=-1)
    heads = jnp.einsum("bhqk,bhkd->bhqd", attn, v)
    return heads.transpose(0, 2, 1, 3).reshape(B, Tq, D) @ p["wo"] + p["bo"]


def _ref_decoder(x, memory, src_mask, tgt_mask, params, num_heads):
    tgt_m = tgt_mask.astype(jnp.float32)
    src_m = src_mask.astype(jnp.float32)
    for lp in params["layers"]:
        xn = _ref_layernorm(x, lp["ln0_a"], lp["ln0_b"])
        x = x + _ref_attention(xn, xn, tgt_m, lp["self_attn"], num_heads)
        xn = _ref_layernorm(x, lp["ln1_a"], lp["ln1_b"])
        x = x + _ref_attention(xn, memory, src_m, lp["src_attn"], num_heads)
        xn = _ref_layernorm(x, lp["ln2_a"], lp["ln2_b"])
        h = jnp.maximum(xn @ lp["ffn"]["w1"] + lp["ffn"]["b1"], 0.0)
        x = x + h @ lp["ffn"]["w2"] + lp["ffn"]["b2"]
    return _ref_layernorm(x, params["norm_a"], params["norm_b"])


# ------------------------------- init & main -------------------------------- #

def init_params(key, n_layers, d_model, d_ff):
    def linear(k, fan_in, fan_out):
        kw, kb = jax.random.split(k)
        bound = 1.0 / math.sqrt(fan_in)
        w = jax.random.uniform(kw, (fan_in, fan_out), jnp.float32, -bound, bound)
        b = jax.random.uniform(kb, (fan_out,), jnp.float32, -bound, bound)
        return w, b

    layers = []
    for lk in jax.random.split(key, n_layers):
        ks = jax.random.split(lk, 4)

        def attn_params(k4):
            kk = jax.random.split(k4, 4)
            wq, bq = linear(kk[0], d_model, d_model)
            wk, bk = linear(kk[1], d_model, d_model)
            wv, bv = linear(kk[2], d_model, d_model)
            wo, bo = linear(kk[3], d_model, d_model)
            return dict(wq=wq, bq=bq, wk=wk, bk=bk, wv=wv, bv=bv, wo=wo, bo=bo)

        w1, b1 = linear(ks[2], d_model, d_ff)
        w2, b2 = linear(ks[3], d_ff, d_model)
        layers.append(dict(
            self_attn=attn_params(ks[0]),
            src_attn=attn_params(ks[1]),
            ffn=dict(w1=w1, b1=b1, w2=w2, b2=b2),
            # LayerNorm.__init__: a_2 = ones, b_2 = zeros
            ln0_a=jnp.ones((d_model,), jnp.float32), ln0_b=jnp.zeros((d_model,), jnp.float32),
            ln1_a=jnp.ones((d_model,), jnp.float32), ln1_b=jnp.zeros((d_model,), jnp.float32),
            ln2_a=jnp.ones((d_model,), jnp.float32), ln2_b=jnp.zeros((d_model,), jnp.float32),
        ))
    return dict(layers=layers,
                norm_a=jnp.ones((d_model,), jnp.float32),
                norm_b=jnp.zeros((d_model,), jnp.float32))


if __name__ == "__main__":
    B, T_TGT, T_SRC = 2, 16, 24
    D_MODEL, N_HEADS, D_FF, N_LAYERS = 256, 2, 512, 2   # d_k = 128 (lane-width heads)

    key = jax.random.PRNGKey(0)
    kp, kx, km = jax.random.split(key, 3)
    params = init_params(kp, N_LAYERS, D_MODEL, D_FF)
    x = jax.random.normal(kx, (B, T_TGT, D_MODEL), jnp.float32)
    memory = jax.random.normal(km, (B, T_SRC, D_MODEL), jnp.float32)
    # tgt_mask: causal (subsequent) mask; src_mask: all source positions visible.
    tgt_mask = jnp.tril(jnp.ones((1, T_TGT, T_TGT), jnp.float32))
    src_mask = jnp.ones((B, 1, T_SRC), jnp.float32)

    # one-time weight packing (bf16 copies, fused K|V, reshaped biases/LN params)
    packed = jax.tree_util.tree_map(lambda a: a, pack_params(params))

    fwd = jax.jit(functools.partial(decoder_forward, num_heads=N_HEADS))
    out = jax.block_until_ready(fwd(x, memory, src_mask, tgt_mask, packed))

    # sanity check against an f32 pure-JAX reference (kernel uses bf16 MXU inputs).
    ref = _ref_decoder(x, memory, src_mask, tgt_mask, params, N_HEADS)
    np.testing.assert_allclose(np.asarray(out), np.asarray(ref), rtol=5e-2, atol=5e-2)

    print("KERNEL_OK")
</pallas_src>

<mosaic_0001>
module attributes {stable_mosaic.version = 11 : i64} {
  func.func @_kv_proj_kernel(%arg0: i32, %arg1: memref<16x256xf32, #tpu.memory_space<vmem>>, %arg2: memref<1x256xf32, #tpu.memory_space<vmem>>, %arg3: memref<1x256xf32, #tpu.memory_space<vmem>>, %arg4: memref<256x512xbf16, #tpu.memory_space<vmem>>, %arg5: memref<1x512xf32, #tpu.memory_space<vmem>>, %arg6: memref<16x512xbf16, #tpu.memory_space<vmem>>) attributes {dimension_semantics = [#tpu.dimension_semantics<parallel>], iteration_bounds = array<i64: 2>, scalar_prefetch = 0 : i64, scratch_operands = 0 : i64, tpu.core_type = #tpu.core_type<tc>, window_params = [{transform_indices = @transform_0, window_bounds = array<i64: 16, 256>}, {pipeline_mode = #tpu.pipeline_mode<synchronous>, transform_indices = @transform_1, window_bounds = array<i64: 1, 256>}, {pipeline_mode = #tpu.pipeline_mode<synchronous>, transform_indices = @transform_2, window_bounds = array<i64: 1, 256>}, {pipeline_mode = #tpu.pipeline_mode<synchronous>, transform_indices = @transform_3, window_bounds = array<i64: 256, 512>}, {pipeline_mode = #tpu.pipeline_mode<synchronous>, transform_indices = @transform_4, window_bounds = array<i64: 1, 512>}, {transform_indices = @transform_5, window_bounds = array<i64: 16, 512>}]} {
    %c0 = arith.constant 0 : index
    %c0_0 = arith.constant 0 : index
    %0 = vector.load %arg1[%c0, %c0_0] : memref<16x256xf32, #tpu.memory_space<vmem>>, vector<16x256xf32>
    %c0_1 = arith.constant 0 : index
    %c0_2 = arith.constant 0 : index
    %1 = vector.load %arg2[%c0_1, %c0_2] : memref<1x256xf32, #tpu.memory_space<vmem>>, vector<1x256xf32>
    %c0_3 = arith.constant 0 : index
    %c0_4 = arith.constant 0 : index
    %2 = vector.load %arg3[%c0_3, %c0_4] : memref<1x256xf32, #tpu.memory_space<vmem>>, vector<1x256xf32>
    %cst = arith.constant dense<0.000000e+00> : vector<16xf32>
    %3 = vector.multi_reduction <add>, %0, %cst [1] : vector<16x256xf32> to vector<16xf32>
    %4 = vector.shape_cast %3 : vector<16xf32> to vector<16x1xf32>
    %cst_5 = arith.constant 2.560000e+02 : f32
    %5 = vector.broadcast %cst_5 : f32 to vector<16x1xf32>
    %6 = arith.divf %4, %5 : vector<16x1xf32>
    %7 = vector.broadcast %6 : vector<16x1xf32> to vector<16x256xf32>
    %8 = arith.subf %0, %7 : vector<16x256xf32>
    %9 = arith.mulf %8, %8 : vector<16x256xf32>
    %cst_6 = arith.constant dense<0.000000e+00> : vector<16xf32>
    %10 = vector.multi_reduction <add>, %9, %cst_6 [1] : vector<16x256xf32> to vector<16xf32>
    %11 = vector.shape_cast %10 : vector<16xf32> to vector<16x1xf32>
    %cst_7 = arith.constant 0.00392156886 : f32
    %12 = vector.broadcast %cst_7 : f32 to vector<16x1xf32>
    %13 = arith.mulf %11, %12 : vector<16x1xf32>
    %14 = math.sqrt %13 : vector<16x1xf32>
    %cst_8 = arith.constant 9.99999997E-7 : f32
    %15 = vector.broadcast %cst_8 : f32 to vector<16x1xf32>
    %16 = arith.addf %14, %15 : vector<16x1xf32>
    %cst_9 = arith.constant 1.000000e+00 : f32
    %17 = vector.broadcast %cst_9 : f32 to vector<16x1xf32>
    %18 = arith.divf %17, %16 : vector<16x1xf32>
    %19 = vector.broadcast %18 : vector<16x1xf32> to vector<16x256xf32>
    %20 = arith.mulf %8, %19 : vector<16x256xf32>
    %21 = vector.broadcast %1 : vector<1x256xf32> to vector<16x256xf32>
    %22 = arith.mulf %21, %20 : vector<16x256xf32>
    %23 = vector.broadcast %2 : vector<1x256xf32> to vector<16x256xf32>
    %24 = arith.addf %22, %23 : vector<16x256xf32>
    %25 = arith.truncf %24 : vector<16x256xf32> to vector<16x256xbf16>
    %c0_10 = arith.constant 0 : index
    %c0_11 = arith.constant 0 : index
    %26 = vector.load %arg4[%c0_10, %c0_11] : memref<256x512xbf16, #tpu.memory_space<vmem>>, vector<256x512xbf16>
    %cst_12 = arith.constant dense<0.000000e+00> : vector<16x512xf32>
    %27 = tpu.matmul %25, %26, %cst_12 {dimension_numbers = #tpu.dot_dimension_numbers<[1], [0], [0], [1], [0, 0, 1, 1], [], []>} : vector<16x256xbf16>, vector<256x512xbf16>, vector<16x512xf32> -> vector<16x512xf32>
    %c0_13 = arith.constant 0 : index
    %c0_14 = arith.constant 0 : index
    %28 = vector.load %arg5[%c0_13, %c0_14] : memref<1x512xf32, #tpu.memory_space<vmem>>, vector<1x512xf32>
    %29 = vector.broadcast %28 : vector<1x512xf32> to vector<16x512xf32>
    %30 = arith.addf %27, %29 : vector<16x512xf32>
    %31 = arith.truncf %30 : vector<16x512xf32> to vector<16x512xbf16>
    %c0_15 = arith.constant 0 : index
    %c0_16 = arith.constant 0 : index
    %32 = vector.load %arg6[%c0_15, %c0_16] : memref<16x512xbf16, #tpu.memory_space<vmem>>, vector<16x512xbf16>
    tpu.vector_store %arg6[%c0_15, %c0_16], %31 {strides = array<i32>} : memref<16x512xbf16, #tpu.memory_space<vmem>>, vector<16x512xbf16>,
    return
  }
  func.func @transform_0(%arg0: i32) -> (i32, i32) {
    %c0_i32 = arith.constant 0 : i32
    %c0_i32_0 = arith.constant 0 : i32
    return %arg0, %c0_i32 : i32, i32
  }
  func.func @transform_1(%arg0: i32) -> (i32, i32) {
    %c0_i32 = arith.constant 0 : i32
    %c0_i32_0 = arith.constant 0 : i32
    %c0_i32_1 = arith.constant 0 : i32
    return %c0_i32, %c0_i32_0 : i32, i32
  }
  func.func @transform_2(%arg0: i32) -> (i32, i32) {
    %c0_i32 = arith.constant 0 : i32
    %c0_i32_0 = arith.constant 0 : i32
    %c0_i32_1 = arith.constant 0 : i32
    return %c0_i32, %c0_i32_0 : i32, i32
  }
  func.func @transform_3(%arg0: i32) -> (i32, i32) {
    %c0_i32 = arith.constant 0 : i32
    %c0_i32_0 = arith.constant 0 : i32
    %c0_i32_1 = arith.constant 0 : i32
    return %c0_i32, %c0_i32_0 : i32, i32
  }
  func.func @transform_4(%arg0: i32) -> (i32, i32) {
    %c0_i32 = arith.constant 0 : i32
    %c0_i32_0 = arith.constant 0 : i32
    %c0_i32_1 = arith.constant 0 : i32
    return %c0_i32, %c0_i32_0 : i32, i32
  }
  func.func @transform_5(%arg0: i32) -> (i32, i32) {
    %c0_i32 = arith.constant 0 : i32
    %c0_i32_0 = arith.constant 0 : i32
    return %arg0, %c0_i32 : i32, i32
  }
}

module attributes {stable_mosaic.version = 11 : i64} {
  func.func @_attn_sublayer_kernel(%arg0: i32, %arg1: i32, %arg2: i32, %arg3: memref<1x16x256xf32, #tpu.memory_space<vmem>>, %arg4: memref<1x16x512xbf16, #tpu.memory_space<vmem>>, %arg5: memref<1x16x16xf32, #tpu.memory_space<vmem>>, %arg6: memref<1x256xf32, #tpu.memory_space<vmem>>, %arg7: memref<1x256xf32, #tpu.memory_space<vmem>>, %arg8: memref<256x256xbf16, #tpu.memory_space<vmem>>, %arg9: memref<1x256xf32, #tpu.memory_space<vmem>>, %arg10: memref<256x256xbf16, #tpu.memory_space<vmem>>, %arg11: memref<1x256xf32, #tpu.memory_space<vmem>>, %arg12: memref<1x16x256xf32, #tpu.memory_space<vmem>>, %arg13: memref<16x256xbf16, #tpu.memory_space<vmem>>, %arg14: memref<2x16x1xf32, #tpu.memory_space<vmem>>, %arg15: memref<2x16x1xf32, #tpu.memory_space<vmem>>, %arg16: memref<16x256xf32, #tpu.memory_space<vmem>>) attributes {dimension_semantics = [#tpu.dimension_semantics<parallel>, #tpu.dimension_semantics<parallel>, #tpu.dimension_semantics<arbitrary>], iteration_bounds = array<i64: 2, 1, 1>, scalar_prefetch = 0 : i64, scratch_operands = 4 : i64, tpu.core_type = #tpu.core_type<tc>, window_params = [{transform_indices = @transform_0, window_bounds = array<i64: 1, 16, 256>}, {transform_indices = @transform_1, window_bounds = array<i64: 1, 16, 512>}, {transform_indices = @transform_2, window_bounds = array<i64: 1, 16, 16>}, {pipeline_mode = #tpu.pipeline_mode<synchronous>, transform_indices = @transform_3, window_bounds = array<i64: 1, 256>}, {pipeline_mode = #tpu.pipeline_mode<synchronous>, transform_indices = @transform_4, window_bounds = array<i64: 1, 256>}, {pipeline_mode = #tpu.pipeline_mode<synchronous>, transform_indices = @transform_5, window_bounds = array<i64: 256, 256>}, {pipeline_mode = #tpu.pipeline_mode<synchronous>, transform_indices = @transform_6, window_bounds = array<i64: 1, 256>}, {pipeline_mode = #tpu.pipeline_mode<synchronous>, transform_indices = @transform_7, window_bounds = array<i64: 256, 256>}, {pipeline_mode = #tpu.pipeline_mode<synchronous>, transform_indices = @transform_8, window_bounds = array<i64: 1, 256>}, {transform_indices = @transform_9, window_bounds = array<i64: 1, 16, 256>}]} {
    %c0_i32 = arith.constant 0 : i32
    %0 = arith.cmpi eq, %arg2, %c0_i32 : i32
    %1 = arith.extui %0 : i1 to i32
    %c0_i32_0 = arith.constant 0 : i32
    %2 = arith.cmpi ne, %1, %c0_i32_0 : i32
    scf.if %2 {
      %c0_49 = arith.constant 0 : index
      %c0_50 = arith.constant 0 : index
      %c0_51 = arith.constant 0 : index
      %78 = vector.load %arg3[%c0_49, %c0_50, %c0_51] : memref<1x16x256xf32, #tpu.memory_space<vmem>>, vector<1x16x256xf32>
      %79 = vector.shape_cast %78 : vector<1x16x256xf32> to vector<16x256xf32>
      %c0_52 = arith.constant 0 : index
      %c0_53 = arith.constant 0 : index
      %80 = vector.load %arg6[%c0_52, %c0_53] : memref<1x256xf32, #tpu.memory_space<vmem>>, vector<1x256xf32>
      %c0_54 = arith.constant 0 : index
      %c0_55 = arith.constant 0 : index
      %81 = vector.load %arg7[%c0_54, %c0_55] : memref<1x256xf32, #tpu.memory_space<vmem>>, vector<1x256xf32>
      %cst_56 = arith.constant dense<0.000000e+00> : vector<16xf32>
      %82 = vector.multi_reduction <add>, %79, %cst_56 [1] : vector<16x256xf32> to vector<16xf32>
      %83 = vector.shape_cast %82 : vector<16xf32> to vector<16x1xf32>
      %cst_57 = arith.constant 2.560000e+02 : f32
      %84 = vector.broadcast %cst_57 : f32 to vector<16x1xf32>
      %85 = arith.divf %83, %84 : vector<16x1xf32>
      %86 = vector.broadcast %85 : vector<16x1xf32> to vector<16x256xf32>
      %87 = arith.subf %79, %86 : vector<16x256xf32>
      %88 = arith.mulf %87, %87 : vector<16x256xf32>
      %cst_58 = arith.constant dense<0.000000e+00> : vector<16xf32>
      %89 = vector.multi_reduction <add>, %88, %cst_58 [1] : vector<16x256xf32> to vector<16xf32>
      %90 = vector.shape_cast %89 : vector<16xf32> to vector<16x1xf32>
      %cst_59 = arith.constant 0.00392156886 : f32
      %91 = vector.broadcast %cst_59 : f32 to vector<16x1xf32>
      %92 = arith.mulf %90, %91 : vector<16x1xf32>
      %93 = math.sqrt %92 : vector<16x1xf32>
      %cst_60 = arith.constant 9.99999997E-7 : f32
      %94 = vector.broadcast %cst_60 : f32 to vector<16x1xf32>
      %95 = arith.addf %93, %94 : vector<16x1xf32>
      %cst_61 = arith.constant 1.000000e+00 : f32
      %96 = vector.broadcast %cst_61 : f32 to vector<16x1xf32>
      %97 = arith.divf %96, %95 : vector<16x1xf32>
      %98 = vector.broadcast %97 : vector<16x1xf32> to vector<16x256xf32>
      %99 = arith.mulf %87, %98 : vector<16x256xf32>
      %100 = vector.broadcast %80 : vector<1x256xf32> to vector<16x256xf32>
      %101 = arith.mulf %100, %99 : vector<16x256xf32>
      %102 = vector.broadcast %81 : vector<1x256xf32> to vector<16x256xf32>
      %103 = arith.addf %101, %102 : vector<16x256xf32>
      %104 = arith.truncf %103 : vector<16x256xf32> to vector<16x256xbf16>
      %c0_62 = arith.constant 0 : index
      %c0_63 = arith.constant 0 : index
      %105 = vector.load %arg8[%c0_62, %c0_63] : memref<256x256xbf16, #tpu.memory_space<vmem>>, vector<256x256xbf16>
      %cst_64 = arith.constant dense<0.000000e+00> : vector<16x256xf32>
      %106 = tpu.matmul %104, %105, %cst_64 {dimension_numbers = #tpu.dot_dimension_numbers<[1], [0], [0], [1], [0, 0, 1, 1], [], []>} : vector<16x256xbf16>, vector<256x256xbf16>, vector<16x256xf32> -> vector<16x256xf32>
      %c0_65 = arith.constant 0 : index
      %c0_66 = arith.constant 0 : index
      %107 = vector.load %arg9[%c0_65, %c0_66] : memref<1x256xf32, #tpu.memory_space<vmem>>, vector<1x256xf32>
      %108 = vector.broadcast %107 : vector<1x256xf32> to vector<16x256xf32>
      %109 = arith.addf %106, %108 : vector<16x256xf32>
      %cst_67 = arith.constant 0.0883883461 : f32
      %110 = vector.broadcast %cst_67 : f32 to vector<16x256xf32>
      %111 = arith.mulf %109, %110 : vector<16x256xf32>
      %112 = arith.truncf %111 : vector<16x256xf32> to vector<16x256xbf16>
      %c0_68 = arith.constant 0 : index
      %c0_69 = arith.constant 0 : index
      %113 = vector.load %arg13[%c0_68, %c0_69] : memref<16x256xbf16, #tpu.memory_space<vmem>>, vector<16x256xbf16>
      tpu.vector_store %arg13[%c0_68, %c0_69], %112 {strides = array<i32>} : memref<16x256xbf16, #tpu.memory_space<vmem>>, vector<16x256xbf16>,
      %cst_70 = arith.constant -1.000000e+30 : f32
      %114 = vector.broadcast %cst_70 : f32 to vector<2x16x1xf32>
      %c0_71 = arith.constant 0 : index
      %c0_72 = arith.constant 0 : index
      %c0_73 = arith.constant 0 : index
      %115 = vector.load %arg14[%c0_71, %c0_72, %c0_73] : memref<2x16x1xf32, #tpu.memory_space<vmem>>, vector<2x16x1xf32>
      tpu.vector_store %arg14[%c0_71, %c0_72, %c0_73], %114 {strides = array<i32>} : memref<2x16x1xf32, #tpu.memory_space<vmem>>, vector<2x16x1xf32>,
      %cst_74 = arith.constant 0.000000e+00 : f32
      %116 = vector.broadcast %cst_74 : f32 to vector<2x16x1xf32>
      %c0_75 = arith.constant 0 : index
      %c0_76 = arith.constant 0 : index
      %c0_77 = arith.constant 0 : index
      %117 = vector.load %arg15[%c0_75, %c0_76, %c0_77] : memref<2x16x1xf32, #tpu.memory_space<vmem>>, vector<2x16x1xf32>
      tpu.vector_store %arg15[%c0_75, %c0_76, %c0_77], %116 {strides = array<i32>} : memref<2x16x1xf32, #tpu.memory_space<vmem>>, vector<2x16x1xf32>,
      %cst_78 = arith.constant 0.000000e+00 : f32
      %118 = vector.broadcast %cst_78 : f32 to vector<16x256xf32>
      %c0_79 = arith.constant 0 : index
      %c0_80 = arith.constant 0 : index
      %119 = vector.load %arg16[%c0_79, %c0_80] : memref<16x256xf32, #tpu.memory_space<vmem>>, vector<16x256xf32>
      tpu.vector_store %arg16[%c0_79, %c0_80], %118 {strides = array<i32>} : memref<16x256xf32, #tpu.memory_space<vmem>>, vector<16x256xf32>,
    } else {
    }
    %c0 = arith.constant 0 : index
    %c0_1 = arith.constant 0 : index
    %c0_2 = arith.constant 0 : index
    %3 = vector.load %arg4[%c0, %c0_1, %c0_2] : memref<1x16x512xbf16, #tpu.memory_space<vmem>>, vector<1x16x512xbf16>
    %4 = vector.shape_cast %3 : vector<1x16x512xbf16> to vector<16x512xbf16>
    %c0_3 = arith.constant 0 : index
    %c0_4 = arith.constant 0 : index
    %c0_5 = arith.constant 0 : index
    %5 = vector.load %arg5[%c0_3, %c0_4, %c0_5] : memref<1x16x16xf32, #tpu.memory_space<vmem>>, vector<1x16x16xf32>
    %6 = vector.shape_cast %5 : vector<1x16x16xf32> to vector<16x16xf32>
    %c0_6 = arith.constant 0 : index
    %c0_7 = arith.constant 0 : index
    %7 = vector.load %arg13[%c0_6, %c0_7] : memref<16x256xbf16, #tpu.memory_space<vmem>>, vector<16x128xbf16>
    %8 = vector.extract_strided_slice %4 {offsets = [0, 0], sizes = [16, 128], strides = [1, 1]} : vector<16x512xbf16> to vector<16x128xbf16>
    %9 = vector.extract_strided_slice %4 {offsets = [0, 256], sizes = [16, 128], strides = [1, 1]} : vector<16x512xbf16> to vector<16x128xbf16>
    %cst = arith.constant dense<0.000000e+00> : vector<16x16xf32>
    %10 = tpu.matmul %7, %8, %cst {dimension_numbers = #tpu.dot_dimension_numbers<[1], [1], [0], [0], [0, 0, 1, 0], [], []>} : vector<16x128xbf16>, vector<16x128xbf16>, vector<16x16xf32> -> vector<16x16xf32>
    %11 = arith.addf %10, %6 : vector<16x16xf32>
    %c0_8 = arith.constant 0 : index
    %c0_9 = arith.constant 0 : index
    %c0_10 = arith.constant 0 : index
    %12 = vector.load %arg14[%c0_8, %c0_9, %c0_10] : memref<2x16x1xf32, #tpu.memory_space<vmem>>, vector<1x16x1xf32>
    %13 = vector.shape_cast %12 : vector<1x16x1xf32> to vector<16x1xf32>
    %cst_11 = arith.constant dense<0xFF800000> : vector<16xf32>
    %14 = vector.multi_reduction <maximumf>, %11, %cst_11 [1] : vector<16x16xf32> to vector<16xf32>
    %15 = vector.shape_cast %14 : vector<16xf32> to vector<16x1xf32>
    %16 = arith.maximumf %13, %15 : vector<16x1xf32>
    %17 = arith.subf %13, %16 : vector<16x1xf32>
    %18 = math.exp %17 : vector<16x1xf32>
    %19 = vector.broadcast %16 : vector<16x1xf32> to vector<16x16xf32>
    %20 = arith.subf %11, %19 : vector<16x16xf32>
    %21 = math.exp %20 : vector<16x16xf32>
    %c0_12 = arith.constant 0 : index
    %c0_13 = arith.constant 0 : index
    %c0_14 = arith.constant 0 : index
    %22 = vector.load %arg15[%c0_12, %c0_13, %c0_14] : memref<2x16x1xf32, #tpu.memory_space<vmem>>, vector<1x16x1xf32>
    %23 = vector.shape_cast %22 : vector<1x16x1xf32> to vector<16x1xf32>
    %24 = arith.mulf %18, %23 : vector<16x1xf32>
    %cst_15 = arith.constant dense<0.000000e+00> : vector<16xf32>
    %25 = vector.multi_reduction <add>, %21, %cst_15 [1] : vector<16x16xf32> to vector<16xf32>
    %26 = vector.shape_cast %25 : vector<16xf32> to vector<16x1xf32>
    %27 = arith.addf %24, %26 : vector<16x1xf32>
    %c0_16 = arith.constant 0 : index
    %c0_17 = arith.constant 0 : index
    %c0_18 = arith.constant 0 : index
    %28 = vector.load %arg15[%c0_16, %c0_17, %c0_18] : memref<2x16x1xf32, #tpu.memory_space<vmem>>, vector<1x16x1xf32>
    %29 = vector.shape_cast %28 : vector<1x16x1xf32> to vector<16x1xf32>
    %30 = vector.shape_cast %27 : vector<16x1xf32> to vector<1x16x1xf32>
    tpu.vector_store %arg15[%c0_16, %c0_17, %c0_18], %30 {strides = array<i32>} : memref<2x16x1xf32, #tpu.memory_space<vmem>>, vector<1x16x1xf32>,
    %c0_19 = arith.constant 0 : index
    %c0_20 = arith.constant 0 : index
    %31 = vector.load %arg16[%c0_19, %c0_20] : memref<16x256xf32, #tpu.memory_space<vmem>>, vector<16x128xf32>
    %32 = vector.broadcast %18 : vector<16x1xf32> to vector<16x128xf32>
    %33 = arith.mulf %32, %31 : vector<16x128xf32>
    %34 = arith.truncf %21 : vector<16x16xf32> to vector<16x16xbf16>
    %cst_21 = arith.constant dense<0.000000e+00> : vector<16x128xf32>
    %35 = tpu.matmul %34, %9, %cst_21 {dimension_numbers = #tpu.dot_dimension_numbers<[1], [0], [0], [1], [0, 0, 1, 1], [], []>} : vector<16x16xbf16>, vector<16x128xbf16>, vector<16x128xf32> -> vector<16x128xf32>
    %36 = arith.addf %33, %35 : vector<16x128xf32>
    %c0_22 = arith.constant 0 : index
    %c0_23 = arith.constant 0 : index
    %37 = vector.load %arg16[%c0_22, %c0_23] : memref<16x256xf32, #tpu.memory_space<vmem>>, vector<16x128xf32>
    tpu.vector_store %arg16[%c0_22, %c0_23], %36 {strides = array<i32>} : memref<16x256xf32, #tpu.memory_space<vmem>>, vector<16x128xf32>,
    %c0_24 = arith.constant 0 : index
    %c0_25 = arith.constant 0 : index
    %c0_26 = arith.constant 0 : index
    %38 = vector.load %arg14[%c0_24, %c0_25, %c0_26] : memref<2x16x1xf32, #tpu.memory_space<vmem>>, vector<1x16x1xf32>
    %39 = vector.shape_cast %38 : vector<1x16x1xf32> to vector<16x1xf32>
    %40 = vector.shape_cast %16 : vector<16x1xf32> to vector<1x16x1xf32>
    tpu.vector_store %arg14[%c0_24, %c0_25, %c0_26], %40 {strides = array<i32>} : memref<2x16x1xf32, #tpu.memory_space<vmem>>, vector<1x16x1xf32>,
    %c0_27 = arith.constant 0 : index
    %c128 = arith.constant 128 : index
    %41 = vector.load %arg13[%c0_27, %c128] : memref<16x256xbf16, #tpu.memory_space<vmem>>, vector<16x128xbf16>
    %42 = vector.extract_strided_slice %4 {offsets = [0, 128], sizes = [16, 128], strides = [1, 1]} : vector<16x512xbf16> to vector<16x128xbf16>
    %43 = vector.extract_strided_slice %4 {offsets = [0, 384], sizes = [16, 128], strides = [1, 1]} : vector<16x512xbf16> to vector<16x128xbf16>
    %cst_28 = arith.constant dense<0.000000e+00> : vector<16x16xf32>
    %44 = tpu.matmul %41, %42, %cst_28 {dimension_numbers = #tpu.dot_dimension_numbers<[1], [1], [0], [0], [0, 0, 1, 0], [], []>} : vector<16x128xbf16>, vector<16x128xbf16>, vector<16x16xf32> -> vector<16x16xf32>
    %45 = arith.addf %44, %6 : vector<16x16xf32>
    %c1 = arith.constant 1 : index
    %c0_29 = arith.constant 0 : index
    %c0_30 = arith.constant 0 : index
    %46 = vector.load %arg14[%c1, %c0_29, %c0_30] : memref<2x16x1xf32, #tpu.memory_space<vmem>>, vector<1x16x1xf32>
    %47 = vector.shape_cast %46 : vector<1x16x1xf32> to vector<16x1xf32>
    %cst_31 = arith.constant dense<0xFF800000> : vector<16xf32>
    %48 = vector.multi_reduction <maximumf>, %45, %cst_31 [1] : vector<16x16xf32> to vector<16xf32>
    %49 = vector.shape_cast %48 : vector<16xf32> to vector<16x1xf32>
    %50 = arith.maximumf %47, %49 : vector<16x1xf32>
    %51 = arith.subf %47, %50 : vector<16x1xf32>
    %52 = math.exp %51 : vector<16x1xf32>
    %53 = vector.broadcast %50 : vector<16x1xf32> to vector<16x16xf32>
    %54 = arith.subf %45, %53 : vector<16x16xf32>
    %55 = math.exp %54 : vector<16x16xf32>
    %c1_32 = arith.constant 1 : index
    %c0_33 = arith.constant 0 : index
    %c0_34 = arith.constant 0 : index
    %56 = vector.load %arg15[%c1_32, %c0_33, %c0_34] : memref<2x16x1xf32, #tpu.memory_space<vmem>>, vector<1x16x1xf32>
    %57 = vector.shape_cast %56 : vector<1x16x1xf32> to vector<16x1xf32>
    %58 = arith.mulf %52, %57 : vector<16x1xf32>
    %cst_35 = arith.constant dense<0.000000e+00> : vector<16xf32>
    %59 = vector.multi_reduction <add>, %55, %cst_35 [1] : vector<16x16xf32> to vector<16xf32>
    %60 = vector.shape_cast %59 : vector<16xf32> to vector<16x1xf32>
    %61 = arith.addf %58, %60 : vector<16x1xf32>
    %c1_36 = arith.constant 1 : index
    %c0_37 = arith.constant 0 : index
    %c0_38 = arith.constant 0 : index
    %62 = vector.load %arg15[%c1_36, %c0_37, %c0_38] : memref<2x16x1xf32, #tpu.memory_space<vmem>>, vector<1x16x1xf32>
    %63 = vector.shape_cast %62 : vector<1x16x1xf32> to vector<16x1xf32>
    %64 = vector.shape_cast %61 : vector<16x1xf32> to vector<1x16x1xf32>
    tpu.vector_store %arg15[%c1_36, %c0_37, %c0_38], %64 {strides = array<i32>} : memref<2x16x1xf32, #tpu.memory_space<vmem>>, vector<1x16x1xf32>,
    %c0_39 = arith.constant 0 : index
    %c128_40 = arith.constant 128 : index
    %65 = vector.load %arg16[%c0_39, %c128_40] : memref<16x256xf32, #tpu.memory_space<vmem>>, vector<16x128xf32>
    %66 = vector.broadcast %52 : vector<16x1xf32> to vector<16x128xf32>
    %67 = arith.mulf %66, %65 : vector<16x128xf32>
    %68 = arith.truncf %55 : vector<16x16xf32> to vector<16x16xbf16>
    %cst_41 = arith.constant dense<0.000000e+00> : vector<16x128xf32>
    %69 = tpu.matmul %68, %43, %cst_41 {dimension_numbers = #tpu.dot_dimension_numbers<[1], [0], [0], [1], [0, 0, 1, 1], [], []>} : vector<16x16xbf16>, vector<16x128xbf16>, vector<16x128xf32> -> vector<16x128xf32>
    %70 = arith.addf %67, %69 : vector<16x128xf32>
    %c0_42 = arith.constant 0 : index
    %c128_43 = arith.constant 128 : index
    %71 = vector.load %arg16[%c0_42, %c128_43] : memref<16x256xf32, #tpu.memory_space<vmem>>, vector<16x128xf32>
    tpu.vector_store %arg16[%c0_42, %c128_43], %70 {strides = array<i32>} : memref<16x256xf32, #tpu.memory_space<vmem>>, vector<16x128xf32>,
    %c1_44 = arith.constant 1 : index
    %c0_45 = arith.constant 0 : index
    %c0_46 = arith.constant 0 : index
    %72 = vector.load %arg14[%c1_44, %c0_45, %c0_46] : memref<2x16x1xf32, #tpu.memory_space<vmem>>, vector<1x16x1xf32>
    %73 = vector.shape_cast %72 : vector<1x16x1xf32> to vector<16x1xf32>
    %74 = vector.shape_cast %50 : vector<16x1xf32> to vector<1x16x1xf32>
    tpu.vector_store %arg14[%c1_44, %c0_45, %c0_46], %74 {strides = array<i32>} : memref<2x16x1xf32, #tpu.memory_space<vmem>>, vector<1x16x1xf32>,
    %c0_i32_47 = arith.constant 0 : i32
    %75 = arith.cmpi eq, %arg2, %c0_i32_47 : i32
    %76 = arith.extui %75 : i1 to i32
    %c0_i32_48 = arith.constant 0 : i32
    %77 = arith.cmpi ne, %76, %c0_i32_48 : i32
    scf.if %77 {
      %c0_49 = arith.constant 0 : index
      %c0_50 = arith.constant 0 : index
      %78 = vector.load %arg16[%c0_49, %c0_50] : memref<16x256xf32, #tpu.memory_space<vmem>>, vector<16x128xf32>
      %c0_51 = arith.constant 0 : index
      %c0_52 = arith.constant 0 : index
      %c0_53 = arith.constant 0 : index
      %79 = vector.load %arg15[%c0_51, %c0_52, %c0_53] : memref<2x16x1xf32, #tpu.memory_space<vmem>>, vector<1x16x1xf32>
      %80 = vector.shape_cast %79 : vector<1x16x1xf32> to vector<16x1xf32>
      %81 = tpu.reciprocal %80 {approx = true} : vector<16x1xf32> -> vector<16x1xf32>
      %82 = vector.broadcast %81 : vector<16x1xf32> to vector<16x128xf32>
      %83 = arith.mulf %78, %82 : vector<16x128xf32>
      %c0_54 = arith.constant 0 : index
      %c128_55 = arith.constant 128 : index
      %84 = vector.load %arg16[%c0_54, %c128_55] : memref<16x256xf32, #tpu.memory_space<vmem>>, vector<16x128xf32>
      %c1_56 = arith.constant 1 : index
      %c0_57 = arith.constant 0 : index
      %c0_58 = arith.constant 0 : index
      %85 = vector.load %arg15[%c1_56, %c0_57, %c0_58] : memref<2x16x1xf32, #tpu.memory_space<vmem>>, vector<1x16x1xf32>
      %86 = vector.shape_cast %85 : vector<1x16x1xf32> to vector<16x1xf32>
      %87 = tpu.reciprocal %86 {approx = true} : vector<16x1xf32> -> vector<16x1xf32>
      %88 = vector.broadcast %87 : vector<16x1xf32> to vector<16x128xf32>
      %89 = arith.mulf %84, %88 : vector<16x128xf32>
      %90 = tpu.concatenate %83, %89 in 1 : vector<16x128xf32>, vector<16x128xf32> -> vector<16x256xf32>
      %91 = arith.truncf %90 : vector<16x256xf32> to vector<16x256xbf16>
      %c0_59 = arith.constant 0 : index
      %c0_60 = arith.constant 0 : index
      %92 = vector.load %arg10[%c0_59, %c0_60] : memref<256x256xbf16, #tpu.memory_space<vmem>>, vector<256x256xbf16>
      %cst_61 = arith.constant dense<0.000000e+00> : vector<16x256xf32>
      %93 = tpu.matmul %91, %92, %cst_61 {dimension_numbers = #tpu.dot_dimension_numbers<[1], [0], [0], [1], [0, 0, 1, 1], [], []>} : vector<16x256xbf16>, vector<256x256xbf16>, vector<16x256xf32> -> vector<16x256xf32>
      %c0_62 = arith.constant 0 : index
      %c0_63 = arith.constant 0 : index
      %94 = vector.load %arg11[%c0_62, %c0_63] : memref<1x256xf32, #tpu.memory_space<vmem>>, vector<1x256xf32>
      %95 = vector.broadcast %94 : vector<1x256xf32> to vector<16x256xf32>
      %96 = arith.addf %93, %95 : vector<16x256xf32>
      %c0_64 = arith.constant 0 : index
      %c0_65 = arith.constant 0 : index
      %c0_66 = arith.constant 0 : index
      %97 = vector.load %arg3[%c0_64, %c0_65, %c0_66] : memref<1x16x256xf32, #tpu.memory_space<vmem>>, vector<1x16x256xf32>
      %98 = vector.shape_cast %97 : vector<1x16x256xf32> to vector<16x256xf32>
      %99 = arith.addf %98, %96 : vector<16x256xf32>
      %c0_67 = arith.constant 0 : index
      %c0_68 = arith.constant 0 : index
      %c0_69 = arith.constant 0 : index
      %100 = vector.load %arg12[%c0_67, %c0_68, %c0_69] : memref<1x16x256xf32, #tpu.memory_space<vmem>>, vector<1x16x256xf32>
      %101 = vector.shape_cast %100 : vector<1x16x256xf32> to vector<16x256xf32>
      %102 = vector.shape_cast %99 : vector<16x256xf32> to vector<1x16x256xf32>
      tpu.vector_store %arg12[%c0_67, %c0_68, %c0_69], %102 {strides = array<i32>} : memref<1x16x256xf32, #tpu.memory_space<vmem>>, vector<1x16x256xf32>,
    } else {
    }
    return
  }
  func.func @transform_0(%arg0: i32, %arg1: i32, %arg2: i32) -> (i32, i32, i32) {
    %c0_i32 = arith.constant 0 : i32
    %c0_i32_0 = arith.constant 0 : i32
    return %arg0, %arg1, %c0_i32 : i32, i32, i32
  }
  func.func @transform_1(%arg0: i32, %arg1: i32, %arg2: i32) -> (i32, i32, i32) {
    %c0_i32 = arith.constant 0 : i32
    %c0_i32_0 = arith.constant 0 : i32
    return %arg0, %arg2, %c0_i32 : i32, i32, i32
  }
  func.func @transform_2(%arg0: i32, %arg1: i32, %arg2: i32) -> (i32, i32, i32) {
    %c0_i32 = arith.constant 0 : i32
    %c0_i32_0 = arith.constant 0 : i32
    return %c0_i32, %arg1, %arg2 : i32, i32, i32
  }
  func.func @transform_3(%arg0: i32, %arg1: i32, %arg2: i32) -> (i32, i32) {
    %c0_i32 = arith.constant 0 : i32
    %c0_i32_0 = arith.constant 0 : i32
    %c0_i32_1 = arith.constant 0 : i32
    return %c0_i32, %c0_i32_0 : i32, i32
  }
  func.func @transform_4(%arg0: i32, %arg1: i32, %arg2: i32) -> (i32, i32) {
    %c0_i32 = arith.constant 0 : i32
    %c0_i32_0 = arith.constant 0 : i32
    %c0_i32_1 = arith.constant 0 : i32
    return %c0_i32, %c0_i32_0 : i32, i32
  }
  func.func @transform_5(%arg0: i32, %arg1: i32, %arg2: i32) -> (i32, i32) {
    %c0_i32 = arith.constant 0 : i32
    %c0_i32_0 = arith.constant 0 : i32
    %c0_i32_1 = arith.constant 0 : i32
    return %c0_i32, %c0_i32_0 : i32, i32
  }
  func.func @transform_6(%arg0: i32, %arg1: i32, %arg2: i32) -> (i32, i32) {
    %c0_i32 = arith.constant 0 : i32
    %c0_i32_0 = arith.constant 0 : i32
    %c0_i32_1 = arith.constant 0 : i32
    return %c0_i32, %c0_i32_0 : i32, i32
  }
  func.func @transform_7(%arg0: i32, %arg1: i32, %arg2: i32) -> (i32, i32) {
    %c0_i32 = arith.constant 0 : i32
    %c0_i32_0 = arith.constant 0 : i32
    %c0_i32_1 = arith.constant 0 : i32
    return %c0_i32, %c0_i32_0 : i32, i32
  }
  func.func @transform_8(%arg0: i32, %arg1: i32, %arg2: i32) -> (i32, i32) {
    %c0_i32 = arith.constant 0 : i32
    %c0_i32_0 = arith.constant 0 : i32
    %c0_i32_1 = arith.constant 0 : i32
    return %c0_i32, %c0_i32_0 : i32, i32
  }
  func.func @transform_9(%arg0: i32, %arg1: i32, %arg2: i32) -> (i32, i32, i32) {
    %c0_i32 = arith.constant 0 : i32
    %c0_i32_0 = arith.constant 0 : i32
    return %arg0, %arg1, %c0_i32 : i32, i32, i32
  }
}

module attributes {stable_mosaic.version = 11 : i64} {
  func.func @_kv_proj_kernel(%arg0: i32, %arg1: memref<16x256xbf16, #tpu.memory_space<vmem>>, %arg2: memref<1x256xf32, #tpu.memory_space<vmem>>, %arg3: memref<1x256xf32, #tpu.memory_space<vmem>>, %arg4: memref<256x512xbf16, #tpu.memory_space<vmem>>, %arg5: memref<1x512xf32, #tpu.memory_space<vmem>>, %arg6: memref<16x512xbf16, #tpu.memory_space<vmem>>) attributes {dimension_semantics = [#tpu.dimension_semantics<parallel>], iteration_bounds = array<i64: 3>, scalar_prefetch = 0 : i64, scratch_operands = 0 : i64, tpu.core_type = #tpu.core_type<tc>, window_params = [{transform_indices = @transform_0, window_bounds = array<i64: 16, 256>}, {pipeline_mode = #tpu.pipeline_mode<synchronous>, transform_indices = @transform_1, window_bounds = array<i64: 1, 256>}, {pipeline_mode = #tpu.pipeline_mode<synchronous>, transform_indices = @transform_2, window_bounds = array<i64: 1, 256>}, {pipeline_mode = #tpu.pipeline_mode<synchronous>, transform_indices = @transform_3, window_bounds = array<i64: 256, 512>}, {pipeline_mode = #tpu.pipeline_mode<synchronous>, transform_indices = @transform_4, window_bounds = array<i64: 1, 512>}, {transform_indices = @transform_5, window_bounds = array<i64: 16, 512>}]} {
    %c0 = arith.constant 0 : index
    %c0_0 = arith.constant 0 : index
    %0 = vector.load %arg1[%c0, %c0_0] : memref<16x256xbf16, #tpu.memory_space<vmem>>, vector<16x256xbf16>
    %c0_1 = arith.constant 0 : index
    %c0_2 = arith.constant 0 : index
    %1 = vector.load %arg4[%c0_1, %c0_2] : memref<256x512xbf16, #tpu.memory_space<vmem>>, vector<256x512xbf16>
    %cst = arith.constant dense<0.000000e+00> : vector<16x512xf32>
    %2 = tpu.matmul %0, %1, %cst {dimension_numbers = #tpu.dot_dimension_numbers<[1], [0], [0], [1], [0, 0, 1, 1], [], []>} : vector<16x256xbf16>, vector<256x512xbf16>, vector<16x512xf32> -> vector<16x512xf32>
    %c0_3 = arith.constant 0 : index
    %c0_4 = arith.constant 0 : index
    %3 = vector.load %arg5[%c0_3, %c0_4] : memref<1x512xf32, #tpu.memory_space<vmem>>, vector<1x512xf32>
    %4 = vector.broadcast %3 : vector<1x512xf32> to vector<16x512xf32>
    %5 = arith.addf %2, %4 : vector<16x512xf32>
    %6 = arith.truncf %5 : vector<16x512xf32> to vector<16x512xbf16>
    %c0_5 = arith.constant 0 : index
    %c0_6 = arith.constant 0 : index
    %7 = vector.load %arg6[%c0_5, %c0_6] : memref<16x512xbf16, #tpu.memory_space<vmem>>, vector<16x512xbf16>
    tpu.vector_store %arg6[%c0_5, %c0_6], %6 {strides = array<i32>} : memref<16x512xbf16, #tpu.memory_space<vmem>>, vector<16x512xbf16>,
    return
  }
  func.func @transform_0(%arg0: i32) -> (i32, i32) {
    %c0_i32 = arith.constant 0 : i32
    %c0_i32_0 = arith.constant 0 : i32
    return %arg0, %c0_i32 : i32, i32
  }
  func.func @transform_1(%arg0: i32) -> (i32, i32) {
    %c0_i32 = arith.constant 0 : i32
    %c0_i32_0 = arith.constant 0 : i32
    %c0_i32_1 = arith.constant 0 : i32
    return %c0_i32, %c0_i32_0 : i32, i32
  }
  func.func @transform_2(%arg0: i32) -> (i32, i32) {
    %c0_i32 = arith.constant 0 : i32
    %c0_i32_0 = arith.constant 0 : i32
    %c0_i32_1 = arith.constant 0 : i32
    return %c0_i32, %c0_i32_0 : i32, i32
  }
  func.func @transform_3(%arg0: i32) -> (i32, i32) {
    %c0_i32 = arith.constant 0 : i32
    %c0_i32_0 = arith.constant 0 : i32
    %c0_i32_1 = arith.constant 0 : i32
    return %c0_i32, %c0_i32_0 : i32, i32
  }
  func.func @transform_4(%arg0: i32) -> (i32, i32) {
    %c0_i32 = arith.constant 0 : i32
    %c0_i32_0 = arith.constant 0 : i32
    %c0_i32_1 = arith.constant 0 : i32
    return %c0_i32, %c0_i32_0 : i32, i32
  }
  func.func @transform_5(%arg0: i32) -> (i32, i32) {
    %c0_i32 = arith.constant 0 : i32
    %c0_i32_0 = arith.constant 0 : i32
    return %arg0, %c0_i32 : i32, i32
  }
}

module attributes {stable_mosaic.version = 11 : i64} {
  func.func @_attn_sublayer_kernel(%arg0: i32, %arg1: i32, %arg2: i32, %arg3: memref<1x16x256xf32, #tpu.memory_space<vmem>>, %arg4: memref<1x24x512xbf16, #tpu.memory_space<vmem>>, %arg5: memref<1x1x24xf32, #tpu.memory_space<vmem>>, %arg6: memref<1x256xf32, #tpu.memory_space<vmem>>, %arg7: memref<1x256xf32, #tpu.memory_space<vmem>>, %arg8: memref<256x256xbf16, #tpu.memory_space<vmem>>, %arg9: memref<1x256xf32, #tpu.memory_space<vmem>>, %arg10: memref<256x256xbf16, #tpu.memory_space<vmem>>, %arg11: memref<1x256xf32, #tpu.memory_space<vmem>>, %arg12: memref<1x16x256xf32, #tpu.memory_space<vmem>>, %arg13: memref<16x256xbf16, #tpu.memory_space<vmem>>, %arg14: memref<2x16x1xf32, #tpu.memory_space<vmem>>, %arg15: memref<2x16x1xf32, #tpu.memory_space<vmem>>, %arg16: memref<16x256xf32, #tpu.memory_space<vmem>>) attributes {dimension_semantics = [#tpu.dimension_semantics<parallel>, #tpu.dimension_semantics<parallel>, #tpu.dimension_semantics<arbitrary>], iteration_bounds = array<i64: 2, 1, 1>, scalar_prefetch = 0 : i64, scratch_operands = 4 : i64, tpu.core_type = #tpu.core_type<tc>, window_params = [{transform_indices = @transform_0, window_bounds = array<i64: 1, 16, 256>}, {transform_indices = @transform_1, window_bounds = array<i64: 1, 24, 512>}, {transform_indices = @transform_2, window_bounds = array<i64: 1, 1, 24>}, {pipeline_mode = #tpu.pipeline_mode<synchronous>, transform_indices = @transform_3, window_bounds = array<i64: 1, 256>}, {pipeline_mode = #tpu.pipeline_mode<synchronous>, transform_indices = @transform_4, window_bounds = array<i64: 1, 256>}, {pipeline_mode = #tpu.pipeline_mode<synchronous>, transform_indices = @transform_5, window_bounds = array<i64: 256, 256>}, {pipeline_mode = #tpu.pipeline_mode<synchronous>, transform_indices = @transform_6, window_bounds = array<i64: 1, 256>}, {pipeline_mode = #tpu.pipeline_mode<synchronous>, transform_indices = @transform_7, window_bounds = array<i64: 256, 256>}, {pipeline_mode = #tpu.pipeline_mode<synchronous>, transform_indices = @transform_8, window_bounds = array<i64: 1, 256>}, {transform_indices = @transform_9, window_bounds = array<i64: 1, 16, 256>}]} {
    %c0_i32 = arith.constant 0 : i32
    %0 = arith.cmpi eq, %arg2, %c0_i32 : i32
    %1 = arith.extui %0 : i1 to i32
    %c0_i32_0 = arith.constant 0 : i32
    %2 = arith.cmpi ne, %1, %c0_i32_0 : i32
    scf.if %2 {
      %c0_49 = arith.constant 0 : index
      %c0_50 = arith.constant 0 : index
      %c0_51 = arith.constant 0 : index
      %80 = vector.load %arg3[%c0_49, %c0_50, %c0_51] : memref<1x16x256xf32, #tpu.memory_space<vmem>>, vector<1x16x256xf32>
      %81 = vector.shape_cast %80 : vector<1x16x256xf32> to vector<16x256xf32>
      %c0_52 = arith.constant 0 : index
      %c0_53 = arith.constant 0 : index
      %82 = vector.load %arg6[%c0_52, %c0_53] : memref<1x256xf32, #tpu.memory_space<vmem>>, vector<1x256xf32>
      %c0_54 = arith.constant 0 : index
      %c0_55 = arith.constant 0 : index
      %83 = vector.load %arg7[%c0_54, %c0_55] : memref<1x256xf32, #tpu.memory_space<vmem>>, vector<1x256xf32>
      %cst_56 = arith.constant dense<0.000000e+00> : vector<16xf32>
      %84 = vector.multi_reduction <add>, %81, %cst_56 [1] : vector<16x256xf32> to vector<16xf32>
      %85 = vector.shape_cast %84 : vector<16xf32> to vector<16x1xf32>
      %cst_57 = arith.constant 2.560000e+02 : f32
      %86 = vector.broadcast %cst_57 : f32 to vector<16x1xf32>
      %87 = arith.divf %85, %86 : vector<16x1xf32>
      %88 = vector.broadcast %87 : vector<16x1xf32> to vector<16x256xf32>
      %89 = arith.subf %81, %88 : vector<16x256xf32>
      %90 = arith.mulf %89, %89 : vector<16x256xf32>
      %cst_58 = arith.constant dense<0.000000e+00> : vector<16xf32>
      %91 = vector.multi_reduction <add>, %90, %cst_58 [1] : vector<16x256xf32> to vector<16xf32>
      %92 = vector.shape_cast %91 : vector<16xf32> to vector<16x1xf32>
      %cst_59 = arith.constant 0.00392156886 : f32
      %93 = vector.broadcast %cst_59 : f32 to vector<16x1xf32>
      %94 = arith.mulf %92, %93 : vector<16x1xf32>
      %95 = math.sqrt %94 : vector<16x1xf32>
      %cst_60 = arith.constant 9.99999997E-7 : f32
      %96 = vector.broadcast %cst_60 : f32 to vector<16x1xf32>
      %97 = arith.addf %95, %96 : vector<16x1xf32>
      %cst_61 = arith.constant 1.000000e+00 : f32
      %98 = vector.broadcast %cst_61 : f32 to vector<16x1xf32>
      %99 = arith.divf %98, %97 : vector<16x1xf32>
      %100 = vector.broadcast %99 : vector<16x1xf32> to vector<16x256xf32>
      %101 = arith.mulf %89, %100 : vector<16x256xf32>
      %102 = vector.broadcast %82 : vector<1x256xf32> to vector<16x256xf32>
      %103 = arith.mulf %102, %101 : vector<16x256xf32>
      %104 = vector.broadcast %83 : vector<1x256xf32> to vector<16x256xf32>
      %105 = arith.addf %103, %104 : vector<16x256xf32>
      %106 = arith.truncf %105 : vector<16x256xf32> to vector<16x256xbf16>
      %c0_62 = arith.constant 0 : index
      %c0_63 = arith.constant 0 : index
      %107 = vector.load %arg8[%c0_62, %c0_63] : memref<256x256xbf16, #tpu.memory_space<vmem>>, vector<256x256xbf16>
      %cst_64 = arith.constant dense<0.000000e+00> : vector<16x256xf32>
      %108 = tpu.matmul %106, %107, %cst_64 {dimension_numbers = #tpu.dot_dimension_numbers<[1], [0], [0], [1], [0, 0, 1, 1], [], []>} : vector<16x256xbf16>, vector<256x256xbf16>, vector<16x256xf32> -> vector<16x256xf32>
      %c0_65 = arith.constant 0 : index
      %c0_66 = arith.constant 0 : index
      %109 = vector.load %arg9[%c0_65, %c0_66] : memref<1x256xf32, #tpu.memory_space<vmem>>, vector<1x256xf32>
      %110 = vector.broadcast %109 : vector<1x256xf32> to vector<16x256xf32>
      %111 = arith.addf %108, %110 : vector<16x256xf32>
      %cst_67 = arith.constant 0.0883883461 : f32
      %112 = vector.broadcast %cst_67 : f32 to vector<16x256xf32>
      %113 = arith.mulf %111, %112 : vector<16x256xf32>
      %114 = arith.truncf %113 : vector<16x256xf32> to vector<16x256xbf16>
      %c0_68 = arith.constant 0 : index
      %c0_69 = arith.constant 0 : index
      %115 = vector.load %arg13[%c0_68, %c0_69] : memref<16x256xbf16, #tpu.memory_space<vmem>>, vector<16x256xbf16>
      tpu.vector_store %arg13[%c0_68, %c0_69], %114 {strides = array<i32>} : memref<16x256xbf16, #tpu.memory_space<vmem>>, vector<16x256xbf16>,
      %cst_70 = arith.constant -1.000000e+30 : f32
      %116 = vector.broadcast %cst_70 : f32 to vector<2x16x1xf32>
      %c0_71 = arith.constant 0 : index
      %c0_72 = arith.constant 0 : index
      %c0_73 = arith.constant 0 : index
      %117 = vector.load %arg14[%c0_71, %c0_72, %c0_73] : memref<2x16x1xf32, #tpu.memory_space<vmem>>, vector<2x16x1xf32>
      tpu.vector_store %arg14[%c0_71, %c0_72, %c0_73], %116 {strides = array<i32>} : memref<2x16x1xf32, #tpu.memory_space<vmem>>, vector<2x16x1xf32>,
      %cst_74 = arith.constant 0.000000e+00 : f32
      %118 = vector.broadcast %cst_74 : f32 to vector<2x16x1xf32>
      %c0_75 = arith.constant 0 : index
      %c0_76 = arith.constant 0 : index
      %c0_77 = arith.constant 0 : index
      %119 = vector.load %arg15[%c0_75, %c0_76, %c0_77] : memref<2x16x1xf32, #tpu.memory_space<vmem>>, vector<2x16x1xf32>
      tpu.vector_store %arg15[%c0_75, %c0_76, %c0_77], %118 {strides = array<i32>} : memref<2x16x1xf32, #tpu.memory_space<vmem>>, vector<2x16x1xf32>,
      %cst_78 = arith.constant 0.000000e+00 : f32
      %120 = vector.broadcast %cst_78 : f32 to vector<16x256xf32>
      %c0_79 = arith.constant 0 : index
      %c0_80 = arith.constant 0 : index
      %121 = vector.load %arg16[%c0_79, %c0_80] : memref<16x256xf32, #tpu.memory_space<vmem>>, vector<16x256xf32>
      tpu.vector_store %arg16[%c0_79, %c0_80], %120 {strides = array<i32>} : memref<16x256xf32, #tpu.memory_space<vmem>>, vector<16x256xf32>,
    } else {
    }
    %c0 = arith.constant 0 : index
    %c0_1 = arith.constant 0 : index
    %c0_2 = arith.constant 0 : index
    %3 = vector.load %arg4[%c0, %c0_1, %c0_2] : memref<1x24x512xbf16, #tpu.memory_space<vmem>>, vector<1x24x512xbf16>
    %4 = vector.shape_cast %3 : vector<1x24x512xbf16> to vector<24x512xbf16>
    %c0_3 = arith.constant 0 : index
    %c0_4 = arith.constant 0 : index
    %c0_5 = arith.constant 0 : index
    %5 = vector.load %arg5[%c0_3, %c0_4, %c0_5] : memref<1x1x24xf32, #tpu.memory_space<vmem>>, vector<1x1x24xf32>
    %6 = vector.shape_cast %5 : vector<1x1x24xf32> to vector<1x24xf32>
    %c0_6 = arith.constant 0 : index
    %c0_7 = arith.constant 0 : index
    %7 = vector.load %arg13[%c0_6, %c0_7] : memref<16x256xbf16, #tpu.memory_space<vmem>>, vector<16x128xbf16>
    %8 = vector.extract_strided_slice %4 {offsets = [0, 0], sizes = [24, 128], strides = [1, 1]} : vector<24x512xbf16> to vector<24x128xbf16>
    %9 = vector.extract_strided_slice %4 {offsets = [0, 256], sizes = [24, 128], strides = [1, 1]} : vector<24x512xbf16> to vector<24x128xbf16>
    %cst = arith.constant dense<0.000000e+00> : vector<16x24xf32>
    %10 = tpu.matmul %7, %8, %cst {dimension_numbers = #tpu.dot_dimension_numbers<[1], [1], [0], [0], [0, 0, 1, 0], [], []>} : vector<16x128xbf16>, vector<24x128xbf16>, vector<16x24xf32> -> vector<16x24xf32>
    %11 = vector.broadcast %6 : vector<1x24xf32> to vector<16x24xf32>
    %12 = arith.addf %10, %11 : vector<16x24xf32>
    %c0_8 = arith.constant 0 : index
    %c0_9 = arith.constant 0 : index
    %c0_10 = arith.constant 0 : index
    %13 = vector.load %arg14[%c0_8, %c0_9, %c0_10] : memref<2x16x1xf32, #tpu.memory_space<vmem>>, vector<1x16x1xf32>
    %14 = vector.shape_cast %13 : vector<1x16x1xf32> to vector<16x1xf32>
    %cst_11 = arith.constant dense<0xFF800000> : vector<16xf32>
    %15 = vector.multi_reduction <maximumf>, %12, %cst_11 [1] : vector<16x24xf32> to vector<16xf32>
    %16 = vector.shape_cast %15 : vector<16xf32> to vector<16x1xf32>
    %17 = arith.maximumf %14, %16 : vector<16x1xf32>
    %18 = arith.subf %14, %17 : vector<16x1xf32>
    %19 = math.exp %18 : vector<16x1xf32>
    %20 = vector.broadcast %17 : vector<16x1xf32> to vector<16x24xf32>
    %21 = arith.subf %12, %20 : vector<16x24xf32>
    %22 = math.exp %21 : vector<16x24xf32>
    %c0_12 = arith.constant 0 : index
    %c0_13 = arith.constant 0 : index
    %c0_14 = arith.constant 0 : index
    %23 = vector.load %arg15[%c0_12, %c0_13, %c0_14] : memref<2x16x1xf32, #tpu.memory_space<vmem>>, vector<1x16x1xf32>
    %24 = vector.shape_cast %23 : vector<1x16x1xf32> to vector<16x1xf32>
    %25 = arith.mulf %19, %24 : vector<16x1xf32>
    %cst_15 = arith.constant dense<0.000000e+00> : vector<16xf32>
    %26 = vector.multi_reduction <add>, %22, %cst_15 [1] : vector<16x24xf32> to vector<16xf32>
    %27 = vector.shape_cast %26 : vector<16xf32> to vector<16x1xf32>
    %28 = arith.addf %25, %27 : vector<16x1xf32>
    %c0_16 = arith.constant 0 : index
    %c0_17 = arith.constant 0 : index
    %c0_18 = arith.constant 0 : index
    %29 = vector.load %arg15[%c0_16, %c0_17, %c0_18] : memref<2x16x1xf32, #tpu.memory_space<vmem>>, vector<1x16x1xf32>
    %30 = vector.shape_cast %29 : vector<1x16x1xf32> to vector<16x1xf32>
    %31 = vector.shape_cast %28 : vector<16x1xf32> to vector<1x16x1xf32>
    tpu.vector_store %arg15[%c0_16, %c0_17, %c0_18], %31 {strides = array<i32>} : memref<2x16x1xf32, #tpu.memory_space<vmem>>, vector<1x16x1xf32>,
    %c0_19 = arith.constant 0 : index
    %c0_20 = arith.constant 0 : index
    %32 = vector.load %arg16[%c0_19, %c0_20] : memref<16x256xf32, #tpu.memory_space<vmem>>, vector<16x128xf32>
    %33 = vector.broadcast %19 : vector<16x1xf32> to vector<16x128xf32>
    %34 = arith.mulf %33, %32 : vector<16x128xf32>
    %35 = arith.truncf %22 : vector<16x24xf32> to vector<16x24xbf16>
    %cst_21 = arith.constant dense<0.000000e+00> : vector<16x128xf32>
    %36 = tpu.matmul %35, %9, %cst_21 {dimension_numbers = #tpu.dot_dimension_numbers<[1], [0], [0], [1], [0, 0, 1, 1], [], []>} : vector<16x24xbf16>, vector<24x128xbf16>, vector<16x128xf32> -> vector<16x128xf32>
    %37 = arith.addf %34, %36 : vector<16x128xf32>
    %c0_22 = arith.constant 0 : index
    %c0_23 = arith.constant 0 : index
    %38 = vector.load %arg16[%c0_22, %c0_23] : memref<16x256xf32, #tpu.memory_space<vmem>>, vector<16x128xf32>
    tpu.vector_store %arg16[%c0_22, %c0_23], %37 {strides = array<i32>} : memref<16x256xf32, #tpu.memory_space<vmem>>, vector<16x128xf32>,
    %c0_24 = arith.constant 0 : index
    %c0_25 = arith.constant 0 : index
    %c0_26 = arith.constant 0 : index
    %39 = vector.load %arg14[%c0_24, %c0_25, %c0_26] : memref<2x16x1xf32, #tpu.memory_space<vmem>>, vector<1x16x1xf32>
    %40 = vector.shape_cast %39 : vector<1x16x1xf32> to vector<16x1xf32>
    %41 = vector.shape_cast %17 : vector<16x1xf32> to vector<1x16x1xf32>
    tpu.vector_store %arg14[%c0_24, %c0_25, %c0_26], %41 {strides = array<i32>} : memref<2x16x1xf32, #tpu.memory_space<vmem>>, vector<1x16x1xf32>,
    %c0_27 = arith.constant 0 : index
    %c128 = arith.constant 128 : index
    %42 = vector.load %arg13[%c0_27, %c128] : memref<16x256xbf16, #tpu.memory_space<vmem>>, vector<16x128xbf16>
    %43 = vector.extract_strided_slice %4 {offsets = [0, 128], sizes = [24, 128], strides = [1, 1]} : vector<24x512xbf16> to vector<24x128xbf16>
    %44 = vector.extract_strided_slice %4 {offsets = [0, 384], sizes = [24, 128], strides = [1, 1]} : vector<24x512xbf16> to vector<24x128xbf16>
    %cst_28 = arith.constant dense<0.000000e+00> : vector<16x24xf32>
    %45 = tpu.matmul %42, %43, %cst_28 {dimension_numbers = #tpu.dot_dimension_numbers<[1], [1], [0], [0], [0, 0, 1, 0], [], []>} : vector<16x128xbf16>, vector<24x128xbf16>, vector<16x24xf32> -> vector<16x24xf32>
    %46 = vector.broadcast %6 : vector<1x24xf32> to vector<16x24xf32>
    %47 = arith.addf %45, %46 : vector<16x24xf32>
    %c1 = arith.constant 1 : index
    %c0_29 = arith.constant 0 : index
    %c0_30 = arith.constant 0 : index
    %48 = vector.load %arg14[%c1, %c0_29, %c0_30] : memref<2x16x1xf32, #tpu.memory_space<vmem>>, vector<1x16x1xf32>
    %49 = vector.shape_cast %48 : vector<1x16x1xf32> to vector<16x1xf32>
    %cst_31 = arith.constant dense<0xFF800000> : vector<16xf32>
    %50 = vector.multi_reduction <maximumf>, %47, %cst_31 [1] : vector<16x24xf32> to vector<16xf32>
    %51 = vector.shape_cast %50 : vector<16xf32> to vector<16x1xf32>
    %52 = arith.maximumf %49, %51 : vector<16x1xf32>
    %53 = arith.subf %49, %52 : vector<16x1xf32>
    %54 = math.exp %53 : vector<16x1xf32>
    %55 = vector.broadcast %52 : vector<16x1xf32> to vector<16x24xf32>
    %56 = arith.subf %47, %55 : vector<16x24xf32>
    %57 = math.exp %56 : vector<16x24xf32>
    %c1_32 = arith.constant 1 : index
    %c0_33 = arith.constant 0 : index
    %c0_34 = arith.constant 0 : index
    %58 = vector.load %arg15[%c1_32, %c0_33, %c0_34] : memref<2x16x1xf32, #tpu.memory_space<vmem>>, vector<1x16x1xf32>
    %59 = vector.shape_cast %58 : vector<1x16x1xf32> to vector<16x1xf32>
    %60 = arith.mulf %54, %59 : vector<16x1xf32>
    %cst_35 = arith.constant dense<0.000000e+00> : vector<16xf32>
    %61 = vector.multi_reduction <add>, %57, %cst_35 [1] : vector<16x24xf32> to vector<16xf32>
    %62 = vector.shape_cast %61 : vector<16xf32> to vector<16x1xf32>
    %63 = arith.addf %60, %62 : vector<16x1xf32>
    %c1_36 = arith.constant 1 : index
    %c0_37 = arith.constant 0 : index
    %c0_38 = arith.constant 0 : index
    %64 = vector.load %arg15[%c1_36, %c0_37, %c0_38] : memref<2x16x1xf32, #tpu.memory_space<vmem>>, vector<1x16x1xf32>
    %65 = vector.shape_cast %64 : vector<1x16x1xf32> to vector<16x1xf32>
    %66 = vector.shape_cast %63 : vector<16x1xf32> to vector<1x16x1xf32>
    tpu.vector_store %arg15[%c1_36, %c0_37, %c0_38], %66 {strides = array<i32>} : memref<2x16x1xf32, #tpu.memory_space<vmem>>, vector<1x16x1xf32>,
    %c0_39 = arith.constant 0 : index
    %c128_40 = arith.constant 128 : index
    %67 = vector.load %arg16[%c0_39, %c128_40] : memref<16x256xf32, #tpu.memory_space<vmem>>, vector<16x128xf32>
    %68 = vector.broadcast %54 : vector<16x1xf32> to vector<16x128xf32>
    %69 = arith.mulf %68, %67 : vector<16x128xf32>
    %70 = arith.truncf %57 : vector<16x24xf32> to vector<16x24xbf16>
    %cst_41 = arith.constant dense<0.000000e+00> : vector<16x128xf32>
    %71 = tpu.matmul %70, %44, %cst_41 {dimension_numbers = #tpu.dot_dimension_numbers<[1], [0], [0], [1], [0, 0, 1, 1], [], []>} : vector<16x24xbf16>, vector<24x128xbf16>, vector<16x128xf32> -> vector<16x128xf32>
    %72 = arith.addf %69, %71 : vector<16x128xf32>
    %c0_42 = arith.constant 0 : index
    %c128_43 = arith.constant 128 : index
    %73 = vector.load %arg16[%c0_42, %c128_43] : memref<16x256xf32, #tpu.memory_space<vmem>>, vector<16x128xf32>
    tpu.vector_store %arg16[%c0_42, %c128_43], %72 {strides = array<i32>} : memref<16x256xf32, #tpu.memory_space<vmem>>, vector<16x128xf32>,
    %c1_44 = arith.constant 1 : index
    %c0_45 = arith.constant 0 : index
    %c0_46 = arith.constant 0 : index
    %74 = vector.load %arg14[%c1_44, %c0_45, %c0_46] : memref<2x16x1xf32, #tpu.memory_space<vmem>>, vector<1x16x1xf32>
    %75 = vector.shape_cast %74 : vector<1x16x1xf32> to vector<16x1xf32>
    %76 = vector.shape_cast %52 : vector<16x1xf32> to vector<1x16x1xf32>
    tpu.vector_store %arg14[%c1_44, %c0_45, %c0_46], %76 {strides = array<i32>} : memref<2x16x1xf32, #tpu.memory_space<vmem>>, vector<1x16x1xf32>,
    %c0_i32_47 = arith.constant 0 : i32
    %77 = arith.cmpi eq, %arg2, %c0_i32_47 : i32
    %78 = arith.extui %77 : i1 to i32
    %c0_i32_48 = arith.constant 0 : i32
    %79 = arith.cmpi ne, %78, %c0_i32_48 : i32
    scf.if %79 {
      %c0_49 = arith.constant 0 : index
      %c0_50 = arith.constant 0 : index
      %80 = vector.load %arg16[%c0_49, %c0_50] : memref<16x256xf32, #tpu.memory_space<vmem>>, vector<16x128xf32>
      %c0_51 = arith.constant 0 : index
      %c0_52 = arith.constant 0 : index
      %c0_53 = arith.constant 0 : index
      %81 = vector.load %arg15[%c0_51, %c0_52, %c0_53] : memref<2x16x1xf32, #tpu.memory_space<vmem>>, vector<1x16x1xf32>
      %82 = vector.shape_cast %81 : vector<1x16x1xf32> to vector<16x1xf32>
      %83 = tpu.reciprocal %82 {approx = true} : vector<16x1xf32> -> vector<16x1xf32>
      %84 = vector.broadcast %83 : vector<16x1xf32> to vector<16x128xf32>
      %85 = arith.mulf %80, %84 : vector<16x128xf32>
      %c0_54 = arith.constant 0 : index
      %c128_55 = arith.constant 128 : index
      %86 = vector.load %arg16[%c0_54, %c128_55] : memref<16x256xf32, #tpu.memory_space<vmem>>, vector<16x128xf32>
      %c1_56 = arith.constant 1 : index
      %c0_57 = arith.constant 0 : index
      %c0_58 = arith.constant 0 : index
      %87 = vector.load %arg15[%c1_56, %c0_57, %c0_58] : memref<2x16x1xf32, #tpu.memory_space<vmem>>, vector<1x16x1xf32>
      %88 = vector.shape_cast %87 : vector<1x16x1xf32> to vector<16x1xf32>
      %89 = tpu.reciprocal %88 {approx = true} : vector<16x1xf32> -> vector<16x1xf32>
      %90 = vector.broadcast %89 : vector<16x1xf32> to vector<16x128xf32>
      %91 = arith.mulf %86, %90 : vector<16x128xf32>
      %92 = tpu.concatenate %85, %91 in 1 : vector<16x128xf32>, vector<16x128xf32> -> vector<16x256xf32>
      %93 = arith.truncf %92 : vector<16x256xf32> to vector<16x256xbf16>
      %c0_59 = arith.constant 0 : index
      %c0_60 = arith.constant 0 : index
      %94 = vector.load %arg10[%c0_59, %c0_60] : memref<256x256xbf16, #tpu.memory_space<vmem>>, vector<256x256xbf16>
      %cst_61 = arith.constant dense<0.000000e+00> : vector<16x256xf32>
      %95 = tpu.matmul %93, %94, %cst_61 {dimension_numbers = #tpu.dot_dimension_numbers<[1], [0], [0], [1], [0, 0, 1, 1], [], []>} : vector<16x256xbf16>, vector<256x256xbf16>, vector<16x256xf32> -> vector<16x256xf32>
      %c0_62 = arith.constant 0 : index
      %c0_63 = arith.constant 0 : index
      %96 = vector.load %arg11[%c0_62, %c0_63] : memref<1x256xf32, #tpu.memory_space<vmem>>, vector<1x256xf32>
      %97 = vector.broadcast %96 : vector<1x256xf32> to vector<16x256xf32>
      %98 = arith.addf %95, %97 : vector<16x256xf32>
      %c0_64 = arith.constant 0 : index
      %c0_65 = arith.constant 0 : index
      %c0_66 = arith.constant 0 : index
      %99 = vector.load %arg3[%c0_64, %c0_65, %c0_66] : memref<1x16x256xf32, #tpu.memory_space<vmem>>, vector<1x16x256xf32>
      %100 = vector.shape_cast %99 : vector<1x16x256xf32> to vector<16x256xf32>
      %101 = arith.addf %100, %98 : vector<16x256xf32>
      %c0_67 = arith.constant 0 : index
      %c0_68 = arith.constant 0 : index
      %c0_69 = arith.constant 0 : index
      %102 = vector.load %arg12[%c0_67, %c0_68, %c0_69] : memref<1x16x256xf32, #tpu.memory_space<vmem>>, vector<1x16x256xf32>
      %103 = vector.shape_cast %102 : vector<1x16x256xf32> to vector<16x256xf32>
      %104 = vector.shape_cast %101 : vector<16x256xf32> to vector<1x16x256xf32>
      tpu.vector_store %arg12[%c0_67, %c0_68, %c0_69], %104 {strides = array<i32>} : memref<1x16x256xf32, #tpu.memory_space<vmem>>, vector<1x16x256xf32>,
    } else {
    }
    return
  }
  func.func @transform_0(%arg0: i32, %arg1: i32, %arg2: i32) -> (i32, i32, i32) {
    %c0_i32 = arith.constant 0 : i32
    %c0_i32_0 = arith.constant 0 : i32
    return %arg0, %arg1, %c0_i32 : i32, i32, i32
  }
  func.func @transform_1(%arg0: i32, %arg1: i32, %arg2: i32) -> (i32, i32, i32) {
    %c0_i32 = arith.constant 0 : i32
    %c0_i32_0 = arith.constant 0 : i32
    return %arg0, %arg2, %c0_i32 : i32, i32, i32
  }
  func.func @transform_2(%arg0: i32, %arg1: i32, %arg2: i32) -> (i32, i32, i32) {
    %c0_i32 = arith.constant 0 : i32
    %c0_i32_0 = arith.constant 0 : i32
    return %arg0, %c0_i32, %arg2 : i32, i32, i32
  }
  func.func @transform_3(%arg0: i32, %arg1: i32, %arg2: i32) -> (i32, i32) {
    %c0_i32 = arith.constant 0 : i32
    %c0_i32_0 = arith.constant 0 : i32
    %c0_i32_1 = arith.constant 0 : i32
    return %c0_i32, %c0_i32_0 : i32, i32
  }
  func.func @transform_4(%arg0: i32, %arg1: i32, %arg2: i32) -> (i32, i32) {
    %c0_i32 = arith.constant 0 : i32
    %c0_i32_0 = arith.constant 0 : i32
    %c0_i32_1 = arith.constant 0 : i32
    return %c0_i32, %c0_i32_0 : i32, i32
  }
  func.func @transform_5(%arg0: i32, %arg1: i32, %arg2: i32) -> (i32, i32) {
    %c0_i32 = arith.constant 0 : i32
    %c0_i32_0 = arith.constant 0 : i32
    %c0_i32_1 = arith.constant 0 : i32
    return %c0_i32, %c0_i32_0 : i32, i32
  }
  func.func @transform_6(%arg0: i32, %arg1: i32, %arg2: i32) -> (i32, i32) {
    %c0_i32 = arith.constant 0 : i32
    %c0_i32_0 = arith.constant 0 : i32
    %c0_i32_1 = arith.constant 0 : i32
    return %c0_i32, %c0_i32_0 : i32, i32
  }
  func.func @transform_7(%arg0: i32, %arg1: i32, %arg2: i32) -> (i32, i32) {
    %c0_i32 = arith.constant 0 : i32
    %c0_i32_0 = arith.constant 0 : i32
    %c0_i32_1 = arith.constant 0 : i32
    return %c0_i32, %c0_i32_0 : i32, i32
  }
  func.func @transform_8(%arg0: i32, %arg1: i32, %arg2: i32) -> (i32, i32) {
    %c0_i32 = arith.constant 0 : i32
    %c0_i32_0 = arith.constant 0 : i32
    %c0_i32_1 = arith.constant 0 : i32
    return %c0_i32, %c0_i32_0 : i32, i32
  }
  func.func @transform_9(%arg0: i32, %arg1: i32, %arg2: i32) -> (i32, i32, i32) {
    %c0_i32 = arith.constant 0 : i32
    %c0_i32_0 = arith.constant 0 : i32
    return %arg0, %arg1, %c0_i32 : i32, i32, i32
  }
}

module attributes {stable_mosaic.version = 11 : i64} {
  func.func @_ffn_sublayer_kernel(%arg0: i32, %arg1: memref<16x256xf32, #tpu.memory_space<vmem>>, %arg2: memref<1x256xf32, #tpu.memory_space<vmem>>, %arg3: memref<1x256xf32, #tpu.memory_space<vmem>>, %arg4: memref<256x512xbf16, #tpu.memory_space<vmem>>, %arg5: memref<1x512xf32, #tpu.memory_space<vmem>>, %arg6: memref<512x256xbf16, #tpu.memory_space<vmem>>, %arg7: memref<1x256xf32, #tpu.memory_space<vmem>>, %arg8: memref<1x256xf32, #tpu.memory_space<vmem>>, %arg9: memref<1x256xf32, #tpu.memory_space<vmem>>, %arg10: memref<16x256xf32, #tpu.memory_space<vmem>>) attributes {dimension_semantics = [#tpu.dimension_semantics<parallel>], iteration_bounds = array<i64: 2>, scalar_prefetch = 0 : i64, scratch_operands = 0 : i64, tpu.core_type = #tpu.core_type<tc>, window_params = [{transform_indices = @transform_0, window_bounds = array<i64: 16, 256>}, {pipeline_mode = #tpu.pipeline_mode<synchronous>, transform_indices = @transform_1, window_bounds = array<i64: 1, 256>}, {pipeline_mode = #tpu.pipeline_mode<synchronous>, transform_indices = @transform_2, window_bounds = array<i64: 1, 256>}, {pipeline_mode = #tpu.pipeline_mode<synchronous>, transform_indices = @transform_3, window_bounds = array<i64: 256, 512>}, {pipeline_mode = #tpu.pipeline_mode<synchronous>, transform_indices = @transform_4, window_bounds = array<i64: 1, 512>}, {pipeline_mode = #tpu.pipeline_mode<synchronous>, transform_indices = @transform_5, window_bounds = array<i64: 512, 256>}, {pipeline_mode = #tpu.pipeline_mode<synchronous>, transform_indices = @transform_6, window_bounds = array<i64: 1, 256>}, {pipeline_mode = #tpu.pipeline_mode<synchronous>, transform_indices = @transform_7, window_bounds = array<i64: 1, 256>}, {pipeline_mode = #tpu.pipeline_mode<synchronous>, transform_indices = @transform_8, window_bounds = array<i64: 1, 256>}, {transform_indices = @transform_9, window_bounds = array<i64: 16, 256>}]} {
    %c0 = arith.constant 0 : index
    %c0_0 = arith.constant 0 : index
    %0 = vector.load %arg1[%c0, %c0_0] : memref<16x256xf32, #tpu.memory_space<vmem>>, vector<16x256xf32>
    %c0_1 = arith.constant 0 : index
    %c0_2 = arith.constant 0 : index
    %1 = vector.load %arg2[%c0_1, %c0_2] : memref<1x256xf32, #tpu.memory_space<vmem>>, vector<1x256xf32>
    %c0_3 = arith.constant 0 : index
    %c0_4 = arith.constant 0 : index
    %2 = vector.load %arg3[%c0_3, %c0_4] : memref<1x256xf32, #tpu.memory_space<vmem>>, vector<1x256xf32>
    %cst = arith.constant dense<0.000000e+00> : vector<16xf32>
    %3 = vector.multi_reduction <add>, %0, %cst [1] : vector<16x256xf32> to vector<16xf32>
    %4 = vector.shape_cast %3 : vector<16xf32> to vector<16x1xf32>
    %cst_5 = arith.constant 2.560000e+02 : f32
    %5 = vector.broadcast %cst_5 : f32 to vector<16x1xf32>
    %6 = arith.divf %4, %5 : vector<16x1xf32>
    %7 = vector.broadcast %6 : vector<16x1xf32> to vector<16x256xf32>
    %8 = arith.subf %0, %7 : vector<16x256xf32>
    %9 = arith.mulf %8, %8 : vector<16x256xf32>
    %cst_6 = arith.constant dense<0.000000e+00> : vector<16xf32>
    %10 = vector.multi_reduction <add>, %9, %cst_6 [1] : vector<16x256xf32> to vector<16xf32>
    %11 = vector.shape_cast %10 : vector<16xf32> to vector<16x1xf32>
    %cst_7 = arith.constant 0.00392156886 : f32
    %12 = vector.broadcast %cst_7 : f32 to vector<16x1xf32>
    %13 = arith.mulf %11, %12 : vector<16x1xf32>
    %14 = math.sqrt %13 : vector<16x1xf32>
    %cst_8 = arith.constant 9.99999997E-7 : f32
    %15 = vector.broadcast %cst_8 : f32 to vector<16x1xf32>
    %16 = arith.addf %14, %15 : vector<16x1xf32>
    %cst_9 = arith.constant 1.000000e+00 : f32
    %17 = vector.broadcast %cst_9 : f32 to vector<16x1xf32>
    %18 = arith.divf %17, %16 : vector<16x1xf32>
    %19 = vector.broadcast %18 : vector<16x1xf32> to vector<16x256xf32>
    %20 = arith.mulf %8, %19 : vector<16x256xf32>
    %21 = vector.broadcast %1 : vector<1x256xf32> to vector<16x256xf32>
    %22 = arith.mulf %21, %20 : vector<16x256xf32>
    %23 = vector.broadcast %2 : vector<1x256xf32> to vector<16x256xf32>
    %24 = arith.addf %22, %23 : vector<16x256xf32>
    %25 = arith.truncf %24 : vector<16x256xf32> to vector<16x256xbf16>
    %c0_10 = arith.constant 0 : index
    %c0_11 = arith.constant 0 : index
    %26 = vector.load %arg4[%c0_10, %c0_11] : memref<256x512xbf16, #tpu.memory_space<vmem>>, vector<256x512xbf16>
    %cst_12 = arith.constant dense<0.000000e+00> : vector<16x512xf32>
    %27 = tpu.matmul %25, %26, %cst_12 {dimension_numbers = #tpu.dot_dimension_numbers<[1], [0], [0], [1], [0, 0, 1, 1], [], []>} : vector<16x256xbf16>, vector<256x512xbf16>, vector<16x512xf32> -> vector<16x512xf32>
    %c0_13 = arith.constant 0 : index
    %c0_14 = arith.constant 0 : index
    %28 = vector.load %arg5[%c0_13, %c0_14] : memref<1x512xf32, #tpu.memory_space<vmem>>, vector<1x512xf32>
    %29 = vector.broadcast %28 : vector<1x512xf32> to vector<16x512xf32>
    %30 = arith.addf %27, %29 : vector<16x512xf32>
    %cst_15 = arith.constant 0.000000e+00 : f32
    %31 = vector.broadcast %cst_15 : f32 to vector<16x512xf32>
    %32 = arith.maximumf %30, %31 : vector<16x512xf32>
    %33 = arith.truncf %32 : vector<16x512xf32> to vector<16x512xbf16>
    %c0_16 = arith.constant 0 : index
    %c0_17 = arith.constant 0 : index
    %34 = vector.load %arg6[%c0_16, %c0_17] : memref<512x256xbf16, #tpu.memory_space<vmem>>, vector<512x256xbf16>
    %cst_18 = arith.constant dense<0.000000e+00> : vector<16x256xf32>
    %35 = tpu.matmul %33, %34, %cst_18 {dimension_numbers = #tpu.dot_dimension_numbers<[1], [0], [0], [1], [0, 0, 1, 1], [], []>} : vector<16x512xbf16>, vector<512x256xbf16>, vector<16x256xf32> -> vector<16x256xf32>
    %c0_19 = arith.constant 0 : index
    %c0_20 = arith.constant 0 : index
    %36 = vector.load %arg7[%c0_19, %c0_20] : memref<1x256xf32, #tpu.memory_space<vmem>>, vector<1x256xf32>
    %37 = vector.broadcast %36 : vector<1x256xf32> to vector<16x256xf32>
    %38 = arith.addf %35, %37 : vector<16x256xf32>
    %39 = arith.addf %0, %38 : vector<16x256xf32>
    %c0_21 = arith.constant 0 : index
    %c0_22 = arith.constant 0 : index
    %40 = vector.load %arg10[%c0_21, %c0_22] : memref<16x256xf32, #tpu.memory_space<vmem>>, vector<16x256xf32>
    tpu.vector_store %arg10[%c0_21, %c0_22], %39 {strides = array<i32>} : memref<16x256xf32, #tpu.memory_space<vmem>>, vector<16x256xf32>,
    return
  }
  func.func @transform_0(%arg0: i32) -> (i32, i32) {
    %c0_i32 = arith.constant 0 : i32
    %c0_i32_0 = arith.constant 0 : i32
    return %arg0, %c0_i32 : i32, i32
  }
  func.func @transform_1(%arg0: i32) -> (i32, i32) {
    %c0_i32 = arith.constant 0 : i32
    %c0_i32_0 = arith.constant 0 : i32
    %c0_i32_1 = arith.constant 0 : i32
    return %c0_i32, %c0_i32_0 : i32, i32
  }
  func.func @transform_2(%arg0: i32) -> (i32, i32) {
    %c0_i32 = arith.constant 0 : i32
    %c0_i32_0 = arith.constant 0 : i32
    %c0_i32_1 = arith.constant 0 : i32
    return %c0_i32, %c0_i32_0 : i32, i32
  }
  func.func @transform_3(%arg0: i32) -> (i32, i32) {
    %c0_i32 = arith.constant 0 : i32
    %c0_i32_0 = arith.constant 0 : i32
    %c0_i32_1 = arith.constant 0 : i32
    return %c0_i32, %c0_i32_0 : i32, i32
  }
  func.func @transform_4(%arg0: i32) -> (i32, i32) {
    %c0_i32 = arith.constant 0 : i32
    %c0_i32_0 = arith.constant 0 : i32
    %c0_i32_1 = arith.constant 0 : i32
    return %c0_i32, %c0_i32_0 : i32, i32
  }
  func.func @transform_5(%arg0: i32) -> (i32, i32) {
    %c0_i32 = arith.constant 0 : i32
    %c0_i32_0 = arith.constant 0 : i32
    %c0_i32_1 = arith.constant 0 : i32
    return %c0_i32, %c0_i32_0 : i32, i32
  }
  func.func @transform_6(%arg0: i32) -> (i32, i32) {
    %c0_i32 = arith.constant 0 : i32
    %c0_i32_0 = arith.constant 0 : i32
    %c0_i32_1 = arith.constant 0 : i32
    return %c0_i32, %c0_i32_0 : i32, i32
  }
  func.func @transform_7(%arg0: i32) -> (i32, i32) {
    %c0_i32 = arith.constant 0 : i32
    %c0_i32_0 = arith.constant 0 : i32
    %c0_i32_1 = arith.constant 0 : i32
    return %c0_i32, %c0_i32_0 : i32, i32
  }
  func.func @transform_8(%arg0: i32) -> (i32, i32) {
    %c0_i32 = arith.constant 0 : i32
    %c0_i32_0 = arith.constant 0 : i32
    %c0_i32_1 = arith.constant 0 : i32
    return %c0_i32, %c0_i32_0 : i32, i32
  }
  func.func @transform_9(%arg0: i32) -> (i32, i32) {
    %c0_i32 = arith.constant 0 : i32
    %c0_i32_0 = arith.constant 0 : i32
    return %arg0, %c0_i32 : i32, i32
  }
}

module attributes {stable_mosaic.version = 11 : i64} {
  func.func @_ffn_sublayer_kernel(%arg0: i32, %arg1: memref<16x256xf32, #tpu.memory_space<vmem>>, %arg2: memref<1x256xf32, #tpu.memory_space<vmem>>, %arg3: memref<1x256xf32, #tpu.memory_space<vmem>>, %arg4: memref<256x512xbf16, #tpu.memory_space<vmem>>, %arg5: memref<1x512xf32, #tpu.memory_space<vmem>>, %arg6: memref<512x256xbf16, #tpu.memory_space<vmem>>, %arg7: memref<1x256xf32, #tpu.memory_space<vmem>>, %arg8: memref<1x256xf32, #tpu.memory_space<vmem>>, %arg9: memref<1x256xf32, #tpu.memory_space<vmem>>, %arg10: memref<16x256xf32, #tpu.memory_space<vmem>>) attributes {dimension_semantics = [#tpu.dimension_semantics<parallel>], iteration_bounds = array<i64: 2>, scalar_prefetch = 0 : i64, scratch_operands = 0 : i64, tpu.core_type = #tpu.core_type<tc>, window_params = [{transform_indices = @transform_0, window_bounds = array<i64: 16, 256>}, {pipeline_mode = #tpu.pipeline_mode<synchronous>, transform_indices = @transform_1, window_bounds = array<i64: 1, 256>}, {pipeline_mode = #tpu.pipeline_mode<synchronous>, transform_indices = @transform_2, window_bounds = array<i64: 1, 256>}, {pipeline_mode = #tpu.pipeline_mode<synchronous>, transform_indices = @transform_3, window_bounds = array<i64: 256, 512>}, {pipeline_mode = #tpu.pipeline_mode<synchronous>, transform_indices = @transform_4, window_bounds = array<i64: 1, 512>}, {pipeline_mode = #tpu.pipeline_mode<synchronous>, transform_indices = @transform_5, window_bounds = array<i64: 512, 256>}, {pipeline_mode = #tpu.pipeline_mode<synchronous>, transform_indices = @transform_6, window_bounds = array<i64: 1, 256>}, {pipeline_mode = #tpu.pipeline_mode<synchronous>, transform_indices = @transform_7, window_bounds = array<i64: 1, 256>}, {pipeline_mode = #tpu.pipeline_mode<synchronous>, transform_indices = @transform_8, window_bounds = array<i64: 1, 256>}, {transform_indices = @transform_9, window_bounds = array<i64: 16, 256>}]} {
    %c0 = arith.constant 0 : index
    %c0_0 = arith.constant 0 : index
    %0 = vector.load %arg1[%c0, %c0_0] : memref<16x256xf32, #tpu.memory_space<vmem>>, vector<16x256xf32>
    %c0_1 = arith.constant 0 : index
    %c0_2 = arith.constant 0 : index
    %1 = vector.load %arg2[%c0_1, %c0_2] : memref<1x256xf32, #tpu.memory_space<vmem>>, vector<1x256xf32>
    %c0_3 = arith.constant 0 : index
    %c0_4 = arith.constant 0 : index
    %2 = vector.load %arg3[%c0_3, %c0_4] : memref<1x256xf32, #tpu.memory_space<vmem>>, vector<1x256xf32>
    %cst = arith.constant dense<0.000000e+00> : vector<16xf32>
    %3 = vector.multi_reduction <add>, %0, %cst [1] : vector<16x256xf32> to vector<16xf32>
    %4 = vector.shape_cast %3 : vector<16xf32> to vector<16x1xf32>
    %cst_5 = arith.constant 2.560000e+02 : f32
    %5 = vector.broadcast %cst_5 : f32 to vector<16x1xf32>
    %6 = arith.divf %4, %5 : vector<16x1xf32>
    %7 = vector.broadcast %6 : vector<16x1xf32> to vector<16x256xf32>
    %8 = arith.subf %0, %7 : vector<16x256xf32>
    %9 = arith.mulf %8, %8 : vector<16x256xf32>
    %cst_6 = arith.constant dense<0.000000e+00> : vector<16xf32>
    %10 = vector.multi_reduction <add>, %9, %cst_6 [1] : vector<16x256xf32> to vector<16xf32>
    %11 = vector.shape_cast %10 : vector<16xf32> to vector<16x1xf32>
    %cst_7 = arith.constant 0.00392156886 : f32
    %12 = vector.broadcast %cst_7 : f32 to vector<16x1xf32>
    %13 = arith.mulf %11, %12 : vector<16x1xf32>
    %14 = math.sqrt %13 : vector<16x1xf32>
    %cst_8 = arith.constant 9.99999997E-7 : f32
    %15 = vector.broadcast %cst_8 : f32 to vector<16x1xf32>
    %16 = arith.addf %14, %15 : vector<16x1xf32>
    %cst_9 = arith.constant 1.000000e+00 : f32
    %17 = vector.broadcast %cst_9 : f32 to vector<16x1xf32>
    %18 = arith.divf %17, %16 : vector<16x1xf32>
    %19 = vector.broadcast %18 : vector<16x1xf32> to vector<16x256xf32>
    %20 = arith.mulf %8, %19 : vector<16x256xf32>
    %21 = vector.broadcast %1 : vector<1x256xf32> to vector<16x256xf32>
    %22 = arith.mulf %21, %20 : vector<16x256xf32>
    %23 = vector.broadcast %2 : vector<1x256xf32> to vector<16x256xf32>
    %24 = arith.addf %22, %23 : vector<16x256xf32>
    %25 = arith.truncf %24 : vector<16x256xf32> to vector<16x256xbf16>
    %c0_10 = arith.constant 0 : index
    %c0_11 = arith.constant 0 : index
    %26 = vector.load %arg4[%c0_10, %c0_11] : memref<256x512xbf16, #tpu.memory_space<vmem>>, vector<256x512xbf16>
    %cst_12 = arith.constant dense<0.000000e+00> : vector<16x512xf32>
    %27 = tpu.matmul %25, %26, %cst_12 {dimension_numbers = #tpu.dot_dimension_numbers<[1], [0], [0], [1], [0, 0, 1, 1], [], []>} : vector<16x256xbf16>, vector<256x512xbf16>, vector<16x512xf32> -> vector<16x512xf32>
    %c0_13 = arith.constant 0 : index
    %c0_14 = arith.constant 0 : index
    %28 = vector.load %arg5[%c0_13, %c0_14] : memref<1x512xf32, #tpu.memory_space<vmem>>, vector<1x512xf32>
    %29 = vector.broadcast %28 : vector<1x512xf32> to vector<16x512xf32>
    %30 = arith.addf %27, %29 : vector<16x512xf32>
    %cst_15 = arith.constant 0.000000e+00 : f32
    %31 = vector.broadcast %cst_15 : f32 to vector<16x512xf32>
    %32 = arith.maximumf %30, %31 : vector<16x512xf32>
    %33 = arith.truncf %32 : vector<16x512xf32> to vector<16x512xbf16>
    %c0_16 = arith.constant 0 : index
    %c0_17 = arith.constant 0 : index
    %34 = vector.load %arg6[%c0_16, %c0_17] : memref<512x256xbf16, #tpu.memory_space<vmem>>, vector<512x256xbf16>
    %cst_18 = arith.constant dense<0.000000e+00> : vector<16x256xf32>
    %35 = tpu.matmul %33, %34, %cst_18 {dimension_numbers = #tpu.dot_dimension_numbers<[1], [0], [0], [1], [0, 0, 1, 1], [], []>} : vector<16x512xbf16>, vector<512x256xbf16>, vector<16x256xf32> -> vector<16x256xf32>
    %c0_19 = arith.constant 0 : index
    %c0_20 = arith.constant 0 : index
    %36 = vector.load %arg7[%c0_19, %c0_20] : memref<1x256xf32, #tpu.memory_space<vmem>>, vector<1x256xf32>
    %37 = vector.broadcast %36 : vector<1x256xf32> to vector<16x256xf32>
    %38 = arith.addf %35, %37 : vector<16x256xf32>
    %39 = arith.addf %0, %38 : vector<16x256xf32>
    %c0_21 = arith.constant 0 : index
    %c0_22 = arith.constant 0 : index
    %40 = vector.load %arg8[%c0_21, %c0_22] : memref<1x256xf32, #tpu.memory_space<vmem>>, vector<1x256xf32>
    %c0_23 = arith.constant 0 : index
    %c0_24 = arith.constant 0 : index
    %41 = vector.load %arg9[%c0_23, %c0_24] : memref<1x256xf32, #tpu.memory_space<vmem>>, vector<1x256xf32>
    %cst_25 = arith.constant dense<0.000000e+00> : vector<16xf32>
    %42 = vector.multi_reduction <add>, %39, %cst_25 [1] : vector<16x256xf32> to vector<16xf32>
    %43 = vector.shape_cast %42 : vector<16xf32> to vector<16x1xf32>
    %cst_26 = arith.constant 2.560000e+02 : f32
    %44 = vector.broadcast %cst_26 : f32 to vector<16x1xf32>
    %45 = arith.divf %43, %44 : vector<16x1xf32>
    %46 = vector.broadcast %45 : vector<16x1xf32> to vector<16x256xf32>
    %47 = arith.subf %39, %46 : vector<16x256xf32>
    %48 = arith.mulf %47, %47 : vector<16x256xf32>
    %cst_27 = arith.constant dense<0.000000e+00> : vector<16xf32>
    %49 = vector.multi_reduction <add>, %48, %cst_27 [1] : vector<16x256xf32> to vector<16xf32>
    %50 = vector.shape_cast %49 : vector<16xf32> to vector<16x1xf32>
    %cst_28 = arith.constant 0.00392156886 : f32
    %51 = vector.broadcast %cst_28 : f32 to vector<16x1xf32>
    %52 = arith.mulf %50, %51 : vector<16x1xf32>
    %53 = math.sqrt %52 : vector<16x1xf32>
    %cst_29 = arith.constant 9.99999997E-7 : f32
    %54 = vector.broadcast %cst_29 : f32 to vector<16x1xf32>
    %55 = arith.addf %53, %54 : vector<16x1xf32>
    %cst_30 = arith.constant 1.000000e+00 : f32
    %56 = vector.broadcast %cst_30 : f32 to vector<16x1xf32>
    %57 = arith.divf %56, %55 : vector<16x1xf32>
    %58 = vector.broadcast %57 : vector<16x1xf32> to vector<16x256xf32>
    %59 = arith.mulf %47, %58 : vector<16x256xf32>
    %60 = vector.broadcast %40 : vector<1x256xf32> to vector<16x256xf32>
    %61 = arith.mulf %60, %59 : vector<16x256xf32>
    %62 = vector.broadcast %41 : vector<1x256xf32> to vector<16x256xf32>
    %63 = arith.addf %61, %62 : vector<16x256xf32>
    %c0_31 = arith.constant 0 : index
    %c0_32 = arith.constant 0 : index
    %64 = vector.load %arg10[%c0_31, %c0_32] : memref<16x256xf32, #tpu.memory_space<vmem>>, vector<16x256xf32>
    tpu.vector_store %arg10[%c0_31, %c0_32], %63 {strides = array<i32>} : memref<16x256xf32, #tpu.memory_space<vmem>>, vector<16x256xf32>,
    return
  }
  func.func @transform_0(%arg0: i32) -> (i32, i32) {
    %c0_i32 = arith.constant 0 : i32
    %c0_i32_0 = arith.constant 0 : i32
    return %arg0, %c0_i32 : i32, i32
  }
  func.func @transform_1(%arg0: i32) -> (i32, i32) {
    %c0_i32 = arith.constant 0 : i32
    %c0_i32_0 = arith.constant 0 : i32
    %c0_i32_1 = arith.constant 0 : i32
    return %c0_i32, %c0_i32_0 : i32, i32
  }
  func.func @transform_2(%arg0: i32) -> (i32, i32) {
    %c0_i32 = arith.constant 0 : i32
    %c0_i32_0 = arith.constant 0 : i32
    %c0_i32_1 = arith.constant 0 : i32
    return %c0_i32, %c0_i32_0 : i32, i32
  }
  func.func @transform_3(%arg0: i32) -> (i32, i32) {
    %c0_i32 = arith.constant 0 : i32
    %c0_i32_0 = arith.constant 0 : i32
    %c0_i32_1 = arith.constant 0 : i32
    return %c0_i32, %c0_i32_0 : i32, i32
  }
  func.func @transform_4(%arg0: i32) -> (i32, i32) {
    %c0_i32 = arith.constant 0 : i32
    %c0_i32_0 = arith.constant 0 : i32
    %c0_i32_1 = arith.constant 0 : i32
    return %c0_i32, %c0_i32_0 : i32, i32
  }
  func.func @transform_5(%arg0: i32) -> (i32, i32) {
    %c0_i32 = arith.constant 0 : i32
    %c0_i32_0 = arith.constant 0 : i32
    %c0_i32_1 = arith.constant 0 : i32
    return %c0_i32, %c0_i32_0 : i32, i32
  }
  func.func @transform_6(%arg0: i32) -> (i32, i32) {
    %c0_i32 = arith.constant 0 : i32
    %c0_i32_0 = arith.constant 0 : i32
    %c0_i32_1 = arith.constant 0 : i32
    return %c0_i32, %c0_i32_0 : i32, i32
  }
  func.func @transform_7(%arg0: i32) -> (i32, i32) {
    %c0_i32 = arith.constant 0 : i32
    %c0_i32_0 = arith.constant 0 : i32
    %c0_i32_1 = arith.constant 0 : i32
    return %c0_i32, %c0_i32_0 : i32, i32
  }
  func.func @transform_8(%arg0: i32) -> (i32, i32) {
    %c0_i32 = arith.constant 0 : i32
    %c0_i32_0 = arith.constant 0 : i32
    %c0_i32_1 = arith.constant 0 : i32
    return %c0_i32, %c0_i32_0 : i32, i32
  }
  func.func @transform_9(%arg0: i32) -> (i32, i32) {
    %c0_i32 = arith.constant 0 : i32
    %c0_i32_0 = arith.constant 0 : i32
    return %arg0, %c0_i32 : i32, i32
  }
}

</mosaic_0001>

<llo_original>
// kernel: decoder_forward.12
$region0: #{decoder_forward.12}
  #allocation0 [shape = 'u32[]', space=smem, size = 0x4, offset = 0x4, fixed_abs, tag = 'smem constant byte address 0x4 - core index']
  #allocation1 [shape = 'u32[72,128]{1,0:T(1,128)}', space=vmem, size = 0x9000, scoped, tag = 'internal scratch']
  %s0 = inlined_call_operand.vmem [shape: bf16[48,256], index: 0, kind: input, shape index: {}]
  %s1 = inlined_call_operand.vmem [shape: f32[1,256], index: 1, kind: input, shape index: {}]
  %s2 = inlined_call_operand.vmem [shape: f32[1,256], index: 2, kind: input, shape index: {}]
  %s3 = inlined_call_operand.hbm [shape: bf16[256,512], index: 3, kind: input, shape index: {}]
  %s4 = inlined_call_operand.vmem [shape: f32[1,512], index: 4, kind: input, shape index: {}]
  %s5 = inlined_call_operand.vmem [shape: bf16[48,512], index: 5, kind: output, shape index: {}]
  %s6 = sld [smem:[#allocation0]]
  $region57: #{decoder_forward.12} parent=0
    _
  %s8 = ssub.s32 1, %s6
  %s9 = scalar_select 0, %s8, %s6
  $region1: #{decoder_forward.12} parent=0
    #allocation2 [shape = 'u8[262144]{0}', space=vmem, size = 0x40000, scoped, tag = 'input window, operand 3, single buffered']
    #allocation3 [shape = 's32[2]{0}', space=sflag, size = 0x8, scoped, tag = 'scoped memory for decoder_forward.12']
    %10 = vsyncpa [#allocation3], 0
    loop: start=0, step=1, limit=5
    $region2: #{decoder_forward.12} parent=1 // loop_pre_header
      _
    $region3: #{decoder_forward.12} parent=1 // loop_header
      %s12 = sphi 0, %s16
      %p13 = scmp.ge.s32.totalorder %s12, 5
      %s22 = sphi 0, %s24
      %s25 = sphi 0, %s22
      %s26 = sphi 0, %s25
      %s42 = sphi 0, %s26
      %s46 = sphi 0, %s46
      %s48 = sphi 0, %s46
      %s49 = sphi 0, %s48
      %s63 = sphi 0, %s49
      %s67 = sphi 0, %s67
      %s69 = sphi 0, %s67
      %s70 = sphi 0, %s69
      %s84 = sphi 0, %s70
      %s88 = sphi 0, %s88
      %s90 = sphi 0, %s88
      %s91 = sphi 0, %s90
      %s105 = sphi 0, %s91
      %s109 = sphi 0, %s109
      %s111 = sphi 0, %s109
      %s112 = sphi 0, %s111
      %s126 = sphi 0, %s112
      %s132 = sphi 0, %s134
      %s135 = sphi 0, %s132
      %s136 = sphi 0, %s135
      %s152 = sphi 0, %s136
    $region4: #{decoder_forward.12} parent=1 // loop_header_branch
      %15 = sbr.rel (%p13) target = $region8
    $region5: #{decoder_forward.12} parent=1 // loop_body
      %s17 = ssub.s32 %s12, 1
      %s18 = ssub.s32 %s12, 2
      %s19 = sadd.s32 %s12, 1
      %s20 = ssub.s32 %s12, %s19
      %p21 = scmp.eq.s32.totalorder %s20, 0
      %s23 = sadd.s32 %s22, 1
      %s24 = scalar_select %p21, %s22, %s23
      %p27 = pneg %p21
      %p28 = scmp.eq.s32.totalorder %s12, 2
      %p29 = por %p27, %p28
      %p30 = scmp.ne.s32.totalorder %s22, %s25
      %p31 = scmp.eq.s32.totalorder %s12, 0
      %p32 = por %p30, %p31
      %p33 = scmp.ne.s32.totalorder %s22, %s25
      %p34 = scmp.eq.s32.totalorder %s17, 2
      %p35 = por %p33, %p34
      %p36 = scmp.ne.s32.totalorder %s25, %s26
      %p37 = scmp.eq.s32.totalorder %s17, 0
      %p38 = por %p36, %p37
      %p39 = scmp.ne.s32.totalorder %s25, %s26
      %p40 = scmp.eq.s32.totalorder %s18, 2
      %p41 = por %p39, %p40
      %p43 = scmp.ne.s32.totalorder %s26, %s42
      %p44 = scmp.eq.s32.totalorder %s18, 0
      %p45 = por %p43, %p44
      %s47 = sadd.s32 %s46, 1
      %p50 = scmp.eq.s32.totalorder %s12, 2
      %p51 = scmp.ne.s32.totalorder %s46, %s48
      %p52 = scmp.eq.s32.totalorder %s12, 0
      %p53 = por %p51, %p52
      %p54 = scmp.ne.s32.totalorder %s46, %s48
      %p55 = scmp.eq.s32.totalorder %s17, 2
      %p56 = por %p54, %p55
      %p57 = scmp.ne.s32.totalorder %s48, %s49
      %p58 = scmp.eq.s32.totalorder %s17, 0
      %p59 = por %p57, %p58
      %p60 = scmp.ne.s32.totalorder %s48, %s49
      %p61 = scmp.eq.s32.totalorder %s18, 2
      %p62 = por %p60, %p61
      %p64 = scmp.ne.s32.totalorder %s49, %s63
      %p65 = scmp.eq.s32.totalorder %s18, 0
      %p66 = por %p64, %p65
      %s68 = sadd.s32 %s67, 1
      %p71 = scmp.eq.s32.totalorder %s12, 2
      %p72 = scmp.ne.s32.totalorder %s67, %s69
      %p73 = scmp.eq.s32.totalorder %s12, 0
      %p74 = por %p72, %p73
      %p75 = scmp.ne.s32.totalorder %s67, %s69
      %p76 = scmp.eq.s32.totalorder %s17, 2
      %p77 = por %p75, %p76
      %p78 = scmp.ne.s32.totalorder %s69, %s70
      %p79 = scmp.eq.s32.totalorder %s17, 0
      %p80 = por %p78, %p79
      %p81 = scmp.ne.s32.totalorder %s69, %s70
      %p82 = scmp.eq.s32.totalorder %s18, 2
      %p83 = por %p81, %p82
      %p85 = scmp.ne.s32.totalorder %s70, %s84
      %p86 = scmp.eq.s32.totalorder %s18, 0
      %p87 = por %p85, %p86
      %s89 = sadd.s32 %s88, 1
      %p92 = scmp.eq.s32.totalorder %s12, 2
      %p93 = scmp.ne.s32.totalorder %s88, %s90
      %p94 = scmp.eq.s32.totalorder %s12, 0
      %p95 = por %p93, %p94
      %p96 = scmp.ne.s32.totalorder %s88, %s90
      %p97 = scmp.eq.s32.totalorder %s17, 2
      %p98 = por %p96, %p97
      %p99 = scmp.ne.s32.totalorder %s90, %s91
      %p100 = scmp.eq.s32.totalorder %s17, 0
      %p101 = por %p99, %p100
      %p102 = scmp.ne.s32.totalorder %s90, %s91
      %p103 = scmp.eq.s32.totalorder %s18, 2
      %p104 = por %p102, %p103
      %p106 = scmp.ne.s32.totalorder %s91, %s105
      %p107 = scmp.eq.s32.totalorder %s18, 0
      %p108 = por %p106, %p107
      %s110 = sadd.s32 %s109, 1
      %p113 = scmp.eq.s32.totalorder %s12, 2
      %p114 = scmp.ne.s32.totalorder %s109, %s111
      %p115 = scmp.eq.s32.totalorder %s12, 0
      %p116 = por %p114, %p115
      %p117 = scmp.ne.s32.totalorder %s109, %s111
      %p118 = scmp.eq.s32.totalorder %s17, 2
      %p119 = por %p117, %p118
      %p120 = scmp.ne.s32.totalorder %s111, %s112
      %p121 = scmp.eq.s32.totalorder %s17, 0
      %p122 = por %p120, %p121
      %p123 = scmp.ne.s32.totalorder %s111, %s112
      %p124 = scmp.eq.s32.totalorder %s18, 2
      %p125 = por %p123, %p124
      %p127 = scmp.ne.s32.totalorder %s112, %s126
      %p128 = scmp.eq.s32.totalorder %s18, 0
      %p129 = por %p127, %p128
      %s130 = ssub.s32 %s12, %s19
      %p131 = scmp.eq.s32.totalorder %s130, 0
      %s133 = sadd.s32 %s132, 1
      %s134 = scalar_select %p131, %s132, %s133
      %p137 = pneg %p131
      %p138 = scmp.eq.s32.totalorder %s12, 2
      %p139 = por %p137, %p138
      %p140 = scmp.ne.s32.totalorder %s132, %s135
      %p141 = scmp.eq.s32.totalorder %s12, 0
      %p142 = por %p140, %p141
      %p143 = scmp.ne.s32.totalorder %s132, %s135
      %p144 = scmp.eq.s32.totalorder %s17, 2
      %p145 = por %p143, %p144
      %p146 = scmp.ne.s32.totalorder %s135, %s136
      %p147 = scmp.eq.s32.totalorder %s17, 0
      %p148 = por %p146, %p147
      %p149 = scmp.ne.s32.totalorder %s135, %s136
      %p150 = scmp.eq.s32.totalorder %s18, 2
      %p151 = por %p149, %p150
      %p153 = scmp.ne.s32.totalorder %s136, %s152
      %p154 = scmp.eq.s32.totalorder %s18, 0
      %p155 = por %p153, %p154
      %p156 = scmp.le.s32.totalorder 1, %s12
      %p157 = scmp.lt.s32.totalorder %s12, 4
      %p158 = pnand %p156, %p157
      %p159 = pneg %p158
      // Predicated region
      $region9: #{decoder_forward.12} parent=5 // pred_check
        _
      $region10: #{decoder_forward.12} parent=5 // pred_check_branch
        %161 = sbr.rel (%p158) target = $region12
      $region11: #{decoder_forward.12} parent=5 // pred_region
        %s162 = ssub.s32 %s12, 1
        // Predicated region
        $region13: #{decoder_forward.12} parent=11 // pred_check
          %p163 = pneg %p59
        $region14: #{decoder_forward.12} parent=11 // pred_check_branch
          %165 = sbr.rel (%p163) target = $region16
        $region15: #{decoder_forward.12} parent=11 // pred_region
          _
        $region16: #{decoder_forward.12} parent=11 // pred_fallthru
          _
        // Predicated region
        $region17: #{decoder_forward.12} parent=11 // pred_check
          %p166 = pneg %p80
        $region18: #{decoder_forward.12} parent=11 // pred_check_branch
          %168 = sbr.rel (%p166) target = $region20
        $region19: #{decoder_forward.12} parent=11 // pred_region
          _
        $region20: #{decoder_forward.12} parent=11 // pred_fallthru
          _
        // Predicated region
        $region21: #{decoder_forward.12} parent=11 // pred_check
          %p169 = pneg %p101
        $region22: #{decoder_forward.12} parent=11 // pred_check_branch
          %171 = sbr.rel (%p169) target = $region24
        $region23: #{decoder_forward.12} parent=11 // pred_region
          %173 = vsyncadd [#allocation3], 0
          %s174 = sshll.u32 %s3, 4
          %s175 = int_to_ptr.hbm [resolvable:$true] %s174
          %s176 = sshll.u32 [#allocation2], 4
          %s177 = int_to_ptr.vmem [resolvable:$true] %s176
          %182 = dma.hbm_to_vmem [thread:$0]  %s175, 8192, %s177, [#allocation3], 256, 256, 16
        $region24: #{decoder_forward.12} parent=11 // pred_fallthru
          _
        // Predicated region
        $region25: #{decoder_forward.12} parent=11 // pred_check
          %p183 = pneg %p122
        $region26: #{decoder_forward.12} parent=11 // pred_check_branch
          %185 = sbr.rel (%p183) target = $region28
        $region27: #{decoder_forward.12} parent=11 // pred_region
          _
        $region28: #{decoder_forward.12} parent=11 // pred_fallthru
          _
      $region12: #{decoder_forward.12} parent=5 // pred_fallthru
        _
      %p186 = scmp.lt.s32.totalorder %s12, 3
      // Predicated region
      $region29: #{decoder_forward.12} parent=5 // pred_check
        %p187 = pneg %p186
      $region30: #{decoder_forward.12} parent=5 // pred_check_branch
        %189 = sbr.rel (%p187) target = $region32
      $region31: #{decoder_forward.12} parent=5 // pred_region
        // Predicated region
        $region33: #{decoder_forward.12} parent=31 // pred_check
          %p190 = pneg %p32
        $region34: #{decoder_forward.12} parent=31 // pred_check_branch
          %192 = sbr.rel (%p190) target = $region36
        $region35: #{decoder_forward.12} parent=31 // pred_region
          %s193 = smul.u32 2, %s12
          %p194 = scmp.lt.s32.totalorder %s193, 5
          %s195 = scalar_select %p194, %s193, 5
          %s196 = smul.addr %s195, 2
          %s197 = smul.addr %s196, 4
          %s198 = scalar_lea.vmem %s0, %s197
          %s199 = smul.u32 2, %s12
        $region36: #{decoder_forward.12} parent=31 // pred_fallthru
          _
      $region32: #{decoder_forward.12} parent=5 // pred_fallthru
        _
      %p200 = scmp.le.s32.totalorder 1, %s12
      %p201 = scmp.lt.s32.totalorder %s12, 4
      %p202 = pnand %p200, %p201
      %p203 = pneg %p202
      // Predicated region
      $region37: #{decoder_forward.12} parent=5 // pred_check
        _
      $region38: #{decoder_forward.12} parent=5 // pred_check_branch
        %205 = sbr.rel (%p202) target = $region40
      $region39: #{decoder_forward.12} parent=5 // pred_region
        %s206 = ssub.s32 %s12, 1
        // Predicated region
        $region41: #{decoder_forward.12} parent=39 // pred_check
          %p207 = pneg %p101
        $region42: #{decoder_forward.12} parent=39 // pred_check_branch
          %209 = sbr.rel (%p207) target = $region44
        $region43: #{decoder_forward.12} parent=39 // pred_region
          %211 = dma.done [#allocation3], 8192
        $region44: #{decoder_forward.12} parent=39 // pred_fallthru
          _
        %s212 = smul.u32 2, %s17
        %p213 = scmp.lt.s32.totalorder %s212, 5
        %s214 = scalar_select %p213, %s212, 5
        %s215 = smul.addr %s214, 2
        %s216 = smul.addr %s215, 4
        %s217 = scalar_lea.vmem %s0, %s216
        %p218 = pneg %p38
        %p219 = pneg %p35
        %p220 = pneg %p59
        %p221 = pneg %p56
        %p222 = pneg %p80
        %p223 = pneg %p77
        %p224 = pneg %p101
        %p225 = pneg %p98
        %p226 = pneg %p122
        %p227 = pneg %p119
        %p228 = pneg %p148
        %p229 = pneg %p145
        %s230 = smul.u32 2, %s17
        %p231 = scmp.lt.s32.totalorder %s230, 5
        %s232 = scalar_select %p231, %s230, 5
        %s233 = smul.addr %s232, 4
        %s234 = smul.addr %s233, 4
        %s235 = scalar_lea.vmem %s5, %s234
        %s236 = smul.u32 2, %s17
        %p237 = scmp.lt.s32.totalorder %s236, 5
        %s238 = scalar_select %p237, %s236, 5
        %s239 = smul.addr %s238, 2
        %s240 = smul.addr %s239, 4
        %s241 = scalar_lea.vmem %s0, %s240
        %s242 = smul.u32 2, %s17
        %s243 = smul.u32 2, %s17
        %p244 = scmp.lt.s32.totalorder %s243, 5
        %s245 = scalar_select %p244, %s243, 5
        %s246 = smul.addr %s245, 4
        %s247 = smul.addr %s246, 4
        %s248 = scalar_lea.vmem %s5, %s247
        %s249 = smul.u32 2, %s17
        %v250 = vld [vmem:[%s241] sm:$0xff]
        %v251 = vld [vmem:[%s241 + $0x8] sm:$0xff]
        %v252 = vld [vmem:[#allocation2] sm:$0xff]
        %v253 = vld [vmem:[#allocation2 + $0x8] sm:$0xff]
        %v254 = vld [vmem:[#allocation2 + $0x10] sm:$0xff]
        %v255 = vld [vmem:[#allocation2 + $0x18] sm:$0xff]
        %v256 = vld [vmem:[#allocation2 + $0x20] sm:$0xff]
        %v257 = vld [vmem:[#allocation2 + $0x28] sm:$0xff]
        %v258 = vld [vmem:[#allocation2 + $0x30] sm:$0xff]
        %v259 = vld [vmem:[#allocation2 + $0x38] sm:$0xff]
        %v260 = vld [vmem:[#allocation2 + $0x40] sm:$0xff]
        %v261 = vld [vmem:[#allocation2 + $0x48] sm:$0xff]
        %v262 = vld [vmem:[#allocation2 + $0x50] sm:$0xff]
        %v263 = vld [vmem:[#allocation2 + $0x58] sm:$0xff]
        %v264 = vld [vmem:[#allocation2 + $0x60] sm:$0xff]
        %v265 = vld [vmem:[#allocation2 + $0x68] sm:$0xff]
        %v266 = vld [vmem:[#allocation2 + $0x70] sm:$0xff]
        %v267 = vld [vmem:[#allocation2 + $0x78] sm:$0xff]
        %v268 = vld [vmem:[#allocation2 + $0x80] sm:$0xff]
        %v269 = vld [vmem:[#allocation2 + $0x88] sm:$0xff]
        %v270 = vld [vmem:[#allocation2 + $0x90] sm:$0xff]
        %v271 = vld [vmem:[#allocation2 + $0x98] sm:$0xff]
        %v272 = vld [vmem:[#allocation2 + $0xa0] sm:$0xff]
        %v273 = vld [vmem:[#allocation2 + $0xa8] sm:$0xff]
        %v274 = vld [vmem:[#allocation2 + $0xb0] sm:$0xff]
        %v275 = vld [vmem:[#allocation2 + $0xb8] sm:$0xff]
        %v276 = vld [vmem:[#allocation2 + $0xc0] sm:$0xff]
        %v277 = vld [vmem:[#allocation2 + $0xc8] sm:$0xff]
        %v278 = vld [vmem:[#allocation2 + $0xd0] sm:$0xff]
        %v279 = vld [vmem:[#allocation2 + $0xd8] sm:$0xff]
        %v280 = vld [vmem:[#allocation2 + $0xe0] sm:$0xff]
        %v281 = vld [vmem:[#allocation2 + $0xe8] sm:$0xff]
        %v282 = vld [vmem:[#allocation2 + $0xf0] sm:$0xff]
        %v283 = vld [vmem:[#allocation2 + $0xf8] sm:$0xff]
        %v284 = vld [vmem:[#allocation2 + $0x100] sm:$0xff]
        %v285 = vld [vmem:[#allocation2 + $0x108] sm:$0xff]
        %v286 = vld [vmem:[#allocation2 + $0x110] sm:$0xff]
        %v287 = vld [vmem:[#allocation2 + $0x118] sm:$0xff]
        %v288 = vld [vmem:[#allocation2 + $0x120] sm:$0xff]
        %v289 = vld [vmem:[#allocation2 + $0x128] sm:$0xff]
        %v290 = vld [vmem:[#allocation2 + $0x130] sm:$0xff]
        %v291 = vld [vmem:[#allocation2 + $0x138] sm:$0xff]
        %v292 = vld [vmem:[#allocation2 + $0x140] sm:$0xff]
        %v293 = vld [vmem:[#allocation2 + $0x148] sm:$0xff]
        %v294 = vld [vmem:[#allocation2 + $0x150] sm:$0xff]
        %v295 = vld [vmem:[#allocation2 + $0x158] sm:$0xff]
        %v296 = vld [vmem:[#allocation2 + $0x160] sm:$0xff]
        %v297 = vld [vmem:[#allocation2 + $0x168] sm:$0xff]
        %v298 = vld [vmem:[#allocation2 + $0x170] sm:$0xff]
        %v299 = vld [vmem:[#allocation2 + $0x178] sm:$0xff]
        %v300 = vld [vmem:[#allocation2 + $0x180] sm:$0xff]
        %v301 = vld [vmem:[#allocation2 + $0x188] sm:$0xff]
        %v302 = vld [vmem:[#allocation2 + $0x190] sm:$0xff]
        %v303 = vld [vmem:[#allocation2 + $0x198] sm:$0xff]
        %v304 = vld [vmem:[#allocation2 + $0x1a0] sm:$0xff]
        %v305 = vld [vmem:[#allocation2 + $0x1a8] sm:$0xff]
        %v306 = vld [vmem:[#allocation2 + $0x1b0] sm:$0xff]
        %v307 = vld [vmem:[#allocation2 + $0x1b8] sm:$0xff]
        %v308 = vld [vmem:[#allocation2 + $0x1c0] sm:$0xff]
        %v309 = vld [vmem:[#allocation2 + $0x1c8] sm:$0xff]
        %v310 = vld [vmem:[#allocation2 + $0x1d0] sm:$0xff]
        %v311 = vld [vmem:[#allocation2 + $0x1d8] sm:$0xff]
        %v312 = vld [vmem:[#allocation2 + $0x1e0] sm:$0xff]
        %v313 = vld [vmem:[#allocation2 + $0x1e8] sm:$0xff]
        %v314 = vld [vmem:[#allocation2 + $0x1f0] sm:$0xff]
        %v315 = vld [vmem:[#allocation2 + $0x1f8] sm:$0xff]
        %v316 = vld [vmem:[%s4] sm:$0xf]
        %v318 = vperm.slane %v316, 0
        %v319 = vperm.slane %v316, 1
        %v320 = vperm.slane %v316, 2
        %v321 = vperm.slane %v316, 3
        %v328 = vunpack.c.l.b16 %v250
        %v329 = vunpack.c.h.b16 %v250
        %v330 = vunpack.c.l.b16 %v251
        %v331 = vunpack.c.h.b16 %v251
        %v332 = vpack.c.b16 %v330, %v328
        %v333 = vpack.c.b16 %v331, %v329
        %v400 = vunpack.c.l.b16 %v252
        %v401 = vunpack.c.h.b16 %v252
        %v402 = vunpack.c.l.b16 %v253
        %v403 = vunpack.c.h.b16 %v253
        %v404 = vunpack.c.l.b16 %v254
        %v405 = vunpack.c.h.b16 %v254
        %v406 = vunpack.c.l.b16 %v255
        %v407 = vunpack.c.h.b16 %v255
        %v408 = vunpack.c.l.b16 %v256
        %v409 = vunpack.c.h.b16 %v256
        %v410 = vunpack.c.l.b16 %v257
        %v411 = vunpack.c.h.b16 %v257
        %v412 = vunpack.c.l.b16 %v258
        %v413 = vunpack.c.h.b16 %v258
        %v414 = vunpack.c.l.b16 %v259
        %v415 = vunpack.c.h.b16 %v259
        %v416 = vunpack.c.l.b16 %v260
        %v417 = vunpack.c.h.b16 %v260
        %v418 = vunpack.c.l.b16 %v261
        %v419 = vunpack.c.h.b16 %v261
        %v420 = vunpack.c.l.b16 %v262
        %v421 = vunpack.c.h.b16 %v262
        %v422 = vunpack.c.l.b16 %v263
        %v423 = vunpack.c.h.b16 %v263
        %v424 = vunpack.c.l.b16 %v264
        %v425 = vunpack.c.h.b16 %v264
        %v426 = vunpack.c.l.b16 %v265
        %v427 = vunpack.c.h.b16 %v265
        %v428 = vunpack.c.l.b16 %v266
        %v429 = vunpack.c.h.b16 %v266
        %v430 = vunpack.c.l.b16 %v267
        %v431 = vunpack.c.h.b16 %v267
        %v432 = vunpack.c.l.b16 %v268
        %v433 = vunpack.c.h.b16 %v268
        %v434 = vunpack.c.l.b16 %v269
        %v435 = vunpack.c.h.b16 %v269
        %v436 = vunpack.c.l.b16 %v270
        %v437 = vunpack.c.h.b16 %v270
        %v438 = vunpack.c.l.b16 %v271
        %v439 = vunpack.c.h.b16 %v271
        %v440 = vunpack.c.l.b16 %v272
        %v441 = vunpack.c.h.b16 %v272
        %v442 = vunpack.c.l.b16 %v273
        %v443 = vunpack.c.h.b16 %v273
        %v444 = vunpack.c.l.b16 %v274
        %v445 = vunpack.c.h.b16 %v274
        %v446 = vunpack.c.l.b16 %v275
        %v447 = vunpack.c.h.b16 %v275
        %v448 = vunpack.c.l.b16 %v276
        %v449 = vunpack.c.h.b16 %v276
        %v450 = vunpack.c.l.b16 %v277
        %v451 = vunpack.c.h.b16 %v277
        %v452 = vunpack.c.l.b16 %v278
        %v453 = vunpack.c.h.b16 %v278
        %v454 = vunpack.c.l.b16 %v279
        %v455 = vunpack.c.h.b16 %v279
        %v456 = vunpack.c.l.b16 %v280
        %v457 = vunpack.c.h.b16 %v280
        %v458 = vunpack.c.l.b16 %v281
        %v459 = vunpack.c.h.b16 %v281
        %v460 = vunpack.c.l.b16 %v282
        %v461 = vunpack.c.h.b16 %v282
        %v462 = vunpack.c.l.b16 %v283
        %v463 = vunpack.c.h.b16 %v283
        %v464 = vunpack.c.l.b16 %v284
        %v465 = vunpack.c.h.b16 %v284
        %v466 = vunpack.c.l.b16 %v285
        %v467 = vunpack.c.h.b16 %v285
        %v468 = vunpack.c.l.b16 %v286
        %v469 = vunpack.c.h.b16 %v286
        %v470 = vunpack.c.l.b16 %v287
        %v471 = vunpack.c.h.b16 %v287
        %v472 = vunpack.c.l.b16 %v288
        %v473 = vunpack.c.h.b16 %v288
        %v474 = vunpack.c.l.b16 %v289
        %v475 = vunpack.c.h.b16 %v289
        %v476 = vunpack.c.l.b16 %v290
        %v477 = vunpack.c.h.b16 %v290
        %v478 = vunpack.c.l.b16 %v291
        %v479 = vunpack.c.h.b16 %v291
        %v480 = vunpack.c.l.b16 %v292
        %v481 = vunpack.c.h.b16 %v292
        %v482 = vunpack.c.l.b16 %v293
        %v483 = vunpack.c.h.b16 %v293
        %v484 = vunpack.c.l.b16 %v294
        %v485 = vunpack.c.h.b16 %v294
        %v486 = vunpack.c.l.b16 %v295
        %v487 = vunpack.c.h.b16 %v295
        %v488 = vunpack.c.l.b16 %v296
        %v489 = vunpack.c.h.b16 %v296
        %v490 = vunpack.c.l.b16 %v297
        %v491 = vunpack.c.h.b16 %v297
        %v492 = vunpack.c.l.b16 %v298
        %v493 = vunpack.c.h.b16 %v298
        %v494 = vunpack.c.l.b16 %v299
        %v495 = vunpack.c.h.b16 %v299
        %v496 = vunpack.c.l.b16 %v300
        %v497 = vunpack.c.h.b16 %v300
        %v498 = vunpack.c.l.b16 %v301
        %v499 = vunpack.c.h.b16 %v301
        %v500 = vunpack.c.l.b16 %v302
        %v501 = vunpack.c.h.b16 %v302
        %v502 = vunpack.c.l.b16 %v303
        %v503 = vunpack.c.h.b16 %v303
        %v504 = vunpack.c.l.b16 %v304
        %v505 = vunpack.c.h.b16 %v304
        %v506 = vunpack.c.l.b16 %v305
        %v507 = vunpack.c.h.b16 %v305
        %v508 = vunpack.c.l.b16 %v306
        %v509 = vunpack.c.h.b16 %v306
        %v510 = vunpack.c.l.b16 %v307
        %v511 = vunpack.c.h.b16 %v307
        %v512 = vunpack.c.l.b16 %v308
        %v513 = vunpack.c.h.b16 %v308
        %v514 = vunpack.c.l.b16 %v309
        %v515 = vunpack.c.h.b16 %v309
        %v516 = vunpack.c.l.b16 %v310
        %v517 = vunpack.c.h.b16 %v310
        %v518 = vunpack.c.l.b16 %v311
        %v519 = vunpack.c.h.b16 %v311
        %v520 = vunpack.c.l.b16 %v312
        %v521 = vunpack.c.h.b16 %v312
        %v522 = vunpack.c.l.b16 %v313
        %v523 = vunpack.c.h.b16 %v313
        %v524 = vunpack.c.l.b16 %v314
        %v525 = vunpack.c.h.b16 %v314
        %v526 = vunpack.c.l.b16 %v315
        %v527 = vunpack.c.h.b16 %v315
        %v528 = vpack.c.b16 %v404, %v400
        %v529 = vpack.c.b16 %v405, %v401
        %v530 = vpack.c.b16 %v406, %v402
        %v531 = vpack.c.b16 %v407, %v403
        %v532 = vpack.c.b16 %v412, %v408
        %v533 = vpack.c.b16 %v413, %v409
        %v534 = vpack.c.b16 %v414, %v410
        %v535 = vpack.c.b16 %v415, %v411
        %v536 = vpack.c.b16 %v420, %v416
        %v537 = vpack.c.b16 %v421, %v417
        %v538 = vpack.c.b16 %v422, %v418
        %v539 = vpack.c.b16 %v423, %v419
        %v540 = vpack.c.b16 %v428, %v424
        %v541 = vpack.c.b16 %v429, %v425
        %v542 = vpack.c.b16 %v430, %v426
        %v543 = vpack.c.b16 %v431, %v427
        %v544 = vpack.c.b16 %v436, %v432
        %v545 = vpack.c.b16 %v437, %v433
        %v546 = vpack.c.b16 %v438, %v434
        %v547 = vpack.c.b16 %v439, %v435
        %v548 = vpack.c.b16 %v444, %v440
        %v549 = vpack.c.b16 %v445, %v441
        %v550 = vpack.c.b16 %v446, %v442
        %v551 = vpack.c.b16 %v447, %v443
        %v552 = vpack.c.b16 %v452, %v448
        %v553 = vpack.c.b16 %v453, %v449
        %v554 = vpack.c.b16 %v454, %v450
        %v555 = vpack.c.b16 %v455, %v451
        %v556 = vpack.c.b16 %v460, %v456
        %v557 = vpack.c.b16 %v461, %v457
        %v558 = vpack.c.b16 %v462, %v458
        %v559 = vpack.c.b16 %v463, %v459
        %v560 = vpack.c.b16 %v468, %v464
        %v561 = vpack.c.b16 %v469, %v465
        %v562 = vpack.c.b16 %v470, %v466
        %v563 = vpack.c.b16 %v471, %v467
        %v564 = vpack.c.b16 %v476, %v472
        %v565 = vpack.c.b16 %v477, %v473
        %v566 = vpack.c.b16 %v478, %v474
        %v567 = vpack.c.b16 %v479, %v475
        %v568 = vpack.c.b16 %v484, %v480
        %v569 = vpack.c.b16 %v485, %v481
        %v570 = vpack.c.b16 %v486, %v482
        %v571 = vpack.c.b16 %v487, %v483
        %v572 = vpack.c.b16 %v492, %v488
        %v573 = vpack.c.b16 %v493, %v489
        %v574 = vpack.c.b16 %v494, %v490
        %v575 = vpack.c.b16 %v495, %v491
        %v576 = vpack.c.b16 %v500, %v496
        %v577 = vpack.c.b16 %v501, %v497
        %v578 = vpack.c.b16 %v502, %v498
        %v579 = vpack.c.b16 %v503, %v499
        %v580 = vpack.c.b16 %v508, %v504
        %v581 = vpack.c.b16 %v509, %v505
        %v582 = vpack.c.b16 %v510, %v506
        %v583 = vpack.c.b16 %v511, %v507
        %v584 = vpack.c.b16 %v516, %v512
        %v585 = vpack.c.b16 %v517, %v513
        %v586 = vpack.c.b16 %v518, %v514
        %v587 = vpack.c.b16 %v519, %v515
        %v588 = vpack.c.b16 %v524, %v520
        %v589 = vpack.c.b16 %v525, %v521
        %v590 = vpack.c.b16 %v526, %v522
        %v591 = vpack.c.b16 %v527, %v523
        %656 = vmatpush.bf16.msra.mxu0 %v556
        %657 = vmatpush.bf16.msra.mxu0 %v552
        %658 = vmatpush.bf16.msra.mxu0 %v548
        %659 = vmatpush.bf16.msra.mxu0 %v544
        %660 = vmatpush.bf16.msra.mxu0 %v540
        %661 = vmatpush.bf16.msra.mxu0 %v536
        %662 = vmatpush.bf16.msra.mxu0 %v532
        %663 = vmatpush.bf16.msra.mxu0 %v528
        %664 = vmatmul.bf16.gmra.mxu0 %v332
        %v665 = vpop.f32.mrf.mxu0
        %v666 = vadd.f32 %v318, %v665
        %v667 = vpop.f32.mrf.mxu0
        %v668 = vadd.f32 %v318, %v667
        %669 = vdwg.mxu0
        %670 = vmatpush.bf16.msra.mxu0 %v588
        %671 = vmatpush.bf16.msra.mxu0 %v584
        %672 = vmatpush.bf16.msra.mxu0 %v580
        %673 = vmatpush.bf16.msra.mxu0 %v576
        %674 = vmatpush.bf16.msra.mxu0 %v572
        %675 = vmatpush.bf16.msra.mxu0 %v568
        %676 = vmatpush.bf16.msra.mxu0 %v564
        %677 = vmatpush.bf16.msra.mxu0 %v560
        %678 = vmatmul.bf16.gmra.mxu0 %v333
        %v679 = vpop.f32.mrf.mxu0
        %v680 = vadd.f32 %v666, %v679
        %v681 = vpop.f32.mrf.mxu0
        %v682 = vadd.f32 %v668, %v681
        %683 = vdwg.mxu0
        %684 = vmatpush.bf16.msra.mxu0 %v557
        %685 = vmatpush.bf16.msra.mxu0 %v553
        %686 = vmatpush.bf16.msra.mxu0 %v549
        %687 = vmatpush.bf16.msra.mxu0 %v545
        %688 = vmatpush.bf16.msra.mxu0 %v541
        %689 = vmatpush.bf16.msra.mxu0 %v537
        %690 = vmatpush.bf16.msra.mxu0 %v533
        %691 = vmatpush.bf16.msra.mxu0 %v529
        %692 = vmatmul.bf16.gmra.mxu0 %v332
        %v693 = vpop.f32.mrf.mxu0
        %v694 = vadd.f32 %v319, %v693
        %v695 = vpop.f32.mrf.mxu0
        %v696 = vadd.f32 %v319, %v695
        %697 = vdwg.mxu0
        %698 = vmatpush.bf16.msra.mxu0 %v589
        %699 = vmatpush.bf16.msra.mxu0 %v585
        %700 = vmatpush.bf16.msra.mxu0 %v581
        %701 = vmatpush.bf16.msra.mxu0 %v577
        %702 = vmatpush.bf16.msra.mxu0 %v573
        %703 = vmatpush.bf16.msra.mxu0 %v569
        %704 = vmatpush.bf16.msra.mxu0 %v565
        %705 = vmatpush.bf16.msra.mxu0 %v561
        %706 = vmatmul.bf16.gmra.mxu0 %v333
        %v707 = vpop.f32.mrf.mxu0
        %v708 = vadd.f32 %v694, %v707
        %v709 = vpop.f32.mrf.mxu0
        %v710 = vadd.f32 %v696, %v709
        %711 = vdwg.mxu0
        %712 = vmatpush.bf16.msra.mxu0 %v558
        %713 = vmatpush.bf16.msra.mxu0 %v554
        %714 = vmatpush.bf16.msra.mxu0 %v550
        %715 = vmatpush.bf16.msra.mxu0 %v546
        %716 = vmatpush.bf16.msra.mxu0 %v542
        %717 = vmatpush.bf16.msra.mxu0 %v538
        %718 = vmatpush.bf16.msra.mxu0 %v534
        %719 = vmatpush.bf16.msra.mxu0 %v530
        %720 = vmatmul.bf16.gmra.mxu0 %v332
        %v721 = vpop.f32.mrf.mxu0
        %v722 = vadd.f32 %v320, %v721
        %v723 = vpop.f32.mrf.mxu0
        %v724 = vadd.f32 %v320, %v723
        %725 = vdwg.mxu0
        %726 = vmatpush.bf16.msra.mxu0 %v590
        %727 = vmatpush.bf16.msra.mxu0 %v586
        %728 = vmatpush.bf16.msra.mxu0 %v582
        %729 = vmatpush.bf16.msra.mxu0 %v578
        %730 = vmatpush.bf16.msra.mxu0 %v574
        %731 = vmatpush.bf16.msra.mxu0 %v570
        %732 = vmatpush.bf16.msra.mxu0 %v566
        %733 = vmatpush.bf16.msra.mxu0 %v562
        %734 = vmatmul.bf16.gmra.mxu0 %v333
        %v735 = vpop.f32.mrf.mxu0
        %v736 = vadd.f32 %v722, %v735
        %v737 = vpop.f32.mrf.mxu0
        %v738 = vadd.f32 %v724, %v737
        %739 = vdwg.mxu0
        %740 = vmatpush.bf16.msra.mxu0 %v559
        %741 = vmatpush.bf16.msra.mxu0 %v555
        %742 = vmatpush.bf16.msra.mxu0 %v551
        %743 = vmatpush.bf16.msra.mxu0 %v547
        %744 = vmatpush.bf16.msra.mxu0 %v543
        %745 = vmatpush.bf16.msra.mxu0 %v539
        %746 = vmatpush.bf16.msra.mxu0 %v535
        %747 = vmatpush.bf16.msra.mxu0 %v531
        %748 = vmatmul.bf16.gmra.mxu0 %v332
        %v749 = vpop.f32.mrf.mxu0
        %v750 = vadd.f32 %v321, %v749
        %v751 = vpop.f32.mrf.mxu0
        %v752 = vadd.f32 %v321, %v751
        %753 = vdwg.mxu0
        %754 = vmatpush.bf16.msra.mxu0 %v591
        %755 = vmatpush.bf16.msra.mxu0 %v587
        %756 = vmatpush.bf16.msra.mxu0 %v583
        %757 = vmatpush.bf16.msra.mxu0 %v579
        %758 = vmatpush.bf16.msra.mxu0 %v575
        %759 = vmatpush.bf16.msra.mxu0 %v571
        %760 = vmatpush.bf16.msra.mxu0 %v567
        %761 = vmatpush.bf16.msra.mxu0 %v563
        %762 = vmatmul.bf16.gmra.mxu0 %v333
        %v763 = vpop.f32.mrf.mxu0
        %v764 = vadd.f32 %v750, %v763
        %v765 = vpop.f32.mrf.mxu0
        %v766 = vadd.f32 %v752, %v765
        %767 = vdwg.mxu0
        %v768 = vpack.c.bf16 %v708, %v680
        %v769 = vpack.c.bf16 %v764, %v736
        %v770 = vpack.c.bf16 %v710, %v682
        %v771 = vpack.c.bf16 %v766, %v738
        %772 = vst [vmem:[%s248] sm:$0xff] %v768
        %773 = vst [vmem:[%s248 + $0x8] sm:$0xff] %v769
        %774 = vst [vmem:[%s248 + $0x10] sm:$0xff] %v770
        %775 = vst [vmem:[%s248 + $0x18] sm:$0xff] %v771
        %s776 = smul.u32 2, %s17
        %p777 = scmp.lt.s32.totalorder %s776, 5
        %s778 = scalar_select %p777, %s776, 5
        %s779 = smul.addr %s778, 4
        %s780 = smul.addr %s779, 4
        %s781 = scalar_lea.vmem %s5, %s780
        // Predicated region
        $region45: #{decoder_forward.12} parent=39 // pred_check
          %p782 = pneg %p145
        $region46: #{decoder_forward.12} parent=39 // pred_check_branch
          %784 = sbr.rel (%p782) target = $region48
        $region47: #{decoder_forward.12} parent=39 // pred_region
          %s785 = smul.u32 2, %s17
        $region48: #{decoder_forward.12} parent=39 // pred_fallthru
          _
      $region40: #{decoder_forward.12} parent=5 // pred_fallthru
        _
      %p786 = scmp.le.s32.totalorder 2, %s12
      // Predicated region
      $region49: #{decoder_forward.12} parent=5 // pred_check
        %p787 = pneg %p786
      $region50: #{decoder_forward.12} parent=5 // pred_check_branch
        %789 = sbr.rel (%p787) target = $region52
      $region51: #{decoder_forward.12} parent=5 // pred_region
        %s790 = ssub.s32 %s12, 2
        // Predicated region
        $region53: #{decoder_forward.12} parent=51 // pred_check
          %p791 = pneg %p151
        $region54: #{decoder_forward.12} parent=51 // pred_check_branch
          %793 = sbr.rel (%p791) target = $region56
        $region55: #{decoder_forward.12} parent=51 // pred_region
          %s794 = smul.u32 2, %s18
          %p795 = scmp.lt.s32.totalorder %s794, 5
          %s796 = scalar_select %p795, %s794, 5
          %s797 = smul.addr %s796, 4
          %s798 = smul.addr %s797, 4
          %s799 = scalar_lea.vmem %s5, %s798
        $region56: #{decoder_forward.12} parent=51 // pred_fallthru
          _
      $region52: #{decoder_forward.12} parent=5 // pred_fallthru
        _
    $region6: #{decoder_forward.12} parent=1 // loop_footer
      %s16 = sadd.s32 1, %s12
    $region7: #{decoder_forward.12} parent=1 // loop_footer_branch
      %11 = sbr.rel target = $region3
    $region8: #{decoder_forward.12} parent=1 // loop_exit
      _
    %800 = vsyncpa [#allocation3], 1
    %s801 = scalar_lea.sflag [#allocation3], 1
    %802 = vsyncpa %s801, 1

// kernel: decoder_forward.10
$region0: #{decoder_forward.10}
  #allocation0 [shape = 'u32[]', space=smem, size = 0x4, offset = 0x4, fixed_abs, tag = 'smem constant byte address 0x4 - core index']
  #allocation1 [shape = 'u32[72,128]{1,0:T(1,128)}', space=vmem, size = 0x9000, scoped, tag = 'internal scratch']
  %s0 = inlined_call_operand.vmem [shape: f32[32,256], index: 0, kind: input, shape index: {}]
  %s1 = inlined_call_operand.vmem [shape: f32[1,256], index: 1, kind: input, shape index: {}]
  %s2 = inlined_call_operand.vmem [shape: f32[1,256], index: 2, kind: input, shape index: {}]
  %s3 = inlined_call_operand.hbm [shape: bf16[256,512], index: 3, kind: input, shape index: {}]
  %s4 = inlined_call_operand.vmem [shape: f32[1,512], index: 4, kind: input, shape index: {}]
  %s5 = inlined_call_operand.vmem [shape: bf16[32,512], index: 5, kind: output, shape index: {}]
  %s6 = sld [smem:[#allocation0]]
  $region57: #{decoder_forward.10} parent=0
    _
  %s8 = ssub.s32 1, %s6
  %s9 = scalar_select 0, %s8, %s6
  $region1: #{decoder_forward.10} parent=0
    #allocation2 [shape = 'u8[262144]{0}', space=vmem, size = 0x40000, scoped, tag = 'input window, operand 3, single buffered']
    #allocation3 [shape = 's32[2]{0}', space=sflag, size = 0x8, scoped, tag = 'scoped memory for decoder_forward.10']
    %10 = vsyncpa [#allocation3], 0
    loop: start=0, step=1, limit=4
    $region2: #{decoder_forward.10} parent=1 // loop_pre_header
      _
    $region3: #{decoder_forward.10} parent=1 // loop_header
      %s12 = sphi 0, %s16
      %p13 = scmp.ge.s32.totalorder %s12, 4
      %s22 = sphi 0, %s24
      %s25 = sphi 0, %s22
      %s26 = sphi 0, %s25
      %s42 = sphi 0, %s26
      %s46 = sphi 0, %s46
      %s48 = sphi 0, %s46
      %s49 = sphi 0, %s48
      %s63 = sphi 0, %s49
      %s67 = sphi 0, %s67
      %s69 = sphi 0, %s67
      %s70 = sphi 0, %s69
      %s84 = sphi 0, %s70
      %s88 = sphi 0, %s88
      %s90 = sphi 0, %s88
      %s91 = sphi 0, %s90
      %s105 = sphi 0, %s91
      %s109 = sphi 0, %s109
      %s111 = sphi 0, %s109
      %s112 = sphi 0, %s111
      %s126 = sphi 0, %s112
      %s132 = sphi 0, %s134
      %s135 = sphi 0, %s132
      %s136 = sphi 0, %s135
      %s152 = sphi 0, %s136
    $region4: #{decoder_forward.10} parent=1 // loop_header_branch
      %15 = sbr.rel (%p13) target = $region8
    $region5: #{decoder_forward.10} parent=1 // loop_body
      %s17 = ssub.s32 %s12, 1
      %s18 = ssub.s32 %s12, 2
      %s19 = sadd.s32 %s12, 1
      %s20 = ssub.s32 %s12, %s19
      %p21 = scmp.eq.s32.totalorder %s20, 0
      %s23 = sadd.s32 %s22, 1
      %s24 = scalar_select %p21, %s22, %s23
      %p27 = pneg %p21
      %p28 = scmp.eq.s32.totalorder %s12, 1
      %p29 = por %p27, %p28
      %p30 = scmp.ne.s32.totalorder %s22, %s25
      %p31 = scmp.eq.s32.totalorder %s12, 0
      %p32 = por %p30, %p31
      %p33 = scmp.ne.s32.totalorder %s22, %s25
      %p34 = scmp.eq.s32.totalorder %s17, 1
      %p35 = por %p33, %p34
      %p36 = scmp.ne.s32.totalorder %s25, %s26
      %p37 = scmp.eq.s32.totalorder %s17, 0
      %p38 = por %p36, %p37
      %p39 = scmp.ne.s32.totalorder %s25, %s26
      %p40 = scmp.eq.s32.totalorder %s18, 1
      %p41 = por %p39, %p40
      %p43 = scmp.ne.s32.totalorder %s26, %s42
      %p44 = scmp.eq.s32.totalorder %s18, 0
      %p45 = por %p43, %p44
      %s47 = sadd.s32 %s46, 1
      %p50 = scmp.eq.s32.totalorder %s12, 1
      %p51 = scmp.ne.s32.totalorder %s46, %s48
      %p52 = scmp.eq.s32.totalorder %s12, 0
      %p53 = por %p51, %p52
      %p54 = scmp.ne.s32.totalorder %s46, %s48
      %p55 = scmp.eq.s32.totalorder %s17, 1
      %p56 = por %p54, %p55
      %p57 = scmp.ne.s32.totalorder %s48, %s49
      %p58 = scmp.eq.s32.totalorder %s17, 0
      %p59 = por %p57, %p58
      %p60 = scmp.ne.s32.totalorder %s48, %s49
      %p61 = scmp.eq.s32.totalorder %s18, 1
      %p62 = por %p60, %p61
      %p64 = scmp.ne.s32.totalorder %s49, %s63
      %p65 = scmp.eq.s32.totalorder %s18, 0
      %p66 = por %p64, %p65
      %s68 = sadd.s32 %s67, 1
      %p71 = scmp.eq.s32.totalorder %s12, 1
      %p72 = scmp.ne.s32.totalorder %s67, %s69
      %p73 = scmp.eq.s32.totalorder %s12, 0
      %p74 = por %p72, %p73
      %p75 = scmp.ne.s32.totalorder %s67, %s69
      %p76 = scmp.eq.s32.totalorder %s17, 1
      %p77 = por %p75, %p76
      %p78 = scmp.ne.s32.totalorder %s69, %s70
      %p79 = scmp.eq.s32.totalorder %s17, 0
      %p80 = por %p78, %p79
      %p81 = scmp.ne.s32.totalorder %s69, %s70
      %p82 = scmp.eq.s32.totalorder %s18, 1
      %p83 = por %p81, %p82
      %p85 = scmp.ne.s32.totalorder %s70, %s84
      %p86 = scmp.eq.s32.totalorder %s18, 0
      %p87 = por %p85, %p86
      %s89 = sadd.s32 %s88, 1
      %p92 = scmp.eq.s32.totalorder %s12, 1
      %p93 = scmp.ne.s32.totalorder %s88, %s90
      %p94 = scmp.eq.s32.totalorder %s12, 0
      %p95 = por %p93, %p94
      %p96 = scmp.ne.s32.totalorder %s88, %s90
      %p97 = scmp.eq.s32.totalorder %s17, 1
      %p98 = por %p96, %p97
      %p99 = scmp.ne.s32.totalorder %s90, %s91
      %p100 = scmp.eq.s32.totalorder %s17, 0
      %p101 = por %p99, %p100
      %p102 = scmp.ne.s32.totalorder %s90, %s91
      %p103 = scmp.eq.s32.totalorder %s18, 1
      %p104 = por %p102, %p103
      %p106 = scmp.ne.s32.totalorder %s91, %s105
      %p107 = scmp.eq.s32.totalorder %s18, 0
      %p108 = por %p106, %p107
      %s110 = sadd.s32 %s109, 1
      %p113 = scmp.eq.s32.totalorder %s12, 1
      %p114 = scmp.ne.s32.totalorder %s109, %s111
      %p115 = scmp.eq.s32.totalorder %s12, 0
      %p116 = por %p114, %p115
      %p117 = scmp.ne.s32.totalorder %s109, %s111
      %p118 = scmp.eq.s32.totalorder %s17, 1
      %p119 = por %p117, %p118
      %p120 = scmp.ne.s32.totalorder %s111, %s112
      %p121 = scmp.eq.s32.totalorder %s17, 0
      %p122 = por %p120, %p121
      %p123 = scmp.ne.s32.totalorder %s111, %s112
      %p124 = scmp.eq.s32.totalorder %s18, 1
      %p125 = por %p123, %p124
      %p127 = scmp.ne.s32.totalorder %s112, %s126
      %p128 = scmp.eq.s32.totalorder %s18, 0
      %p129 = por %p127, %p128
      %s130 = ssub.s32 %s12, %s19
      %p131 = scmp.eq.s32.totalorder %s130, 0
      %s133 = sadd.s32 %s132, 1
      %s134 = scalar_select %p131, %s132, %s133
      %p137 = pneg %p131
      %p138 = scmp.eq.s32.totalorder %s12, 1
      %p139 = por %p137, %p138
      %p140 = scmp.ne.s32.totalorder %s132, %s135
      %p141 = scmp.eq.s32.totalorder %s12, 0
      %p142 = por %p140, %p141
      %p143 = scmp.ne.s32.totalorder %s132, %s135
      %p144 = scmp.eq.s32.totalorder %s17, 1
      %p145 = por %p143, %p144
      %p146 = scmp.ne.s32.totalorder %s135, %s136
      %p147 = scmp.eq.s32.totalorder %s17, 0
      %p148 = por %p146, %p147
      %p149 = scmp.ne.s32.totalorder %s135, %s136
      %p150 = scmp.eq.s32.totalorder %s18, 1
      %p151 = por %p149, %p150
      %p153 = scmp.ne.s32.totalorder %s136, %s152
      %p154 = scmp.eq.s32.totalorder %s18, 0
      %p155 = por %p153, %p154
      %p156 = scmp.le.s32.totalorder 1, %s12
      %p157 = scmp.lt.s32.totalorder %s12, 3
      %p158 = pnand %p156, %p157
      %p159 = pneg %p158
      // Predicated region
      $region9: #{decoder_forward.10} parent=5 // pred_check
        _
      $region10: #{decoder_forward.10} parent=5 // pred_check_branch
        %161 = sbr.rel (%p158) target = $region12
      $region11: #{decoder_forward.10} parent=5 // pred_region
        %s162 = ssub.s32 %s12, 1
        // Predicated region
        $region13: #{decoder_forward.10} parent=11 // pred_check
          %p163 = pneg %p59
        $region14: #{decoder_forward.10} parent=11 // pred_check_branch
          %165 = sbr.rel (%p163) target = $region16
        $region15: #{decoder_forward.10} parent=11 // pred_region
          _
        $region16: #{decoder_forward.10} parent=11 // pred_fallthru
          _
        // Predicated region
        $region17: #{decoder_forward.10} parent=11 // pred_check
          %p166 = pneg %p80
        $region18: #{decoder_forward.10} parent=11 // pred_check_branch
          %168 = sbr.rel (%p166) target = $region20
        $region19: #{decoder_forward.10} parent=11 // pred_region
          _
        $region20: #{decoder_forward.10} parent=11 // pred_fallthru
          _
        // Predicated region
        $region21: #{decoder_forward.10} parent=11 // pred_check
          %p169 = pneg %p101
        $region22: #{decoder_forward.10} parent=11 // pred_check_branch
          %171 = sbr.rel (%p169) target = $region24
        $region23: #{decoder_forward.10} parent=11 // pred_region
          %173 = vsyncadd [#allocation3], 0
          %s174 = sshll.u32 %s3, 4
          %s175 = int_to_ptr.hbm [resolvable:$true] %s174
          %s176 = sshll.u32 [#allocation2], 4
          %s177 = int_to_ptr.vmem [resolvable:$true] %s176
          %182 = dma.hbm_to_vmem [thread:$0]  %s175, 8192, %s177, [#allocation3], 256, 256, 16
        $region24: #{decoder_forward.10} parent=11 // pred_fallthru
          _
        // Predicated region
        $region25: #{decoder_forward.10} parent=11 // pred_check
          %p183 = pneg %p122
        $region26: #{decoder_forward.10} parent=11 // pred_check_branch
          %185 = sbr.rel (%p183) target = $region28
        $region27: #{decoder_forward.10} parent=11 // pred_region
          _
        $region28: #{decoder_forward.10} parent=11 // pred_fallthru
          _
      $region12: #{decoder_forward.10} parent=5 // pred_fallthru
        _
      %p186 = scmp.lt.s32.totalorder %s12, 2
      // Predicated region
      $region29: #{decoder_forward.10} parent=5 // pred_check
        %p187 = pneg %p186
      $region30: #{decoder_forward.10} parent=5 // pred_check_branch
        %189 = sbr.rel (%p187) target = $region32
      $region31: #{decoder_forward.10} parent=5 // pred_region
        // Predicated region
        $region33: #{decoder_forward.10} parent=31 // pred_check
          %p190 = pneg %p32
        $region34: #{decoder_forward.10} parent=31 // pred_check_branch
          %192 = sbr.rel (%p190) target = $region36
        $region35: #{decoder_forward.10} parent=31 // pred_region
          %s193 = smul.u32 2, %s12
          %p194 = scmp.lt.s32.totalorder %s193, 3
          %s195 = scalar_select %p194, %s193, 3
          %s196 = smul.addr %s195, 2
          %s197 = smul.addr %s196, 8
          %s198 = scalar_lea.vmem %s0, %s197
          %s199 = smul.u32 2, %s12
        $region36: #{decoder_forward.10} parent=31 // pred_fallthru
          _
      $region32: #{decoder_forward.10} parent=5 // pred_fallthru
        _
      %p200 = scmp.le.s32.totalorder 1, %s12
      %p201 = scmp.lt.s32.totalorder %s12, 3
      %p202 = pnand %p200, %p201
      %p203 = pneg %p202
      // Predicated region
      $region37: #{decoder_forward.10} parent=5 // pred_check
        _
      $region38: #{decoder_forward.10} parent=5 // pred_check_branch
        %205 = sbr.rel (%p202) target = $region40
      $region39: #{decoder_forward.10} parent=5 // pred_region
        %s206 = ssub.s32 %s12, 1
        // Predicated region
        $region41: #{decoder_forward.10} parent=39 // pred_check
          %p207 = pneg %p101
        $region42: #{decoder_forward.10} parent=39 // pred_check_branch
          %209 = sbr.rel (%p207) target = $region44
        $region43: #{decoder_forward.10} parent=39 // pred_region
          %211 = dma.done [#allocation3], 8192
        $region44: #{decoder_forward.10} parent=39 // pred_fallthru
          _
        %s212 = smul.u32 2, %s17
        %p213 = scmp.lt.s32.totalorder %s212, 3
        %s214 = scalar_select %p213, %s212, 3
        %s215 = smul.addr %s214, 2
        %s216 = smul.addr %s215, 8
        %s217 = scalar_lea.vmem %s0, %s216
        %p218 = pneg %p38
        %p219 = pneg %p35
        %p220 = pneg %p59
        %p221 = pneg %p56
        %p222 = pneg %p80
        %p223 = pneg %p77
        %p224 = pneg %p101
        %p225 = pneg %p98
        %p226 = pneg %p122
        %p227 = pneg %p119
        %p228 = pneg %p148
        %p229 = pneg %p145
        %s230 = smul.u32 2, %s17
        %p231 = scmp.lt.s32.totalorder %s230, 3
        %s232 = scalar_select %p231, %s230, 3
        %s233 = smul.addr %s232, 4
        %s234 = smul.addr %s233, 4
        %s235 = scalar_lea.vmem %s5, %s234
        %s236 = smul.u32 2, %s17
        %p237 = scmp.lt.s32.totalorder %s236, 3
        %s238 = scalar_select %p237, %s236, 3
        %s239 = smul.addr %s238, 2
        %s240 = smul.addr %s239, 8
        %s241 = scalar_lea.vmem %s0, %s240
        %s242 = smul.u32 2, %s17
        %s243 = smul.u32 2, %s17
        %p244 = scmp.lt.s32.totalorder %s243, 3
        %s245 = scalar_select %p244, %s243, 3
        %s246 = smul.addr %s245, 4
        %s247 = smul.addr %s246, 4
        %s248 = scalar_lea.vmem %s5, %s247
        %s249 = smul.u32 2, %s17
        %v250 = vld [vmem:[%s241] sm:$0xff]
        %v251 = vld [vmem:[%s241 + $0x8] sm:$0xff]
        %v252 = vld [vmem:[%s241 + $0x10] sm:$0xff]
        %v253 = vld [vmem:[%s241 + $0x18] sm:$0xff]
        %v254 = vld [vmem:[%s1] sm:$0x3]
        %v255 = vld [vmem:[%s2] sm:$0x3]
        %v256 = vadd.f32 %v250, %v251
        %257 = vadd.xlane.f32.xlu0 %v256
        %v258 = vpop.xlane.xlu0 %257
        %v259 = vadd.f32 %v252, %v253
        %260 = vadd.xlane.f32.xlu0 %v259
        %v261 = vpop.xlane.xlu0 %260
        %v262 = vrcp.pop 256.0
        %v263 = vmul.f32 256.0, %v262
        %v264 = vsub.f32 1.0, %v263
        %v265 = vmul.f32 %v262, %v264
        %v266 = vadd.f32 %v262, %v265
        %vm267 = vweird.f32 %v262
        %v268 = vsel %vm267, %v262, %v266
        %v269 = vmul.f32 %v258, %v268
        %v270 = vmul.f32 %v261, %v268
        %v271 = vsub.f32 %v250, %v269
        %v272 = vsub.f32 %v251, %v269
        %v273 = vsub.f32 %v252, %v270
        %v274 = vsub.f32 %v253, %v270
        %v275 = vmul.f32 %v271, %v271
        %v276 = vmul.f32 %v272, %v272
        %v277 = vmul.f32 %v273, %v273
        %v278 = vmul.f32 %v274, %v274
        %v279 = vadd.f32 %v275, %v276
        %280 = vadd.xlane.f32.xlu0 %v279
        %v281 = vpop.xlane.xlu0 %280
        %v282 = vadd.f32 %v277, %v278
        %283 = vadd.xlane.f32.xlu0 %v282
        %v284 = vpop.xlane.xlu0 %283
        %v285 = vmul.f32 %v281, 0.003921569
        %v286 = vmul.f32 %v284, 0.003921569
        %v287 = vrsqrt.pop %v285
        %v288 = vmul.f32 %v287, %v285
        %v289 = vmul.f32 %v288, %v287
        %v290 = vmul.f32 0.5, %v289
        %v291 = vsub.f32 1.5, %v290
        %v292 = vmul.f32 %v287, %v291
        %v293 = vmul.f32 %v285, %v292
        %vm294 = vcmp.eq.f32.partialorder %v285, inf
        %v295 = vsel %vm294, %v285, %v293
        %vm296 = vcmp.eq.f32.partialorder %v285, 0.0
        %v297 = vand.u32 %v285, 2147483648
        %v298 = vsel %vm296, %v297, %v295
        %v299 = vrsqrt.pop %v286
        %v300 = vmul.f32 %v299, %v286
        %v301 = vmul.f32 %v300, %v299
        %v302 = vmul.f32 0.5, %v301
        %v303 = vsub.f32 1.5, %v302
        %v304 = vmul.f32 %v299, %v303
        %v305 = vmul.f32 %v286, %v304
        %vm306 = vcmp.eq.f32.partialorder %v286, inf
        %v307 = vsel %vm306, %v286, %v305
        %vm308 = vcmp.eq.f32.partialorder %v286, 0.0
        %v309 = vand.u32 %v286, 2147483648
        %v310 = vsel %vm308, %v309, %v307
        %v311 = vadd.f32 %v298, 1e-06
        %v312 = vadd.f32 %v310, 1e-06
        %v313 = vrcp.pop %v311
        %v314 = vmul.f32 %v311, %v313
        %v315 = vsub.f32 1.0, %v314
        %v316 = vmul.f32 %v313, %v315
        %v317 = vadd.f32 %v313, %v316
        %vm318 = vweird.f32 %v311
        %vm319 = vweird.f32 %v313
        %vm320 = vmor %vm318, %vm319
        %v321 = vsel %vm320, %v313, %v317
        %v322 = vand.u32 2147483647, %v311
        %vm323 = vcmp.eq.f32.partialorder %v322, 8.507059e+37
        %v324 = vand.u32 %v311, 2147483648
        %v325 = vor.u32 1.1754944e-38, %v324
        %v326 = vsel %vm323, %v325, %v321
        %v327 = vmul.f32 1.0, %v326
        %v328 = vrcp.pop %v312
        %v329 = vmul.f32 %v312, %v328
        %v330 = vsub.f32 1.0, %v329
        %v331 = vmul.f32 %v328, %v330
        %v332 = vadd.f32 %v328, %v331
        %vm333 = vweird.f32 %v312
        %vm334 = vweird.f32 %v328
        %vm335 = vmor %vm333, %vm334
        %v336 = vsel %vm335, %v328, %v332
        %v337 = vand.u32 2147483647, %v312
        %vm338 = vcmp.eq.f32.partialorder %v337, 8.507059e+37
        %v339 = vand.u32 %v312, 2147483648
        %v340 = vor.u32 1.1754944e-38, %v339
        %v341 = vsel %vm338, %v340, %v336
        %v342 = vmul.f32 1.0, %v341
        %v343 = vmul.f32 %v271, %v327
        %v344 = vmul.f32 %v272, %v327
        %v345 = vmul.f32 %v273, %v342
        %v346 = vmul.f32 %v274, %v342
        %v348 = vperm.slane %v254, 0
        %v349 = vperm.slane %v254, 1
        %v352 = vmul.f32 %v348, %v343
        %v353 = vmul.f32 %v349, %v344
        %v354 = vmul.f32 %v348, %v345
        %v355 = vmul.f32 %v349, %v346
        %v357 = vperm.slane %v255, 0
        %v358 = vperm.slane %v255, 1
        %v361 = vadd.f32 %v352, %v357
        %v362 = vadd.f32 %v353, %v358
        %v363 = vadd.f32 %v354, %v357
        %v364 = vadd.f32 %v355, %v358
        %v365 = vpack.c.bf16 %v363, %v361
        %v366 = vpack.c.bf16 %v364, %v362
        %v367 = vld [vmem:[#allocation2] sm:$0xff]
        %v368 = vld [vmem:[#allocation2 + $0x8] sm:$0xff]
        %v369 = vld [vmem:[#allocation2 + $0x10] sm:$0xff]
        %v370 = vld [vmem:[#allocation2 + $0x18] sm:$0xff]
        %v371 = vld [vmem:[#allocation2 + $0x20] sm:$0xff]
        %v372 = vld [vmem:[#allocation2 + $0x28] sm:$0xff]
        %v373 = vld [vmem:[#allocation2 + $0x30] sm:$0xff]
        %v374 = vld [vmem:[#allocation2 + $0x38] sm:$0xff]
        %v375 = vld [vmem:[#allocation2 + $0x40] sm:$0xff]
        %v376 = vld [vmem:[#allocation2 + $0x48] sm:$0xff]
        %v377 = vld [vmem:[#allocation2 + $0x50] sm:$0xff]
        %v378 = vld [vmem:[#allocation2 + $0x58] sm:$0xff]
        %v379 = vld [vmem:[#allocation2 + $0x60] sm:$0xff]
        %v380 = vld [vmem:[#allocation2 + $0x68] sm:$0xff]
        %v381 = vld [vmem:[#allocation2 + $0x70] sm:$0xff]
        %v382 = vld [vmem:[#allocation2 + $0x78] sm:$0xff]
        %v383 = vld [vmem:[#allocation2 + $0x80] sm:$0xff]
        %v384 = vld [vmem:[#allocation2 + $0x88] sm:$0xff]
        %v385 = vld [vmem:[#allocation2 + $0x90] sm:$0xff]
        %v386 = vld [vmem:[#allocation2 + $0x98] sm:$0xff]
        %v387 = vld [vmem:[#allocation2 + $0xa0] sm:$0xff]
        %v388 = vld [vmem:[#allocation2 + $0xa8] sm:$0xff]
        %v389 = vld [vmem:[#allocation2 + $0xb0] sm:$0xff]
        %v390 = vld [vmem:[#allocation2 + $0xb8] sm:$0xff]
        %v391 = vld [vmem:[#allocation2 + $0xc0] sm:$0xff]
        %v392 = vld [vmem:[#allocation2 + $0xc8] sm:$0xff]
        %v393 = vld [vmem:[#allocation2 + $0xd0] sm:$0xff]
        %v394 = vld [vmem:[#allocation2 + $0xd8] sm:$0xff]
        %v395 = vld [vmem:[#allocation2 + $0xe0] sm:$0xff]
        %v396 = vld [vmem:[#allocation2 + $0xe8] sm:$0xff]
        %v397 = vld [vmem:[#allocation2 + $0xf0] sm:$0xff]
        %v398 = vld [vmem:[#allocation2 + $0xf8] sm:$0xff]
        %v399 = vld [vmem:[#allocation2 + $0x100] sm:$0xff]
        %v400 = vld [vmem:[#allocation2 + $0x108] sm:$0xff]
        %v401 = vld [vmem:[#allocation2 + $0x110] sm:$0xff]
        %v402 = vld [vmem:[#allocation2 + $0x118] sm:$0xff]
        %v403 = vld [vmem:[#allocation2 + $0x120] sm:$0xff]
        %v404 = vld [vmem:[#allocation2 + $0x128] sm:$0xff]
        %v405 = vld [vmem:[#allocation2 + $0x130] sm:$0xff]
        %v406 = vld [vmem:[#allocation2 + $0x138] sm:$0xff]
        %v407 = vld [vmem:[#allocation2 + $0x140] sm:$0xff]
        %v408 = vld [vmem:[#allocation2 + $0x148] sm:$0xff]
        %v409 = vld [vmem:[#allocation2 + $0x150] sm:$0xff]
        %v410 = vld [vmem:[#allocation2 + $0x158] sm:$0xff]
        %v411 = vld [vmem:[#allocation2 + $0x160] sm:$0xff]
        %v412 = vld [vmem:[#allocation2 + $0x168] sm:$0xff]
        %v413 = vld [vmem:[#allocation2 + $0x170] sm:$0xff]
        %v414 = vld [vmem:[#allocation2 + $0x178] sm:$0xff]
        %v415 = vld [vmem:[#allocation2 + $0x180] sm:$0xff]
        %v416 = vld [vmem:[#allocation2 + $0x188] sm:$0xff]
        %v417 = vld [vmem:[#allocation2 + $0x190] sm:$0xff]
        %v418 = vld [vmem:[#allocation2 + $0x198] sm:$0xff]
        %v419 = vld [vmem:[#allocation2 + $0x1a0] sm:$0xff]
        %v420 = vld [vmem:[#allocation2 + $0x1a8] sm:$0xff]
        %v421 = vld [vmem:[#allocation2 + $0x1b0] sm:$0xff]
        %v422 = vld [vmem:[#allocation2 + $0x1b8] sm:$0xff]
        %v423 = vld [vmem:[#allocation2 + $0x1c0] sm:$0xff]
        %v424 = vld [vmem:[#allocation2 + $0x1c8] sm:$0xff]
        %v425 = vld [vmem:[#allocation2 + $0x1d0] sm:$0xff]
        %v426 = vld [vmem:[#allocation2 + $0x1d8] sm:$0xff]
        %v427 = vld [vmem:[#allocation2 + $0x1e0] sm:$0xff]
        %v428 = vld [vmem:[#allocation2 + $0x1e8] sm:$0xff]
        %v429 = vld [vmem:[#allocation2 + $0x1f0] sm:$0xff]
        %v430 = vld [vmem:[#allocation2 + $0x1f8] sm:$0xff]
        %v431 = vld [vmem:[%s4] sm:$0xf]
        %v433 = vperm.slane %v431, 0
        %v434 = vperm.slane %v431, 1
        %v435 = vperm.slane %v431, 2
        %v436 = vperm.slane %v431, 3
        %v505 = vunpack.c.l.b16 %v367
        %v506 = vunpack.c.h.b16 %v367
        %v507 = vunpack.c.l.b16 %v368
        %v508 = vunpack.c.h.b16 %v368
        %v509 = vunpack.c.l.b16 %v369
        %v510 = vunpack.c.h.b16 %v369
        %v511 = vunpack.c.l.b16 %v370
        %v512 = vunpack.c.h.b16 %v370
        %v513 = vunpack.c.l.b16 %v371
        %v514 = vunpack.c.h.b16 %v371
        %v515 = vunpack.c.l.b16 %v372
        %v516 = vunpack.c.h.b16 %v372
        %v517 = vunpack.c.l.b16 %v373
        %v518 = vunpack.c.h.b16 %v373
        %v519 = vunpack.c.l.b16 %v374
        %v520 = vunpack.c.h.b16 %v374
        %v521 = vunpack.c.l.b16 %v375
        %v522 = vunpack.c.h.b16 %v375
        %v523 = vunpack.c.l.b16 %v376
        %v524 = vunpack.c.h.b16 %v376
        %v525 = vunpack.c.l.b16 %v377
        %v526 = vunpack.c.h.b16 %v377
        %v527 = vunpack.c.l.b16 %v378
        %v528 = vunpack.c.h.b16 %v378
        %v529 = vunpack.c.l.b16 %v379
        %v530 = vunpack.c.h.b16 %v379
        %v531 = vunpack.c.l.b16 %v380
        %v532 = vunpack.c.h.b16 %v380
        %v533 = vunpack.c.l.b16 %v381
        %v534 = vunpack.c.h.b16 %v381
        %v535 = vunpack.c.l.b16 %v382
        %v536 = vunpack.c.h.b16 %v382
        %v537 = vunpack.c.l.b16 %v383
        %v538 = vunpack.c.h.b16 %v383
        %v539 = vunpack.c.l.b16 %v384
        %v540 = vunpack.c.h.b16 %v384
        %v541 = vunpack.c.l.b16 %v385
        %v542 = vunpack.c.h.b16 %v385
        %v543 = vunpack.c.l.b16 %v386
        %v544 = vunpack.c.h.b16 %v386
        %v545 = vunpack.c.l.b16 %v387
        %v546 = vunpack.c.h.b16 %v387
        %v547 = vunpack.c.l.b16 %v388
        %v548 = vunpack.c.h.b16 %v388
        %v549 = vunpack.c.l.b16 %v389
        %v550 = vunpack.c.h.b16 %v389
        %v551 = vunpack.c.l.b16 %v390
        %v552 = vunpack.c.h.b16 %v390
        %v553 = vunpack.c.l.b16 %v391
        %v554 = vunpack.c.h.b16 %v391
        %v555 = vunpack.c.l.b16 %v392
        %v556 = vunpack.c.h.b16 %v392
        %v557 = vunpack.c.l.b16 %v393
        %v558 = vunpack.c.h.b16 %v393
        %v559 = vunpack.c.l.b16 %v394
        %v560 = vunpack.c.h.b16 %v394
        %v561 = vunpack.c.l.b16 %v395
        %v562 = vunpack.c.h.b16 %v395
        %v563 = vunpack.c.l.b16 %v396
        %v564 = vunpack.c.h.b16 %v396
        %v565 = vunpack.c.l.b16 %v397
        %v566 = vunpack.c.h.b16 %v397
        %v567 = vunpack.c.l.b16 %v398
        %v568 = vunpack.c.h.b16 %v398
        %v569 = vunpack.c.l.b16 %v399
        %v570 = vunpack.c.h.b16 %v399
        %v571 = vunpack.c.l.b16 %v400
        %v572 = vunpack.c.h.b16 %v400
        %v573 = vunpack.c.l.b16 %v401
        %v574 = vunpack.c.h.b16 %v401
        %v575 = vunpack.c.l.b16 %v402
        %v576 = vunpack.c.h.b16 %v402
        %v577 = vunpack.c.l.b16 %v403
        %v578 = vunpack.c.h.b16 %v403
        %v579 = vunpack.c.l.b16 %v404
        %v580 = vunpack.c.h.b16 %v404
        %v581 = vunpack.c.l.b16 %v405
        %v582 = vunpack.c.h.b16 %v405
        %v583 = vunpack.c.l.b16 %v406
        %v584 = vunpack.c.h.b16 %v406
        %v585 = vunpack.c.l.b16 %v407
        %v586 = vunpack.c.h.b16 %v407
        %v587 = vunpack.c.l.b16 %v408
        %v588 = vunpack.c.h.b16 %v408
        %v589 = vunpack.c.l.b16 %v409
        %v590 = vunpack.c.h.b16 %v409
        %v591 = vunpack.c.l.b16 %v410
        %v592 = vunpack.c.h.b16 %v410
        %v593 = vunpack.c.l.b16 %v411
        %v594 = vunpack.c.h.b16 %v411
        %v595 = vunpack.c.l.b16 %v412
        %v596 = vunpack.c.h.b16 %v412
        %v597 = vunpack.c.l.b16 %v413
        %v598 = vunpack.c.h.b16 %v413
        %v599 = vunpack.c.l.b16 %v414
        %v600 = vunpack.c.h.b16 %v414
        %v601 = vunpack.c.l.b16 %v415
        %v602 = vunpack.c.h.b16 %v415
        %v603 = vunpack.c.l.b16 %v416
        %v604 = vunpack.c.h.b16 %v416
        %v605 = vunpack.c.l.b16 %v417
        %v606 = vunpack.c.h.b16 %v417
        %v607 = vunpack.c.l.b16 %v418
        %v608 = vunpack.c.h.b16 %v418
        %v609 = vunpack.c.l.b16 %v419
        %v610 = vunpack.c.h.b16 %v419
        %v611 = vunpack.c.l.b16 %v420
        %v612 = vunpack.c.h.b16 %v420
        %v613 = vunpack.c.l.b16 %v421
        %v614 = vunpack.c.h.b16 %v421
        %v615 = vunpack.c.l.b16 %v422
        %v616 = vunpack.c.h.b16 %v422
        %v617 = vunpack.c.l.b16 %v423
        %v618 = vunpack.c.h.b16 %v423
        %v619 = vunpack.c.l.b16 %v424
        %v620 = vunpack.c.h.b16 %v424
        %v621 = vunpack.c.l.b16 %v425
        %v622 = vunpack.c.h.b16 %v425
        %v623 = vunpack.c.l.b16 %v426
        %v624 = vunpack.c.h.b16 %v426
        %v625 = vunpack.c.l.b16 %v427
        %v626 = vunpack.c.h.b16 %v427
        %v627 = vunpack.c.l.b16 %v428
        %v628 = vunpack.c.h.b16 %v428
        %v629 = vunpack.c.l.b16 %v429
        %v630 = vunpack.c.h.b16 %v429
        %v631 = vunpack.c.l.b16 %v430
        %v632 = vunpack.c.h.b16 %v430
        %v633 = vpack.c.b16 %v509, %v505
        %v634 = vpack.c.b16 %v510, %v506
        %v635 = vpack.c.b16 %v511, %v507
        %v636 = vpack.c.b16 %v512, %v508
        %v637 = vpack.c.b16 %v517, %v513
        %v638 = vpack.c.b16 %v518, %v514
        %v639 = vpack.c.b16 %v519, %v515
        %v640 = vpack.c.b16 %v520, %v516
        %v641 = vpack.c.b16 %v525, %v521
        %v642 = vpack.c.b16 %v526, %v522
        %v643 = vpack.c.b16 %v527, %v523
        %v644 = vpack.c.b16 %v528, %v524
        %v645 = vpack.c.b16 %v533, %v529
        %v646 = vpack.c.b16 %v534, %v530
        %v647 = vpack.c.b16 %v535, %v531
        %v648 = vpack.c.b16 %v536, %v532
        %v649 = vpack.c.b16 %v541, %v537
        %v650 = vpack.c.b16 %v542, %v538
        %v651 = vpack.c.b16 %v543, %v539
        %v652 = vpack.c.b16 %v544, %v540
        %v653 = vpack.c.b16 %v549, %v545
        %v654 = vpack.c.b16 %v550, %v546
        %v655 = vpack.c.b16 %v551, %v547
        %v656 = vpack.c.b16 %v552, %v548
        %v657 = vpack.c.b16 %v557, %v553
        %v658 = vpack.c.b16 %v558, %v554
        %v659 = vpack.c.b16 %v559, %v555
        %v660 = vpack.c.b16 %v560, %v556
        %v661 = vpack.c.b16 %v565, %v561
        %v662 = vpack.c.b16 %v566, %v562
        %v663 = vpack.c.b16 %v567, %v563
        %v664 = vpack.c.b16 %v568, %v564
        %v665 = vpack.c.b16 %v573, %v569
        %v666 = vpack.c.b16 %v574, %v570
        %v667 = vpack.c.b16 %v575, %v571
        %v668 = vpack.c.b16 %v576, %v572
        %v669 = vpack.c.b16 %v581, %v577
        %v670 = vpack.c.b16 %v582, %v578
        %v671 = vpack.c.b16 %v583, %v579
        %v672 = vpack.c.b16 %v584, %v580
        %v673 = vpack.c.b16 %v589, %v585
        %v674 = vpack.c.b16 %v590, %v586
        %v675 = vpack.c.b16 %v591, %v587
        %v676 = vpack.c.b16 %v592, %v588
        %v677 = vpack.c.b16 %v597, %v593
        %v678 = vpack.c.b16 %v598, %v594
        %v679 = vpack.c.b16 %v599, %v595
        %v680 = vpack.c.b16 %v600, %v596
        %v681 = vpack.c.b16 %v605, %v601
        %v682 = vpack.c.b16 %v606, %v602
        %v683 = vpack.c.b16 %v607, %v603
        %v684 = vpack.c.b16 %v608, %v604
        %v685 = vpack.c.b16 %v613, %v609
        %v686 = vpack.c.b16 %v614, %v610
        %v687 = vpack.c.b16 %v615, %v611
        %v688 = vpack.c.b16 %v616, %v612
        %v689 = vpack.c.b16 %v621, %v617
        %v690 = vpack.c.b16 %v622, %v618
        %v691 = vpack.c.b16 %v623, %v619
        %v692 = vpack.c.b16 %v624, %v620
        %v693 = vpack.c.b16 %v629, %v625
        %v694 = vpack.c.b16 %v630, %v626
        %v695 = vpack.c.b16 %v631, %v627
        %v696 = vpack.c.b16 %v632, %v628
        %761 = vmatpush.bf16.msra.mxu0 %v661
        %762 = vmatpush.bf16.msra.mxu0 %v657
        %763 = vmatpush.bf16.msra.mxu0 %v653
        %764 = vmatpush.bf16.msra.mxu0 %v649
        %765 = vmatpush.bf16.msra.mxu0 %v645
        %766 = vmatpush.bf16.msra.mxu0 %v641
        %767 = vmatpush.bf16.msra.mxu0 %v637
        %768 = vmatpush.bf16.msra.mxu0 %v633
        %769 = vmatmul.bf16.gmra.mxu0 %v365
        %v770 = vpop.f32.mrf.mxu0
        %v771 = vadd.f32 %v433, %v770
        %v772 = vpop.f32.mrf.mxu0
        %v773 = vadd.f32 %v433, %v772
        %774 = vdwg.mxu0
        %775 = vmatpush.bf16.msra.mxu0 %v693
        %776 = vmatpush.bf16.msra.mxu0 %v689
        %777 = vmatpush.bf16.msra.mxu0 %v685
        %778 = vmatpush.bf16.msra.mxu0 %v681
        %779 = vmatpush.bf16.msra.mxu0 %v677
        %780 = vmatpush.bf16.msra.mxu0 %v673
        %781 = vmatpush.bf16.msra.mxu0 %v669
        %782 = vmatpush.bf16.msra.mxu0 %v665
        %783 = vmatmul.bf16.gmra.mxu0 %v366
        %v784 = vpop.f32.mrf.mxu0
        %v785 = vadd.f32 %v771, %v784
        %v786 = vpop.f32.mrf.mxu0
        %v787 = vadd.f32 %v773, %v786
        %788 = vdwg.mxu0
        %789 = vmatpush.bf16.msra.mxu0 %v662
        %790 = vmatpush.bf16.msra.mxu0 %v658
        %791 = vmatpush.bf16.msra.mxu0 %v654
        %792 = vmatpush.bf16.msra.mxu0 %v650
        %793 = vmatpush.bf16.msra.mxu0 %v646
        %794 = vmatpush.bf16.msra.mxu0 %v642
        %795 = vmatpush.bf16.msra.mxu0 %v638
        %796 = vmatpush.bf16.msra.mxu0 %v634
        %797 = vmatmul.bf16.gmra.mxu0 %v365
        %v798 = vpop.f32.mrf.mxu0
        %v799 = vadd.f32 %v434, %v798
        %v800 = vpop.f32.mrf.mxu0
        %v801 = vadd.f32 %v434, %v800
        %802 = vdwg.mxu0
        %803 = vmatpush.bf16.msra.mxu0 %v694
        %804 = vmatpush.bf16.msra.mxu0 %v690
        %805 = vmatpush.bf16.msra.mxu0 %v686
        %806 = vmatpush.bf16.msra.mxu0 %v682
        %807 = vmatpush.bf16.msra.mxu0 %v678
        %808 = vmatpush.bf16.msra.mxu0 %v674
        %809 = vmatpush.bf16.msra.mxu0 %v670
        %810 = vmatpush.bf16.msra.mxu0 %v666
        %811 = vmatmul.bf16.gmra.mxu0 %v366
        %v812 = vpop.f32.mrf.mxu0
        %v813 = vadd.f32 %v799, %v812
        %v814 = vpop.f32.mrf.mxu0
        %v815 = vadd.f32 %v801, %v814
        %816 = vdwg.mxu0
        %817 = vmatpush.bf16.msra.mxu0 %v663
        %818 = vmatpush.bf16.msra.mxu0 %v659
        %819 = vmatpush.bf16.msra.mxu0 %v655
        %820 = vmatpush.bf16.msra.mxu0 %v651
        %821 = vmatpush.bf16.msra.mxu0 %v647
        %822 = vmatpush.bf16.msra.mxu0 %v643
        %823 = vmatpush.bf16.msra.mxu0 %v639
        %824 = vmatpush.bf16.msra.mxu0 %v635
        %825 = vmatmul.bf16.gmra.mxu0 %v365
        %v826 = vpop.f32.mrf.mxu0
        %v827 = vadd.f32 %v435, %v826
        %v828 = vpop.f32.mrf.mxu0
        %v829 = vadd.f32 %v435, %v828
        %830 = vdwg.mxu0
        %831 = vmatpush.bf16.msra.mxu0 %v695
        %832 = vmatpush.bf16.msra.mxu0 %v691
        %833 = vmatpush.bf16.msra.mxu0 %v687
        %834 = vmatpush.bf16.msra.mxu0 %v683
        %835 = vmatpush.bf16.msra.mxu0 %v679
        %836 = vmatpush.bf16.msra.mxu0 %v675
        %837 = vmatpush.bf16.msra.mxu0 %v671
        %838 = vmatpush.bf16.msra.mxu0 %v667
        %839 = vmatmul.bf16.gmra.mxu0 %v366
        %v840 = vpop.f32.mrf.mxu0
        %v841 = vadd.f32 %v827, %v840
        %v842 = vpop.f32.mrf.mxu0
        %v843 = vadd.f32 %v829, %v842
        %844 = vdwg.mxu0
        %845 = vmatpush.bf16.msra.mxu0 %v664
        %846 = vmatpush.bf16.msra.mxu0 %v660
        %847 = vmatpush.bf16.msra.mxu0 %v656
        %848 = vmatpush.bf16.msra.mxu0 %v652
        %849 = vmatpush.bf16.msra.mxu0 %v648
        %850 = vmatpush.bf16.msra.mxu0 %v644
        %851 = vmatpush.bf16.msra.mxu0 %v640
        %852 = vmatpush.bf16.msra.mxu0 %v636
        %853 = vmatmul.bf16.gmra.mxu0 %v365
        %v854 = vpop.f32.mrf.mxu0
        %v855 = vadd.f32 %v436, %v854
        %v856 = vpop.f32.mrf.mxu0
        %v857 = vadd.f32 %v436, %v856
        %858 = vdwg.mxu0
        %859 = vmatpush.bf16.msra.mxu0 %v696
        %860 = vmatpush.bf16.msra.mxu0 %v692
        %861 = vmatpush.bf16.msra.mxu0 %v688
        %862 = vmatpush.bf16.msra.mxu0 %v684
        %863 = vmatpush.bf16.msra.mxu0 %v680
        %864 = vmatpush.bf16.msra.mxu0 %v676
        %865 = vmatpush.bf16.msra.mxu0 %v672
        %866 = vmatpush.bf16.msra.mxu0 %v668
        %867 = vmatmul.bf16.gmra.mxu0 %v366
        %v868 = vpop.f32.mrf.mxu0
        %v869 = vadd.f32 %v855, %v868
        %v870 = vpop.f32.mrf.mxu0
        %v871 = vadd.f32 %v857, %v870
        %872 = vdwg.mxu0
        %v873 = vpack.c.bf16 %v813, %v785
        %v874 = vpack.c.bf16 %v869, %v841
        %v875 = vpack.c.bf16 %v815, %v787
        %v876 = vpack.c.bf16 %v871, %v843
        %877 = vst [vmem:[%s248] sm:$0xff] %v873
        %878 = vst [vmem:[%s248 + $0x8] sm:$0xff] %v874
        %879 = vst [vmem:[%s248 + $0x10] sm:$0xff] %v875
        %880 = vst [vmem:[%s248 + $0x18] sm:$0xff] %v876
        %s881 = smul.u32 2, %s17
        %p882 = scmp.lt.s32.totalorder %s881, 3
        %s883 = scalar_select %p882, %s881, 3
        %s884 = smul.addr %s883, 4
        %s885 = smul.addr %s884, 4
        %s886 = scalar_lea.vmem %s5, %s885
        // Predicated region
        $region45: #{decoder_forward.10} parent=39 // pred_check
          %p887 = pneg %p145
        $region46: #{decoder_forward.10} parent=39 // pred_check_branch
          %889 = sbr.rel (%p887) target = $region48
        $region47: #{decoder_forward.10} parent=39 // pred_region
          %s890 = smul.u32 2, %s17
        $region48: #{decoder_forward.10} parent=39 // pred_fallthru
          _
      $region40: #{decoder_forward.10} parent=5 // pred_fallthru
        _
      %p891 = scmp.le.s32.totalorder 2, %s12
      // Predicated region
      $region49: #{decoder_forward.10} parent=5 // pred_check
        %p892 = pneg %p891
      $region50: #{decoder_forward.10} parent=5 // pred_check_branch
        %894 = sbr.rel (%p892) target = $region52
      $region51: #{decoder_forward.10} parent=5 // pred_region
        %s895 = ssub.s32 %s12, 2
        // Predicated region
        $region53: #{decoder_forward.10} parent=51 // pred_check
          %p896 = pneg %p151
        $region54: #{decoder_forward.10} parent=51 // pred_check_branch
          %898 = sbr.rel (%p896) target = $region56
        $region55: #{decoder_forward.10} parent=51 // pred_region
          %s899 = smul.u32 2, %s18
          %p900 = scmp.lt.s32.totalorder %s899, 3
          %s901 = scalar_select %p900, %s899, 3
          %s902 = smul.addr %s901, 4
          %s903 = smul.addr %s902, 4
          %s904 = scalar_lea.vmem %s5, %s903
        $region56: #{decoder_forward.10} parent=51 // pred_fallthru
          _
      $region52: #{decoder_forward.10} parent=5 // pred_fallthru
        _
    $region6: #{decoder_forward.10} parent=1 // loop_footer
      %s16 = sadd.s32 1, %s12
    $region7: #{decoder_forward.10} parent=1 // loop_footer_branch
      %11 = sbr.rel target = $region3
    $region8: #{decoder_forward.10} parent=1 // loop_exit
      _
    %905 = vsyncpa [#allocation3], 1
    %s906 = scalar_lea.sflag [#allocation3], 1
    %907 = vsyncpa %s906, 1

// kernel: decoder_forward.11
$region0: #{decoder_forward.11}
  #allocation0 [shape = 'u32[]', space=smem, size = 0x4, offset = 0x4, fixed_abs, tag = 'smem constant byte address 0x4 - core index']
  #allocation1 [shape = 'u32[72,128]{1,0:T(1,128)}', space=vmem, size = 0x9000, scoped, tag = 'internal scratch']
  #allocation2 [shape = 'bf16[16,256]{1,0:T(8,128)(2,1)}', space=vmem, size = 0x2000, scoped, tag = 'scratch operand']
  #allocation3 [shape = 'f32[2,16,1]{2,1,0:T(8,128)}', space=vmem, size = 0x4000, scoped, tag = 'scratch operand']
  #allocation4 [shape = 'f32[2,16,1]{2,1,0:T(8,128)}', space=vmem, size = 0x4000, scoped, tag = 'scratch operand']
  #allocation5 [shape = 'f32[16,256]{1,0:T(8,128)}', space=vmem, size = 0x4000, scoped, tag = 'scratch operand']
  %s0 = inlined_call_operand.vmem [shape: f32[2,16,256], index: 0, kind: input, shape index: {}, may-alias: {0,9}]
  %s1 = inlined_call_operand.vmem [shape: bf16[2,16,512], index: 1, kind: input, shape index: {}]
  %s2 = inlined_call_operand.vmem [shape: f32[1,16,16], index: 2, kind: input, shape index: {}]
  %s3 = inlined_call_operand.vmem [shape: f32[1,256], index: 3, kind: input, shape index: {}]
  %s4 = inlined_call_operand.vmem [shape: f32[1,256], index: 4, kind: input, shape index: {}]
  %s5 = inlined_call_operand.hbm [shape: bf16[256,256], index: 5, kind: input, shape index: {}]
  %s6 = inlined_call_operand.vmem [shape: f32[1,256], index: 6, kind: input, shape index: {}]
  %s7 = inlined_call_operand.hbm [shape: bf16[256,256], index: 7, kind: input, shape index: {}]
  %s8 = inlined_call_operand.vmem [shape: f32[1,256], index: 8, kind: input, shape index: {}]
  %s9 = inlined_call_operand.vmem [shape: f32[2,16,256], index: 9, kind: output, shape index: {}, may-alias: {0,9}]
  %s10 = sld [smem:[#allocation0]]
  $region85: #{decoder_forward.11} parent=0
    _
  %s12 = ssub.s32 1, %s10
  %s13 = scalar_select 0, %s12, %s10
  $region1: #{decoder_forward.11} parent=0
    #allocation6 [shape = 'u8[131072]{0}', space=vmem, size = 0x20000, scoped, tag = 'input window, operand 5, single buffered']
    #allocation7 [shape = 's32[2]{0}', space=sflag, size = 0x8, scoped, tag = 'scoped memory for decoder_forward.11']
    #allocation8 [shape = 'u8[131072]{0}', space=vmem, size = 0x20000, scoped, tag = 'input window, operand 7, single buffered']
    #allocation9 [shape = 's32[1]{0}', space=sflag, size = 0x4, scoped, tag = 'scoped memory for decoder_forward.11']
    %14 = vsyncpa [#allocation7], 0
    %15 = vsyncpa [#allocation9], 0
    loop: start=0, step=1, limit=4
    $region2: #{decoder_forward.11} parent=1 // loop_pre_header
      _
    $region3: #{decoder_forward.11} parent=1 // loop_header
      %s17 = sphi 0, %s21
      %p18 = scmp.ge.s32.totalorder %s17, 4
      %s24 = sphi 0, %s43
      %s25 = sphi 0, %s39
      %s26 = sphi 0, %s35
      %s27 = sphi 0, %s24
      %s28 = sphi 0, %s25
      %s29 = sphi 0, %s26
      %s30 = sphi 0, %s27
      %s31 = sphi 0, %s28
      %s32 = sphi 0, %s29
      %s48 = sphi 0, %s50
      %s51 = sphi 0, %s48
      %s52 = sphi 0, %s51
      %s68 = sphi 0, %s52
      %s76 = sphi 0, %s78
      %s79 = sphi 0, %s76
      %s80 = sphi 0, %s79
      %s96 = sphi 0, %s80
      %s104 = sphi 0, %s106
      %s107 = sphi 0, %s104
      %s108 = sphi 0, %s107
      %s124 = sphi 0, %s108
      %s128 = sphi 0, %s128
      %s130 = sphi 0, %s128
      %s131 = sphi 0, %s130
      %s145 = sphi 0, %s131
      %s149 = sphi 0, %s149
      %s151 = sphi 0, %s149
      %s152 = sphi 0, %s151
      %s166 = sphi 0, %s152
      %s170 = sphi 0, %s170
      %s172 = sphi 0, %s170
      %s173 = sphi 0, %s172
      %s187 = sphi 0, %s173
      %s191 = sphi 0, %s191
      %s193 = sphi 0, %s191
      %s194 = sphi 0, %s193
      %s208 = sphi 0, %s194
      %s212 = sphi 0, %s212
      %s214 = sphi 0, %s212
      %s215 = sphi 0, %s214
      %s229 = sphi 0, %s215
      %s233 = sphi 0, %s233
      %s235 = sphi 0, %s233
      %s236 = sphi 0, %s235
      %s250 = sphi 0, %s236
      %s258 = sphi 0, %s260
      %s261 = sphi 0, %s258
      %s262 = sphi 0, %s261
      %s278 = sphi 0, %s262
    $region4: #{decoder_forward.11} parent=1 // loop_header_branch
      %20 = sbr.rel (%p18) target = $region8
    $region5: #{decoder_forward.11} parent=1 // loop_body
      %s22 = ssub.s32 %s17, 1
      %s23 = ssub.s32 %s17, 2
      %s33 = sadd.s32 1, %s26
      %p34 = scmp.ge.s32.totalorder %s33, 1
      %s35 = scalar_select %p34, 0, %s33
      %s36 = sadd.s32 1, %s25
      %s37 = scalar_select %p34, %s36, %s25
      %p38 = scmp.ge.s32.totalorder %s37, 1
      %s39 = scalar_select %p38, 0, %s37
      %s40 = sadd.s32 1, %s24
      %s41 = scalar_select %p38, %s40, %s24
      %p42 = scmp.ge.s32.totalorder %s41, 2
      %s43 = scalar_select %p42, 0, %s41
      %s44 = ssub.s32 %s24, %s43
      %s45 = ssub.s32 %s25, %s39
      %s46 = sor.u32 %s44, %s45
      %p47 = scmp.eq.s32.totalorder %s46, 0
      %s49 = sadd.s32 %s48, 1
      %s50 = scalar_select %p47, %s48, %s49
      %p53 = pneg %p47
      %p54 = scmp.eq.s32.totalorder %s17, 1
      %p55 = por %p53, %p54
      %p56 = scmp.ne.s32.totalorder %s48, %s51
      %p57 = scmp.eq.s32.totalorder %s17, 0
      %p58 = por %p56, %p57
      %p59 = scmp.ne.s32.totalorder %s48, %s51
      %p60 = scmp.eq.s32.totalorder %s22, 1
      %p61 = por %p59, %p60
      %p62 = scmp.ne.s32.totalorder %s51, %s52
      %p63 = scmp.eq.s32.totalorder %s22, 0
      %p64 = por %p62, %p63
      %p65 = scmp.ne.s32.totalorder %s51, %s52
      %p66 = scmp.eq.s32.totalorder %s23, 1
      %p67 = por %p65, %p66
      %p69 = scmp.ne.s32.totalorder %s52, %s68
      %p70 = scmp.eq.s32.totalorder %s23, 0
      %p71 = por %p69, %p70
      %s72 = ssub.s32 %s24, %s43
      %s73 = ssub.s32 %s26, %s35
      %s74 = sor.u32 %s72, %s73
      %p75 = scmp.eq.s32.totalorder %s74, 0
      %s77 = sadd.s32 %s76, 1
      %s78 = scalar_select %p75, %s76, %s77
      %p81 = pneg %p75
      %p82 = scmp.eq.s32.totalorder %s17, 1
      %p83 = por %p81, %p82
      %p84 = scmp.ne.s32.totalorder %s76, %s79
      %p85 = scmp.eq.s32.totalorder %s17, 0
      %p86 = por %p84, %p85
      %p87 = scmp.ne.s32.totalorder %s76, %s79
      %p88 = scmp.eq.s32.totalorder %s22, 1
      %p89 = por %p87, %p88
      %p90 = scmp.ne.s32.totalorder %s79, %s80
      %p91 = scmp.eq.s32.totalorder %s22, 0
      %p92 = por %p90, %p91
      %p93 = scmp.ne.s32.totalorder %s79, %s80
      %p94 = scmp.eq.s32.totalorder %s23, 1
      %p95 = por %p93, %p94
      %p97 = scmp.ne.s32.totalorder %s80, %s96
      %p98 = scmp.eq.s32.totalorder %s23, 0
      %p99 = por %p97, %p98
      %s100 = ssub.s32 %s25, %s39
      %s101 = ssub.s32 %s26, %s35
      %s102 = sor.u32 %s100, %s101
      %p103 = scmp.eq.s32.totalorder %s102, 0
      %s105 = sadd.s32 %s104, 1
      %s106 = scalar_select %p103, %s104, %s105
      %p109 = pneg %p103
      %p110 = scmp.eq.s32.totalorder %s17, 1
      %p111 = por %p109, %p110
      %p112 = scmp.ne.s32.totalorder %s104, %s107
      %p113 = scmp.eq.s32.totalorder %s17, 0
      %p114 = por %p112, %p113
      %p115 = scmp.ne.s32.totalorder %s104, %s107
      %p116 = scmp.eq.s32.totalorder %s22, 1
      %p117 = por %p115, %p116
      %p118 = scmp.ne.s32.totalorder %s107, %s108
      %p119 = scmp.eq.s32.totalorder %s22, 0
      %p120 = por %p118, %p119
      %p121 = scmp.ne.s32.totalorder %s107, %s108
      %p122 = scmp.eq.s32.totalorder %s23, 1
      %p123 = por %p121, %p122
      %p125 = scmp.ne.s32.totalorder %s108, %s124
      %p126 = scmp.eq.s32.totalorder %s23, 0
      %p127 = por %p125, %p126
      %s129 = sadd.s32 %s128, 1
      %p132 = scmp.eq.s32.totalorder %s17, 1
      %p133 = scmp.ne.s32.totalorder %s128, %s130
      %p134 = scmp.eq.s32.totalorder %s17, 0
      %p135 = por %p133, %p134
      %p136 = scmp.ne.s32.totalorder %s128, %s130
      %p137 = scmp.eq.s32.totalorder %s22, 1
      %p138 = por %p136, %p137
      %p139 = scmp.ne.s32.totalorder %s130, %s131
      %p140 = scmp.eq.s32.totalorder %s22, 0
      %p141 = por %p139, %p140
      %p142 = scmp.ne.s32.totalorder %s130, %s131
      %p143 = scmp.eq.s32.totalorder %s23, 1
      %p144 = por %p142, %p143
      %p146 = scmp.ne.s32.totalorder %s131, %s145
      %p147 = scmp.eq.s32.totalorder %s23, 0
      %p148 = por %p146, %p147
      %s150 = sadd.s32 %s149, 1
      %p153 = scmp.eq.s32.totalorder %s17, 1
      %p154 = scmp.ne.s32.totalorder %s149, %s151
      %p155 = scmp.eq.s32.totalorder %s17, 0
      %p156 = por %p154, %p155
      %p157 = scmp.ne.s32.totalorder %s149, %s151
      %p158 = scmp.eq.s32.totalorder %s22, 1
      %p159 = por %p157, %p158
      %p160 = scmp.ne.s32.totalorder %s151, %s152
      %p161 = scmp.eq.s32.totalorder %s22, 0
      %p162 = por %p160, %p161
      %p163 = scmp.ne.s32.totalorder %s151, %s152
      %p164 = scmp.eq.s32.totalorder %s23, 1
      %p165 = por %p163, %p164
      %p167 = scmp.ne.s32.totalorder %s152, %s166
      %p168 = scmp.eq.s32.totalorder %s23, 0
      %p169 = por %p167, %p168
      %s171 = sadd.s32 %s170, 1
      %p174 = scmp.eq.s32.totalorder %s17, 1
      %p175 = scmp.ne.s32.totalorder %s170, %s172
      %p176 = scmp.eq.s32.totalorder %s17, 0
      %p177 = por %p175, %p176
      %p178 = scmp.ne.s32.totalorder %s170, %s172
      %p179 = scmp.eq.s32.totalorder %s22, 1
      %p180 = por %p178, %p179
      %p181 = scmp.ne.s32.totalorder %s172, %s173
      %p182 = scmp.eq.s32.totalorder %s22, 0
      %p183 = por %p181, %p182
      %p184 = scmp.ne.s32.totalorder %s172, %s173
      %p185 = scmp.eq.s32.totalorder %s23, 1
      %p186 = por %p184, %p185
      %p188 = scmp.ne.s32.totalorder %s173, %s187
      %p189 = scmp.eq.s32.totalorder %s23, 0
      %p190 = por %p188, %p189
      %s192 = sadd.s32 %s191, 1
      %p195 = scmp.eq.s32.totalorder %s17, 1
      %p196 = scmp.ne.s32.totalorder %s191, %s193
      %p197 = scmp.eq.s32.totalorder %s17, 0
      %p198 = por %p196, %p197
      %p199 = scmp.ne.s32.totalorder %s191, %s193
      %p200 = scmp.eq.s32.totalorder %s22, 1
      %p201 = por %p199, %p200
      %p202 = scmp.ne.s32.totalorder %s193, %s194
      %p203 = scmp.eq.s32.totalorder %s22, 0
      %p204 = por %p202, %p203
      %p205 = scmp.ne.s32.totalorder %s193, %s194
      %p206 = scmp.eq.s32.totalorder %s23, 1
      %p207 = por %p205, %p206
      %p209 = scmp.ne.s32.totalorder %s194, %s208
      %p210 = scmp.eq.s32.totalorder %s23, 0
      %p211 = por %p209, %p210
      %s213 = sadd.s32 %s212, 1
      %p216 = scmp.eq.s32.totalorder %s17, 1
      %p217 = scmp.ne.s32.totalorder %s212, %s214
      %p218 = scmp.eq.s32.totalorder %s17, 0
      %p219 = por %p217, %p218
      %p220 = scmp.ne.s32.totalorder %s212, %s214
      %p221 = scmp.eq.s32.totalorder %s22, 1
      %p222 = por %p220, %p221
      %p223 = scmp.ne.s32.totalorder %s214, %s215
      %p224 = scmp.eq.s32.totalorder %s22, 0
      %p225 = por %p223, %p224
      %p226 = scmp.ne.s32.totalorder %s214, %s215
      %p227 = scmp.eq.s32.totalorder %s23, 1
      %p228 = por %p226, %p227
      %p230 = scmp.ne.s32.totalorder %s215, %s229
      %p231 = scmp.eq.s32.totalorder %s23, 0
      %p232 = por %p230, %p231
      %s234 = sadd.s32 %s233, 1
      %p237 = scmp.eq.s32.totalorder %s17, 1
      %p238 = scmp.ne.s32.totalorder %s233, %s235
      %p239 = scmp.eq.s32.totalorder %s17, 0
      %p240 = por %p238, %p239
      %p241 = scmp.ne.s32.totalorder %s233, %s235
      %p242 = scmp.eq.s32.totalorder %s22, 1
      %p243 = por %p241, %p242
      %p244 = scmp.ne.s32.totalorder %s235, %s236
      %p245 = scmp.eq.s32.totalorder %s22, 0
      %p246 = por %p244, %p245
      %p247 = scmp.ne.s32.totalorder %s235, %s236
      %p248 = scmp.eq.s32.totalorder %s23, 1
      %p249 = por %p247, %p248
      %p251 = scmp.ne.s32.totalorder %s236, %s250
      %p252 = scmp.eq.s32.totalorder %s23, 0
      %p253 = por %p251, %p252
      %s254 = ssub.s32 %s24, %s43
      %s255 = ssub.s32 %s25, %s39
      %s256 = sor.u32 %s254, %s255
      %p257 = scmp.eq.s32.totalorder %s256, 0
      %s259 = sadd.s32 %s258, 1
      %s260 = scalar_select %p257, %s258, %s259
      %p263 = pneg %p257
      %p264 = scmp.eq.s32.totalorder %s17, 1
      %p265 = por %p263, %p264
      %p266 = scmp.ne.s32.totalorder %s258, %s261
      %p267 = scmp.eq.s32.totalorder %s17, 0
      %p268 = por %p266, %p267
      %p269 = scmp.ne.s32.totalorder %s258, %s261
      %p270 = scmp.eq.s32.totalorder %s22, 1
      %p271 = por %p269, %p270
      %p272 = scmp.ne.s32.totalorder %s261, %s262
      %p273 = scmp.eq.s32.totalorder %s22, 0
      %p274 = por %p272, %p273
      %p275 = scmp.ne.s32.totalorder %s261, %s262
      %p276 = scmp.eq.s32.totalorder %s23, 1
      %p277 = por %p275, %p276
      %p279 = scmp.ne.s32.totalorder %s262, %s278
      %p280 = scmp.eq.s32.totalorder %s23, 0
      %p281 = por %p279, %p280
      %p282 = scmp.le.s32.totalorder 1, %s17
      %p283 = scmp.lt.s32.totalorder %s17, 3
      %p284 = pnand %p282, %p283
      %p285 = pneg %p284
      // Predicated region
      $region9: #{decoder_forward.11} parent=5 // pred_check
        _
      $region10: #{decoder_forward.11} parent=5 // pred_check_branch
        %287 = sbr.rel (%p284) target = $region12
      $region11: #{decoder_forward.11} parent=5 // pred_region
        %s288 = ssub.s32 %s17, 1
        // Predicated region
        $region13: #{decoder_forward.11} parent=11 // pred_check
          %p289 = pneg %p120
        $region14: #{decoder_forward.11} parent=11 // pred_check_branch
          %291 = sbr.rel (%p289) target = $region16
        $region15: #{decoder_forward.11} parent=11 // pred_region
          %s292 = smul.u32 2, %s28
          %p293 = scmp.lt.s32.totalorder %s292, 1
          %s294 = scalar_select %p293, %s292, 1
          %p295 = scmp.lt.s32.totalorder %s29, 0
          %s296 = scalar_select %p295, %s29, 0
          %s297 = sadd.s32 %s296, %s294
          %s298 = smul.addr %s297, 8
          %s299 = scalar_lea.vmem %s2, %s298
          %s300 = smul.u32 2, %s28
        $region16: #{decoder_forward.11} parent=11 // pred_fallthru
          _
        // Predicated region
        $region17: #{decoder_forward.11} parent=11 // pred_check
          %p301 = pneg %p141
        $region18: #{decoder_forward.11} parent=11 // pred_check_branch
          %303 = sbr.rel (%p301) target = $region20
        $region19: #{decoder_forward.11} parent=11 // pred_region
          _
        $region20: #{decoder_forward.11} parent=11 // pred_fallthru
          _
        // Predicated region
        $region21: #{decoder_forward.11} parent=11 // pred_check
          %p304 = pneg %p162
        $region22: #{decoder_forward.11} parent=11 // pred_check_branch
          %306 = sbr.rel (%p304) target = $region24
        $region23: #{decoder_forward.11} parent=11 // pred_region
          _
        $region24: #{decoder_forward.11} parent=11 // pred_fallthru
          _
        // Predicated region
        $region25: #{decoder_forward.11} parent=11 // pred_check
          %p307 = pneg %p183
        $region26: #{decoder_forward.11} parent=11 // pred_check_branch
          %309 = sbr.rel (%p307) target = $region28
        $region27: #{decoder_forward.11} parent=11 // pred_region
          %311 = vsyncadd [#allocation7], 0
          %s312 = sshll.u32 %s5, 4
          %s313 = int_to_ptr.hbm [resolvable:$true] %s312
          %s314 = sshll.u32 [#allocation6], 4
          %s315 = int_to_ptr.vmem [resolvable:$true] %s314
          %320 = dma.hbm_to_vmem [thread:$0]  %s313, 4096, %s315, [#allocation7], 128, 128, 8
        $region28: #{decoder_forward.11} parent=11 // pred_fallthru
          _
        // Predicated region
        $region29: #{decoder_forward.11} parent=11 // pred_check
          %p321 = pneg %p204
        $region30: #{decoder_forward.11} parent=11 // pred_check_branch
          %323 = sbr.rel (%p321) target = $region32
        $region31: #{decoder_forward.11} parent=11 // pred_region
          _
        $region32: #{decoder_forward.11} parent=11 // pred_fallthru
          _
        // Predicated region
        $region33: #{decoder_forward.11} parent=11 // pred_check
          %p324 = pneg %p225
        $region34: #{decoder_forward.11} parent=11 // pred_check_branch
          %326 = sbr.rel (%p324) target = $region36
        $region35: #{decoder_forward.11} parent=11 // pred_region
          %328 = vsyncadd [#allocation9], 0
          %s329 = sshll.u32 %s7, 4
          %s330 = int_to_ptr.hbm [resolvable:$true] %s329
          %s331 = sshll.u32 [#allocation8], 4
          %s332 = int_to_ptr.vmem [resolvable:$true] %s331
          %337 = dma.hbm_to_vmem [thread:$0]  %s330, 4096, %s332, [#allocation9], 128, 128, 8
        $region36: #{decoder_forward.11} parent=11 // pred_fallthru
          _
        // Predicated region
        $region37: #{decoder_forward.11} parent=11 // pred_check
          %p338 = pneg %p246
        $region38: #{decoder_forward.11} parent=11 // pred_check_branch
          %340 = sbr.rel (%p338) target = $region40
        $region39: #{decoder_forward.11} parent=11 // pred_region
          _
        $region40: #{decoder_forward.11} parent=11 // pred_fallthru
          _
      $region12: #{decoder_forward.11} parent=5 // pred_fallthru
        _
      %p341 = scmp.lt.s32.totalorder %s17, 2
      // Predicated region
      $region41: #{decoder_forward.11} parent=5 // pred_check
        %p342 = pneg %p341
      $region42: #{decoder_forward.11} parent=5 // pred_check_branch
        %344 = sbr.rel (%p342) target = $region44
      $region43: #{decoder_forward.11} parent=5 // pred_region
        // Predicated region
        $region45: #{decoder_forward.11} parent=43 // pred_check
          %p345 = pneg %p58
        $region46: #{decoder_forward.11} parent=43 // pred_check_branch
          %347 = sbr.rel (%p345) target = $region48
        $region47: #{decoder_forward.11} parent=43 // pred_region
          %s348 = smul.u32 2, %s25
          %p349 = scmp.lt.s32.totalorder %s24, 1
          %s350 = scalar_select %p349, %s24, 1
          %p351 = scmp.lt.s32.totalorder %s348, 1
          %s352 = scalar_select %p351, %s348, 1
          %s353 = smul.addr %s352, 2
          %s354 = smul.addr %s350, 4
          %s355 = sadd.s32 %s353, %s354
          %s356 = smul.addr %s355, 8
          %s357 = scalar_lea.vmem %s0, %s356
          %s358 = smul.u32 2, %s25
        $region48: #{decoder_forward.11} parent=43 // pred_fallthru
          _
        // Predicated region
        $region49: #{decoder_forward.11} parent=43 // pred_check
          %p359 = pneg %p86
        $region50: #{decoder_forward.11} parent=43 // pred_check_branch
          %361 = sbr.rel (%p359) target = $region52
        $region51: #{decoder_forward.11} parent=43 // pred_region
          %s362 = smul.u32 2, %s26
          %p363 = scmp.lt.s32.totalorder %s24, 1
          %s364 = scalar_select %p363, %s24, 1
          %p365 = scmp.lt.s32.totalorder %s362, 1
          %s366 = scalar_select %p365, %s362, 1
          %s367 = smul.addr %s366, 4
          %s368 = smul.addr %s364, 8
          %s369 = sadd.s32 %s367, %s368
          %s370 = smul.addr %s369, 4
          %s371 = scalar_lea.vmem %s1, %s370
          %s372 = smul.u32 2, %s26
        $region52: #{decoder_forward.11} parent=43 // pred_fallthru
          _
      $region44: #{decoder_forward.11} parent=5 // pred_fallthru
        _
      %p373 = scmp.le.s32.totalorder 1, %s17
      %p374 = scmp.lt.s32.totalorder %s17, 3
      %p375 = pnand %p373, %p374
      %p376 = pneg %p375
      // Predicated region
      $region53: #{decoder_forward.11} parent=5 // pred_check
        _
      $region54: #{decoder_forward.11} parent=5 // pred_check_branch
        %378 = sbr.rel (%p375) target = $region56
      $region55: #{decoder_forward.11} parent=5 // pred_region
        %s379 = ssub.s32 %s17, 1
        // Predicated region
        $region57: #{decoder_forward.11} parent=55 // pred_check
          %p380 = pneg %p183
        $region58: #{decoder_forward.11} parent=55 // pred_check_branch
          %382 = sbr.rel (%p380) target = $region60
        $region59: #{decoder_forward.11} parent=55 // pred_region
          %384 = dma.done [#allocation7], 4096
        $region60: #{decoder_forward.11} parent=55 // pred_fallthru
          _
        // Predicated region
        $region61: #{decoder_forward.11} parent=55 // pred_check
          %p385 = pneg %p225
        $region62: #{decoder_forward.11} parent=55 // pred_check_branch
          %387 = sbr.rel (%p385) target = $region64
        $region63: #{decoder_forward.11} parent=55 // pred_region
          %389 = dma.done [#allocation9], 4096
        $region64: #{decoder_forward.11} parent=55 // pred_fallthru
          _
        %s390 = smul.u32 2, %s28
        %p391 = scmp.lt.s32.totalorder %s27, 1
        %s392 = scalar_select %p391, %s27, 1
        %p393 = scmp.lt.s32.totalorder %s390, 1
        %s394 = scalar_select %p393, %s390, 1
        %s395 = smul.addr %s394, 2
        %s396 = smul.addr %s392, 4
        %s397 = sadd.s32 %s395, %s396
        %s398 = smul.addr %s397, 8
        %s399 = scalar_lea.vmem %s0, %s398
        %p400 = pneg %p64
        %p401 = pneg %p61
        %s402 = smul.u32 2, %s29
        %p403 = scmp.lt.s32.totalorder %s27, 1
        %s404 = scalar_select %p403, %s27, 1
        %p405 = scmp.lt.s32.totalorder %s402, 1
        %s406 = scalar_select %p405, %s402, 1
        %s407 = smul.addr %s406, 4
        %s408 = smul.addr %s404, 8
        %s409 = sadd.s32 %s407, %s408
        %s410 = smul.addr %s409, 4
        %s411 = scalar_lea.vmem %s1, %s410
        %p412 = pneg %p92
        %p413 = pneg %p89
        %s414 = smul.u32 2, %s28
        %p415 = scmp.lt.s32.totalorder %s414, 1
        %s416 = scalar_select %p415, %s414, 1
        %p417 = scmp.lt.s32.totalorder %s29, 0
        %s418 = scalar_select %p417, %s29, 0
        %s419 = sadd.s32 %s418, %s416
        %s420 = smul.addr %s419, 8
        %s421 = scalar_lea.vmem %s2, %s420
        %p422 = pneg %p120
        %p423 = pneg %p117
        %p424 = pneg %p141
        %p425 = pneg %p138
        %p426 = pneg %p162
        %p427 = pneg %p159
        %p428 = pneg %p183
        %p429 = pneg %p180
        %p430 = pneg %p204
        %p431 = pneg %p201
        %p432 = pneg %p225
        %p433 = pneg %p222
        %p434 = pneg %p246
        %p435 = pneg %p243
        %p436 = pneg %p274
        %p437 = pneg %p271
        %s438 = smul.u32 2, %s28
        %p439 = scmp.lt.s32.totalorder %s27, 1
        %s440 = scalar_select %p439, %s27, 1
        %p441 = scmp.lt.s32.totalorder %s438, 1
        %s442 = scalar_select %p441, %s438, 1
        %s443 = smul.addr %s442, 2
        %s444 = smul.addr %s440, 4
        %s445 = sadd.s32 %s443, %s444
        %s446 = smul.addr %s445, 8
        %s447 = scalar_lea.vmem %s9, %s446
        %s448 = smul.u32 2, %s28
        %p449 = scmp.lt.s32.totalorder %s27, 1
        %s450 = scalar_select %p449, %s27, 1
        %p451 = scmp.lt.s32.totalorder %s448, 1
        %s452 = scalar_select %p451, %s448, 1
        %s453 = smul.addr %s452, 2
        %s454 = smul.addr %s450, 4
        %s455 = sadd.s32 %s453, %s454
        %s456 = smul.addr %s455, 8
        %s457 = scalar_lea.vmem %s0, %s456
        %s458 = smul.u32 2, %s28
        %s459 = smul.u32 2, %s29
        %p460 = scmp.lt.s32.totalorder %s27, 1
        %s461 = scalar_select %p460, %s27, 1
        %p462 = scmp.lt.s32.totalorder %s459, 1
        %s463 = scalar_select %p462, %s459, 1
        %s464 = smul.addr %s463, 4
        %s465 = smul.addr %s461, 8
        %s466 = sadd.s32 %s464, %s465
        %s467 = smul.addr %s466, 4
        %s468 = scalar_lea.vmem %s1, %s467
        %s469 = smul.u32 2, %s29
        %s470 = smul.u32 2, %s28
        %p471 = scmp.lt.s32.totalorder %s470, 1
        %s472 = scalar_select %p471, %s470, 1
        %p473 = scmp.lt.s32.totalorder %s29, 0
        %s474 = scalar_select %p473, %s29, 0
        %s475 = sadd.s32 %s474, %s472
        %s476 = smul.addr %s475, 8
        %s477 = scalar_lea.vmem %s2, %s476
        %s478 = smul.u32 2, %s28
        %s479 = smul.u32 2, %s28
        %p480 = scmp.lt.s32.totalorder %s27, 1
        %s481 = scalar_select %p480, %s27, 1
        %p482 = scmp.lt.s32.totalorder %s479, 1
        %s483 = scalar_select %p482, %s479, 1
        %s484 = smul.addr %s483, 2
        %s485 = smul.addr %s481, 4
        %s486 = sadd.s32 %s484, %s485
        %s487 = smul.addr %s486, 8
        %s488 = scalar_lea.vmem %s9, %s487
        %s489 = smul.u32 2, %s28
        %p491 = scmp.eq.s32.totalorder %s29, 0
        // Predicated region
        $region65: #{decoder_forward.11} parent=55 // pred_check
          %p492 = pneg %p491
        $region66: #{decoder_forward.11} parent=55 // pred_check_branch
          %494 = sbr.rel (%p492) target = $region68
        $region67: #{decoder_forward.11} parent=55 // pred_region
          %v495 = vld [vmem:[%s457] sm:$0xff]
          %v496 = vld [vmem:[%s457 + $0x8] sm:$0xff]
          %v497 = vld [vmem:[%s457 + $0x10] sm:$0xff]
          %v498 = vld [vmem:[%s457 + $0x18] sm:$0xff]
          %v499 = vld [vmem:[%s3] sm:$0x3]
          %v500 = vld [vmem:[%s4] sm:$0x3]
          %v501 = vadd.f32 %v495, %v496
          %502 = vadd.xlane.f32.xlu0 %v501
          %v503 = vpop.xlane.xlu0 %502
          %v504 = vadd.f32 %v497, %v498
          %505 = vadd.xlane.f32.xlu0 %v504
          %v506 = vpop.xlane.xlu0 %505
          %v507 = vrcp.pop 256.0
          %v508 = vmul.f32 256.0, %v507
          %v509 = vsub.f32 1.0, %v508
          %v510 = vmul.f32 %v507, %v509
          %v511 = vadd.f32 %v507, %v510
          %vm512 = vweird.f32 %v507
          %v513 = vsel %vm512, %v507, %v511
          %v514 = vmul.f32 %v503, %v513
          %v515 = vmul.f32 %v506, %v513
          %v516 = vsub.f32 %v495, %v514
          %v517 = vsub.f32 %v496, %v514
          %v518 = vsub.f32 %v497, %v515
          %v519 = vsub.f32 %v498, %v515
          %v520 = vmul.f32 %v516, %v516
          %v521 = vmul.f32 %v517, %v517
          %v522 = vmul.f32 %v518, %v518
          %v523 = vmul.f32 %v519, %v519
          %v524 = vadd.f32 %v520, %v521
          %525 = vadd.xlane.f32.xlu0 %v524
          %v526 = vpop.xlane.xlu0 %525
          %v527 = vadd.f32 %v522, %v523
          %528 = vadd.xlane.f32.xlu0 %v527
          %v529 = vpop.xlane.xlu0 %528
          %v530 = vmul.f32 %v526, 0.003921569
          %v531 = vmul.f32 %v529, 0.003921569
          %v532 = vrsqrt.pop %v530
          %v533 = vmul.f32 %v532, %v530
          %v534 = vmul.f32 %v533, %v532
          %v535 = vmul.f32 0.5, %v534
          %v536 = vsub.f32 1.5, %v535
          %v537 = vmul.f32 %v532, %v536
          %v538 = vmul.f32 %v530, %v537
          %vm539 = vcmp.eq.f32.partialorder %v530, inf
          %v540 = vsel %vm539, %v530, %v538
          %vm541 = vcmp.eq.f32.partialorder %v530, 0.0
          %v542 = vand.u32 %v530, 2147483648
          %v543 = vsel %vm541, %v542, %v540
          %v544 = vrsqrt.pop %v531
          %v545 = vmul.f32 %v544, %v531
          %v546 = vmul.f32 %v545, %v544
          %v547 = vmul.f32 0.5, %v546
          %v548 = vsub.f32 1.5, %v547
          %v549 = vmul.f32 %v544, %v548
          %v550 = vmul.f32 %v531, %v549
          %vm551 = vcmp.eq.f32.partialorder %v531, inf
          %v552 = vsel %vm551, %v531, %v550
          %vm553 = vcmp.eq.f32.partialorder %v531, 0.0
          %v554 = vand.u32 %v531, 2147483648
          %v555 = vsel %vm553, %v554, %v552
          %v556 = vadd.f32 %v543, 1e-06
          %v557 = vadd.f32 %v555, 1e-06
          %v558 = vrcp.pop %v556
          %v559 = vmul.f32 %v556, %v558
          %v560 = vsub.f32 1.0, %v559
          %v561 = vmul.f32 %v558, %v560
          %v562 = vadd.f32 %v558, %v561
          %vm563 = vweird.f32 %v556
          %vm564 = vweird.f32 %v558
          %vm565 = vmor %vm563, %vm564
          %v566 = vsel %vm565, %v558, %v562
          %v567 = vand.u32 2147483647, %v556
          %vm568 = vcmp.eq.f32.partialorder %v567, 8.507059e+37
          %v569 = vand.u32 %v556, 2147483648
          %v570 = vor.u32 1.1754944e-38, %v569
          %v571 = vsel %vm568, %v570, %v566
          %v572 = vmul.f32 1.0, %v571
          %v573 = vrcp.pop %v557
          %v574 = vmul.f32 %v557, %v573
          %v575 = vsub.f32 1.0, %v574
          %v576 = vmul.f32 %v573, %v575
          %v577 = vadd.f32 %v573, %v576
          %vm578 = vweird.f32 %v557
          %vm579 = vweird.f32 %v573
          %vm580 = vmor %vm578, %vm579
          %v581 = vsel %vm580, %v573, %v577
          %v582 = vand.u32 2147483647, %v557
          %vm583 = vcmp.eq.f32.partialorder %v582, 8.507059e+37
          %v584 = vand.u32 %v557, 2147483648
          %v585 = vor.u32 1.1754944e-38, %v584
          %v586 = vsel %vm583, %v585, %v581
          %v587 = vmul.f32 1.0, %v586
          %v588 = vmul.f32 %v516, %v572
          %v589 = vmul.f32 %v517, %v572
          %v590 = vmul.f32 %v518, %v587
          %v591 = vmul.f32 %v519, %v587
          %v593 = vperm.slane %v499, 0
          %v594 = vperm.slane %v499, 1
          %v597 = vmul.f32 %v593, %v588
          %v598 = vmul.f32 %v594, %v589
          %v599 = vmul.f32 %v593, %v590
          %v600 = vmul.f32 %v594, %v591
          %v602 = vperm.slane %v500, 0
          %v603 = vperm.slane %v500, 1
          %v606 = vadd.f32 %v597, %v602
          %v607 = vadd.f32 %v598, %v603
          %v608 = vadd.f32 %v599, %v602
          %v609 = vadd.f32 %v600, %v603
          %v610 = vpack.c.bf16 %v608, %v606
          %v611 = vpack.c.bf16 %v609, %v607
          %v612 = vld [vmem:[#allocation6] sm:$0xff]
          %v613 = vld [vmem:[#allocation6 + $0x8] sm:$0xff]
          %v614 = vld [vmem:[#allocation6 + $0x10] sm:$0xff]
          %v615 = vld [vmem:[#allocation6 + $0x18] sm:$0xff]
          %v616 = vld [vmem:[#allocation6 + $0x20] sm:$0xff]
          %v617 = vld [vmem:[#allocation6 + $0x28] sm:$0xff]
          %v618 = vld [vmem:[#allocation6 + $0x30] sm:$0xff]
          %v619 = vld [vmem:[#allocation6 + $0x38] sm:$0xff]
          %v620 = vld [vmem:[#allocation6 + $0x40] sm:$0xff]
          %v621 = vld [vmem:[#allocation6 + $0x48] sm:$0xff]
          %v622 = vld [vmem:[#allocation6 + $0x50] sm:$0xff]
          %v623 = vld [vmem:[#allocation6 + $0x58] sm:$0xff]
          %v624 = vld [vmem:[#allocation6 + $0x60] sm:$0xff]
          %v625 = vld [vmem:[#allocation6 + $0x68] sm:$0xff]
          %v626 = vld [vmem:[#allocation6 + $0x70] sm:$0xff]
          %v627 = vld [vmem:[#allocation6 + $0x78] sm:$0xff]
          %v628 = vld [vmem:[#allocation6 + $0x80] sm:$0xff]
          %v629 = vld [vmem:[#allocation6 + $0x88] sm:$0xff]
          %v630 = vld [vmem:[#allocation6 + $0x90] sm:$0xff]
          %v631 = vld [vmem:[#allocation6 + $0x98] sm:$0xff]
          %v632 = vld [vmem:[#allocation6 + $0xa0] sm:$0xff]
          %v633 = vld [vmem:[#allocation6 + $0xa8] sm:$0xff]
          %v634 = vld [vmem:[#allocation6 + $0xb0] sm:$0xff]
          %v635 = vld [vmem:[#allocation6 + $0xb8] sm:$0xff]
          %v636 = vld [vmem:[#allocation6 + $0xc0] sm:$0xff]
          %v637 = vld [vmem:[#allocation6 + $0xc8] sm:$0xff]
          %v638 = vld [vmem:[#allocation6 + $0xd0] sm:$0xff]
          %v639 = vld [vmem:[#allocation6 + $0xd8] sm:$0xff]
          %v640 = vld [vmem:[#allocation6 + $0xe0] sm:$0xff]
          %v641 = vld [vmem:[#allocation6 + $0xe8] sm:$0xff]
          %v642 = vld [vmem:[#allocation6 + $0xf0] sm:$0xff]
          %v643 = vld [vmem:[#allocation6 + $0xf8] sm:$0xff]
          %v644 = vld [vmem:[%s6] sm:$0x3]
          %v646 = vperm.slane %v644, 0
          %v647 = vperm.slane %v644, 1
          %v682 = vunpack.c.l.b16 %v612
          %v683 = vunpack.c.h.b16 %v612
          %v684 = vunpack.c.l.b16 %v613
          %v685 = vunpack.c.h.b16 %v613
          %v686 = vunpack.c.l.b16 %v614
          %v687 = vunpack.c.h.b16 %v614
          %v688 = vunpack.c.l.b16 %v615
          %v689 = vunpack.c.h.b16 %v615
          %v690 = vunpack.c.l.b16 %v616
          %v691 = vunpack.c.h.b16 %v616
          %v692 = vunpack.c.l.b16 %v617
          %v693 = vunpack.c.h.b16 %v617
          %v694 = vunpack.c.l.b16 %v618
          %v695 = vunpack.c.h.b16 %v618
          %v696 = vunpack.c.l.b16 %v619
          %v697 = vunpack.c.h.b16 %v619
          %v698 = vunpack.c.l.b16 %v620
          %v699 = vunpack.c.h.b16 %v620
          %v700 = vunpack.c.l.b16 %v621
          %v701 = vunpack.c.h.b16 %v621
          %v702 = vunpack.c.l.b16 %v622
          %v703 = vunpack.c.h.b16 %v622
          %v704 = vunpack.c.l.b16 %v623
          %v705 = vunpack.c.h.b16 %v623
          %v706 = vunpack.c.l.b16 %v624
          %v707 = vunpack.c.h.b16 %v624
          %v708 = vunpack.c.l.b16 %v625
          %v709 = vunpack.c.h.b16 %v625
          %v710 = vunpack.c.l.b16 %v626
          %v711 = vunpack.c.h.b16 %v626
          %v712 = vunpack.c.l.b16 %v627
          %v713 = vunpack.c.h.b16 %v627
          %v714 = vunpack.c.l.b16 %v628
          %v715 = vunpack.c.h.b16 %v628
          %v716 = vunpack.c.l.b16 %v629
          %v717 = vunpack.c.h.b16 %v629
          %v718 = vunpack.c.l.b16 %v630
          %v719 = vunpack.c.h.b16 %v630
          %v720 = vunpack.c.l.b16 %v631
          %v721 = vunpack.c.h.b16 %v631
          %v722 = vunpack.c.l.b16 %v632
          %v723 = vunpack.c.h.b16 %v632
          %v724 = vunpack.c.l.b16 %v633
          %v725 = vunpack.c.h.b16 %v633
          %v726 = vunpack.c.l.b16 %v634
          %v727 = vunpack.c.h.b16 %v634
          %v728 = vunpack.c.l.b16 %v635
          %v729 = vunpack.c.h.b16 %v635
          %v730 = vunpack.c.l.b16 %v636
          %v731 = vunpack.c.h.b16 %v636
          %v732 = vunpack.c.l.b16 %v637
          %v733 = vunpack.c.h.b16 %v637
          %v734 = vunpack.c.l.b16 %v638
          %v735 = vunpack.c.h.b16 %v638
          %v736 = vunpack.c.l.b16 %v639
          %v737 = vunpack.c.h.b16 %v639
          %v738 = vunpack.c.l.b16 %v640
          %v739 = vunpack.c.h.b16 %v640
          %v740 = vunpack.c.l.b16 %v641
          %v741 = vunpack.c.h.b16 %v641
          %v742 = vunpack.c.l.b16 %v642
          %v743 = vunpack.c.h.b16 %v642
          %v744 = vunpack.c.l.b16 %v643
          %v745 = vunpack.c.h.b16 %v643
          %v746 = vpack.c.b16 %v684, %v682
          %v747 = vpack.c.b16 %v685, %v683
          %v748 = vpack.c.b16 %v688, %v686
          %v749 = vpack.c.b16 %v689, %v687
          %v750 = vpack.c.b16 %v692, %v690
          %v751 = vpack.c.b16 %v693, %v691
          %v752 = vpack.c.b16 %v696, %v694
          %v753 = vpack.c.b16 %v697, %v695
          %v754 = vpack.c.b16 %v700, %v698
          %v755 = vpack.c.b16 %v701, %v699
          %v756 = vpack.c.b16 %v704, %v702
          %v757 = vpack.c.b16 %v705, %v703
          %v758 = vpack.c.b16 %v708, %v706
          %v759 = vpack.c.b16 %v709, %v707
          %v760 = vpack.c.b16 %v712, %v710
          %v761 = vpack.c.b16 %v713, %v711
          %v762 = vpack.c.b16 %v716, %v714
          %v763 = vpack.c.b16 %v717, %v715
          %v764 = vpack.c.b16 %v720, %v718
          %v765 = vpack.c.b16 %v721, %v719
          %v766 = vpack.c.b16 %v724, %v722
          %v767 = vpack.c.b16 %v725, %v723
          %v768 = vpack.c.b16 %v728, %v726
          %v769 = vpack.c.b16 %v729, %v727
          %v770 = vpack.c.b16 %v732, %v730
          %v771 = vpack.c.b16 %v733, %v731
          %v772 = vpack.c.b16 %v736, %v734
          %v773 = vpack.c.b16 %v737, %v735
          %v774 = vpack.c.b16 %v740, %v738
          %v775 = vpack.c.b16 %v741, %v739
          %v776 = vpack.c.b16 %v744, %v742
          %v777 = vpack.c.b16 %v745, %v743
          %810 = vmatpush.bf16.msra.mxu0 %v760
          %811 = vmatpush.bf16.msra.mxu0 %v758
          %812 = vmatpush.bf16.msra.mxu0 %v756
          %813 = vmatpush.bf16.msra.mxu0 %v754
          %814 = vmatpush.bf16.msra.mxu0 %v752
          %815 = vmatpush.bf16.msra.mxu0 %v750
          %816 = vmatpush.bf16.msra.mxu0 %v748
          %817 = vmatpush.bf16.msra.mxu0 %v746
          %818 = vmatmul.bf16.gmra.mxu0 %v610
          %v819 = vpop.f32.mrf.mxu0
          %v820 = vadd.f32 %v646, %v819
          %v821 = vpop.f32.mrf.mxu0
          %v822 = vadd.f32 %v646, %v821
          %823 = vdwg.mxu0
          %824 = vmatpush.bf16.msra.mxu0 %v776
          %825 = vmatpush.bf16.msra.mxu0 %v774
          %826 = vmatpush.bf16.msra.mxu0 %v772
          %827 = vmatpush.bf16.msra.mxu0 %v770
          %828 = vmatpush.bf16.msra.mxu0 %v768
          %829 = vmatpush.bf16.msra.mxu0 %v766
          %830 = vmatpush.bf16.msra.mxu0 %v764
          %831 = vmatpush.bf16.msra.mxu0 %v762
          %832 = vmatmul.bf16.gmra.mxu0 %v611
          %v833 = vpop.f32.mrf.mxu0
          %v834 = vadd.f32 %v820, %v833
          %v835 = vpop.f32.mrf.mxu0
          %v836 = vadd.f32 %v822, %v835
          %837 = vdwg.mxu0
          %838 = vmatpush.bf16.msra.mxu0 %v761
          %839 = vmatpush.bf16.msra.mxu0 %v759
          %840 = vmatpush.bf16.msra.mxu0 %v757
          %841 = vmatpush.bf16.msra.mxu0 %v755
          %842 = vmatpush.bf16.msra.mxu0 %v753
          %843 = vmatpush.bf16.msra.mxu0 %v751
          %844 = vmatpush.bf16.msra.mxu0 %v749
          %845 = vmatpush.bf16.msra.mxu0 %v747
          %846 = vmatmul.bf16.gmra.mxu0 %v610
          %v847 = vpop.f32.mrf.mxu0
          %v848 = vadd.f32 %v647, %v847
          %v849 = vpop.f32.mrf.mxu0
          %v850 = vadd.f32 %v647, %v849
          %851 = vdwg.mxu0
          %852 = vmatpush.bf16.msra.mxu0 %v777
          %853 = vmatpush.bf16.msra.mxu0 %v775
          %854 = vmatpush.bf16.msra.mxu0 %v773
          %855 = vmatpush.bf16.msra.mxu0 %v771
          %856 = vmatpush.bf16.msra.mxu0 %v769
          %857 = vmatpush.bf16.msra.mxu0 %v767
          %858 = vmatpush.bf16.msra.mxu0 %v765
          %859 = vmatpush.bf16.msra.mxu0 %v763
          %860 = vmatmul.bf16.gmra.mxu0 %v611
          %v861 = vpop.f32.mrf.mxu0
          %v862 = vadd.f32 %v848, %v861
          %v863 = vpop.f32.mrf.mxu0
          %v864 = vadd.f32 %v850, %v863
          %865 = vdwg.mxu0
          %v866 = vmul.f32 %v834, 0.088388346
          %v867 = vmul.f32 %v862, 0.088388346
          %v868 = vmul.f32 %v836, 0.088388346
          %v869 = vmul.f32 %v864, 0.088388346
          %v870 = vpack.c.bf16 %v867, %v866
          %v871 = vpack.c.bf16 %v869, %v868
          %872 = vst [vmem:[#allocation2] sm:$0xff] %v870
          %873 = vst [vmem:[#allocation2 + $0x8] sm:$0xff] %v871
          %vm874 = vcmask 7168
          %875 = vst.msk [vmem:[#allocation3] sm:$0xff] %vm874, -1e+30
          %876 = vst.msk [vmem:[#allocation3 + $0x8] sm:$0xff] %vm874, -1e+30
          %877 = vst.msk [vmem:[#allocation3 + $0x10] sm:$0xff] %vm874, -1e+30
          %878 = vst.msk [vmem:[#allocation3 + $0x18] sm:$0xff] %vm874, -1e+30
          %879 = vst.msk [vmem:[#allocation4] sm:$0xff] %vm874, 0.0
          %880 = vst.msk [vmem:[#allocation4 + $0x8] sm:$0xff] %vm874, 0.0
          %881 = vst.msk [vmem:[#allocation4 + $0x10] sm:$0xff] %vm874, 0.0
          %882 = vst.msk [vmem:[#allocation4 + $0x18] sm:$0xff] %vm874, 0.0
          %883 = vst [vmem:[#allocation5] sm:$0xff] 0.0
          %884 = vst [vmem:[#allocation5 + $0x8] sm:$0xff] 0.0
          %885 = vst [vmem:[#allocation5 + $0x10] sm:$0xff] 0.0
          %886 = vst [vmem:[#allocation5 + $0x18] sm:$0xff] 0.0
        $region68: #{decoder_forward.11} parent=55 // pred_fallthru
          _
        %v887 = vld [vmem:[%s468] sm:$0xff]
        %v888 = vld [vmem:[%s468 + $0x8] sm:$0xff]
        %v889 = vld [vmem:[%s468 + $0x10] sm:$0xff]
        %v890 = vld [vmem:[%s468 + $0x18] sm:$0xff]
        %v891 = vld [vmem:[%s477] sm:$0xff]
        %v892 = vld [vmem:[%s477 + $0x8] sm:$0xff]
        %v893 = vld [vmem:[#allocation2] sm:$0xf]
        %v894 = vld [vmem:[#allocation2 + $0x8] sm:$0xf]
        %v897 = vunpack.c.l.b16 %v893
        %v898 = vunpack.c.l.b16 %v894
        %v899 = vpack.c.b16 %v898, %v897
        %v903 = vunpack.c.l.b16 %v887
        %v904 = vunpack.c.l.b16 %v889
        %v905 = vpack.c.b16 %v904, %v903
        %907 = vmatpush.bf16.xpose.msra.mxu0 0
        %908 = vmatpush.bf16.xpose.msra.mxu0 0
        %909 = vmatpush.bf16.xpose.msra.mxu0 0
        %910 = vmatpush.bf16.xpose.msra.mxu0 0
        %911 = vmatpush.bf16.xpose.msra.mxu0 0
        %912 = vmatpush.bf16.xpose.msra.mxu0 0
        %913 = vmatpush.bf16.xpose.msra.mxu0 0
        %914 = vmatpush.bf16.xpose.msra.mxu0 %v905
        %915 = vmatmul.bf16.gmra.mxu0 %v899
        %v916 = vpop.f32.mrf.mxu0
        %v917 = vadd.f32 %v891, %v916
        %v918 = vpop.f32.mrf.mxu0
        %v919 = vadd.f32 %v892, %v918
        %920 = vdwg.mxu0
        %v921 = vld [vmem:[#allocation3] sm:$0xff]
        %v922 = vld [vmem:[#allocation3 + $0x8] sm:$0xff]
        %vm923 = vcmask 130048
        %v924 = vsel %vm923, %v917, -inf
        %925 = vmax.xlane.f32.xlu0 %v924
        %v926 = vpop.xlane.xlu0 %925
        %v927 = vsel %vm923, %v919, -inf
        %928 = vmax.xlane.f32.xlu0 %v927
        %v929 = vpop.xlane.xlu0 %928
        %v930 = vmax.f32 %v921, %v926
        %v931 = vmax.f32 %v922, %v929
        %v932 = vsub.f32 %v921, %v930
        %v933 = vsub.f32 %v922, %v931
        %v934 = vmul.f32 %v932, 1.442695
        %v935 = vpow.pop %v934
        %v936 = vmul.f32 %v933, 1.442695
        %v937 = vpow.pop %v936
        %939 = vset.pattern.permute.xlu0 0
        %940 = vperm.xlu0 %939, %v930
        %v941 = vpop.permute.xlu0 %940
        %944 = vset.pattern.permute.xlu0 0
        %945 = vperm.xlu0 %944, %v931
        %v946 = vpop.permute.xlu0 %945
        %v948 = vsub.f32 %v917, %v941
        %v949 = vsub.f32 %v919, %v946
        %v950 = vmul.f32 %v948, 1.442695
        %v951 = vpow.pop %v950
        %v952 = vmul.f32 %v949, 1.442695
        %v953 = vpow.pop %v952
        %v954 = vld [vmem:[#allocation4] sm:$0xff]
        %v955 = vld [vmem:[#allocation4 + $0x8] sm:$0xff]
        %v956 = vmul.f32 %v935, %v954
        %v957 = vmul.f32 %v937, %v955
        %v958 = vsel %vm923, %v951, 0.0
        %959 = vadd.xlane.f32.xlu0 %v958
        %v960 = vpop.xlane.xlu0 %959
        %v961 = vsel %vm923, %v953, 0.0
        %962 = vadd.xlane.f32.xlu0 %v961
        %v963 = vpop.xlane.xlu0 %962
        %v964 = vadd.f32 %v956, %v960
        %v965 = vadd.f32 %v957, %v963
        %vm966 = vcmask 7168
        %967 = vst.msk [vmem:[#allocation4] sm:$0xff] %vm966, %v964
        %968 = vst.msk [vmem:[#allocation4 + $0x8] sm:$0xff] %vm966, %v965
        %v969 = vld [vmem:[#allocation5] sm:$0xff]
        %v970 = vld [vmem:[#allocation5 + $0x10] sm:$0xff]
        %972 = vset.pattern.permute.xlu0 0
        %973 = vperm.xlu0 %972, %v935
        %v974 = vpop.permute.xlu0 %973
        %977 = vset.pattern.permute.xlu0 0
        %978 = vperm.xlu0 %977, %v937
        %v979 = vpop.permute.xlu0 %978
        %v981 = vmul.f32 %v974, %v969
        %v982 = vmul.f32 %v979, %v970
        %v983 = vpack.c.bf16 %v953, %v951
        %v986 = vunpack.c.l.b16 %v888
        %v987 = vunpack.c.l.b16 %v890
        %v988 = vpack.c.b16 %v987, %v986
        %v991 = vsel %vm923, %v983, 0
        %993 = vmatpush.bf16.msra.mxu0 0
        %994 = vmatpush.bf16.msra.mxu0 0
        %995 = vmatpush.bf16.msra.mxu0 0
        %996 = vmatpush.bf16.msra.mxu0 0
        %997 = vmatpush.bf16.msra.mxu0 0
        %998 = vmatpush.bf16.msra.mxu0 0
        %999 = vmatpush.bf16.msra.mxu0 0
        %1000 = vmatpush.bf16.msra.mxu0 %v988
        %1001 = vmatmul.bf16.gmra.mxu0 %v991
        %v1002 = vpop.f32.mrf.mxu0
        %v1003 = vadd.f32 0.0, %v1002
        %v1004 = vpop.f32.mrf.mxu0
        %v1005 = vadd.f32 0.0, %v1004
        %1006 = vdwg.mxu0
        %v1007 = vadd.f32 %v981, %v1003
        %v1008 = vadd.f32 %v982, %v1005
        %1009 = vst [vmem:[#allocation5] sm:$0xff] %v1007
        %1010 = vst [vmem:[#allocation5 + $0x10] sm:$0xff] %v1008
        %1011 = vst.msk [vmem:[#allocation3] sm:$0xff] %vm966, %v930
        %1012 = vst.msk [vmem:[#allocation3 + $0x8] sm:$0xff] %vm966, %v931
        %v1013 = vld [vmem:[#allocation2 + $0x4] sm:$0xf]
        %v1014 = vld [vmem:[#allocation2 + $0xc] sm:$0xf]
        %v1017 = vunpack.c.l.b16 %v1013
        %v1018 = vunpack.c.l.b16 %v1014
        %v1019 = vpack.c.b16 %v1018, %v1017
        %v1021 = vunpack.c.h.b16 %v887
        %v1022 = vunpack.c.h.b16 %v889
        %v1023 = vpack.c.b16 %v1022, %v1021
        %1025 = vmatpush.bf16.xpose.msra.mxu0 0
        %1026 = vmatpush.bf16.xpose.msra.mxu0 0
        %1027 = vmatpush.bf16.xpose.msra.mxu0 0
        %1028 = vmatpush.bf16.xpose.msra.mxu0 0
        %1029 = vmatpush.bf16.xpose.msra.mxu0 0
        %1030 = vmatpush.bf16.xpose.msra.mxu0 0
        %1031 = vmatpush.bf16.xpose.msra.mxu0 0
        %1032 = vmatpush.bf16.xpose.msra.mxu0 %v1023
        %1033 = vmatmul.bf16.gmra.mxu0 %v1019
        %v1034 = vpop.f32.mrf.mxu0
        %v1035 = vadd.f32 %v891, %v1034
        %v1036 = vpop.f32.mrf.mxu0
        %v1037 = vadd.f32 %v892, %v1036
        %1038 = vdwg.mxu0
        %s1039 = scalar_lea.vmem [#allocation3], 16
        %v1040 = vld [vmem:[%s1039] sm:$0xff]
        %v1041 = vld [vmem:[%s1039 + $0x8] sm:$0xff]
        %v1042 = vsel %vm923, %v1035, -inf
        %1043 = vmax.xlane.f32.xlu0 %v1042
        %v1044 = vpop.xlane.xlu0 %1043
        %v1045 = vsel %vm923, %v1037, -inf
        %1046 = vmax.xlane.f32.xlu0 %v1045
        %v1047 = vpop.xlane.xlu0 %1046
        %v1048 = vmax.f32 %v1040, %v1044
        %v1049 = vmax.f32 %v1041, %v1047
        %v1050 = vsub.f32 %v1040, %v1048
        %v1051 = vsub.f32 %v1041, %v1049
        %v1052 = vmul.f32 %v1050, 1.442695
        %v1053 = vpow.pop %v1052
        %v1054 = vmul.f32 %v1051, 1.442695
        %v1055 = vpow.pop %v1054
        %1057 = vset.pattern.permute.xlu0 0
        %1058 = vperm.xlu0 %1057, %v1048
        %v1059 = vpop.permute.xlu0 %1058
        %1062 = vset.pattern.permute.xlu0 0
        %1063 = vperm.xlu0 %1062, %v1049
        %v1064 = vpop.permute.xlu0 %1063
        %v1066 = vsub.f32 %v1035, %v1059
        %v1067 = vsub.f32 %v1037, %v1064
        %v1068 = vmul.f32 %v1066, 1.442695
        %v1069 = vpow.pop %v1068
        %v1070 = vmul.f32 %v1067, 1.442695
        %v1071 = vpow.pop %v1070
        %s1072 = scalar_lea.vmem [#allocation4], 16
        %v1073 = vld [vmem:[%s1072] sm:$0xff]
        %v1074 = vld [vmem:[%s1072 + $0x8] sm:$0xff]
        %v1075 = vmul.f32 %v1053, %v1073
        %v1076 = vmul.f32 %v1055, %v1074
        %v1077 = vsel %vm923, %v1069, 0.0
        %1078 = vadd.xlane.f32.xlu0 %v1077
        %v1079 = vpop.xlane.xlu0 %1078
        %v1080 = vsel %vm923, %v1071, 0.0
        %1081 = vadd.xlane.f32.xlu0 %v1080
        %v1082 = vpop.xlane.xlu0 %1081
        %v1083 = vadd.f32 %v1075, %v1079
        %v1084 = vadd.f32 %v1076, %v1082
        %1085 = vst.msk [vmem:[%s1072] sm:$0xff] %vm966, %v1083
        %1086 = vst.msk [vmem:[%s1072 + $0x8] sm:$0xff] %vm966, %v1084
        %v1087 = vld [vmem:[#allocation5 + $0x8] sm:$0xff]
        %v1088 = vld [vmem:[#allocation5 + $0x18] sm:$0xff]
        %1090 = vset.pattern.permute.xlu0 0
        %1091 = vperm.xlu0 %1090, %v1053
        %v1092 = vpop.permute.xlu0 %1091
        %1095 = vset.pattern.permute.xlu0 0
        %1096 = vperm.xlu0 %1095, %v1055
        %v1097 = vpop.permute.xlu0 %1096
        %v1099 = vmul.f32 %v1092, %v1087
        %v1100 = vmul.f32 %v1097, %v1088
        %v1101 = vpack.c.bf16 %v1071, %v1069
        %v1102 = vunpack.c.h.b16 %v888
        %v1103 = vunpack.c.h.b16 %v890
        %v1104 = vpack.c.b16 %v1103, %v1102
        %v1107 = vsel %vm923, %v1101, 0
        %1109 = vmatpush.bf16.msra.mxu0 0
        %1110 = vmatpush.bf16.msra.mxu0 0
        %1111 = vmatpush.bf16.msra.mxu0 0
        %1112 = vmatpush.bf16.msra.mxu0 0
        %1113 = vmatpush.bf16.msra.mxu0 0
        %1114 = vmatpush.bf16.msra.mxu0 0
        %1115 = vmatpush.bf16.msra.mxu0 0
        %1116 = vmatpush.bf16.msra.mxu0 %v1104
        %1117 = vmatmul.bf16.gmra.mxu0 %v1107
        %v1118 = vpop.f32.mrf.mxu0
        %v1119 = vadd.f32 0.0, %v1118
        %v1120 = vpop.f32.mrf.mxu0
        %v1121 = vadd.f32 0.0, %v1120
        %1122 = vdwg.mxu0
        %v1123 = vadd.f32 %v1099, %v1119
        %v1124 = vadd.f32 %v1100, %v1121
        %1125 = vst [vmem:[#allocation5 + $0x8] sm:$0xff] %v1123
        %1126 = vst [vmem:[#allocation5 + $0x18] sm:$0xff] %v1124
        %1127 = vst.msk [vmem:[%s1039] sm:$0xff] %vm966, %v1048
        %1128 = vst.msk [vmem:[%s1039 + $0x8] sm:$0xff] %vm966, %v1049
        // Predicated region
        $region69: #{decoder_forward.11} parent=55 // pred_check
          %p1129 = pneg %p491
        $region70: #{decoder_forward.11} parent=55 // pred_check_branch
          %1131 = sbr.rel (%p1129) target = $region72
        $region71: #{decoder_forward.11} parent=55 // pred_region
          %v1132 = vld [vmem:[#allocation5] sm:$0xff]
          %v1133 = vld [vmem:[#allocation5 + $0x10] sm:$0xff]
          %v1134 = vld [vmem:[#allocation4] sm:$0xff]
          %v1135 = vld [vmem:[#allocation4 + $0x8] sm:$0xff]
          %v1136 = vrcp.pop %v1134
          %v1137 = vrcp.pop %v1135
          %1139 = vset.pattern.permute.xlu0 0
          %1140 = vperm.xlu0 %1139, %v1136
          %v1141 = vpop.permute.xlu0 %1140
          %1144 = vset.pattern.permute.xlu0 0
          %1145 = vperm.xlu0 %1144, %v1137
          %v1146 = vpop.permute.xlu0 %1145
          %v1148 = vmul.f32 %v1132, %v1141
          %v1149 = vmul.f32 %v1133, %v1146
          %v1150 = vld [vmem:[#allocation5 + $0x8] sm:$0xff]
          %v1151 = vld [vmem:[#allocation5 + $0x18] sm:$0xff]
          %v1152 = vld [vmem:[%s1072] sm:$0xff]
          %v1153 = vld [vmem:[%s1072 + $0x8] sm:$0xff]
          %v1154 = vrcp.pop %v1152
          %v1155 = vrcp.pop %v1153
          %1157 = vset.pattern.permute.xlu0 0
          %1158 = vperm.xlu0 %1157, %v1154
          %v1159 = vpop.permute.xlu0 %1158
          %1162 = vset.pattern.permute.xlu0 0
          %1163 = vperm.xlu0 %1162, %v1155
          %v1164 = vpop.permute.xlu0 %1163
          %v1166 = vmul.f32 %v1150, %v1159
          %v1167 = vmul.f32 %v1151, %v1164
          %v1168 = vpack.c.bf16 %v1149, %v1148
          %v1169 = vpack.c.bf16 %v1167, %v1166
          %v1170 = vld [vmem:[#allocation8] sm:$0xff]
          %v1171 = vld [vmem:[#allocation8 + $0x8] sm:$0xff]
          %v1172 = vld [vmem:[#allocation8 + $0x10] sm:$0xff]
          %v1173 = vld [vmem:[#allocation8 + $0x18] sm:$0xff]
          %v1174 = vld [vmem:[#allocation8 + $0x20] sm:$0xff]
          %v1175 = vld [vmem:[#allocation8 + $0x28] sm:$0xff]
          %v1176 = vld [vmem:[#allocation8 + $0x30] sm:$0xff]
          %v1177 = vld [vmem:[#allocation8 + $0x38] sm:$0xff]
          %v1178 = vld [vmem:[#allocation8 + $0x40] sm:$0xff]
          %v1179 = vld [vmem:[#allocation8 + $0x48] sm:$0xff]
          %v1180 = vld [vmem:[#allocation8 + $0x50] sm:$0xff]
          %v1181 = vld [vmem:[#allocation8 + $0x58] sm:$0xff]
          %v1182 = vld [vmem:[#allocation8 + $0x60] sm:$0xff]
          %v1183 = vld [vmem:[#allocation8 + $0x68] sm:$0xff]
          %v1184 = vld [vmem:[#allocation8 + $0x70] sm:$0xff]
          %v1185 = vld [vmem:[#allocation8 + $0x78] sm:$0xff]
          %v1186 = vld [vmem:[#allocation8 + $0x80] sm:$0xff]
          %v1187 = vld [vmem:[#allocation8 + $0x88] sm:$0xff]
          %v1188 = vld [vmem:[#allocation8 + $0x90] sm:$0xff]
          %v1189 = vld [vmem:[#allocation8 + $0x98] sm:$0xff]
          %v1190 = vld [vmem:[#allocation8 + $0xa0] sm:$0xff]
          %v1191 = vld [vmem:[#allocation8 + $0xa8] sm:$0xff]
          %v1192 = vld [vmem:[#allocation8 + $0xb0] sm:$0xff]
          %v1193 = vld [vmem:[#allocation8 + $0xb8] sm:$0xff]
          %v1194 = vld [vmem:[#allocation8 + $0xc0] sm:$0xff]
          %v1195 = vld [vmem:[#allocation8 + $0xc8] sm:$0xff]
          %v1196 = vld [vmem:[#allocation8 + $0xd0] sm:$0xff]
          %v1197 = vld [vmem:[#allocation8 + $0xd8] sm:$0xff]
          %v1198 = vld [vmem:[#allocation8 + $0xe0] sm:$0xff]
          %v1199 = vld [vmem:[#allocation8 + $0xe8] sm:$0xff]
          %v1200 = vld [vmem:[#allocation8 + $0xf0] sm:$0xff]
          %v1201 = vld [vmem:[#allocation8 + $0xf8] sm:$0xff]
          %v1202 = vld [vmem:[%s8] sm:$0x3]
          %v1204 = vperm.slane %v1202, 0
          %v1205 = vperm.slane %v1202, 1
          %v1240 = vunpack.c.l.b16 %v1170
          %v1241 = vunpack.c.h.b16 %v1170
          %v1242 = vunpack.c.l.b16 %v1171
          %v1243 = vunpack.c.h.b16 %v1171
          %v1244 = vunpack.c.l.b16 %v1172
          %v1245 = vunpack.c.h.b16 %v1172
          %v1246 = vunpack.c.l.b16 %v1173
          %v1247 = vunpack.c.h.b16 %v1173
          %v1248 = vunpack.c.l.b16 %v1174
          %v1249 = vunpack.c.h.b16 %v1174
          %v1250 = vunpack.c.l.b16 %v1175
          %v1251 = vunpack.c.h.b16 %v1175
          %v1252 = vunpack.c.l.b16 %v1176
          %v1253 = vunpack.c.h.b16 %v1176
          %v1254 = vunpack.c.l.b16 %v1177
          %v1255 = vunpack.c.h.b16 %v1177
          %v1256 = vunpack.c.l.b16 %v1178
          %v1257 = vunpack.c.h.b16 %v1178
          %v1258 = vunpack.c.l.b16 %v1179
          %v1259 = vunpack.c.h.b16 %v1179
          %v1260 = vunpack.c.l.b16 %v1180
          %v1261 = vunpack.c.h.b16 %v1180
          %v1262 = vunpack.c.l.b16 %v1181
          %v1263 = vunpack.c.h.b16 %v1181
          %v1264 = vunpack.c.l.b16 %v1182
          %v1265 = vunpack.c.h.b16 %v1182
          %v1266 = vunpack.c.l.b16 %v1183
          %v1267 = vunpack.c.h.b16 %v1183
          %v1268 = vunpack.c.l.b16 %v1184
          %v1269 = vunpack.c.h.b16 %v1184
          %v1270 = vunpack.c.l.b16 %v1185
          %v1271 = vunpack.c.h.b16 %v1185
          %v1272 = vunpack.c.l.b16 %v1186
          %v1273 = vunpack.c.h.b16 %v1186
          %v1274 = vunpack.c.l.b16 %v1187
          %v1275 = vunpack.c.h.b16 %v1187
          %v1276 = vunpack.c.l.b16 %v1188
          %v1277 = vunpack.c.h.b16 %v1188
          %v1278 = vunpack.c.l.b16 %v1189
          %v1279 = vunpack.c.h.b16 %v1189
          %v1280 = vunpack.c.l.b16 %v1190
          %v1281 = vunpack.c.h.b16 %v1190
          %v1282 = vunpack.c.l.b16 %v1191
          %v1283 = vunpack.c.h.b16 %v1191
          %v1284 = vunpack.c.l.b16 %v1192
          %v1285 = vunpack.c.h.b16 %v1192
          %v1286 = vunpack.c.l.b16 %v1193
          %v1287 = vunpack.c.h.b16 %v1193
          %v1288 = vunpack.c.l.b16 %v1194
          %v1289 = vunpack.c.h.b16 %v1194
          %v1290 = vunpack.c.l.b16 %v1195
          %v1291 = vunpack.c.h.b16 %v1195
          %v1292 = vunpack.c.l.b16 %v1196
          %v1293 = vunpack.c.h.b16 %v1196
          %v1294 = vunpack.c.l.b16 %v1197
          %v1295 = vunpack.c.h.b16 %v1197
          %v1296 = vunpack.c.l.b16 %v1198
          %v1297 = vunpack.c.h.b16 %v1198
          %v1298 = vunpack.c.l.b16 %v1199
          %v1299 = vunpack.c.h.b16 %v1199
          %v1300 = vunpack.c.l.b16 %v1200
          %v1301 = vunpack.c.h.b16 %v1200
          %v1302 = vunpack.c.l.b16 %v1201
          %v1303 = vunpack.c.h.b16 %v1201
          %v1304 = vpack.c.b16 %v1242, %v1240
          %v1305 = vpack.c.b16 %v1243, %v1241
          %v1306 = vpack.c.b16 %v1246, %v1244
          %v1307 = vpack.c.b16 %v1247, %v1245
          %v1308 = vpack.c.b16 %v1250, %v1248
          %v1309 = vpack.c.b16 %v1251, %v1249
          %v1310 = vpack.c.b16 %v1254, %v1252
          %v1311 = vpack.c.b16 %v1255, %v1253
          %v1312 = vpack.c.b16 %v1258, %v1256
          %v1313 = vpack.c.b16 %v1259, %v1257
          %v1314 = vpack.c.b16 %v1262, %v1260
          %v1315 = vpack.c.b16 %v1263, %v1261
          %v1316 = vpack.c.b16 %v1266, %v1264
          %v1317 = vpack.c.b16 %v1267, %v1265
          %v1318 = vpack.c.b16 %v1270, %v1268
          %v1319 = vpack.c.b16 %v1271, %v1269
          %v1320 = vpack.c.b16 %v1274, %v1272
          %v1321 = vpack.c.b16 %v1275, %v1273
          %v1322 = vpack.c.b16 %v1278, %v1276
          %v1323 = vpack.c.b16 %v1279, %v1277
          %v1324 = vpack.c.b16 %v1282, %v1280
          %v1325 = vpack.c.b16 %v1283, %v1281
          %v1326 = vpack.c.b16 %v1286, %v1284
          %v1327 = vpack.c.b16 %v1287, %v1285
          %v1328 = vpack.c.b16 %v1290, %v1288
          %v1329 = vpack.c.b16 %v1291, %v1289
          %v1330 = vpack.c.b16 %v1294, %v1292
          %v1331 = vpack.c.b16 %v1295, %v1293
          %v1332 = vpack.c.b16 %v1298, %v1296
          %v1333 = vpack.c.b16 %v1299, %v1297
          %v1334 = vpack.c.b16 %v1302, %v1300
          %v1335 = vpack.c.b16 %v1303, %v1301
          %1368 = vmatpush.bf16.msra.mxu0 %v1318
          %1369 = vmatpush.bf16.msra.mxu0 %v1316
          %1370 = vmatpush.bf16.msra.mxu0 %v1314
          %1371 = vmatpush.bf16.msra.mxu0 %v1312
          %1372 = vmatpush.bf16.msra.mxu0 %v1310
          %1373 = vmatpush.bf16.msra.mxu0 %v1308
          %1374 = vmatpush.bf16.msra.mxu0 %v1306
          %1375 = vmatpush.bf16.msra.mxu0 %v1304
          %1376 = vmatmul.bf16.gmra.mxu0 %v1168
          %v1377 = vpop.f32.mrf.mxu0
          %v1378 = vadd.f32 %v1204, %v1377
          %v1379 = vpop.f32.mrf.mxu0
          %v1380 = vadd.f32 %v1204, %v1379
          %1381 = vdwg.mxu0
          %1382 = vmatpush.bf16.msra.mxu0 %v1334
          %1383 = vmatpush.bf16.msra.mxu0 %v1332
          %1384 = vmatpush.bf16.msra.mxu0 %v1330
          %1385 = vmatpush.bf16.msra.mxu0 %v1328
          %1386 = vmatpush.bf16.msra.mxu0 %v1326
          %1387 = vmatpush.bf16.msra.mxu0 %v1324
          %1388 = vmatpush.bf16.msra.mxu0 %v1322
          %1389 = vmatpush.bf16.msra.mxu0 %v1320
          %1390 = vmatmul.bf16.gmra.mxu0 %v1169
          %v1391 = vpop.f32.mrf.mxu0
          %v1392 = vadd.f32 %v1378, %v1391
          %v1393 = vpop.f32.mrf.mxu0
          %v1394 = vadd.f32 %v1380, %v1393
          %1395 = vdwg.mxu0
          %1396 = vmatpush.bf16.msra.mxu0 %v1319
          %1397 = vmatpush.bf16.msra.mxu0 %v1317
          %1398 = vmatpush.bf16.msra.mxu0 %v1315
          %1399 = vmatpush.bf16.msra.mxu0 %v1313
          %1400 = vmatpush.bf16.msra.mxu0 %v1311
          %1401 = vmatpush.bf16.msra.mxu0 %v1309
          %1402 = vmatpush.bf16.msra.mxu0 %v1307
          %1403 = vmatpush.bf16.msra.mxu0 %v1305
          %1404 = vmatmul.bf16.gmra.mxu0 %v1168
          %v1405 = vpop.f32.mrf.mxu0
          %v1406 = vadd.f32 %v1205, %v1405
          %v1407 = vpop.f32.mrf.mxu0
          %v1408 = vadd.f32 %v1205, %v1407
          %1409 = vdwg.mxu0
          %1410 = vmatpush.bf16.msra.mxu0 %v1335
          %1411 = vmatpush.bf16.msra.mxu0 %v1333
          %1412 = vmatpush.bf16.msra.mxu0 %v1331
          %1413 = vmatpush.bf16.msra.mxu0 %v1329
          %1414 = vmatpush.bf16.msra.mxu0 %v1327
          %1415 = vmatpush.bf16.msra.mxu0 %v1325
          %1416 = vmatpush.bf16.msra.mxu0 %v1323
          %1417 = vmatpush.bf16.msra.mxu0 %v1321
          %1418 = vmatmul.bf16.gmra.mxu0 %v1169
          %v1419 = vpop.f32.mrf.mxu0
          %v1420 = vadd.f32 %v1406, %v1419
          %v1421 = vpop.f32.mrf.mxu0
          %v1422 = vadd.f32 %v1408, %v1421
          %1423 = vdwg.mxu0
          %v1424 = vld [vmem:[%s457] sm:$0xff]
          %v1425 = vld [vmem:[%s457 + $0x8] sm:$0xff]
          %v1426 = vld [vmem:[%s457 + $0x10] sm:$0xff]
          %v1427 = vld [vmem:[%s457 + $0x18] sm:$0xff]
          %v1428 = vadd.f32 %v1424, %v1392
          %v1429 = vadd.f32 %v1425, %v1420
          %v1430 = vadd.f32 %v1426, %v1394
          %v1431 = vadd.f32 %v1427, %v1422
          %1432 = vst [vmem:[%s488] sm:$0xff] %v1428
          %1433 = vst [vmem:[%s488 + $0x8] sm:$0xff] %v1429
          %1434 = vst [vmem:[%s488 + $0x10] sm:$0xff] %v1430
          %1435 = vst [vmem:[%s488 + $0x18] sm:$0xff] %v1431
        $region72: #{decoder_forward.11} parent=55 // pred_fallthru
          _
        %s1436 = smul.u32 2, %s28
        %p1437 = scmp.lt.s32.totalorder %s27, 1
        %s1438 = scalar_select %p1437, %s27, 1
        %p1439 = scmp.lt.s32.totalorder %s1436, 1
        %s1440 = scalar_select %p1439, %s1436, 1
        %s1441 = smul.addr %s1440, 2
        %s1442 = smul.addr %s1438, 4
        %s1443 = sadd.s32 %s1441, %s1442
        %s1444 = smul.addr %s1443, 8
        %s1445 = scalar_lea.vmem %s9, %s1444
        // Predicated region
        $region73: #{decoder_forward.11} parent=55 // pred_check
          %p1446 = pneg %p271
        $region74: #{decoder_forward.11} parent=55 // pred_check_branch
          %1448 = sbr.rel (%p1446) target = $region76
        $region75: #{decoder_forward.11} parent=55 // pred_region
          %s1449 = smul.u32 2, %s28
        $region76: #{decoder_forward.11} parent=55 // pred_fallthru
          _
      $region56: #{decoder_forward.11} parent=5 // pred_fallthru
        _
      %p1450 = scmp.le.s32.totalorder 2, %s17
      // Predicated region
      $region77: #{decoder_forward.11} parent=5 // pred_check
        %p1451 = pneg %p1450
      $region78: #{decoder_forward.11} parent=5 // pred_check_branch
        %1453 = sbr.rel (%p1451) target = $region80
      $region79: #{decoder_forward.11} parent=5 // pred_region
        %s1454 = ssub.s32 %s17, 2
        // Predicated region
        $region81: #{decoder_forward.11} parent=79 // pred_check
          %p1455 = pneg %p277
        $region82: #{decoder_forward.11} parent=79 // pred_check_branch
          %1457 = sbr.rel (%p1455) target = $region84
        $region83: #{decoder_forward.11} parent=79 // pred_region
          %s1458 = smul.u32 2, %s31
          %p1459 = scmp.lt.s32.totalorder %s30, 1
          %s1460 = scalar_select %p1459, %s30, 1
          %p1461 = scmp.lt.s32.totalorder %s1458, 1
          %s1462 = scalar_select %p1461, %s1458, 1
          %s1463 = smul.addr %s1462, 2
          %s1464 = smul.addr %s1460, 4
          %s1465 = sadd.s32 %s1463, %s1464
          %s1466 = smul.addr %s1465, 8
          %s1467 = scalar_lea.vmem %s9, %s1466
        $region84: #{decoder_forward.11} parent=79 // pred_fallthru
          _
      $region80: #{decoder_forward.11} parent=5 // pred_fallthru
        _
    $region6: #{decoder_forward.11} parent=1 // loop_footer
      %s21 = sadd.s32 1, %s17
    $region7: #{decoder_forward.11} parent=1 // loop_footer_branch
      %16 = sbr.rel target = $region3
    $region8: #{decoder_forward.11} parent=1 // loop_exit
      _
    %1468 = vsyncpa [#allocation7], 1
    %s1469 = scalar_lea.sflag [#allocation7], 1
    %1470 = vsyncpa %s1469, 1
    %1471 = vsyncpa [#allocation9], 1

// kernel: decoder_forward.13
$region0: #{decoder_forward.13}
  #allocation0 [shape = 'u32[]', space=smem, size = 0x4, offset = 0x4, fixed_abs, tag = 'smem constant byte address 0x4 - core index']
  #allocation1 [shape = 'u32[72,128]{1,0:T(1,128)}', space=vmem, size = 0x9000, scoped, tag = 'internal scratch']
  #allocation2 [shape = 'bf16[16,256]{1,0:T(8,128)(2,1)}', space=vmem, size = 0x2000, scoped, tag = 'scratch operand']
  #allocation3 [shape = 'f32[2,16,1]{2,1,0:T(8,128)}', space=vmem, size = 0x4000, scoped, tag = 'scratch operand']
  #allocation4 [shape = 'f32[2,16,1]{2,1,0:T(8,128)}', space=vmem, size = 0x4000, scoped, tag = 'scratch operand']
  #allocation5 [shape = 'f32[16,256]{1,0:T(8,128)}', space=vmem, size = 0x4000, scoped, tag = 'scratch operand']
  %s0 = inlined_call_operand.vmem [shape: f32[2,16,256], index: 0, kind: input, shape index: {}, may-alias: {0,9}]
  %s1 = inlined_call_operand.vmem [shape: bf16[2,24,512], index: 1, kind: input, shape index: {}]
  %s2 = inlined_call_operand.vmem [shape: f32[2,1,24], index: 2, kind: input, shape index: {}]
  %s3 = inlined_call_operand.vmem [shape: f32[1,256], index: 3, kind: input, shape index: {}]
  %s4 = inlined_call_operand.vmem [shape: f32[1,256], index: 4, kind: input, shape index: {}]
  %s5 = inlined_call_operand.hbm [shape: bf16[256,256], index: 5, kind: input, shape index: {}]
  %s6 = inlined_call_operand.vmem [shape: f32[1,256], index: 6, kind: input, shape index: {}]
  %s7 = inlined_call_operand.hbm [shape: bf16[256,256], index: 7, kind: input, shape index: {}]
  %s8 = inlined_call_operand.vmem [shape: f32[1,256], index: 8, kind: input, shape index: {}]
  %s9 = inlined_call_operand.vmem [shape: f32[2,16,256], index: 9, kind: output, shape index: {}, may-alias: {0,9}]
  %s10 = sld [smem:[#allocation0]]
  $region85: #{decoder_forward.13} parent=0
    _
  %s12 = ssub.s32 1, %s10
  %s13 = scalar_select 0, %s12, %s10
  $region1: #{decoder_forward.13} parent=0
    #allocation6 [shape = 'u8[131072]{0}', space=vmem, size = 0x20000, scoped, tag = 'input window, operand 5, single buffered']
    #allocation7 [shape = 's32[2]{0}', space=sflag, size = 0x8, scoped, tag = 'scoped memory for decoder_forward.13']
    #allocation8 [shape = 'u8[131072]{0}', space=vmem, size = 0x20000, scoped, tag = 'input window, operand 7, single buffered']
    #allocation9 [shape = 's32[1]{0}', space=sflag, size = 0x4, scoped, tag = 'scoped memory for decoder_forward.13']
    %14 = vsyncpa [#allocation7], 0
    %15 = vsyncpa [#allocation9], 0
    loop: start=0, step=1, limit=4
    $region2: #{decoder_forward.13} parent=1 // loop_pre_header
      _
    $region3: #{decoder_forward.13} parent=1 // loop_header
      %s17 = sphi 0, %s21
      %p18 = scmp.ge.s32.totalorder %s17, 4
      %s24 = sphi 0, %s43
      %s25 = sphi 0, %s39
      %s26 = sphi 0, %s35
      %s27 = sphi 0, %s24
      %s28 = sphi 0, %s25
      %s29 = sphi 0, %s26
      %s30 = sphi 0, %s27
      %s31 = sphi 0, %s28
      %s32 = sphi 0, %s29
      %s48 = sphi 0, %s50
      %s51 = sphi 0, %s48
      %s52 = sphi 0, %s51
      %s68 = sphi 0, %s52
      %s76 = sphi 0, %s78
      %s79 = sphi 0, %s76
      %s80 = sphi 0, %s79
      %s96 = sphi 0, %s80
      %s104 = sphi 0, %s106
      %s107 = sphi 0, %s104
      %s108 = sphi 0, %s107
      %s124 = sphi 0, %s108
      %s128 = sphi 0, %s128
      %s130 = sphi 0, %s128
      %s131 = sphi 0, %s130
      %s145 = sphi 0, %s131
      %s149 = sphi 0, %s149
      %s151 = sphi 0, %s149
      %s152 = sphi 0, %s151
      %s166 = sphi 0, %s152
      %s170 = sphi 0, %s170
      %s172 = sphi 0, %s170
      %s173 = sphi 0, %s172
      %s187 = sphi 0, %s173
      %s191 = sphi 0, %s191
      %s193 = sphi 0, %s191
      %s194 = sphi 0, %s193
      %s208 = sphi 0, %s194
      %s212 = sphi 0, %s212
      %s214 = sphi 0, %s212
      %s215 = sphi 0, %s214
      %s229 = sphi 0, %s215
      %s233 = sphi 0, %s233
      %s235 = sphi 0, %s233
      %s236 = sphi 0, %s235
      %s250 = sphi 0, %s236
      %s258 = sphi 0, %s260
      %s261 = sphi 0, %s258
      %s262 = sphi 0, %s261
      %s278 = sphi 0, %s262
    $region4: #{decoder_forward.13} parent=1 // loop_header_branch
      %20 = sbr.rel (%p18) target = $region8
    $region5: #{decoder_forward.13} parent=1 // loop_body
      %s22 = ssub.s32 %s17, 1
      %s23 = ssub.s32 %s17, 2
      %s33 = sadd.s32 1, %s26
      %p34 = scmp.ge.s32.totalorder %s33, 1
      %s35 = scalar_select %p34, 0, %s33
      %s36 = sadd.s32 1, %s25
      %s37 = scalar_select %p34, %s36, %s25
      %p38 = scmp.ge.s32.totalorder %s37, 1
      %s39 = scalar_select %p38, 0, %s37
      %s40 = sadd.s32 1, %s24
      %s41 = scalar_select %p38, %s40, %s24
      %p42 = scmp.ge.s32.totalorder %s41, 2
      %s43 = scalar_select %p42, 0, %s41
      %s44 = ssub.s32 %s24, %s43
      %s45 = ssub.s32 %s25, %s39
      %s46 = sor.u32 %s44, %s45
      %p47 = scmp.eq.s32.totalorder %s46, 0
      %s49 = sadd.s32 %s48, 1
      %s50 = scalar_select %p47, %s48, %s49
      %p53 = pneg %p47
      %p54 = scmp.eq.s32.totalorder %s17, 1
      %p55 = por %p53, %p54
      %p56 = scmp.ne.s32.totalorder %s48, %s51
      %p57 = scmp.eq.s32.totalorder %s17, 0
      %p58 = por %p56, %p57
      %p59 = scmp.ne.s32.totalorder %s48, %s51
      %p60 = scmp.eq.s32.totalorder %s22, 1
      %p61 = por %p59, %p60
      %p62 = scmp.ne.s32.totalorder %s51, %s52
      %p63 = scmp.eq.s32.totalorder %s22, 0
      %p64 = por %p62, %p63
      %p65 = scmp.ne.s32.totalorder %s51, %s52
      %p66 = scmp.eq.s32.totalorder %s23, 1
      %p67 = por %p65, %p66
      %p69 = scmp.ne.s32.totalorder %s52, %s68
      %p70 = scmp.eq.s32.totalorder %s23, 0
      %p71 = por %p69, %p70
      %s72 = ssub.s32 %s24, %s43
      %s73 = ssub.s32 %s26, %s35
      %s74 = sor.u32 %s72, %s73
      %p75 = scmp.eq.s32.totalorder %s74, 0
      %s77 = sadd.s32 %s76, 1
      %s78 = scalar_select %p75, %s76, %s77
      %p81 = pneg %p75
      %p82 = scmp.eq.s32.totalorder %s17, 1
      %p83 = por %p81, %p82
      %p84 = scmp.ne.s32.totalorder %s76, %s79
      %p85 = scmp.eq.s32.totalorder %s17, 0
      %p86 = por %p84, %p85
      %p87 = scmp.ne.s32.totalorder %s76, %s79
      %p88 = scmp.eq.s32.totalorder %s22, 1
      %p89 = por %p87, %p88
      %p90 = scmp.ne.s32.totalorder %s79, %s80
      %p91 = scmp.eq.s32.totalorder %s22, 0
      %p92 = por %p90, %p91
      %p93 = scmp.ne.s32.totalorder %s79, %s80
      %p94 = scmp.eq.s32.totalorder %s23, 1
      %p95 = por %p93, %p94
      %p97 = scmp.ne.s32.totalorder %s80, %s96
      %p98 = scmp.eq.s32.totalorder %s23, 0
      %p99 = por %p97, %p98
      %s100 = ssub.s32 %s24, %s43
      %s101 = ssub.s32 %s26, %s35
      %s102 = sor.u32 %s100, %s101
      %p103 = scmp.eq.s32.totalorder %s102, 0
      %s105 = sadd.s32 %s104, 1
      %s106 = scalar_select %p103, %s104, %s105
      %p109 = pneg %p103
      %p110 = scmp.eq.s32.totalorder %s17, 1
      %p111 = por %p109, %p110
      %p112 = scmp.ne.s32.totalorder %s104, %s107
      %p113 = scmp.eq.s32.totalorder %s17, 0
      %p114 = por %p112, %p113
      %p115 = scmp.ne.s32.totalorder %s104, %s107
      %p116 = scmp.eq.s32.totalorder %s22, 1
      %p117 = por %p115, %p116
      %p118 = scmp.ne.s32.totalorder %s107, %s108
      %p119 = scmp.eq.s32.totalorder %s22, 0
      %p120 = por %p118, %p119
      %p121 = scmp.ne.s32.totalorder %s107, %s108
      %p122 = scmp.eq.s32.totalorder %s23, 1
      %p123 = por %p121, %p122
      %p125 = scmp.ne.s32.totalorder %s108, %s124
      %p126 = scmp.eq.s32.totalorder %s23, 0
      %p127 = por %p125, %p126
      %s129 = sadd.s32 %s128, 1
      %p132 = scmp.eq.s32.totalorder %s17, 1
      %p133 = scmp.ne.s32.totalorder %s128, %s130
      %p134 = scmp.eq.s32.totalorder %s17, 0
      %p135 = por %p133, %p134
      %p136 = scmp.ne.s32.totalorder %s128, %s130
      %p137 = scmp.eq.s32.totalorder %s22, 1
      %p138 = por %p136, %p137
      %p139 = scmp.ne.s32.totalorder %s130, %s131
      %p140 = scmp.eq.s32.totalorder %s22, 0
      %p141 = por %p139, %p140
      %p142 = scmp.ne.s32.totalorder %s130, %s131
      %p143 = scmp.eq.s32.totalorder %s23, 1
      %p144 = por %p142, %p143
      %p146 = scmp.ne.s32.totalorder %s131, %s145
      %p147 = scmp.eq.s32.totalorder %s23, 0
      %p148 = por %p146, %p147
      %s150 = sadd.s32 %s149, 1
      %p153 = scmp.eq.s32.totalorder %s17, 1
      %p154 = scmp.ne.s32.totalorder %s149, %s151
      %p155 = scmp.eq.s32.totalorder %s17, 0
      %p156 = por %p154, %p155
      %p157 = scmp.ne.s32.totalorder %s149, %s151
      %p158 = scmp.eq.s32.totalorder %s22, 1
      %p159 = por %p157, %p158
      %p160 = scmp.ne.s32.totalorder %s151, %s152
      %p161 = scmp.eq.s32.totalorder %s22, 0
      %p162 = por %p160, %p161
      %p163 = scmp.ne.s32.totalorder %s151, %s152
      %p164 = scmp.eq.s32.totalorder %s23, 1
      %p165 = por %p163, %p164
      %p167 = scmp.ne.s32.totalorder %s152, %s166
      %p168 = scmp.eq.s32.totalorder %s23, 0
      %p169 = por %p167, %p168
      %s171 = sadd.s32 %s170, 1
      %p174 = scmp.eq.s32.totalorder %s17, 1
      %p175 = scmp.ne.s32.totalorder %s170, %s172
      %p176 = scmp.eq.s32.totalorder %s17, 0
      %p177 = por %p175, %p176
      %p178 = scmp.ne.s32.totalorder %s170, %s172
      %p179 = scmp.eq.s32.totalorder %s22, 1
      %p180 = por %p178, %p179
      %p181 = scmp.ne.s32.totalorder %s172, %s173
      %p182 = scmp.eq.s32.totalorder %s22, 0
      %p183 = por %p181, %p182
      %p184 = scmp.ne.s32.totalorder %s172, %s173
      %p185 = scmp.eq.s32.totalorder %s23, 1
      %p186 = por %p184, %p185
      %p188 = scmp.ne.s32.totalorder %s173, %s187
      %p189 = scmp.eq.s32.totalorder %s23, 0
      %p190 = por %p188, %p189
      %s192 = sadd.s32 %s191, 1
      %p195 = scmp.eq.s32.totalorder %s17, 1
      %p196 = scmp.ne.s32.totalorder %s191, %s193
      %p197 = scmp.eq.s32.totalorder %s17, 0
      %p198 = por %p196, %p197
      %p199 = scmp.ne.s32.totalorder %s191, %s193
      %p200 = scmp.eq.s32.totalorder %s22, 1
      %p201 = por %p199, %p200
      %p202 = scmp.ne.s32.totalorder %s193, %s194
      %p203 = scmp.eq.s32.totalorder %s22, 0
      %p204 = por %p202, %p203
      %p205 = scmp.ne.s32.totalorder %s193, %s194
      %p206 = scmp.eq.s32.totalorder %s23, 1
      %p207 = por %p205, %p206
      %p209 = scmp.ne.s32.totalorder %s194, %s208
      %p210 = scmp.eq.s32.totalorder %s23, 0
      %p211 = por %p209, %p210
      %s213 = sadd.s32 %s212, 1
      %p216 = scmp.eq.s32.totalorder %s17, 1
      %p217 = scmp.ne.s32.totalorder %s212, %s214
      %p218 = scmp.eq.s32.totalorder %s17, 0
      %p219 = por %p217, %p218
      %p220 = scmp.ne.s32.totalorder %s212, %s214
      %p221 = scmp.eq.s32.totalorder %s22, 1
      %p222 = por %p220, %p221
      %p223 = scmp.ne.s32.totalorder %s214, %s215
      %p224 = scmp.eq.s32.totalorder %s22, 0
      %p225 = por %p223, %p224
      %p226 = scmp.ne.s32.totalorder %s214, %s215
      %p227 = scmp.eq.s32.totalorder %s23, 1
      %p228 = por %p226, %p227
      %p230 = scmp.ne.s32.totalorder %s215, %s229
      %p231 = scmp.eq.s32.totalorder %s23, 0
      %p232 = por %p230, %p231
      %s234 = sadd.s32 %s233, 1
      %p237 = scmp.eq.s32.totalorder %s17, 1
      %p238 = scmp.ne.s32.totalorder %s233, %s235
      %p239 = scmp.eq.s32.totalorder %s17, 0
      %p240 = por %p238, %p239
      %p241 = scmp.ne.s32.totalorder %s233, %s235
      %p242 = scmp.eq.s32.totalorder %s22, 1
      %p243 = por %p241, %p242
      %p244 = scmp.ne.s32.totalorder %s235, %s236
      %p245 = scmp.eq.s32.totalorder %s22, 0
      %p246 = por %p244, %p245
      %p247 = scmp.ne.s32.totalorder %s235, %s236
      %p248 = scmp.eq.s32.totalorder %s23, 1
      %p249 = por %p247, %p248
      %p251 = scmp.ne.s32.totalorder %s236, %s250
      %p252 = scmp.eq.s32.totalorder %s23, 0
      %p253 = por %p251, %p252
      %s254 = ssub.s32 %s24, %s43
      %s255 = ssub.s32 %s25, %s39
      %s256 = sor.u32 %s254, %s255
      %p257 = scmp.eq.s32.totalorder %s256, 0
      %s259 = sadd.s32 %s258, 1
      %s260 = scalar_select %p257, %s258, %s259
      %p263 = pneg %p257
      %p264 = scmp.eq.s32.totalorder %s17, 1
      %p265 = por %p263, %p264
      %p266 = scmp.ne.s32.totalorder %s258, %s261
      %p267 = scmp.eq.s32.totalorder %s17, 0
      %p268 = por %p266, %p267
      %p269 = scmp.ne.s32.totalorder %s258, %s261
      %p270 = scmp.eq.s32.totalorder %s22, 1
      %p271 = por %p269, %p270
      %p272 = scmp.ne.s32.totalorder %s261, %s262
      %p273 = scmp.eq.s32.totalorder %s22, 0
      %p274 = por %p272, %p273
      %p275 = scmp.ne.s32.totalorder %s261, %s262
      %p276 = scmp.eq.s32.totalorder %s23, 1
      %p277 = por %p275, %p276
      %p279 = scmp.ne.s32.totalorder %s262, %s278
      %p280 = scmp.eq.s32.totalorder %s23, 0
      %p281 = por %p279, %p280
      %p282 = scmp.le.s32.totalorder 1, %s17
      %p283 = scmp.lt.s32.totalorder %s17, 3
      %p284 = pnand %p282, %p283
      %p285 = pneg %p284
      // Predicated region
      $region9: #{decoder_forward.13} parent=5 // pred_check
        _
      $region10: #{decoder_forward.13} parent=5 // pred_check_branch
        %287 = sbr.rel (%p284) target = $region12
      $region11: #{decoder_forward.13} parent=5 // pred_region
        %s288 = ssub.s32 %s17, 1
        // Predicated region
        $region13: #{decoder_forward.13} parent=11 // pred_check
          %p289 = pneg %p141
        $region14: #{decoder_forward.13} parent=11 // pred_check_branch
          %291 = sbr.rel (%p289) target = $region16
        $region15: #{decoder_forward.13} parent=11 // pred_region
          _
        $region16: #{decoder_forward.13} parent=11 // pred_fallthru
          _
        // Predicated region
        $region17: #{decoder_forward.13} parent=11 // pred_check
          %p292 = pneg %p162
        $region18: #{decoder_forward.13} parent=11 // pred_check_branch
          %294 = sbr.rel (%p292) target = $region20
        $region19: #{decoder_forward.13} parent=11 // pred_region
          _
        $region20: #{decoder_forward.13} parent=11 // pred_fallthru
          _
        // Predicated region
        $region21: #{decoder_forward.13} parent=11 // pred_check
          %p295 = pneg %p183
        $region22: #{decoder_forward.13} parent=11 // pred_check_branch
          %297 = sbr.rel (%p295) target = $region24
        $region23: #{decoder_forward.13} parent=11 // pred_region
          %299 = vsyncadd [#allocation7], 0
          %s300 = sshll.u32 %s5, 4
          %s301 = int_to_ptr.hbm [resolvable:$true] %s300
          %s302 = sshll.u32 [#allocation6], 4
          %s303 = int_to_ptr.vmem [resolvable:$true] %s302
          %308 = dma.hbm_to_vmem [thread:$0]  %s301, 4096, %s303, [#allocation7], 128, 128, 8
        $region24: #{decoder_forward.13} parent=11 // pred_fallthru
          _
        // Predicated region
        $region25: #{decoder_forward.13} parent=11 // pred_check
          %p309 = pneg %p204
        $region26: #{decoder_forward.13} parent=11 // pred_check_branch
          %311 = sbr.rel (%p309) target = $region28
        $region27: #{decoder_forward.13} parent=11 // pred_region
          _
        $region28: #{decoder_forward.13} parent=11 // pred_fallthru
          _
        // Predicated region
        $region29: #{decoder_forward.13} parent=11 // pred_check
          %p312 = pneg %p225
        $region30: #{decoder_forward.13} parent=11 // pred_check_branch
          %314 = sbr.rel (%p312) target = $region32
        $region31: #{decoder_forward.13} parent=11 // pred_region
          %316 = vsyncadd [#allocation9], 0
          %s317 = sshll.u32 %s7, 4
          %s318 = int_to_ptr.hbm [resolvable:$true] %s317
          %s319 = sshll.u32 [#allocation8], 4
          %s320 = int_to_ptr.vmem [resolvable:$true] %s319
          %325 = dma.hbm_to_vmem [thread:$0]  %s318, 4096, %s320, [#allocation9], 128, 128, 8
        $region32: #{decoder_forward.13} parent=11 // pred_fallthru
          _
        // Predicated region
        $region33: #{decoder_forward.13} parent=11 // pred_check
          %p326 = pneg %p246
        $region34: #{decoder_forward.13} parent=11 // pred_check_branch
          %328 = sbr.rel (%p326) target = $region36
        $region35: #{decoder_forward.13} parent=11 // pred_region
          _
        $region36: #{decoder_forward.13} parent=11 // pred_fallthru
          _
      $region12: #{decoder_forward.13} parent=5 // pred_fallthru
        _
      %p329 = scmp.lt.s32.totalorder %s17, 2
      // Predicated region
      $region37: #{decoder_forward.13} parent=5 // pred_check
        %p330 = pneg %p329
      $region38: #{decoder_forward.13} parent=5 // pred_check_branch
        %332 = sbr.rel (%p330) target = $region40
      $region39: #{decoder_forward.13} parent=5 // pred_region
        // Predicated region
        $region41: #{decoder_forward.13} parent=39 // pred_check
          %p333 = pneg %p58
        $region42: #{decoder_forward.13} parent=39 // pred_check_branch
          %335 = sbr.rel (%p333) target = $region44
        $region43: #{decoder_forward.13} parent=39 // pred_region
          %s336 = smul.u32 2, %s25
          %p337 = scmp.lt.s32.totalorder %s24, 1
          %s338 = scalar_select %p337, %s24, 1
          %p339 = scmp.lt.s32.totalorder %s336, 1
          %s340 = scalar_select %p339, %s336, 1
          %s341 = smul.addr %s340, 2
          %s342 = smul.addr %s338, 4
          %s343 = sadd.s32 %s341, %s342
          %s344 = smul.addr %s343, 8
          %s345 = scalar_lea.vmem %s0, %s344
          %s346 = smul.u32 2, %s25
        $region44: #{decoder_forward.13} parent=39 // pred_fallthru
          _
        // Predicated region
        $region45: #{decoder_forward.13} parent=39 // pred_check
          %p347 = pneg %p86
        $region46: #{decoder_forward.13} parent=39 // pred_check_branch
          %349 = sbr.rel (%p347) target = $region48
        $region47: #{decoder_forward.13} parent=39 // pred_region
          %s350 = smul.u32 3, %s26
          %p351 = scmp.lt.s32.totalorder %s24, 1
          %s352 = scalar_select %p351, %s24, 1
          %p353 = scmp.lt.s32.totalorder %s350, 2
          %s354 = scalar_select %p353, %s350, 2
          %s355 = smul.addr %s354, 4
          %s356 = smul.addr %s352, 12
          %s357 = sadd.s32 %s355, %s356
          %s358 = smul.addr %s357, 4
          %s359 = scalar_lea.vmem %s1, %s358
          %s360 = smul.u32 3, %s26
        $region48: #{decoder_forward.13} parent=39 // pred_fallthru
          _
        // Predicated region
        $region49: #{decoder_forward.13} parent=39 // pred_check
          %p361 = pneg %p114
        $region50: #{decoder_forward.13} parent=39 // pred_check_branch
          %363 = sbr.rel (%p361) target = $region52
        $region51: #{decoder_forward.13} parent=39 // pred_region
          %p364 = scmp.lt.s32.totalorder %s24, 1
          %s365 = scalar_select %p364, %s24, 1
          %p366 = scmp.lt.s32.totalorder %s26, 0
          %s367 = scalar_select %p366, %s26, 0
          %s368 = sadd.s32 %s367, %s365
          %s369 = scalar_lea.vmem %s2, %s368
        $region52: #{decoder_forward.13} parent=39 // pred_fallthru
          _
      $region40: #{decoder_forward.13} parent=5 // pred_fallthru
        _
      %p370 = scmp.le.s32.totalorder 1, %s17
      %p371 = scmp.lt.s32.totalorder %s17, 3
      %p372 = pnand %p370, %p371
      %p373 = pneg %p372
      // Predicated region
      $region53: #{decoder_forward.13} parent=5 // pred_check
        _
      $region54: #{decoder_forward.13} parent=5 // pred_check_branch
        %375 = sbr.rel (%p372) target = $region56
      $region55: #{decoder_forward.13} parent=5 // pred_region
        %s376 = ssub.s32 %s17, 1
        // Predicated region
        $region57: #{decoder_forward.13} parent=55 // pred_check
          %p377 = pneg %p183
        $region58: #{decoder_forward.13} parent=55 // pred_check_branch
          %379 = sbr.rel (%p377) target = $region60
        $region59: #{decoder_forward.13} parent=55 // pred_region
          %381 = dma.done [#allocation7], 4096
        $region60: #{decoder_forward.13} parent=55 // pred_fallthru
          _
        // Predicated region
        $region61: #{decoder_forward.13} parent=55 // pred_check
          %p382 = pneg %p225
        $region62: #{decoder_forward.13} parent=55 // pred_check_branch
          %384 = sbr.rel (%p382) target = $region64
        $region63: #{decoder_forward.13} parent=55 // pred_region
          %386 = dma.done [#allocation9], 4096
        $region64: #{decoder_forward.13} parent=55 // pred_fallthru
          _
        %s387 = smul.u32 2, %s28
        %p388 = scmp.lt.s32.totalorder %s27, 1
        %s389 = scalar_select %p388, %s27, 1
        %p390 = scmp.lt.s32.totalorder %s387, 1
        %s391 = scalar_select %p390, %s387, 1
        %s392 = smul.addr %s391, 2
        %s393 = smul.addr %s389, 4
        %s394 = sadd.s32 %s392, %s393
        %s395 = smul.addr %s394, 8
        %s396 = scalar_lea.vmem %s0, %s395
        %p397 = pneg %p64
        %p398 = pneg %p61
        %s399 = smul.u32 3, %s29
        %p400 = scmp.lt.s32.totalorder %s27, 1
        %s401 = scalar_select %p400, %s27, 1
        %p402 = scmp.lt.s32.totalorder %s399, 2
        %s403 = scalar_select %p402, %s399, 2
        %s404 = smul.addr %s403, 4
        %s405 = smul.addr %s401, 12
        %s406 = sadd.s32 %s404, %s405
        %s407 = smul.addr %s406, 4
        %s408 = scalar_lea.vmem %s1, %s407
        %p409 = pneg %p92
        %p410 = pneg %p89
        %p411 = scmp.lt.s32.totalorder %s27, 1
        %s412 = scalar_select %p411, %s27, 1
        %p413 = scmp.lt.s32.totalorder %s29, 0
        %s414 = scalar_select %p413, %s29, 0
        %s415 = sadd.s32 %s414, %s412
        %s416 = scalar_lea.vmem %s2, %s415
        %p417 = pneg %p120
        %p418 = pneg %p117
        %p419 = pneg %p141
        %p420 = pneg %p138
        %p421 = pneg %p162
        %p422 = pneg %p159
        %p423 = pneg %p183
        %p424 = pneg %p180
        %p425 = pneg %p204
        %p426 = pneg %p201
        %p427 = pneg %p225
        %p428 = pneg %p222
        %p429 = pneg %p246
        %p430 = pneg %p243
        %p431 = pneg %p274
        %p432 = pneg %p271
        %s433 = smul.u32 2, %s28
        %p434 = scmp.lt.s32.totalorder %s27, 1
        %s435 = scalar_select %p434, %s27, 1
        %p436 = scmp.lt.s32.totalorder %s433, 1
        %s437 = scalar_select %p436, %s433, 1
        %s438 = smul.addr %s437, 2
        %s439 = smul.addr %s435, 4
        %s440 = sadd.s32 %s438, %s439
        %s441 = smul.addr %s440, 8
        %s442 = scalar_lea.vmem %s9, %s441
        %s443 = smul.u32 2, %s28
        %p444 = scmp.lt.s32.totalorder %s27, 1
        %s445 = scalar_select %p444, %s27, 1
        %p446 = scmp.lt.s32.totalorder %s443, 1
        %s447 = scalar_select %p446, %s443, 1
        %s448 = smul.addr %s447, 2
        %s449 = smul.addr %s445, 4
        %s450 = sadd.s32 %s448, %s449
        %s451 = smul.addr %s450, 8
        %s452 = scalar_lea.vmem %s0, %s451
        %s453 = smul.u32 2, %s28
        %s454 = smul.u32 3, %s29
        %p455 = scmp.lt.s32.totalorder %s27, 1
        %s456 = scalar_select %p455, %s27, 1
        %p457 = scmp.lt.s32.totalorder %s454, 2
        %s458 = scalar_select %p457, %s454, 2
        %s459 = smul.addr %s458, 4
        %s460 = smul.addr %s456, 12
        %s461 = sadd.s32 %s459, %s460
        %s462 = smul.addr %s461, 4
        %s463 = scalar_lea.vmem %s1, %s462
        %s464 = smul.u32 3, %s29
        %p465 = scmp.lt.s32.totalorder %s27, 1
        %s466 = scalar_select %p465, %s27, 1
        %p467 = scmp.lt.s32.totalorder %s29, 0
        %s468 = scalar_select %p467, %s29, 0
        %s469 = sadd.s32 %s468, %s466
        %s470 = scalar_lea.vmem %s2, %s469
        %s471 = smul.u32 2, %s28
        %p472 = scmp.lt.s32.totalorder %s27, 1
        %s473 = scalar_select %p472, %s27, 1
        %p474 = scmp.lt.s32.totalorder %s471, 1
        %s475 = scalar_select %p474, %s471, 1
        %s476 = smul.addr %s475, 2
        %s477 = smul.addr %s473, 4
        %s478 = sadd.s32 %s476, %s477
        %s479 = smul.addr %s478, 8
        %s480 = scalar_lea.vmem %s9, %s479
        %s481 = smul.u32 2, %s28
        %p483 = scmp.eq.s32.totalorder %s29, 0
        // Predicated region
        $region65: #{decoder_forward.13} parent=55 // pred_check
          %p484 = pneg %p483
        $region66: #{decoder_forward.13} parent=55 // pred_check_branch
          %486 = sbr.rel (%p484) target = $region68
        $region67: #{decoder_forward.13} parent=55 // pred_region
          %v487 = vld [vmem:[%s452] sm:$0xff]
          %v488 = vld [vmem:[%s452 + $0x8] sm:$0xff]
          %v489 = vld [vmem:[%s452 + $0x10] sm:$0xff]
          %v490 = vld [vmem:[%s452 + $0x18] sm:$0xff]
          %v491 = vld [vmem:[%s3] sm:$0x3]
          %v492 = vld [vmem:[%s4] sm:$0x3]
          %v493 = vadd.f32 %v487, %v488
          %494 = vadd.xlane.f32.xlu0 %v493
          %v495 = vpop.xlane.xlu0 %494
          %v496 = vadd.f32 %v489, %v490
          %497 = vadd.xlane.f32.xlu0 %v496
          %v498 = vpop.xlane.xlu0 %497
          %v499 = vrcp.pop 256.0
          %v500 = vmul.f32 256.0, %v499
          %v501 = vsub.f32 1.0, %v500
          %v502 = vmul.f32 %v499, %v501
          %v503 = vadd.f32 %v499, %v502
          %vm504 = vweird.f32 %v499
          %v505 = vsel %vm504, %v499, %v503
          %v506 = vmul.f32 %v495, %v505
          %v507 = vmul.f32 %v498, %v505
          %v508 = vsub.f32 %v487, %v506
          %v509 = vsub.f32 %v488, %v506
          %v510 = vsub.f32 %v489, %v507
          %v511 = vsub.f32 %v490, %v507
          %v512 = vmul.f32 %v508, %v508
          %v513 = vmul.f32 %v509, %v509
          %v514 = vmul.f32 %v510, %v510
          %v515 = vmul.f32 %v511, %v511
          %v516 = vadd.f32 %v512, %v513
          %517 = vadd.xlane.f32.xlu0 %v516
          %v518 = vpop.xlane.xlu0 %517
          %v519 = vadd.f32 %v514, %v515
          %520 = vadd.xlane.f32.xlu0 %v519
          %v521 = vpop.xlane.xlu0 %520
          %v522 = vmul.f32 %v518, 0.003921569
          %v523 = vmul.f32 %v521, 0.003921569
          %v524 = vrsqrt.pop %v522
          %v525 = vmul.f32 %v524, %v522
          %v526 = vmul.f32 %v525, %v524
          %v527 = vmul.f32 0.5, %v526
          %v528 = vsub.f32 1.5, %v527
          %v529 = vmul.f32 %v524, %v528
          %v530 = vmul.f32 %v522, %v529
          %vm531 = vcmp.eq.f32.partialorder %v522, inf
          %v532 = vsel %vm531, %v522, %v530
          %vm533 = vcmp.eq.f32.partialorder %v522, 0.0
          %v534 = vand.u32 %v522, 2147483648
          %v535 = vsel %vm533, %v534, %v532
          %v536 = vrsqrt.pop %v523
          %v537 = vmul.f32 %v536, %v523
          %v538 = vmul.f32 %v537, %v536
          %v539 = vmul.f32 0.5, %v538
          %v540 = vsub.f32 1.5, %v539
          %v541 = vmul.f32 %v536, %v540
          %v542 = vmul.f32 %v523, %v541
          %vm543 = vcmp.eq.f32.partialorder %v523, inf
          %v544 = vsel %vm543, %v523, %v542
          %vm545 = vcmp.eq.f32.partialorder %v523, 0.0
          %v546 = vand.u32 %v523, 2147483648
          %v547 = vsel %vm545, %v546, %v544
          %v548 = vadd.f32 %v535, 1e-06
          %v549 = vadd.f32 %v547, 1e-06
          %v550 = vrcp.pop %v548
          %v551 = vmul.f32 %v548, %v550
          %v552 = vsub.f32 1.0, %v551
          %v553 = vmul.f32 %v550, %v552
          %v554 = vadd.f32 %v550, %v553
          %vm555 = vweird.f32 %v548
          %vm556 = vweird.f32 %v550
          %vm557 = vmor %vm555, %vm556
          %v558 = vsel %vm557, %v550, %v554
          %v559 = vand.u32 2147483647, %v548
          %vm560 = vcmp.eq.f32.partialorder %v559, 8.507059e+37
          %v561 = vand.u32 %v548, 2147483648
          %v562 = vor.u32 1.1754944e-38, %v561
          %v563 = vsel %vm560, %v562, %v558
          %v564 = vmul.f32 1.0, %v563
          %v565 = vrcp.pop %v549
          %v566 = vmul.f32 %v549, %v565
          %v567 = vsub.f32 1.0, %v566
          %v568 = vmul.f32 %v565, %v567
          %v569 = vadd.f32 %v565, %v568
          %vm570 = vweird.f32 %v549
          %vm571 = vweird.f32 %v565
          %vm572 = vmor %vm570, %vm571
          %v573 = vsel %vm572, %v565, %v569
          %v574 = vand.u32 2147483647, %v549
          %vm575 = vcmp.eq.f32.partialorder %v574, 8.507059e+37
          %v576 = vand.u32 %v549, 2147483648
          %v577 = vor.u32 1.1754944e-38, %v576
          %v578 = vsel %vm575, %v577, %v573
          %v579 = vmul.f32 1.0, %v578
          %v580 = vmul.f32 %v508, %v564
          %v581 = vmul.f32 %v509, %v564
          %v582 = vmul.f32 %v510, %v579
          %v583 = vmul.f32 %v511, %v579
          %v585 = vperm.slane %v491, 0
          %v586 = vperm.slane %v491, 1
          %v589 = vmul.f32 %v585, %v580
          %v590 = vmul.f32 %v586, %v581
          %v591 = vmul.f32 %v585, %v582
          %v592 = vmul.f32 %v586, %v583
          %v594 = vperm.slane %v492, 0
          %v595 = vperm.slane %v492, 1
          %v598 = vadd.f32 %v589, %v594
          %v599 = vadd.f32 %v590, %v595
          %v600 = vadd.f32 %v591, %v594
          %v601 = vadd.f32 %v592, %v595
          %v602 = vpack.c.bf16 %v600, %v598
          %v603 = vpack.c.bf16 %v601, %v599
          %v604 = vld [vmem:[#allocation6] sm:$0xff]
          %v605 = vld [vmem:[#allocation6 + $0x8] sm:$0xff]
          %v606 = vld [vmem:[#allocation6 + $0x10] sm:$0xff]
          %v607 = vld [vmem:[#allocation6 + $0x18] sm:$0xff]
          %v608 = vld [vmem:[#allocation6 + $0x20] sm:$0xff]
          %v609 = vld [vmem:[#allocation6 + $0x28] sm:$0xff]
          %v610 = vld [vmem:[#allocation6 + $0x30] sm:$0xff]
          %v611 = vld [vmem:[#allocation6 + $0x38] sm:$0xff]
          %v612 = vld [vmem:[#allocation6 + $0x40] sm:$0xff]
          %v613 = vld [vmem:[#allocation6 + $0x48] sm:$0xff]
          %v614 = vld [vmem:[#allocation6 + $0x50] sm:$0xff]
          %v615 = vld [vmem:[#allocation6 + $0x58] sm:$0xff]
          %v616 = vld [vmem:[#allocation6 + $0x60] sm:$0xff]
          %v617 = vld [vmem:[#allocation6 + $0x68] sm:$0xff]
          %v618 = vld [vmem:[#allocation6 + $0x70] sm:$0xff]
          %v619 = vld [vmem:[#allocation6 + $0x78] sm:$0xff]
          %v620 = vld [vmem:[#allocation6 + $0x80] sm:$0xff]
          %v621 = vld [vmem:[#allocation6 + $0x88] sm:$0xff]
          %v622 = vld [vmem:[#allocation6 + $0x90] sm:$0xff]
          %v623 = vld [vmem:[#allocation6 + $0x98] sm:$0xff]
          %v624 = vld [vmem:[#allocation6 + $0xa0] sm:$0xff]
          %v625 = vld [vmem:[#allocation6 + $0xa8] sm:$0xff]
          %v626 = vld [vmem:[#allocation6 + $0xb0] sm:$0xff]
          %v627 = vld [vmem:[#allocation6 + $0xb8] sm:$0xff]
          %v628 = vld [vmem:[#allocation6 + $0xc0] sm:$0xff]
          %v629 = vld [vmem:[#allocation6 + $0xc8] sm:$0xff]
          %v630 = vld [vmem:[#allocation6 + $0xd0] sm:$0xff]
          %v631 = vld [vmem:[#allocation6 + $0xd8] sm:$0xff]
          %v632 = vld [vmem:[#allocation6 + $0xe0] sm:$0xff]
          %v633 = vld [vmem:[#allocation6 + $0xe8] sm:$0xff]
          %v634 = vld [vmem:[#allocation6 + $0xf0] sm:$0xff]
          %v635 = vld [vmem:[#allocation6 + $0xf8] sm:$0xff]
          %v636 = vld [vmem:[%s6] sm:$0x3]
          %v638 = vperm.slane %v636, 0
          %v639 = vperm.slane %v636, 1
          %v674 = vunpack.c.l.b16 %v604
          %v675 = vunpack.c.h.b16 %v604
          %v676 = vunpack.c.l.b16 %v605
          %v677 = vunpack.c.h.b16 %v605
          %v678 = vunpack.c.l.b16 %v606
          %v679 = vunpack.c.h.b16 %v606
          %v680 = vunpack.c.l.b16 %v607
          %v681 = vunpack.c.h.b16 %v607
          %v682 = vunpack.c.l.b16 %v608
          %v683 = vunpack.c.h.b16 %v608
          %v684 = vunpack.c.l.b16 %v609
          %v685 = vunpack.c.h.b16 %v609
          %v686 = vunpack.c.l.b16 %v610
          %v687 = vunpack.c.h.b16 %v610
          %v688 = vunpack.c.l.b16 %v611
          %v689 = vunpack.c.h.b16 %v611
          %v690 = vunpack.c.l.b16 %v612
          %v691 = vunpack.c.h.b16 %v612
          %v692 = vunpack.c.l.b16 %v613
          %v693 = vunpack.c.h.b16 %v613
          %v694 = vunpack.c.l.b16 %v614
          %v695 = vunpack.c.h.b16 %v614
          %v696 = vunpack.c.l.b16 %v615
          %v697 = vunpack.c.h.b16 %v615
          %v698 = vunpack.c.l.b16 %v616
          %v699 = vunpack.c.h.b16 %v616
          %v700 = vunpack.c.l.b16 %v617
          %v701 = vunpack.c.h.b16 %v617
          %v702 = vunpack.c.l.b16 %v618
          %v703 = vunpack.c.h.b16 %v618
          %v704 = vunpack.c.l.b16 %v619
          %v705 = vunpack.c.h.b16 %v619
          %v706 = vunpack.c.l.b16 %v620
          %v707 = vunpack.c.h.b16 %v620
          %v708 = vunpack.c.l.b16 %v621
          %v709 = vunpack.c.h.b16 %v621
          %v710 = vunpack.c.l.b16 %v622
          %v711 = vunpack.c.h.b16 %v622
          %v712 = vunpack.c.l.b16 %v623
          %v713 = vunpack.c.h.b16 %v623
          %v714 = vunpack.c.l.b16 %v624
          %v715 = vunpack.c.h.b16 %v624
          %v716 = vunpack.c.l.b16 %v625
          %v717 = vunpack.c.h.b16 %v625
          %v718 = vunpack.c.l.b16 %v626
          %v719 = vunpack.c.h.b16 %v626
          %v720 = vunpack.c.l.b16 %v627
          %v721 = vunpack.c.h.b16 %v627
          %v722 = vunpack.c.l.b16 %v628
          %v723 = vunpack.c.h.b16 %v628
          %v724 = vunpack.c.l.b16 %v629
          %v725 = vunpack.c.h.b16 %v629
          %v726 = vunpack.c.l.b16 %v630
          %v727 = vunpack.c.h.b16 %v630
          %v728 = vunpack.c.l.b16 %v631
          %v729 = vunpack.c.h.b16 %v631
          %v730 = vunpack.c.l.b16 %v632
          %v731 = vunpack.c.h.b16 %v632
          %v732 = vunpack.c.l.b16 %v633
          %v733 = vunpack.c.h.b16 %v633
          %v734 = vunpack.c.l.b16 %v634
          %v735 = vunpack.c.h.b16 %v634
          %v736 = vunpack.c.l.b16 %v635
          %v737 = vunpack.c.h.b16 %v635
          %v738 = vpack.c.b16 %v676, %v674
          %v739 = vpack.c.b16 %v677, %v675
          %v740 = vpack.c.b16 %v680, %v678
          %v741 = vpack.c.b16 %v681, %v679
          %v742 = vpack.c.b16 %v684, %v682
          %v743 = vpack.c.b16 %v685, %v683
          %v744 = vpack.c.b16 %v688, %v686
          %v745 = vpack.c.b16 %v689, %v687
          %v746 = vpack.c.b16 %v692, %v690
          %v747 = vpack.c.b16 %v693, %v691
          %v748 = vpack.c.b16 %v696, %v694
          %v749 = vpack.c.b16 %v697, %v695
          %v750 = vpack.c.b16 %v700, %v698
          %v751 = vpack.c.b16 %v701, %v699
          %v752 = vpack.c.b16 %v704, %v702
          %v753 = vpack.c.b16 %v705, %v703
          %v754 = vpack.c.b16 %v708, %v706
          %v755 = vpack.c.b16 %v709, %v707
          %v756 = vpack.c.b16 %v712, %v710
          %v757 = vpack.c.b16 %v713, %v711
          %v758 = vpack.c.b16 %v716, %v714
          %v759 = vpack.c.b16 %v717, %v715
          %v760 = vpack.c.b16 %v720, %v718
          %v761 = vpack.c.b16 %v721, %v719
          %v762 = vpack.c.b16 %v724, %v722
          %v763 = vpack.c.b16 %v725, %v723
          %v764 = vpack.c.b16 %v728, %v726
          %v765 = vpack.c.b16 %v729, %v727
          %v766 = vpack.c.b16 %v732, %v730
          %v767 = vpack.c.b16 %v733, %v731
          %v768 = vpack.c.b16 %v736, %v734
          %v769 = vpack.c.b16 %v737, %v735
          %802 = vmatpush.bf16.msra.mxu0 %v752
          %803 = vmatpush.bf16.msra.mxu0 %v750
          %804 = vmatpush.bf16.msra.mxu0 %v748
          %805 = vmatpush.bf16.msra.mxu0 %v746
          %806 = vmatpush.bf16.msra.mxu0 %v744
          %807 = vmatpush.bf16.msra.mxu0 %v742
          %808 = vmatpush.bf16.msra.mxu0 %v740
          %809 = vmatpush.bf16.msra.mxu0 %v738
          %810 = vmatmul.bf16.gmra.mxu0 %v602
          %v811 = vpop.f32.mrf.mxu0
          %v812 = vadd.f32 %v638, %v811
          %v813 = vpop.f32.mrf.mxu0
          %v814 = vadd.f32 %v638, %v813
          %815 = vdwg.mxu0
          %816 = vmatpush.bf16.msra.mxu0 %v768
          %817 = vmatpush.bf16.msra.mxu0 %v766
          %818 = vmatpush.bf16.msra.mxu0 %v764
          %819 = vmatpush.bf16.msra.mxu0 %v762
          %820 = vmatpush.bf16.msra.mxu0 %v760
          %821 = vmatpush.bf16.msra.mxu0 %v758
          %822 = vmatpush.bf16.msra.mxu0 %v756
          %823 = vmatpush.bf16.msra.mxu0 %v754
          %824 = vmatmul.bf16.gmra.mxu0 %v603
          %v825 = vpop.f32.mrf.mxu0
          %v826 = vadd.f32 %v812, %v825
          %v827 = vpop.f32.mrf.mxu0
          %v828 = vadd.f32 %v814, %v827
          %829 = vdwg.mxu0
          %830 = vmatpush.bf16.msra.mxu0 %v753
          %831 = vmatpush.bf16.msra.mxu0 %v751
          %832 = vmatpush.bf16.msra.mxu0 %v749
          %833 = vmatpush.bf16.msra.mxu0 %v747
          %834 = vmatpush.bf16.msra.mxu0 %v745
          %835 = vmatpush.bf16.msra.mxu0 %v743
          %836 = vmatpush.bf16.msra.mxu0 %v741
          %837 = vmatpush.bf16.msra.mxu0 %v739
          %838 = vmatmul.bf16.gmra.mxu0 %v602
          %v839 = vpop.f32.mrf.mxu0
          %v840 = vadd.f32 %v639, %v839
          %v841 = vpop.f32.mrf.mxu0
          %v842 = vadd.f32 %v639, %v841
          %843 = vdwg.mxu0
          %844 = vmatpush.bf16.msra.mxu0 %v769
          %845 = vmatpush.bf16.msra.mxu0 %v767
          %846 = vmatpush.bf16.msra.mxu0 %v765
          %847 = vmatpush.bf16.msra.mxu0 %v763
          %848 = vmatpush.bf16.msra.mxu0 %v761
          %849 = vmatpush.bf16.msra.mxu0 %v759
          %850 = vmatpush.bf16.msra.mxu0 %v757
          %851 = vmatpush.bf16.msra.mxu0 %v755
          %852 = vmatmul.bf16.gmra.mxu0 %v603
          %v853 = vpop.f32.mrf.mxu0
          %v854 = vadd.f32 %v840, %v853
          %v855 = vpop.f32.mrf.mxu0
          %v856 = vadd.f32 %v842, %v855
          %857 = vdwg.mxu0
          %v858 = vmul.f32 %v826, 0.088388346
          %v859 = vmul.f32 %v854, 0.088388346
          %v860 = vmul.f32 %v828, 0.088388346
          %v861 = vmul.f32 %v856, 0.088388346
          %v862 = vpack.c.bf16 %v859, %v858
          %v863 = vpack.c.bf16 %v861, %v860
          %864 = vst [vmem:[#allocation2] sm:$0xff] %v862
          %865 = vst [vmem:[#allocation2 + $0x8] sm:$0xff] %v863
          %vm866 = vcmask 7168
          %867 = vst.msk [vmem:[#allocation3] sm:$0xff] %vm866, -1e+30
          %868 = vst.msk [vmem:[#allocation3 + $0x8] sm:$0xff] %vm866, -1e+30
          %869 = vst.msk [vmem:[#allocation3 + $0x10] sm:$0xff] %vm866, -1e+30
          %870 = vst.msk [vmem:[#allocation3 + $0x18] sm:$0xff] %vm866, -1e+30
          %871 = vst.msk [vmem:[#allocation4] sm:$0xff] %vm866, 0.0
          %872 = vst.msk [vmem:[#allocation4 + $0x8] sm:$0xff] %vm866, 0.0
          %873 = vst.msk [vmem:[#allocation4 + $0x10] sm:$0xff] %vm866, 0.0
          %874 = vst.msk [vmem:[#allocation4 + $0x18] sm:$0xff] %vm866, 0.0
          %875 = vst [vmem:[#allocation5] sm:$0xff] 0.0
          %876 = vst [vmem:[#allocation5 + $0x8] sm:$0xff] 0.0
          %877 = vst [vmem:[#allocation5 + $0x10] sm:$0xff] 0.0
          %878 = vst [vmem:[#allocation5 + $0x18] sm:$0xff] 0.0
        $region68: #{decoder_forward.13} parent=55 // pred_fallthru
          _
        %v879 = vld [vmem:[%s463] sm:$0xff]
        %v880 = vld [vmem:[%s463 + $0x8] sm:$0xff]
        %v881 = vld [vmem:[%s463 + $0x10] sm:$0xff]
        %v882 = vld [vmem:[%s463 + $0x18] sm:$0xff]
        %v883 = vld [vmem:[%s463 + $0x20] sm:$0xff]
        %v884 = vld [vmem:[%s463 + $0x28] sm:$0xff]
        %v885 = vld [vmem:[%s470] sm:$0x1]
        %v886 = vld [vmem:[#allocation2] sm:$0xf]
        %v887 = vld [vmem:[#allocation2 + $0x8] sm:$0xf]
        %v889 = vperm.slane %v885, 0
        %v893 = vunpack.c.l.b16 %v886
        %v894 = vunpack.c.l.b16 %v887
        %v895 = vpack.c.b16 %v894, %v893
        %v900 = vunpack.c.l.b16 %v879
        %v901 = vunpack.c.l.b16 %v881
        %v902 = vunpack.c.l.b16 %v883
        %v903 = vpack.c.b16 %v901, %v900
        %v904 = vpack.c.b16 %v902, %v902
        %907 = vmatpush.bf16.xpose.msra.mxu0 0
        %908 = vmatpush.bf16.xpose.msra.mxu0 0
        %909 = vmatpush.bf16.xpose.msra.mxu0 0
        %910 = vmatpush.bf16.xpose.msra.mxu0 0
        %911 = vmatpush.bf16.xpose.msra.mxu0 0
        %912 = vmatpush.bf16.xpose.msra.mxu0 0
        %913 = vmatpush.bf16.xpose.msra.mxu0 %v904
        %914 = vmatpush.bf16.xpose.msra.mxu0 %v903
        %915 = vmatmul.bf16.gmra.mxu0 %v895
        %v916 = vpop.f32.mrf.mxu0
        %v917 = vadd.f32 %v889, %v916
        %v918 = vpop.f32.mrf.mxu0
        %v919 = vadd.f32 %v889, %v918
        %920 = vdwg.mxu0
        %v921 = vld [vmem:[#allocation3] sm:$0xff]
        %v922 = vld [vmem:[#allocation3 + $0x8] sm:$0xff]
        %vm923 = vcmask 195584
        %v924 = vsel %vm923, %v917, -inf
        %925 = vmax.xlane.f32.xlu0 %v924
        %v926 = vpop.xlane.xlu0 %925
        %v927 = vsel %vm923, %v919, -inf
        %928 = vmax.xlane.f32.xlu0 %v927
        %v929 = vpop.xlane.xlu0 %928
        %v930 = vmax.f32 %v921, %v926
        %v931 = vmax.f32 %v922, %v929
        %v932 = vsub.f32 %v921, %v930
        %v933 = vsub.f32 %v922, %v931
        %v934 = vmul.f32 %v932, 1.442695
        %v935 = vpow.pop %v934
        %v936 = vmul.f32 %v933, 1.442695
        %v937 = vpow.pop %v936
        %939 = vset.pattern.permute.xlu0 0
        %940 = vperm.xlu0 %939, %v930
        %v941 = vpop.permute.xlu0 %940
        %944 = vset.pattern.permute.xlu0 0
        %945 = vperm.xlu0 %944, %v931
        %v946 = vpop.permute.xlu0 %945
        %v948 = vsub.f32 %v917, %v941
        %v949 = vsub.f32 %v919, %v946
        %v950 = vmul.f32 %v948, 1.442695
        %v951 = vpow.pop %v950
        %v952 = vmul.f32 %v949, 1.442695
        %v953 = vpow.pop %v952
        %v954 = vld [vmem:[#allocation4] sm:$0xff]
        %v955 = vld [vmem:[#allocation4 + $0x8] sm:$0xff]
        %v956 = vmul.f32 %v935, %v954
        %v957 = vmul.f32 %v937, %v955
        %v958 = vsel %vm923, %v951, 0.0
        %959 = vadd.xlane.f32.xlu0 %v958
        %v960 = vpop.xlane.xlu0 %959
        %v961 = vsel %vm923, %v953, 0.0
        %962 = vadd.xlane.f32.xlu0 %v961
        %v963 = vpop.xlane.xlu0 %962
        %v964 = vadd.f32 %v956, %v960
        %v965 = vadd.f32 %v957, %v963
        %vm966 = vcmask 7168
        %967 = vst.msk [vmem:[#allocation4] sm:$0xff] %vm966, %v964
        %968 = vst.msk [vmem:[#allocation4 + $0x8] sm:$0xff] %vm966, %v965
        %v969 = vld [vmem:[#allocation5] sm:$0xff]
        %v970 = vld [vmem:[#allocation5 + $0x10] sm:$0xff]
        %972 = vset.pattern.permute.xlu0 0
        %973 = vperm.xlu0 %972, %v935
        %v974 = vpop.permute.xlu0 %973
        %977 = vset.pattern.permute.xlu0 0
        %978 = vperm.xlu0 %977, %v937
        %v979 = vpop.permute.xlu0 %978
        %v981 = vmul.f32 %v974, %v969
        %v982 = vmul.f32 %v979, %v970
        %v983 = vpack.c.bf16 %v953, %v951
        %v987 = vunpack.c.l.b16 %v880
        %v988 = vunpack.c.l.b16 %v882
        %v989 = vunpack.c.l.b16 %v884
        %v990 = vpack.c.b16 %v988, %v987
        %v991 = vpack.c.b16 %v989, %v989
        %v994 = vsel %vm923, %v983, 0
        %vm996 = vcmask 1043456
        %v998 = vsel %vm996, %v991, 0
        %1000 = vmatpush.bf16.msra.mxu0 0
        %1001 = vmatpush.bf16.msra.mxu0 0
        %1002 = vmatpush.bf16.msra.mxu0 0
        %1003 = vmatpush.bf16.msra.mxu0 0
        %1004 = vmatpush.bf16.msra.mxu0 0
        %1005 = vmatpush.bf16.msra.mxu0 0
        %1006 = vmatpush.bf16.msra.mxu0 %v998
        %1007 = vmatpush.bf16.msra.mxu0 %v990
        %1008 = vmatmul.bf16.gmra.mxu0 %v994
        %v1009 = vpop.f32.mrf.mxu0
        %v1010 = vadd.f32 0.0, %v1009
        %v1011 = vpop.f32.mrf.mxu0
        %v1012 = vadd.f32 0.0, %v1011
        %1013 = vdwg.mxu0
        %v1014 = vadd.f32 %v981, %v1010
        %v1015 = vadd.f32 %v982, %v1012
        %1016 = vst [vmem:[#allocation5] sm:$0xff] %v1014
        %1017 = vst [vmem:[#allocation5 + $0x10] sm:$0xff] %v1015
        %1018 = vst.msk [vmem:[#allocation3] sm:$0xff] %vm966, %v930
        %1019 = vst.msk [vmem:[#allocation3 + $0x8] sm:$0xff] %vm966, %v931
        %v1020 = vld [vmem:[#allocation2 + $0x4] sm:$0xf]
        %v1021 = vld [vmem:[#allocation2 + $0xc] sm:$0xf]
        %v1024 = vunpack.c.l.b16 %v1020
        %v1025 = vunpack.c.l.b16 %v1021
        %v1026 = vpack.c.b16 %v1025, %v1024
        %v1028 = vunpack.c.h.b16 %v879
        %v1029 = vunpack.c.h.b16 %v881
        %v1030 = vunpack.c.h.b16 %v883
        %v1031 = vpack.c.b16 %v1029, %v1028
        %v1032 = vpack.c.b16 %v1030, %v1030
        %1035 = vmatpush.bf16.xpose.msra.mxu0 0
        %1036 = vmatpush.bf16.xpose.msra.mxu0 0
        %1037 = vmatpush.bf16.xpose.msra.mxu0 0
        %1038 = vmatpush.bf16.xpose.msra.mxu0 0
        %1039 = vmatpush.bf16.xpose.msra.mxu0 0
        %1040 = vmatpush.bf16.xpose.msra.mxu0 0
        %1041 = vmatpush.bf16.xpose.msra.mxu0 %v1032
        %1042 = vmatpush.bf16.xpose.msra.mxu0 %v1031
        %1043 = vmatmul.bf16.gmra.mxu0 %v1026
        %v1044 = vpop.f32.mrf.mxu0
        %v1045 = vadd.f32 %v889, %v1044
        %v1046 = vpop.f32.mrf.mxu0
        %v1047 = vadd.f32 %v889, %v1046
        %1048 = vdwg.mxu0
        %s1049 = scalar_lea.vmem [#allocation3], 16
        %v1050 = vld [vmem:[%s1049] sm:$0xff]
        %v1051 = vld [vmem:[%s1049 + $0x8] sm:$0xff]
        %v1052 = vsel %vm923, %v1045, -inf
        %1053 = vmax.xlane.f32.xlu0 %v1052
        %v1054 = vpop.xlane.xlu0 %1053
        %v1055 = vsel %vm923, %v1047, -inf
        %1056 = vmax.xlane.f32.xlu0 %v1055
        %v1057 = vpop.xlane.xlu0 %1056
        %v1058 = vmax.f32 %v1050, %v1054
        %v1059 = vmax.f32 %v1051, %v1057
        %v1060 = vsub.f32 %v1050, %v1058
        %v1061 = vsub.f32 %v1051, %v1059
        %v1062 = vmul.f32 %v1060, 1.442695
        %v1063 = vpow.pop %v1062
        %v1064 = vmul.f32 %v1061, 1.442695
        %v1065 = vpow.pop %v1064
        %1067 = vset.pattern.permute.xlu0 0
        %1068 = vperm.xlu0 %1067, %v1058
        %v1069 = vpop.permute.xlu0 %1068
        %1072 = vset.pattern.permute.xlu0 0
        %1073 = vperm.xlu0 %1072, %v1059
        %v1074 = vpop.permute.xlu0 %1073
        %v1076 = vsub.f32 %v1045, %v1069
        %v1077 = vsub.f32 %v1047, %v1074
        %v1078 = vmul.f32 %v1076, 1.442695
        %v1079 = vpow.pop %v1078
        %v1080 = vmul.f32 %v1077, 1.442695
        %v1081 = vpow.pop %v1080
        %s1082 = scalar_lea.vmem [#allocation4], 16
        %v1083 = vld [vmem:[%s1082] sm:$0xff]
        %v1084 = vld [vmem:[%s1082 + $0x8] sm:$0xff]
        %v1085 = vmul.f32 %v1063, %v1083
        %v1086 = vmul.f32 %v1065, %v1084
        %v1087 = vsel %vm923, %v1079, 0.0
        %1088 = vadd.xlane.f32.xlu0 %v1087
        %v1089 = vpop.xlane.xlu0 %1088
        %v1090 = vsel %vm923, %v1081, 0.0
        %1091 = vadd.xlane.f32.xlu0 %v1090
        %v1092 = vpop.xlane.xlu0 %1091
        %v1093 = vadd.f32 %v1085, %v1089
        %v1094 = vadd.f32 %v1086, %v1092
        %1095 = vst.msk [vmem:[%s1082] sm:$0xff] %vm966, %v1093
        %1096 = vst.msk [vmem:[%s1082 + $0x8] sm:$0xff] %vm966, %v1094
        %v1097 = vld [vmem:[#allocation5 + $0x8] sm:$0xff]
        %v1098 = vld [vmem:[#allocation5 + $0x18] sm:$0xff]
        %1100 = vset.pattern.permute.xlu0 0
        %1101 = vperm.xlu0 %1100, %v1063
        %v1102 = vpop.permute.xlu0 %1101
        %1105 = vset.pattern.permute.xlu0 0
        %1106 = vperm.xlu0 %1105, %v1065
        %v1107 = vpop.permute.xlu0 %1106
        %v1109 = vmul.f32 %v1102, %v1097
        %v1110 = vmul.f32 %v1107, %v1098
        %v1111 = vpack.c.bf16 %v1081, %v1079
        %v1112 = vunpack.c.h.b16 %v880
        %v1113 = vunpack.c.h.b16 %v882
        %v1114 = vunpack.c.h.b16 %v884
        %v1115 = vpack.c.b16 %v1113, %v1112
        %v1116 = vpack.c.b16 %v1114, %v1114
        %v1119 = vsel %vm923, %v1111, 0
        %v1122 = vsel %vm996, %v1116, 0
        %1124 = vmatpush.bf16.msra.mxu0 0
        %1125 = vmatpush.bf16.msra.mxu0 0
        %1126 = vmatpush.bf16.msra.mxu0 0
        %1127 = vmatpush.bf16.msra.mxu0 0
        %1128 = vmatpush.bf16.msra.mxu0 0
        %1129 = vmatpush.bf16.msra.mxu0 0
        %1130 = vmatpush.bf16.msra.mxu0 %v1122
        %1131 = vmatpush.bf16.msra.mxu0 %v1115
        %1132 = vmatmul.bf16.gmra.mxu0 %v1119
        %v1133 = vpop.f32.mrf.mxu0
        %v1134 = vadd.f32 0.0, %v1133
        %v1135 = vpop.f32.mrf.mxu0
        %v1136 = vadd.f32 0.0, %v1135
        %1137 = vdwg.mxu0
        %v1138 = vadd.f32 %v1109, %v1134
        %v1139 = vadd.f32 %v1110, %v1136
        %1140 = vst [vmem:[#allocation5 + $0x8] sm:$0xff] %v1138
        %1141 = vst [vmem:[#allocation5 + $0x18] sm:$0xff] %v1139
        %1142 = vst.msk [vmem:[%s1049] sm:$0xff] %vm966, %v1058
        %1143 = vst.msk [vmem:[%s1049 + $0x8] sm:$0xff] %vm966, %v1059
        // Predicated region
        $region69: #{decoder_forward.13} parent=55 // pred_check
          %p1144 = pneg %p483
        $region70: #{decoder_forward.13} parent=55 // pred_check_branch
          %1146 = sbr.rel (%p1144) target = $region72
        $region71: #{decoder_forward.13} parent=55 // pred_region
          %v1147 = vld [vmem:[#allocation5] sm:$0xff]
          %v1148 = vld [vmem:[#allocation5 + $0x10] sm:$0xff]
          %v1149 = vld [vmem:[#allocation4] sm:$0xff]
          %v1150 = vld [vmem:[#allocation4 + $0x8] sm:$0xff]
          %v1151 = vrcp.pop %v1149
          %v1152 = vrcp.pop %v1150
          %1154 = vset.pattern.permute.xlu0 0
          %1155 = vperm.xlu0 %1154, %v1151
          %v1156 = vpop.permute.xlu0 %1155
          %1159 = vset.pattern.permute.xlu0 0
          %1160 = vperm.xlu0 %1159, %v1152
          %v1161 = vpop.permute.xlu0 %1160
          %v1163 = vmul.f32 %v1147, %v1156
          %v1164 = vmul.f32 %v1148, %v1161
          %v1165 = vld [vmem:[#allocation5 + $0x8] sm:$0xff]
          %v1166 = vld [vmem:[#allocation5 + $0x18] sm:$0xff]
          %v1167 = vld [vmem:[%s1082] sm:$0xff]
          %v1168 = vld [vmem:[%s1082 + $0x8] sm:$0xff]
          %v1169 = vrcp.pop %v1167
          %v1170 = vrcp.pop %v1168
          %1172 = vset.pattern.permute.xlu0 0
          %1173 = vperm.xlu0 %1172, %v1169
          %v1174 = vpop.permute.xlu0 %1173
          %1177 = vset.pattern.permute.xlu0 0
          %1178 = vperm.xlu0 %1177, %v1170
          %v1179 = vpop.permute.xlu0 %1178
          %v1181 = vmul.f32 %v1165, %v1174
          %v1182 = vmul.f32 %v1166, %v1179
          %v1183 = vpack.c.bf16 %v1164, %v1163
          %v1184 = vpack.c.bf16 %v1182, %v1181
          %v1185 = vld [vmem:[#allocation8] sm:$0xff]
          %v1186 = vld [vmem:[#allocation8 + $0x8] sm:$0xff]
          %v1187 = vld [vmem:[#allocation8 + $0x10] sm:$0xff]
          %v1188 = vld [vmem:[#allocation8 + $0x18] sm:$0xff]
          %v1189 = vld [vmem:[#allocation8 + $0x20] sm:$0xff]
          %v1190 = vld [vmem:[#allocation8 + $0x28] sm:$0xff]
          %v1191 = vld [vmem:[#allocation8 + $0x30] sm:$0xff]
          %v1192 = vld [vmem:[#allocation8 + $0x38] sm:$0xff]
          %v1193 = vld [vmem:[#allocation8 + $0x40] sm:$0xff]
          %v1194 = vld [vmem:[#allocation8 + $0x48] sm:$0xff]
          %v1195 = vld [vmem:[#allocation8 + $0x50] sm:$0xff]
          %v1196 = vld [vmem:[#allocation8 + $0x58] sm:$0xff]
          %v1197 = vld [vmem:[#allocation8 + $0x60] sm:$0xff]
          %v1198 = vld [vmem:[#allocation8 + $0x68] sm:$0xff]
          %v1199 = vld [vmem:[#allocation8 + $0x70] sm:$0xff]
          %v1200 = vld [vmem:[#allocation8 + $0x78] sm:$0xff]
          %v1201 = vld [vmem:[#allocation8 + $0x80] sm:$0xff]
          %v1202 = vld [vmem:[#allocation8 + $0x88] sm:$0xff]
          %v1203 = vld [vmem:[#allocation8 + $0x90] sm:$0xff]
          %v1204 = vld [vmem:[#allocation8 + $0x98] sm:$0xff]
          %v1205 = vld [vmem:[#allocation8 + $0xa0] sm:$0xff]
          %v1206 = vld [vmem:[#allocation8 + $0xa8] sm:$0xff]
          %v1207 = vld [vmem:[#allocation8 + $0xb0] sm:$0xff]
          %v1208 = vld [vmem:[#allocation8 + $0xb8] sm:$0xff]
          %v1209 = vld [vmem:[#allocation8 + $0xc0] sm:$0xff]
          %v1210 = vld [vmem:[#allocation8 + $0xc8] sm:$0xff]
          %v1211 = vld [vmem:[#allocation8 + $0xd0] sm:$0xff]
          %v1212 = vld [vmem:[#allocation8 + $0xd8] sm:$0xff]
          %v1213 = vld [vmem:[#allocation8 + $0xe0] sm:$0xff]
          %v1214 = vld [vmem:[#allocation8 + $0xe8] sm:$0xff]
          %v1215 = vld [vmem:[#allocation8 + $0xf0] sm:$0xff]
          %v1216 = vld [vmem:[#allocation8 + $0xf8] sm:$0xff]
          %v1217 = vld [vmem:[%s8] sm:$0x3]
          %v1219 = vperm.slane %v1217, 0
          %v1220 = vperm.slane %v1217, 1
          %v1255 = vunpack.c.l.b16 %v1185
          %v1256 = vunpack.c.h.b16 %v1185
          %v1257 = vunpack.c.l.b16 %v1186
          %v1258 = vunpack.c.h.b16 %v1186
          %v1259 = vunpack.c.l.b16 %v1187
          %v1260 = vunpack.c.h.b16 %v1187
          %v1261 = vunpack.c.l.b16 %v1188
          %v1262 = vunpack.c.h.b16 %v1188
          %v1263 = vunpack.c.l.b16 %v1189
          %v1264 = vunpack.c.h.b16 %v1189
          %v1265 = vunpack.c.l.b16 %v1190
          %v1266 = vunpack.c.h.b16 %v1190
          %v1267 = vunpack.c.l.b16 %v1191
          %v1268 = vunpack.c.h.b16 %v1191
          %v1269 = vunpack.c.l.b16 %v1192
          %v1270 = vunpack.c.h.b16 %v1192
          %v1271 = vunpack.c.l.b16 %v1193
          %v1272 = vunpack.c.h.b16 %v1193
          %v1273 = vunpack.c.l.b16 %v1194
          %v1274 = vunpack.c.h.b16 %v1194
          %v1275 = vunpack.c.l.b16 %v1195
          %v1276 = vunpack.c.h.b16 %v1195
          %v1277 = vunpack.c.l.b16 %v1196
          %v1278 = vunpack.c.h.b16 %v1196
          %v1279 = vunpack.c.l.b16 %v1197
          %v1280 = vunpack.c.h.b16 %v1197
          %v1281 = vunpack.c.l.b16 %v1198
          %v1282 = vunpack.c.h.b16 %v1198
          %v1283 = vunpack.c.l.b16 %v1199
          %v1284 = vunpack.c.h.b16 %v1199
          %v1285 = vunpack.c.l.b16 %v1200
          %v1286 = vunpack.c.h.b16 %v1200
          %v1287 = vunpack.c.l.b16 %v1201
          %v1288 = vunpack.c.h.b16 %v1201
          %v1289 = vunpack.c.l.b16 %v1202
          %v1290 = vunpack.c.h.b16 %v1202
          %v1291 = vunpack.c.l.b16 %v1203
          %v1292 = vunpack.c.h.b16 %v1203
          %v1293 = vunpack.c.l.b16 %v1204
          %v1294 = vunpack.c.h.b16 %v1204
          %v1295 = vunpack.c.l.b16 %v1205
          %v1296 = vunpack.c.h.b16 %v1205
          %v1297 = vunpack.c.l.b16 %v1206
          %v1298 = vunpack.c.h.b16 %v1206
          %v1299 = vunpack.c.l.b16 %v1207
          %v1300 = vunpack.c.h.b16 %v1207
          %v1301 = vunpack.c.l.b16 %v1208
          %v1302 = vunpack.c.h.b16 %v1208
          %v1303 = vunpack.c.l.b16 %v1209
          %v1304 = vunpack.c.h.b16 %v1209
          %v1305 = vunpack.c.l.b16 %v1210
          %v1306 = vunpack.c.h.b16 %v1210
          %v1307 = vunpack.c.l.b16 %v1211
          %v1308 = vunpack.c.h.b16 %v1211
          %v1309 = vunpack.c.l.b16 %v1212
          %v1310 = vunpack.c.h.b16 %v1212
          %v1311 = vunpack.c.l.b16 %v1213
          %v1312 = vunpack.c.h.b16 %v1213
          %v1313 = vunpack.c.l.b16 %v1214
          %v1314 = vunpack.c.h.b16 %v1214
          %v1315 = vunpack.c.l.b16 %v1215
          %v1316 = vunpack.c.h.b16 %v1215
          %v1317 = vunpack.c.l.b16 %v1216
          %v1318 = vunpack.c.h.b16 %v1216
          %v1319 = vpack.c.b16 %v1257, %v1255
          %v1320 = vpack.c.b16 %v1258, %v1256
          %v1321 = vpack.c.b16 %v1261, %v1259
          %v1322 = vpack.c.b16 %v1262, %v1260
          %v1323 = vpack.c.b16 %v1265, %v1263
          %v1324 = vpack.c.b16 %v1266, %v1264
          %v1325 = vpack.c.b16 %v1269, %v1267
          %v1326 = vpack.c.b16 %v1270, %v1268
          %v1327 = vpack.c.b16 %v1273, %v1271
          %v1328 = vpack.c.b16 %v1274, %v1272
          %v1329 = vpack.c.b16 %v1277, %v1275
          %v1330 = vpack.c.b16 %v1278, %v1276
          %v1331 = vpack.c.b16 %v1281, %v1279
          %v1332 = vpack.c.b16 %v1282, %v1280
          %v1333 = vpack.c.b16 %v1285, %v1283
          %v1334 = vpack.c.b16 %v1286, %v1284
          %v1335 = vpack.c.b16 %v1289, %v1287
          %v1336 = vpack.c.b16 %v1290, %v1288
          %v1337 = vpack.c.b16 %v1293, %v1291
          %v1338 = vpack.c.b16 %v1294, %v1292
          %v1339 = vpack.c.b16 %v1297, %v1295
          %v1340 = vpack.c.b16 %v1298, %v1296
          %v1341 = vpack.c.b16 %v1301, %v1299
          %v1342 = vpack.c.b16 %v1302, %v1300
          %v1343 = vpack.c.b16 %v1305, %v1303
          %v1344 = vpack.c.b16 %v1306, %v1304
          %v1345 = vpack.c.b16 %v1309, %v1307
          %v1346 = vpack.c.b16 %v1310, %v1308
          %v1347 = vpack.c.b16 %v1313, %v1311
          %v1348 = vpack.c.b16 %v1314, %v1312
          %v1349 = vpack.c.b16 %v1317, %v1315
          %v1350 = vpack.c.b16 %v1318, %v1316
          %1383 = vmatpush.bf16.msra.mxu0 %v1333
          %1384 = vmatpush.bf16.msra.mxu0 %v1331
          %1385 = vmatpush.bf16.msra.mxu0 %v1329
          %1386 = vmatpush.bf16.msra.mxu0 %v1327
          %1387 = vmatpush.bf16.msra.mxu0 %v1325
          %1388 = vmatpush.bf16.msra.mxu0 %v1323
          %1389 = vmatpush.bf16.msra.mxu0 %v1321
          %1390 = vmatpush.bf16.msra.mxu0 %v1319
          %1391 = vmatmul.bf16.gmra.mxu0 %v1183
          %v1392 = vpop.f32.mrf.mxu0
          %v1393 = vadd.f32 %v1219, %v1392
          %v1394 = vpop.f32.mrf.mxu0
          %v1395 = vadd.f32 %v1219, %v1394
          %1396 = vdwg.mxu0
          %1397 = vmatpush.bf16.msra.mxu0 %v1349
          %1398 = vmatpush.bf16.msra.mxu0 %v1347
          %1399 = vmatpush.bf16.msra.mxu0 %v1345
          %1400 = vmatpush.bf16.msra.mxu0 %v1343
          %1401 = vmatpush.bf16.msra.mxu0 %v1341
          %1402 = vmatpush.bf16.msra.mxu0 %v1339
          %1403 = vmatpush.bf16.msra.mxu0 %v1337
          %1404 = vmatpush.bf16.msra.mxu0 %v1335
          %1405 = vmatmul.bf16.gmra.mxu0 %v1184
          %v1406 = vpop.f32.mrf.mxu0
          %v1407 = vadd.f32 %v1393, %v1406
          %v1408 = vpop.f32.mrf.mxu0
          %v1409 = vadd.f32 %v1395, %v1408
          %1410 = vdwg.mxu0
          %1411 = vmatpush.bf16.msra.mxu0 %v1334
          %1412 = vmatpush.bf16.msra.mxu0 %v1332
          %1413 = vmatpush.bf16.msra.mxu0 %v1330
          %1414 = vmatpush.bf16.msra.mxu0 %v1328
          %1415 = vmatpush.bf16.msra.mxu0 %v1326
          %1416 = vmatpush.bf16.msra.mxu0 %v1324
          %1417 = vmatpush.bf16.msra.mxu0 %v1322
          %1418 = vmatpush.bf16.msra.mxu0 %v1320
          %1419 = vmatmul.bf16.gmra.mxu0 %v1183
          %v1420 = vpop.f32.mrf.mxu0
          %v1421 = vadd.f32 %v1220, %v1420
          %v1422 = vpop.f32.mrf.mxu0
          %v1423 = vadd.f32 %v1220, %v1422
          %1424 = vdwg.mxu0
          %1425 = vmatpush.bf16.msra.mxu0 %v1350
          %1426 = vmatpush.bf16.msra.mxu0 %v1348
          %1427 = vmatpush.bf16.msra.mxu0 %v1346
          %1428 = vmatpush.bf16.msra.mxu0 %v1344
          %1429 = vmatpush.bf16.msra.mxu0 %v1342
          %1430 = vmatpush.bf16.msra.mxu0 %v1340
          %1431 = vmatpush.bf16.msra.mxu0 %v1338
          %1432 = vmatpush.bf16.msra.mxu0 %v1336
          %1433 = vmatmul.bf16.gmra.mxu0 %v1184
          %v1434 = vpop.f32.mrf.mxu0
          %v1435 = vadd.f32 %v1421, %v1434
          %v1436 = vpop.f32.mrf.mxu0
          %v1437 = vadd.f32 %v1423, %v1436
          %1438 = vdwg.mxu0
          %v1439 = vld [vmem:[%s452] sm:$0xff]
          %v1440 = vld [vmem:[%s452 + $0x8] sm:$0xff]
          %v1441 = vld [vmem:[%s452 + $0x10] sm:$0xff]
          %v1442 = vld [vmem:[%s452 + $0x18] sm:$0xff]
          %v1443 = vadd.f32 %v1439, %v1407
          %v1444 = vadd.f32 %v1440, %v1435
          %v1445 = vadd.f32 %v1441, %v1409
          %v1446 = vadd.f32 %v1442, %v1437
          %1447 = vst [vmem:[%s480] sm:$0xff] %v1443
          %1448 = vst [vmem:[%s480 + $0x8] sm:$0xff] %v1444
          %1449 = vst [vmem:[%s480 + $0x10] sm:$0xff] %v1445
          %1450 = vst [vmem:[%s480 + $0x18] sm:$0xff] %v1446
        $region72: #{decoder_forward.13} parent=55 // pred_fallthru
          _
        %s1451 = smul.u32 2, %s28
        %p1452 = scmp.lt.s32.totalorder %s27, 1
        %s1453 = scalar_select %p1452, %s27, 1
        %p1454 = scmp.lt.s32.totalorder %s1451, 1
        %s1455 = scalar_select %p1454, %s1451, 1
        %s1456 = smul.addr %s1455, 2
        %s1457 = smul.addr %s1453, 4
        %s1458 = sadd.s32 %s1456, %s1457
        %s1459 = smul.addr %s1458, 8
        %s1460 = scalar_lea.vmem %s9, %s1459
        // Predicated region
        $region73: #{decoder_forward.13} parent=55 // pred_check
          %p1461 = pneg %p271
        $region74: #{decoder_forward.13} parent=55 // pred_check_branch
          %1463 = sbr.rel (%p1461) target = $region76
        $region75: #{decoder_forward.13} parent=55 // pred_region
          %s1464 = smul.u32 2, %s28
        $region76: #{decoder_forward.13} parent=55 // pred_fallthru
          _
      $region56: #{decoder_forward.13} parent=5 // pred_fallthru
        _
      %p1465 = scmp.le.s32.totalorder 2, %s17
      // Predicated region
      $region77: #{decoder_forward.13} parent=5 // pred_check
        %p1466 = pneg %p1465
      $region78: #{decoder_forward.13} parent=5 // pred_check_branch
        %1468 = sbr.rel (%p1466) target = $region80
      $region79: #{decoder_forward.13} parent=5 // pred_region
        %s1469 = ssub.s32 %s17, 2
        // Predicated region
        $region81: #{decoder_forward.13} parent=79 // pred_check
          %p1470 = pneg %p277
        $region82: #{decoder_forward.13} parent=79 // pred_check_branch
          %1472 = sbr.rel (%p1470) target = $region84
        $region83: #{decoder_forward.13} parent=79 // pred_region
          %s1473 = smul.u32 2, %s31
          %p1474 = scmp.lt.s32.totalorder %s30, 1
          %s1475 = scalar_select %p1474, %s30, 1
          %p1476 = scmp.lt.s32.totalorder %s1473, 1
          %s1477 = scalar_select %p1476, %s1473, 1
          %s1478 = smul.addr %s1477, 2
          %s1479 = smul.addr %s1475, 4
          %s1480 = sadd.s32 %s1478, %s1479
          %s1481 = smul.addr %s1480, 8
          %s1482 = scalar_lea.vmem %s9, %s1481
        $region84: #{decoder_forward.13} parent=79 // pred_fallthru
          _
      $region80: #{decoder_forward.13} parent=5 // pred_fallthru
        _
    $region6: #{decoder_forward.13} parent=1 // loop_footer
      %s21 = sadd.s32 1, %s17
    $region7: #{decoder_forward.13} parent=1 // loop_footer_branch
      %16 = sbr.rel target = $region3
    $region8: #{decoder_forward.13} parent=1 // loop_exit
      _
    %1483 = vsyncpa [#allocation7], 1
    %s1484 = scalar_lea.sflag [#allocation7], 1
    %1485 = vsyncpa %s1484, 1
    %1486 = vsyncpa [#allocation9], 1

// kernel: decoder_forward.14
$region0: #{decoder_forward.14}
  #allocation0 [shape = 'u32[]', space=smem, size = 0x4, offset = 0x4, fixed_abs, tag = 'smem constant byte address 0x4 - core index']
  #allocation1 [shape = 'u32[72,128]{1,0:T(1,128)}', space=vmem, size = 0x9000, scoped, tag = 'internal scratch']
  %s0 = inlined_call_operand.vmem [shape: f32[32,256], index: 0, kind: input, shape index: {}, may-alias: {0,9}]
  %s1 = inlined_call_operand.vmem [shape: f32[1,256], index: 1, kind: input, shape index: {}]
  %s2 = inlined_call_operand.vmem [shape: f32[1,256], index: 2, kind: input, shape index: {}]
  %s3 = inlined_call_operand.hbm [shape: bf16[256,512], index: 3, kind: input, shape index: {}]
  %s4 = inlined_call_operand.vmem [shape: f32[1,512], index: 4, kind: input, shape index: {}]
  %s5 = inlined_call_operand.hbm [shape: bf16[512,256], index: 5, kind: input, shape index: {}]
  %s6 = inlined_call_operand.vmem [shape: f32[1,256], index: 6, kind: input, shape index: {}]
  %s7 = inlined_call_operand.vmem [shape: f32[1,256], index: 7, kind: input, shape index: {}]
  %s8 = inlined_call_operand.vmem [shape: f32[1,256], index: 8, kind: input, shape index: {}]
  %s9 = inlined_call_operand.vmem [shape: f32[32,256], index: 9, kind: output, shape index: {}, may-alias: {0,9}]
  %s10 = sld [smem:[#allocation0]]
  $region77: #{decoder_forward.14} parent=0
    _
  %s12 = ssub.s32 1, %s10
  %s13 = scalar_select 0, %s12, %s10
  $region1: #{decoder_forward.14} parent=0
    #allocation2 [shape = 'u8[262144]{0}', space=vmem, size = 0x40000, scoped, tag = 'input window, operand 3, single buffered']
    #allocation3 [shape = 's32[2]{0}', space=sflag, size = 0x8, scoped, tag = 'scoped memory for decoder_forward.14']
    #allocation4 [shape = 'u8[262144]{0}', space=vmem, size = 0x40000, scoped, tag = 'input window, operand 5, single buffered']
    #allocation5 [shape = 's32[1]{0}', space=sflag, size = 0x4, scoped, tag = 'scoped memory for decoder_forward.14']
    %14 = vsyncpa [#allocation3], 0
    %15 = vsyncpa [#allocation5], 0
    loop: start=0, step=1, limit=4
    $region2: #{decoder_forward.14} parent=1 // loop_pre_header
      _
    $region3: #{decoder_forward.14} parent=1 // loop_header
      %s17 = sphi 0, %s21
      %p18 = scmp.ge.s32.totalorder %s17, 4
      %s27 = sphi 0, %s29
      %s30 = sphi 0, %s27
      %s31 = sphi 0, %s30
      %s47 = sphi 0, %s31
      %s51 = sphi 0, %s51
      %s53 = sphi 0, %s51
      %s54 = sphi 0, %s53
      %s68 = sphi 0, %s54
      %s72 = sphi 0, %s72
      %s74 = sphi 0, %s72
      %s75 = sphi 0, %s74
      %s89 = sphi 0, %s75
      %s93 = sphi 0, %s93
      %s95 = sphi 0, %s93
      %s96 = sphi 0, %s95
      %s110 = sphi 0, %s96
      %s114 = sphi 0, %s114
      %s116 = sphi 0, %s114
      %s117 = sphi 0, %s116
      %s131 = sphi 0, %s117
      %s135 = sphi 0, %s135
      %s137 = sphi 0, %s135
      %s138 = sphi 0, %s137
      %s152 = sphi 0, %s138
      %s156 = sphi 0, %s156
      %s158 = sphi 0, %s156
      %s159 = sphi 0, %s158
      %s173 = sphi 0, %s159
      %s177 = sphi 0, %s177
      %s179 = sphi 0, %s177
      %s180 = sphi 0, %s179
      %s194 = sphi 0, %s180
      %s198 = sphi 0, %s198
      %s200 = sphi 0, %s198
      %s201 = sphi 0, %s200
      %s215 = sphi 0, %s201
      %s221 = sphi 0, %s223
      %s224 = sphi 0, %s221
      %s225 = sphi 0, %s224
      %s241 = sphi 0, %s225
    $region4: #{decoder_forward.14} parent=1 // loop_header_branch
      %20 = sbr.rel (%p18) target = $region8
    $region5: #{decoder_forward.14} parent=1 // loop_body
      %s22 = ssub.s32 %s17, 1
      %s23 = ssub.s32 %s17, 2
      %s24 = sadd.s32 %s17, 1
      %s25 = ssub.s32 %s17, %s24
      %p26 = scmp.eq.s32.totalorder %s25, 0
      %s28 = sadd.s32 %s27, 1
      %s29 = scalar_select %p26, %s27, %s28
      %p32 = pneg %p26
      %p33 = scmp.eq.s32.totalorder %s17, 1
      %p34 = por %p32, %p33
      %p35 = scmp.ne.s32.totalorder %s27, %s30
      %p36 = scmp.eq.s32.totalorder %s17, 0
      %p37 = por %p35, %p36
      %p38 = scmp.ne.s32.totalorder %s27, %s30
      %p39 = scmp.eq.s32.totalorder %s22, 1
      %p40 = por %p38, %p39
      %p41 = scmp.ne.s32.totalorder %s30, %s31
      %p42 = scmp.eq.s32.totalorder %s22, 0
      %p43 = por %p41, %p42
      %p44 = scmp.ne.s32.totalorder %s30, %s31
      %p45 = scmp.eq.s32.totalorder %s23, 1
      %p46 = por %p44, %p45
      %p48 = scmp.ne.s32.totalorder %s31, %s47
      %p49 = scmp.eq.s32.totalorder %s23, 0
      %p50 = por %p48, %p49
      %s52 = sadd.s32 %s51, 1
      %p55 = scmp.eq.s32.totalorder %s17, 1
      %p56 = scmp.ne.s32.totalorder %s51, %s53
      %p57 = scmp.eq.s32.totalorder %s17, 0
      %p58 = por %p56, %p57
      %p59 = scmp.ne.s32.totalorder %s51, %s53
      %p60 = scmp.eq.s32.totalorder %s22, 1
      %p61 = por %p59, %p60
      %p62 = scmp.ne.s32.totalorder %s53, %s54
      %p63 = scmp.eq.s32.totalorder %s22, 0
      %p64 = por %p62, %p63
      %p65 = scmp.ne.s32.totalorder %s53, %s54
      %p66 = scmp.eq.s32.totalorder %s23, 1
      %p67 = por %p65, %p66
      %p69 = scmp.ne.s32.totalorder %s54, %s68
      %p70 = scmp.eq.s32.totalorder %s23, 0
      %p71 = por %p69, %p70
      %s73 = sadd.s32 %s72, 1
      %p76 = scmp.eq.s32.totalorder %s17, 1
      %p77 = scmp.ne.s32.totalorder %s72, %s74
      %p78 = scmp.eq.s32.totalorder %s17, 0
      %p79 = por %p77, %p78
      %p80 = scmp.ne.s32.totalorder %s72, %s74
      %p81 = scmp.eq.s32.totalorder %s22, 1
      %p82 = por %p80, %p81
      %p83 = scmp.ne.s32.totalorder %s74, %s75
      %p84 = scmp.eq.s32.totalorder %s22, 0
      %p85 = por %p83, %p84
      %p86 = scmp.ne.s32.totalorder %s74, %s75
      %p87 = scmp.eq.s32.totalorder %s23, 1
      %p88 = por %p86, %p87
      %p90 = scmp.ne.s32.totalorder %s75, %s89
      %p91 = scmp.eq.s32.totalorder %s23, 0
      %p92 = por %p90, %p91
      %s94 = sadd.s32 %s93, 1
      %p97 = scmp.eq.s32.totalorder %s17, 1
      %p98 = scmp.ne.s32.totalorder %s93, %s95
      %p99 = scmp.eq.s32.totalorder %s17, 0
      %p100 = por %p98, %p99
      %p101 = scmp.ne.s32.totalorder %s93, %s95
      %p102 = scmp.eq.s32.totalorder %s22, 1
      %p103 = por %p101, %p102
      %p104 = scmp.ne.s32.totalorder %s95, %s96
      %p105 = scmp.eq.s32.totalorder %s22, 0
      %p106 = por %p104, %p105
      %p107 = scmp.ne.s32.totalorder %s95, %s96
      %p108 = scmp.eq.s32.totalorder %s23, 1
      %p109 = por %p107, %p108
      %p111 = scmp.ne.s32.totalorder %s96, %s110
      %p112 = scmp.eq.s32.totalorder %s23, 0
      %p113 = por %p111, %p112
      %s115 = sadd.s32 %s114, 1
      %p118 = scmp.eq.s32.totalorder %s17, 1
      %p119 = scmp.ne.s32.totalorder %s114, %s116
      %p120 = scmp.eq.s32.totalorder %s17, 0
      %p121 = por %p119, %p120
      %p122 = scmp.ne.s32.totalorder %s114, %s116
      %p123 = scmp.eq.s32.totalorder %s22, 1
      %p124 = por %p122, %p123
      %p125 = scmp.ne.s32.totalorder %s116, %s117
      %p126 = scmp.eq.s32.totalorder %s22, 0
      %p127 = por %p125, %p126
      %p128 = scmp.ne.s32.totalorder %s116, %s117
      %p129 = scmp.eq.s32.totalorder %s23, 1
      %p130 = por %p128, %p129
      %p132 = scmp.ne.s32.totalorder %s117, %s131
      %p133 = scmp.eq.s32.totalorder %s23, 0
      %p134 = por %p132, %p133
      %s136 = sadd.s32 %s135, 1
      %p139 = scmp.eq.s32.totalorder %s17, 1
      %p140 = scmp.ne.s32.totalorder %s135, %s137
      %p141 = scmp.eq.s32.totalorder %s17, 0
      %p142 = por %p140, %p141
      %p143 = scmp.ne.s32.totalorder %s135, %s137
      %p144 = scmp.eq.s32.totalorder %s22, 1
      %p145 = por %p143, %p144
      %p146 = scmp.ne.s32.totalorder %s137, %s138
      %p147 = scmp.eq.s32.totalorder %s22, 0
      %p148 = por %p146, %p147
      %p149 = scmp.ne.s32.totalorder %s137, %s138
      %p150 = scmp.eq.s32.totalorder %s23, 1
      %p151 = por %p149, %p150
      %p153 = scmp.ne.s32.totalorder %s138, %s152
      %p154 = scmp.eq.s32.totalorder %s23, 0
      %p155 = por %p153, %p154
      %s157 = sadd.s32 %s156, 1
      %p160 = scmp.eq.s32.totalorder %s17, 1
      %p161 = scmp.ne.s32.totalorder %s156, %s158
      %p162 = scmp.eq.s32.totalorder %s17, 0
      %p163 = por %p161, %p162
      %p164 = scmp.ne.s32.totalorder %s156, %s158
      %p165 = scmp.eq.s32.totalorder %s22, 1
      %p166 = por %p164, %p165
      %p167 = scmp.ne.s32.totalorder %s158, %s159
      %p168 = scmp.eq.s32.totalorder %s22, 0
      %p169 = por %p167, %p168
      %p170 = scmp.ne.s32.totalorder %s158, %s159
      %p171 = scmp.eq.s32.totalorder %s23, 1
      %p172 = por %p170, %p171
      %p174 = scmp.ne.s32.totalorder %s159, %s173
      %p175 = scmp.eq.s32.totalorder %s23, 0
      %p176 = por %p174, %p175
      %s178 = sadd.s32 %s177, 1
      %p181 = scmp.eq.s32.totalorder %s17, 1
      %p182 = scmp.ne.s32.totalorder %s177, %s179
      %p183 = scmp.eq.s32.totalorder %s17, 0
      %p184 = por %p182, %p183
      %p185 = scmp.ne.s32.totalorder %s177, %s179
      %p186 = scmp.eq.s32.totalorder %s22, 1
      %p187 = por %p185, %p186
      %p188 = scmp.ne.s32.totalorder %s179, %s180
      %p189 = scmp.eq.s32.totalorder %s22, 0
      %p190 = por %p188, %p189
      %p191 = scmp.ne.s32.totalorder %s179, %s180
      %p192 = scmp.eq.s32.totalorder %s23, 1
      %p193 = por %p191, %p192
      %p195 = scmp.ne.s32.totalorder %s180, %s194
      %p196 = scmp.eq.s32.totalorder %s23, 0
      %p197 = por %p195, %p196
      %s199 = sadd.s32 %s198, 1
      %p202 = scmp.eq.s32.totalorder %s17, 1
      %p203 = scmp.ne.s32.totalorder %s198, %s200
      %p204 = scmp.eq.s32.totalorder %s17, 0
      %p205 = por %p203, %p204
      %p206 = scmp.ne.s32.totalorder %s198, %s200
      %p207 = scmp.eq.s32.totalorder %s22, 1
      %p208 = por %p206, %p207
      %p209 = scmp.ne.s32.totalorder %s200, %s201
      %p210 = scmp.eq.s32.totalorder %s22, 0
      %p211 = por %p209, %p210
      %p212 = scmp.ne.s32.totalorder %s200, %s201
      %p213 = scmp.eq.s32.totalorder %s23, 1
      %p214 = por %p212, %p213
      %p216 = scmp.ne.s32.totalorder %s201, %s215
      %p217 = scmp.eq.s32.totalorder %s23, 0
      %p218 = por %p216, %p217
      %s219 = ssub.s32 %s17, %s24
      %p220 = scmp.eq.s32.totalorder %s219, 0
      %s222 = sadd.s32 %s221, 1
      %s223 = scalar_select %p220, %s221, %s222
      %p226 = pneg %p220
      %p227 = scmp.eq.s32.totalorder %s17, 1
      %p228 = por %p226, %p227
      %p229 = scmp.ne.s32.totalorder %s221, %s224
      %p230 = scmp.eq.s32.totalorder %s17, 0
      %p231 = por %p229, %p230
      %p232 = scmp.ne.s32.totalorder %s221, %s224
      %p233 = scmp.eq.s32.totalorder %s22, 1
      %p234 = por %p232, %p233
      %p235 = scmp.ne.s32.totalorder %s224, %s225
      %p236 = scmp.eq.s32.totalorder %s22, 0
      %p237 = por %p235, %p236
      %p238 = scmp.ne.s32.totalorder %s224, %s225
      %p239 = scmp.eq.s32.totalorder %s23, 1
      %p240 = por %p238, %p239
      %p242 = scmp.ne.s32.totalorder %s225, %s241
      %p243 = scmp.eq.s32.totalorder %s23, 0
      %p244 = por %p242, %p243
      %p245 = scmp.le.s32.totalorder 1, %s17
      %p246 = scmp.lt.s32.totalorder %s17, 3
      %p247 = pnand %p245, %p246
      %p248 = pneg %p247
      // Predicated region
      $region9: #{decoder_forward.14} parent=5 // pred_check
        _
      $region10: #{decoder_forward.14} parent=5 // pred_check_branch
        %250 = sbr.rel (%p247) target = $region12
      $region11: #{decoder_forward.14} parent=5 // pred_region
        %s251 = ssub.s32 %s17, 1
        // Predicated region
        $region13: #{decoder_forward.14} parent=11 // pred_check
          %p252 = pneg %p64
        $region14: #{decoder_forward.14} parent=11 // pred_check_branch
          %254 = sbr.rel (%p252) target = $region16
        $region15: #{decoder_forward.14} parent=11 // pred_region
          _
        $region16: #{decoder_forward.14} parent=11 // pred_fallthru
          _
        // Predicated region
        $region17: #{decoder_forward.14} parent=11 // pred_check
          %p255 = pneg %p85
        $region18: #{decoder_forward.14} parent=11 // pred_check_branch
          %257 = sbr.rel (%p255) target = $region20
        $region19: #{decoder_forward.14} parent=11 // pred_region
          _
        $region20: #{decoder_forward.14} parent=11 // pred_fallthru
          _
        // Predicated region
        $region21: #{decoder_forward.14} parent=11 // pred_check
          %p258 = pneg %p106
        $region22: #{decoder_forward.14} parent=11 // pred_check_branch
          %260 = sbr.rel (%p258) target = $region24
        $region23: #{decoder_forward.14} parent=11 // pred_region
          %262 = vsyncadd [#allocation3], 0
          %s263 = sshll.u32 %s3, 4
          %s264 = int_to_ptr.hbm [resolvable:$true] %s263
          %s265 = sshll.u32 [#allocation2], 4
          %s266 = int_to_ptr.vmem [resolvable:$true] %s265
          %271 = dma.hbm_to_vmem [thread:$0]  %s264, 8192, %s266, [#allocation3], 256, 256, 16
        $region24: #{decoder_forward.14} parent=11 // pred_fallthru
          _
        // Predicated region
        $region25: #{decoder_forward.14} parent=11 // pred_check
          %p272 = pneg %p127
        $region26: #{decoder_forward.14} parent=11 // pred_check_branch
          %274 = sbr.rel (%p272) target = $region28
        $region27: #{decoder_forward.14} parent=11 // pred_region
          _
        $region28: #{decoder_forward.14} parent=11 // pred_fallthru
          _
        // Predicated region
        $region29: #{decoder_forward.14} parent=11 // pred_check
          %p275 = pneg %p148
        $region30: #{decoder_forward.14} parent=11 // pred_check_branch
          %277 = sbr.rel (%p275) target = $region32
        $region31: #{decoder_forward.14} parent=11 // pred_region
          %279 = vsyncadd [#allocation5], 0
          %s280 = sshll.u32 %s5, 4
          %s281 = int_to_ptr.hbm [resolvable:$true] %s280
          %s282 = sshll.u32 [#allocation4], 4
          %s283 = int_to_ptr.vmem [resolvable:$true] %s282
          %288 = dma.hbm_to_vmem [thread:$0]  %s281, 8192, %s283, [#allocation5], 128, 128, 8
        $region32: #{decoder_forward.14} parent=11 // pred_fallthru
          _
        // Predicated region
        $region33: #{decoder_forward.14} parent=11 // pred_check
          %p289 = pneg %p169
        $region34: #{decoder_forward.14} parent=11 // pred_check_branch
          %291 = sbr.rel (%p289) target = $region36
        $region35: #{decoder_forward.14} parent=11 // pred_region
          _
        $region36: #{decoder_forward.14} parent=11 // pred_fallthru
          _
        // Predicated region
        $region37: #{decoder_forward.14} parent=11 // pred_check
          %p292 = pneg %p190
        $region38: #{decoder_forward.14} parent=11 // pred_check_branch
          %294 = sbr.rel (%p292) target = $region40
        $region39: #{decoder_forward.14} parent=11 // pred_region
          _
        $region40: #{decoder_forward.14} parent=11 // pred_fallthru
          _
        // Predicated region
        $region41: #{decoder_forward.14} parent=11 // pred_check
          %p295 = pneg %p211
        $region42: #{decoder_forward.14} parent=11 // pred_check_branch
          %297 = sbr.rel (%p295) target = $region44
        $region43: #{decoder_forward.14} parent=11 // pred_region
          _
        $region44: #{decoder_forward.14} parent=11 // pred_fallthru
          _
      $region12: #{decoder_forward.14} parent=5 // pred_fallthru
        _
      %p298 = scmp.lt.s32.totalorder %s17, 2
      // Predicated region
      $region45: #{decoder_forward.14} parent=5 // pred_check
        %p299 = pneg %p298
      $region46: #{decoder_forward.14} parent=5 // pred_check_branch
        %301 = sbr.rel (%p299) target = $region48
      $region47: #{decoder_forward.14} parent=5 // pred_region
        // Predicated region
        $region49: #{decoder_forward.14} parent=47 // pred_check
          %p302 = pneg %p37
        $region50: #{decoder_forward.14} parent=47 // pred_check_branch
          %304 = sbr.rel (%p302) target = $region52
        $region51: #{decoder_forward.14} parent=47 // pred_region
          %s305 = smul.u32 2, %s17
          %p306 = scmp.lt.s32.totalorder %s305, 3
          %s307 = scalar_select %p306, %s305, 3
          %s308 = smul.addr %s307, 2
          %s309 = smul.addr %s308, 8
          %s310 = scalar_lea.vmem %s0, %s309
          %s311 = smul.u32 2, %s17
        $region52: #{decoder_forward.14} parent=47 // pred_fallthru
          _
      $region48: #{decoder_forward.14} parent=5 // pred_fallthru
        _
      %p312 = scmp.le.s32.totalorder 1, %s17
      %p313 = scmp.lt.s32.totalorder %s17, 3
      %p314 = pnand %p312, %p313
      %p315 = pneg %p314
      // Predicated region
      $region53: #{decoder_forward.14} parent=5 // pred_check
        _
      $region54: #{decoder_forward.14} parent=5 // pred_check_branch
        %317 = sbr.rel (%p314) target = $region56
      $region55: #{decoder_forward.14} parent=5 // pred_region
        %s318 = ssub.s32 %s17, 1
        // Predicated region
        $region57: #{decoder_forward.14} parent=55 // pred_check
          %p319 = pneg %p106
        $region58: #{decoder_forward.14} parent=55 // pred_check_branch
          %321 = sbr.rel (%p319) target = $region60
        $region59: #{decoder_forward.14} parent=55 // pred_region
          %323 = dma.done [#allocation3], 8192
        $region60: #{decoder_forward.14} parent=55 // pred_fallthru
          _
        // Predicated region
        $region61: #{decoder_forward.14} parent=55 // pred_check
          %p324 = pneg %p148
        $region62: #{decoder_forward.14} parent=55 // pred_check_branch
          %326 = sbr.rel (%p324) target = $region64
        $region63: #{decoder_forward.14} parent=55 // pred_region
          %328 = dma.done [#allocation5], 8192
        $region64: #{decoder_forward.14} parent=55 // pred_fallthru
          _
        %s329 = smul.u32 2, %s22
        %p330 = scmp.lt.s32.totalorder %s329, 3
        %s331 = scalar_select %p330, %s329, 3
        %s332 = smul.addr %s331, 2
        %s333 = smul.addr %s332, 8
        %s334 = scalar_lea.vmem %s0, %s333
        %p335 = pneg %p43
        %p336 = pneg %p40
        %p337 = pneg %p64
        %p338 = pneg %p61
        %p339 = pneg %p85
        %p340 = pneg %p82
        %p341 = pneg %p106
        %p342 = pneg %p103
        %p343 = pneg %p127
        %p344 = pneg %p124
        %p345 = pneg %p148
        %p346 = pneg %p145
        %p347 = pneg %p169
        %p348 = pneg %p166
        %p349 = pneg %p190
        %p350 = pneg %p187
        %p351 = pneg %p211
        %p352 = pneg %p208
        %p353 = pneg %p237
        %p354 = pneg %p234
        %s355 = smul.u32 2, %s22
        %p356 = scmp.lt.s32.totalorder %s355, 3
        %s357 = scalar_select %p356, %s355, 3
        %s358 = smul.addr %s357, 2
        %s359 = smul.addr %s358, 8
        %s360 = scalar_lea.vmem %s9, %s359
        %s361 = smul.u32 2, %s22
        %p362 = scmp.lt.s32.totalorder %s361, 3
        %s363 = scalar_select %p362, %s361, 3
        %s364 = smul.addr %s363, 2
        %s365 = smul.addr %s364, 8
        %s366 = scalar_lea.vmem %s0, %s365
        %s367 = smul.u32 2, %s22
        %s368 = smul.u32 2, %s22
        %p369 = scmp.lt.s32.totalorder %s368, 3
        %s370 = scalar_select %p369, %s368, 3
        %s371 = smul.addr %s370, 2
        %s372 = smul.addr %s371, 8
        %s373 = scalar_lea.vmem %s9, %s372
        %s374 = smul.u32 2, %s22
        %v375 = vld [vmem:[%s366] sm:$0xff]
        %v376 = vld [vmem:[%s366 + $0x8] sm:$0xff]
        %v377 = vld [vmem:[%s366 + $0x10] sm:$0xff]
        %v378 = vld [vmem:[%s366 + $0x18] sm:$0xff]
        %v379 = vld [vmem:[%s1] sm:$0x3]
        %v380 = vld [vmem:[%s2] sm:$0x3]
        %v381 = vadd.f32 %v375, %v376
        %382 = vadd.xlane.f32.xlu0 %v381
        %v383 = vpop.xlane.xlu0 %382
        %v384 = vadd.f32 %v377, %v378
        %385 = vadd.xlane.f32.xlu0 %v384
        %v386 = vpop.xlane.xlu0 %385
        %v387 = vrcp.pop 256.0
        %v388 = vmul.f32 256.0, %v387
        %v389 = vsub.f32 1.0, %v388
        %v390 = vmul.f32 %v387, %v389
        %v391 = vadd.f32 %v387, %v390
        %vm392 = vweird.f32 %v387
        %v393 = vsel %vm392, %v387, %v391
        %v394 = vmul.f32 %v383, %v393
        %v395 = vmul.f32 %v386, %v393
        %v396 = vsub.f32 %v375, %v394
        %v397 = vsub.f32 %v376, %v394
        %v398 = vsub.f32 %v377, %v395
        %v399 = vsub.f32 %v378, %v395
        %v400 = vmul.f32 %v396, %v396
        %v401 = vmul.f32 %v397, %v397
        %v402 = vmul.f32 %v398, %v398
        %v403 = vmul.f32 %v399, %v399
        %v404 = vadd.f32 %v400, %v401
        %405 = vadd.xlane.f32.xlu0 %v404
        %v406 = vpop.xlane.xlu0 %405
        %v407 = vadd.f32 %v402, %v403
        %408 = vadd.xlane.f32.xlu0 %v407
        %v409 = vpop.xlane.xlu0 %408
        %v410 = vmul.f32 %v406, 0.003921569
        %v411 = vmul.f32 %v409, 0.003921569
        %v412 = vrsqrt.pop %v410
        %v413 = vmul.f32 %v412, %v410
        %v414 = vmul.f32 %v413, %v412
        %v415 = vmul.f32 0.5, %v414
        %v416 = vsub.f32 1.5, %v415
        %v417 = vmul.f32 %v412, %v416
        %v418 = vmul.f32 %v410, %v417
        %vm419 = vcmp.eq.f32.partialorder %v410, inf
        %v420 = vsel %vm419, %v410, %v418
        %vm421 = vcmp.eq.f32.partialorder %v410, 0.0
        %v422 = vand.u32 %v410, 2147483648
        %v423 = vsel %vm421, %v422, %v420
        %v424 = vrsqrt.pop %v411
        %v425 = vmul.f32 %v424, %v411
        %v426 = vmul.f32 %v425, %v424
        %v427 = vmul.f32 0.5, %v426
        %v428 = vsub.f32 1.5, %v427
        %v429 = vmul.f32 %v424, %v428
        %v430 = vmul.f32 %v411, %v429
        %vm431 = vcmp.eq.f32.partialorder %v411, inf
        %v432 = vsel %vm431, %v411, %v430
        %vm433 = vcmp.eq.f32.partialorder %v411, 0.0
        %v434 = vand.u32 %v411, 2147483648
        %v435 = vsel %vm433, %v434, %v432
        %v436 = vadd.f32 %v423, 1e-06
        %v437 = vadd.f32 %v435, 1e-06
        %v438 = vrcp.pop %v436
        %v439 = vmul.f32 %v436, %v438
        %v440 = vsub.f32 1.0, %v439
        %v441 = vmul.f32 %v438, %v440
        %v442 = vadd.f32 %v438, %v441
        %vm443 = vweird.f32 %v436
        %vm444 = vweird.f32 %v438
        %vm445 = vmor %vm443, %vm444
        %v446 = vsel %vm445, %v438, %v442
        %v447 = vand.u32 2147483647, %v436
        %vm448 = vcmp.eq.f32.partialorder %v447, 8.507059e+37
        %v449 = vand.u32 %v436, 2147483648
        %v450 = vor.u32 1.1754944e-38, %v449
        %v451 = vsel %vm448, %v450, %v446
        %v452 = vmul.f32 1.0, %v451
        %v453 = vrcp.pop %v437
        %v454 = vmul.f32 %v437, %v453
        %v455 = vsub.f32 1.0, %v454
        %v456 = vmul.f32 %v453, %v455
        %v457 = vadd.f32 %v453, %v456
        %vm458 = vweird.f32 %v437
        %vm459 = vweird.f32 %v453
        %vm460 = vmor %vm458, %vm459
        %v461 = vsel %vm460, %v453, %v457
        %v462 = vand.u32 2147483647, %v437
        %vm463 = vcmp.eq.f32.partialorder %v462, 8.507059e+37
        %v464 = vand.u32 %v437, 2147483648
        %v465 = vor.u32 1.1754944e-38, %v464
        %v466 = vsel %vm463, %v465, %v461
        %v467 = vmul.f32 1.0, %v466
        %v468 = vmul.f32 %v396, %v452
        %v469 = vmul.f32 %v397, %v452
        %v470 = vmul.f32 %v398, %v467
        %v471 = vmul.f32 %v399, %v467
        %v473 = vperm.slane %v379, 0
        %v474 = vperm.slane %v379, 1
        %v477 = vmul.f32 %v473, %v468
        %v478 = vmul.f32 %v474, %v469
        %v479 = vmul.f32 %v473, %v470
        %v480 = vmul.f32 %v474, %v471
        %v482 = vperm.slane %v380, 0
        %v483 = vperm.slane %v380, 1
        %v486 = vadd.f32 %v477, %v482
        %v487 = vadd.f32 %v478, %v483
        %v488 = vadd.f32 %v479, %v482
        %v489 = vadd.f32 %v480, %v483
        %v490 = vpack.c.bf16 %v488, %v486
        %v491 = vpack.c.bf16 %v489, %v487
        %v492 = vld [vmem:[#allocation2] sm:$0xff]
        %v493 = vld [vmem:[#allocation2 + $0x8] sm:$0xff]
        %v494 = vld [vmem:[#allocation2 + $0x10] sm:$0xff]
        %v495 = vld [vmem:[#allocation2 + $0x18] sm:$0xff]
        %v496 = vld [vmem:[#allocation2 + $0x20] sm:$0xff]
        %v497 = vld [vmem:[#allocation2 + $0x28] sm:$0xff]
        %v498 = vld [vmem:[#allocation2 + $0x30] sm:$0xff]
        %v499 = vld [vmem:[#allocation2 + $0x38] sm:$0xff]
        %v500 = vld [vmem:[#allocation2 + $0x40] sm:$0xff]
        %v501 = vld [vmem:[#allocation2 + $0x48] sm:$0xff]
        %v502 = vld [vmem:[#allocation2 + $0x50] sm:$0xff]
        %v503 = vld [vmem:[#allocation2 + $0x58] sm:$0xff]
        %v504 = vld [vmem:[#allocation2 + $0x60] sm:$0xff]
        %v505 = vld [vmem:[#allocation2 + $0x68] sm:$0xff]
        %v506 = vld [vmem:[#allocation2 + $0x70] sm:$0xff]
        %v507 = vld [vmem:[#allocation2 + $0x78] sm:$0xff]
        %v508 = vld [vmem:[#allocation2 + $0x80] sm:$0xff]
        %v509 = vld [vmem:[#allocation2 + $0x88] sm:$0xff]
        %v510 = vld [vmem:[#allocation2 + $0x90] sm:$0xff]
        %v511 = vld [vmem:[#allocation2 + $0x98] sm:$0xff]
        %v512 = vld [vmem:[#allocation2 + $0xa0] sm:$0xff]
        %v513 = vld [vmem:[#allocation2 + $0xa8] sm:$0xff]
        %v514 = vld [vmem:[#allocation2 + $0xb0] sm:$0xff]
        %v515 = vld [vmem:[#allocation2 + $0xb8] sm:$0xff]
        %v516 = vld [vmem:[#allocation2 + $0xc0] sm:$0xff]
        %v517 = vld [vmem:[#allocation2 + $0xc8] sm:$0xff]
        %v518 = vld [vmem:[#allocation2 + $0xd0] sm:$0xff]
        %v519 = vld [vmem:[#allocation2 + $0xd8] sm:$0xff]
        %v520 = vld [vmem:[#allocation2 + $0xe0] sm:$0xff]
        %v521 = vld [vmem:[#allocation2 + $0xe8] sm:$0xff]
        %v522 = vld [vmem:[#allocation2 + $0xf0] sm:$0xff]
        %v523 = vld [vmem:[#allocation2 + $0xf8] sm:$0xff]
        %v524 = vld [vmem:[#allocation2 + $0x100] sm:$0xff]
        %v525 = vld [vmem:[#allocation2 + $0x108] sm:$0xff]
        %v526 = vld [vmem:[#allocation2 + $0x110] sm:$0xff]
        %v527 = vld [vmem:[#allocation2 + $0x118] sm:$0xff]
        %v528 = vld [vmem:[#allocation2 + $0x120] sm:$0xff]
        %v529 = vld [vmem:[#allocation2 + $0x128] sm:$0xff]
        %v530 = vld [vmem:[#allocation2 + $0x130] sm:$0xff]
        %v531 = vld [vmem:[#allocation2 + $0x138] sm:$0xff]
        %v532 = vld [vmem:[#allocation2 + $0x140] sm:$0xff]
        %v533 = vld [vmem:[#allocation2 + $0x148] sm:$0xff]
        %v534 = vld [vmem:[#allocation2 + $0x150] sm:$0xff]
        %v535 = vld [vmem:[#allocation2 + $0x158] sm:$0xff]
        %v536 = vld [vmem:[#allocation2 + $0x160] sm:$0xff]
        %v537 = vld [vmem:[#allocation2 + $0x168] sm:$0xff]
        %v538 = vld [vmem:[#allocation2 + $0x170] sm:$0xff]
        %v539 = vld [vmem:[#allocation2 + $0x178] sm:$0xff]
        %v540 = vld [vmem:[#allocation2 + $0x180] sm:$0xff]
        %v541 = vld [vmem:[#allocation2 + $0x188] sm:$0xff]
        %v542 = vld [vmem:[#allocation2 + $0x190] sm:$0xff]
        %v543 = vld [vmem:[#allocation2 + $0x198] sm:$0xff]
        %v544 = vld [vmem:[#allocation2 + $0x1a0] sm:$0xff]
        %v545 = vld [vmem:[#allocation2 + $0x1a8] sm:$0xff]
        %v546 = vld [vmem:[#allocation2 + $0x1b0] sm:$0xff]
        %v547 = vld [vmem:[#allocation2 + $0x1b8] sm:$0xff]
        %v548 = vld [vmem:[#allocation2 + $0x1c0] sm:$0xff]
        %v549 = vld [vmem:[#allocation2 + $0x1c8] sm:$0xff]
        %v550 = vld [vmem:[#allocation2 + $0x1d0] sm:$0xff]
        %v551 = vld [vmem:[#allocation2 + $0x1d8] sm:$0xff]
        %v552 = vld [vmem:[#allocation2 + $0x1e0] sm:$0xff]
        %v553 = vld [vmem:[#allocation2 + $0x1e8] sm:$0xff]
        %v554 = vld [vmem:[#allocation2 + $0x1f0] sm:$0xff]
        %v555 = vld [vmem:[#allocation2 + $0x1f8] sm:$0xff]
        %v556 = vld [vmem:[%s4] sm:$0xf]
        %v558 = vperm.slane %v556, 0
        %v559 = vperm.slane %v556, 1
        %v560 = vperm.slane %v556, 2
        %v561 = vperm.slane %v556, 3
        %v630 = vunpack.c.l.b16 %v492
        %v631 = vunpack.c.h.b16 %v492
        %v632 = vunpack.c.l.b16 %v493
        %v633 = vunpack.c.h.b16 %v493
        %v634 = vunpack.c.l.b16 %v494
        %v635 = vunpack.c.h.b16 %v494
        %v636 = vunpack.c.l.b16 %v495
        %v637 = vunpack.c.h.b16 %v495
        %v638 = vunpack.c.l.b16 %v496
        %v639 = vunpack.c.h.b16 %v496
        %v640 = vunpack.c.l.b16 %v497
        %v641 = vunpack.c.h.b16 %v497
        %v642 = vunpack.c.l.b16 %v498
        %v643 = vunpack.c.h.b16 %v498
        %v644 = vunpack.c.l.b16 %v499
        %v645 = vunpack.c.h.b16 %v499
        %v646 = vunpack.c.l.b16 %v500
        %v647 = vunpack.c.h.b16 %v500
        %v648 = vunpack.c.l.b16 %v501
        %v649 = vunpack.c.h.b16 %v501
        %v650 = vunpack.c.l.b16 %v502
        %v651 = vunpack.c.h.b16 %v502
        %v652 = vunpack.c.l.b16 %v503
        %v653 = vunpack.c.h.b16 %v503
        %v654 = vunpack.c.l.b16 %v504
        %v655 = vunpack.c.h.b16 %v504
        %v656 = vunpack.c.l.b16 %v505
        %v657 = vunpack.c.h.b16 %v505
        %v658 = vunpack.c.l.b16 %v506
        %v659 = vunpack.c.h.b16 %v506
        %v660 = vunpack.c.l.b16 %v507
        %v661 = vunpack.c.h.b16 %v507
        %v662 = vunpack.c.l.b16 %v508
        %v663 = vunpack.c.h.b16 %v508
        %v664 = vunpack.c.l.b16 %v509
        %v665 = vunpack.c.h.b16 %v509
        %v666 = vunpack.c.l.b16 %v510
        %v667 = vunpack.c.h.b16 %v510
        %v668 = vunpack.c.l.b16 %v511
        %v669 = vunpack.c.h.b16 %v511
        %v670 = vunpack.c.l.b16 %v512
        %v671 = vunpack.c.h.b16 %v512
        %v672 = vunpack.c.l.b16 %v513
        %v673 = vunpack.c.h.b16 %v513
        %v674 = vunpack.c.l.b16 %v514
        %v675 = vunpack.c.h.b16 %v514
        %v676 = vunpack.c.l.b16 %v515
        %v677 = vunpack.c.h.b16 %v515
        %v678 = vunpack.c.l.b16 %v516
        %v679 = vunpack.c.h.b16 %v516
        %v680 = vunpack.c.l.b16 %v517
        %v681 = vunpack.c.h.b16 %v517
        %v682 = vunpack.c.l.b16 %v518
        %v683 = vunpack.c.h.b16 %v518
        %v684 = vunpack.c.l.b16 %v519
        %v685 = vunpack.c.h.b16 %v519
        %v686 = vunpack.c.l.b16 %v520
        %v687 = vunpack.c.h.b16 %v520
        %v688 = vunpack.c.l.b16 %v521
        %v689 = vunpack.c.h.b16 %v521
        %v690 = vunpack.c.l.b16 %v522
        %v691 = vunpack.c.h.b16 %v522
        %v692 = vunpack.c.l.b16 %v523
        %v693 = vunpack.c.h.b16 %v523
        %v694 = vunpack.c.l.b16 %v524
        %v695 = vunpack.c.h.b16 %v524
        %v696 = vunpack.c.l.b16 %v525
        %v697 = vunpack.c.h.b16 %v525
        %v698 = vunpack.c.l.b16 %v526
        %v699 = vunpack.c.h.b16 %v526
        %v700 = vunpack.c.l.b16 %v527
        %v701 = vunpack.c.h.b16 %v527
        %v702 = vunpack.c.l.b16 %v528
        %v703 = vunpack.c.h.b16 %v528
        %v704 = vunpack.c.l.b16 %v529
        %v705 = vunpack.c.h.b16 %v529
        %v706 = vunpack.c.l.b16 %v530
        %v707 = vunpack.c.h.b16 %v530
        %v708 = vunpack.c.l.b16 %v531
        %v709 = vunpack.c.h.b16 %v531
        %v710 = vunpack.c.l.b16 %v532
        %v711 = vunpack.c.h.b16 %v532
        %v712 = vunpack.c.l.b16 %v533
        %v713 = vunpack.c.h.b16 %v533
        %v714 = vunpack.c.l.b16 %v534
        %v715 = vunpack.c.h.b16 %v534
        %v716 = vunpack.c.l.b16 %v535
        %v717 = vunpack.c.h.b16 %v535
        %v718 = vunpack.c.l.b16 %v536
        %v719 = vunpack.c.h.b16 %v536
        %v720 = vunpack.c.l.b16 %v537
        %v721 = vunpack.c.h.b16 %v537
        %v722 = vunpack.c.l.b16 %v538
        %v723 = vunpack.c.h.b16 %v538
        %v724 = vunpack.c.l.b16 %v539
        %v725 = vunpack.c.h.b16 %v539
        %v726 = vunpack.c.l.b16 %v540
        %v727 = vunpack.c.h.b16 %v540
        %v728 = vunpack.c.l.b16 %v541
        %v729 = vunpack.c.h.b16 %v541
        %v730 = vunpack.c.l.b16 %v542
        %v731 = vunpack.c.h.b16 %v542
        %v732 = vunpack.c.l.b16 %v543
        %v733 = vunpack.c.h.b16 %v543
        %v734 = vunpack.c.l.b16 %v544
        %v735 = vunpack.c.h.b16 %v544
        %v736 = vunpack.c.l.b16 %v545
        %v737 = vunpack.c.h.b16 %v545
        %v738 = vunpack.c.l.b16 %v546
        %v739 = vunpack.c.h.b16 %v546
        %v740 = vunpack.c.l.b16 %v547
        %v741 = vunpack.c.h.b16 %v547
        %v742 = vunpack.c.l.b16 %v548
        %v743 = vunpack.c.h.b16 %v548
        %v744 = vunpack.c.l.b16 %v549
        %v745 = vunpack.c.h.b16 %v549
        %v746 = vunpack.c.l.b16 %v550
        %v747 = vunpack.c.h.b16 %v550
        %v748 = vunpack.c.l.b16 %v551
        %v749 = vunpack.c.h.b16 %v551
        %v750 = vunpack.c.l.b16 %v552
        %v751 = vunpack.c.h.b16 %v552
        %v752 = vunpack.c.l.b16 %v553
        %v753 = vunpack.c.h.b16 %v553
        %v754 = vunpack.c.l.b16 %v554
        %v755 = vunpack.c.h.b16 %v554
        %v756 = vunpack.c.l.b16 %v555
        %v757 = vunpack.c.h.b16 %v555
        %v758 = vpack.c.b16 %v634, %v630
        %v759 = vpack.c.b16 %v635, %v631
        %v760 = vpack.c.b16 %v636, %v632
        %v761 = vpack.c.b16 %v637, %v633
        %v762 = vpack.c.b16 %v642, %v638
        %v763 = vpack.c.b16 %v643, %v639
        %v764 = vpack.c.b16 %v644, %v640
        %v765 = vpack.c.b16 %v645, %v641
        %v766 = vpack.c.b16 %v650, %v646
        %v767 = vpack.c.b16 %v651, %v647
        %v768 = vpack.c.b16 %v652, %v648
        %v769 = vpack.c.b16 %v653, %v649
        %v770 = vpack.c.b16 %v658, %v654
        %v771 = vpack.c.b16 %v659, %v655
        %v772 = vpack.c.b16 %v660, %v656
        %v773 = vpack.c.b16 %v661, %v657
        %v774 = vpack.c.b16 %v666, %v662
        %v775 = vpack.c.b16 %v667, %v663
        %v776 = vpack.c.b16 %v668, %v664
        %v777 = vpack.c.b16 %v669, %v665
        %v778 = vpack.c.b16 %v674, %v670
        %v779 = vpack.c.b16 %v675, %v671
        %v780 = vpack.c.b16 %v676, %v672
        %v781 = vpack.c.b16 %v677, %v673
        %v782 = vpack.c.b16 %v682, %v678
        %v783 = vpack.c.b16 %v683, %v679
        %v784 = vpack.c.b16 %v684, %v680
        %v785 = vpack.c.b16 %v685, %v681
        %v786 = vpack.c.b16 %v690, %v686
        %v787 = vpack.c.b16 %v691, %v687
        %v788 = vpack.c.b16 %v692, %v688
        %v789 = vpack.c.b16 %v693, %v689
        %v790 = vpack.c.b16 %v698, %v694
        %v791 = vpack.c.b16 %v699, %v695
        %v792 = vpack.c.b16 %v700, %v696
        %v793 = vpack.c.b16 %v701, %v697
        %v794 = vpack.c.b16 %v706, %v702
        %v795 = vpack.c.b16 %v707, %v703
        %v796 = vpack.c.b16 %v708, %v704
        %v797 = vpack.c.b16 %v709, %v705
        %v798 = vpack.c.b16 %v714, %v710
        %v799 = vpack.c.b16 %v715, %v711
        %v800 = vpack.c.b16 %v716, %v712
        %v801 = vpack.c.b16 %v717, %v713
        %v802 = vpack.c.b16 %v722, %v718
        %v803 = vpack.c.b16 %v723, %v719
        %v804 = vpack.c.b16 %v724, %v720
        %v805 = vpack.c.b16 %v725, %v721
        %v806 = vpack.c.b16 %v730, %v726
        %v807 = vpack.c.b16 %v731, %v727
        %v808 = vpack.c.b16 %v732, %v728
        %v809 = vpack.c.b16 %v733, %v729
        %v810 = vpack.c.b16 %v738, %v734
        %v811 = vpack.c.b16 %v739, %v735
        %v812 = vpack.c.b16 %v740, %v736
        %v813 = vpack.c.b16 %v741, %v737
        %v814 = vpack.c.b16 %v746, %v742
        %v815 = vpack.c.b16 %v747, %v743
        %v816 = vpack.c.b16 %v748, %v744
        %v817 = vpack.c.b16 %v749, %v745
        %v818 = vpack.c.b16 %v754, %v750
        %v819 = vpack.c.b16 %v755, %v751
        %v820 = vpack.c.b16 %v756, %v752
        %v821 = vpack.c.b16 %v757, %v753
        %886 = vmatpush.bf16.msra.mxu0 %v786
        %887 = vmatpush.bf16.msra.mxu0 %v782
        %888 = vmatpush.bf16.msra.mxu0 %v778
        %889 = vmatpush.bf16.msra.mxu0 %v774
        %890 = vmatpush.bf16.msra.mxu0 %v770
        %891 = vmatpush.bf16.msra.mxu0 %v766
        %892 = vmatpush.bf16.msra.mxu0 %v762
        %893 = vmatpush.bf16.msra.mxu0 %v758
        %894 = vmatmul.bf16.gmra.mxu0 %v490
        %v895 = vpop.f32.mrf.mxu0
        %v896 = vadd.f32 %v558, %v895
        %v897 = vpop.f32.mrf.mxu0
        %v898 = vadd.f32 %v558, %v897
        %899 = vdwg.mxu0
        %900 = vmatpush.bf16.msra.mxu0 %v818
        %901 = vmatpush.bf16.msra.mxu0 %v814
        %902 = vmatpush.bf16.msra.mxu0 %v810
        %903 = vmatpush.bf16.msra.mxu0 %v806
        %904 = vmatpush.bf16.msra.mxu0 %v802
        %905 = vmatpush.bf16.msra.mxu0 %v798
        %906 = vmatpush.bf16.msra.mxu0 %v794
        %907 = vmatpush.bf16.msra.mxu0 %v790
        %908 = vmatmul.bf16.gmra.mxu0 %v491
        %v909 = vpop.f32.mrf.mxu0
        %v910 = vadd.f32 %v896, %v909
        %v911 = vpop.f32.mrf.mxu0
        %v912 = vadd.f32 %v898, %v911
        %913 = vdwg.mxu0
        %914 = vmatpush.bf16.msra.mxu0 %v787
        %915 = vmatpush.bf16.msra.mxu0 %v783
        %916 = vmatpush.bf16.msra.mxu0 %v779
        %917 = vmatpush.bf16.msra.mxu0 %v775
        %918 = vmatpush.bf16.msra.mxu0 %v771
        %919 = vmatpush.bf16.msra.mxu0 %v767
        %920 = vmatpush.bf16.msra.mxu0 %v763
        %921 = vmatpush.bf16.msra.mxu0 %v759
        %922 = vmatmul.bf16.gmra.mxu0 %v490
        %v923 = vpop.f32.mrf.mxu0
        %v924 = vadd.f32 %v559, %v923
        %v925 = vpop.f32.mrf.mxu0
        %v926 = vadd.f32 %v559, %v925
        %927 = vdwg.mxu0
        %928 = vmatpush.bf16.msra.mxu0 %v819
        %929 = vmatpush.bf16.msra.mxu0 %v815
        %930 = vmatpush.bf16.msra.mxu0 %v811
        %931 = vmatpush.bf16.msra.mxu0 %v807
        %932 = vmatpush.bf16.msra.mxu0 %v803
        %933 = vmatpush.bf16.msra.mxu0 %v799
        %934 = vmatpush.bf16.msra.mxu0 %v795
        %935 = vmatpush.bf16.msra.mxu0 %v791
        %936 = vmatmul.bf16.gmra.mxu0 %v491
        %v937 = vpop.f32.mrf.mxu0
        %v938 = vadd.f32 %v924, %v937
        %v939 = vpop.f32.mrf.mxu0
        %v940 = vadd.f32 %v926, %v939
        %941 = vdwg.mxu0
        %942 = vmatpush.bf16.msra.mxu0 %v788
        %943 = vmatpush.bf16.msra.mxu0 %v784
        %944 = vmatpush.bf16.msra.mxu0 %v780
        %945 = vmatpush.bf16.msra.mxu0 %v776
        %946 = vmatpush.bf16.msra.mxu0 %v772
        %947 = vmatpush.bf16.msra.mxu0 %v768
        %948 = vmatpush.bf16.msra.mxu0 %v764
        %949 = vmatpush.bf16.msra.mxu0 %v760
        %950 = vmatmul.bf16.gmra.mxu0 %v490
        %v951 = vpop.f32.mrf.mxu0
        %v952 = vadd.f32 %v560, %v951
        %v953 = vpop.f32.mrf.mxu0
        %v954 = vadd.f32 %v560, %v953
        %955 = vdwg.mxu0
        %956 = vmatpush.bf16.msra.mxu0 %v820
        %957 = vmatpush.bf16.msra.mxu0 %v816
        %958 = vmatpush.bf16.msra.mxu0 %v812
        %959 = vmatpush.bf16.msra.mxu0 %v808
        %960 = vmatpush.bf16.msra.mxu0 %v804
        %961 = vmatpush.bf16.msra.mxu0 %v800
        %962 = vmatpush.bf16.msra.mxu0 %v796
        %963 = vmatpush.bf16.msra.mxu0 %v792
        %964 = vmatmul.bf16.gmra.mxu0 %v491
        %v965 = vpop.f32.mrf.mxu0
        %v966 = vadd.f32 %v952, %v965
        %v967 = vpop.f32.mrf.mxu0
        %v968 = vadd.f32 %v954, %v967
        %969 = vdwg.mxu0
        %970 = vmatpush.bf16.msra.mxu0 %v789
        %971 = vmatpush.bf16.msra.mxu0 %v785
        %972 = vmatpush.bf16.msra.mxu0 %v781
        %973 = vmatpush.bf16.msra.mxu0 %v777
        %974 = vmatpush.bf16.msra.mxu0 %v773
        %975 = vmatpush.bf16.msra.mxu0 %v769
        %976 = vmatpush.bf16.msra.mxu0 %v765
        %977 = vmatpush.bf16.msra.mxu0 %v761
        %978 = vmatmul.bf16.gmra.mxu0 %v490
        %v979 = vpop.f32.mrf.mxu0
        %v980 = vadd.f32 %v561, %v979
        %v981 = vpop.f32.mrf.mxu0
        %v982 = vadd.f32 %v561, %v981
        %983 = vdwg.mxu0
        %984 = vmatpush.bf16.msra.mxu0 %v821
        %985 = vmatpush.bf16.msra.mxu0 %v817
        %986 = vmatpush.bf16.msra.mxu0 %v813
        %987 = vmatpush.bf16.msra.mxu0 %v809
        %988 = vmatpush.bf16.msra.mxu0 %v805
        %989 = vmatpush.bf16.msra.mxu0 %v801
        %990 = vmatpush.bf16.msra.mxu0 %v797
        %991 = vmatpush.bf16.msra.mxu0 %v793
        %992 = vmatmul.bf16.gmra.mxu0 %v491
        %v993 = vpop.f32.mrf.mxu0
        %v994 = vadd.f32 %v980, %v993
        %v995 = vpop.f32.mrf.mxu0
        %v996 = vadd.f32 %v982, %v995
        %997 = vdwg.mxu0
        %v998 = vmax.f32 %v910, 0.0
        %v999 = vmax.f32 %v938, 0.0
        %v1000 = vmax.f32 %v966, 0.0
        %v1001 = vmax.f32 %v994, 0.0
        %v1002 = vmax.f32 %v912, 0.0
        %v1003 = vmax.f32 %v940, 0.0
        %v1004 = vmax.f32 %v968, 0.0
        %v1005 = vmax.f32 %v996, 0.0
        %v1006 = vpack.c.bf16 %v1002, %v998
        %v1007 = vpack.c.bf16 %v1003, %v999
        %v1008 = vpack.c.bf16 %v1004, %v1000
        %v1009 = vpack.c.bf16 %v1005, %v1001
        %v1010 = vld [vmem:[#allocation4] sm:$0xff]
        %v1011 = vld [vmem:[#allocation4 + $0x8] sm:$0xff]
        %v1012 = vld [vmem:[#allocation4 + $0x10] sm:$0xff]
        %v1013 = vld [vmem:[#allocation4 + $0x18] sm:$0xff]
        %v1014 = vld [vmem:[#allocation4 + $0x20] sm:$0xff]
        %v1015 = vld [vmem:[#allocation4 + $0x28] sm:$0xff]
        %v1016 = vld [vmem:[#allocation4 + $0x30] sm:$0xff]
        %v1017 = vld [vmem:[#allocation4 + $0x38] sm:$0xff]
        %v1018 = vld [vmem:[#allocation4 + $0x40] sm:$0xff]
        %v1019 = vld [vmem:[#allocation4 + $0x48] sm:$0xff]
        %v1020 = vld [vmem:[#allocation4 + $0x50] sm:$0xff]
        %v1021 = vld [vmem:[#allocation4 + $0x58] sm:$0xff]
        %v1022 = vld [vmem:[#allocation4 + $0x60] sm:$0xff]
        %v1023 = vld [vmem:[#allocation4 + $0x68] sm:$0xff]
        %v1024 = vld [vmem:[#allocation4 + $0x70] sm:$0xff]
        %v1025 = vld [vmem:[#allocation4 + $0x78] sm:$0xff]
        %v1026 = vld [vmem:[#allocation4 + $0x80] sm:$0xff]
        %v1027 = vld [vmem:[#allocation4 + $0x88] sm:$0xff]
        %v1028 = vld [vmem:[#allocation4 + $0x90] sm:$0xff]
        %v1029 = vld [vmem:[#allocation4 + $0x98] sm:$0xff]
        %v1030 = vld [vmem:[#allocation4 + $0xa0] sm:$0xff]
        %v1031 = vld [vmem:[#allocation4 + $0xa8] sm:$0xff]
        %v1032 = vld [vmem:[#allocation4 + $0xb0] sm:$0xff]
        %v1033 = vld [vmem:[#allocation4 + $0xb8] sm:$0xff]
        %v1034 = vld [vmem:[#allocation4 + $0xc0] sm:$0xff]
        %v1035 = vld [vmem:[#allocation4 + $0xc8] sm:$0xff]
        %v1036 = vld [vmem:[#allocation4 + $0xd0] sm:$0xff]
        %v1037 = vld [vmem:[#allocation4 + $0xd8] sm:$0xff]
        %v1038 = vld [vmem:[#allocation4 + $0xe0] sm:$0xff]
        %v1039 = vld [vmem:[#allocation4 + $0xe8] sm:$0xff]
        %v1040 = vld [vmem:[#allocation4 + $0xf0] sm:$0xff]
        %v1041 = vld [vmem:[#allocation4 + $0xf8] sm:$0xff]
        %v1042 = vld [vmem:[#allocation4 + $0x100] sm:$0xff]
        %v1043 = vld [vmem:[#allocation4 + $0x108] sm:$0xff]
        %v1044 = vld [vmem:[#allocation4 + $0x110] sm:$0xff]
        %v1045 = vld [vmem:[#allocation4 + $0x118] sm:$0xff]
        %v1046 = vld [vmem:[#allocation4 + $0x120] sm:$0xff]
        %v1047 = vld [vmem:[#allocation4 + $0x128] sm:$0xff]
        %v1048 = vld [vmem:[#allocation4 + $0x130] sm:$0xff]
        %v1049 = vld [vmem:[#allocation4 + $0x138] sm:$0xff]
        %v1050 = vld [vmem:[#allocation4 + $0x140] sm:$0xff]
        %v1051 = vld [vmem:[#allocation4 + $0x148] sm:$0xff]
        %v1052 = vld [vmem:[#allocation4 + $0x150] sm:$0xff]
        %v1053 = vld [vmem:[#allocation4 + $0x158] sm:$0xff]
        %v1054 = vld [vmem:[#allocation4 + $0x160] sm:$0xff]
        %v1055 = vld [vmem:[#allocation4 + $0x168] sm:$0xff]
        %v1056 = vld [vmem:[#allocation4 + $0x170] sm:$0xff]
        %v1057 = vld [vmem:[#allocation4 + $0x178] sm:$0xff]
        %v1058 = vld [vmem:[#allocation4 + $0x180] sm:$0xff]
        %v1059 = vld [vmem:[#allocation4 + $0x188] sm:$0xff]
        %v1060 = vld [vmem:[#allocation4 + $0x190] sm:$0xff]
        %v1061 = vld [vmem:[#allocation4 + $0x198] sm:$0xff]
        %v1062 = vld [vmem:[#allocation4 + $0x1a0] sm:$0xff]
        %v1063 = vld [vmem:[#allocation4 + $0x1a8] sm:$0xff]
        %v1064 = vld [vmem:[#allocation4 + $0x1b0] sm:$0xff]
        %v1065 = vld [vmem:[#allocation4 + $0x1b8] sm:$0xff]
        %v1066 = vld [vmem:[#allocation4 + $0x1c0] sm:$0xff]
        %v1067 = vld [vmem:[#allocation4 + $0x1c8] sm:$0xff]
        %v1068 = vld [vmem:[#allocation4 + $0x1d0] sm:$0xff]
        %v1069 = vld [vmem:[#allocation4 + $0x1d8] sm:$0xff]
        %v1070 = vld [vmem:[#allocation4 + $0x1e0] sm:$0xff]
        %v1071 = vld [vmem:[#allocation4 + $0x1e8] sm:$0xff]
        %v1072 = vld [vmem:[#allocation4 + $0x1f0] sm:$0xff]
        %v1073 = vld [vmem:[#allocation4 + $0x1f8] sm:$0xff]
        %v1074 = vld [vmem:[%s6] sm:$0x3]
        %v1076 = vperm.slane %v1074, 0
        %v1077 = vperm.slane %v1074, 1
        %v1144 = vunpack.c.l.b16 %v1010
        %v1145 = vunpack.c.h.b16 %v1010
        %v1146 = vunpack.c.l.b16 %v1011
        %v1147 = vunpack.c.h.b16 %v1011
        %v1148 = vunpack.c.l.b16 %v1012
        %v1149 = vunpack.c.h.b16 %v1012
        %v1150 = vunpack.c.l.b16 %v1013
        %v1151 = vunpack.c.h.b16 %v1013
        %v1152 = vunpack.c.l.b16 %v1014
        %v1153 = vunpack.c.h.b16 %v1014
        %v1154 = vunpack.c.l.b16 %v1015
        %v1155 = vunpack.c.h.b16 %v1015
        %v1156 = vunpack.c.l.b16 %v1016
        %v1157 = vunpack.c.h.b16 %v1016
        %v1158 = vunpack.c.l.b16 %v1017
        %v1159 = vunpack.c.h.b16 %v1017
        %v1160 = vunpack.c.l.b16 %v1018
        %v1161 = vunpack.c.h.b16 %v1018
        %v1162 = vunpack.c.l.b16 %v1019
        %v1163 = vunpack.c.h.b16 %v1019
        %v1164 = vunpack.c.l.b16 %v1020
        %v1165 = vunpack.c.h.b16 %v1020
        %v1166 = vunpack.c.l.b16 %v1021
        %v1167 = vunpack.c.h.b16 %v1021
        %v1168 = vunpack.c.l.b16 %v1022
        %v1169 = vunpack.c.h.b16 %v1022
        %v1170 = vunpack.c.l.b16 %v1023
        %v1171 = vunpack.c.h.b16 %v1023
        %v1172 = vunpack.c.l.b16 %v1024
        %v1173 = vunpack.c.h.b16 %v1024
        %v1174 = vunpack.c.l.b16 %v1025
        %v1175 = vunpack.c.h.b16 %v1025
        %v1176 = vunpack.c.l.b16 %v1026
        %v1177 = vunpack.c.h.b16 %v1026
        %v1178 = vunpack.c.l.b16 %v1027
        %v1179 = vunpack.c.h.b16 %v1027
        %v1180 = vunpack.c.l.b16 %v1028
        %v1181 = vunpack.c.h.b16 %v1028
        %v1182 = vunpack.c.l.b16 %v1029
        %v1183 = vunpack.c.h.b16 %v1029
        %v1184 = vunpack.c.l.b16 %v1030
        %v1185 = vunpack.c.h.b16 %v1030
        %v1186 = vunpack.c.l.b16 %v1031
        %v1187 = vunpack.c.h.b16 %v1031
        %v1188 = vunpack.c.l.b16 %v1032
        %v1189 = vunpack.c.h.b16 %v1032
        %v1190 = vunpack.c.l.b16 %v1033
        %v1191 = vunpack.c.h.b16 %v1033
        %v1192 = vunpack.c.l.b16 %v1034
        %v1193 = vunpack.c.h.b16 %v1034
        %v1194 = vunpack.c.l.b16 %v1035
        %v1195 = vunpack.c.h.b16 %v1035
        %v1196 = vunpack.c.l.b16 %v1036
        %v1197 = vunpack.c.h.b16 %v1036
        %v1198 = vunpack.c.l.b16 %v1037
        %v1199 = vunpack.c.h.b16 %v1037
        %v1200 = vunpack.c.l.b16 %v1038
        %v1201 = vunpack.c.h.b16 %v1038
        %v1202 = vunpack.c.l.b16 %v1039
        %v1203 = vunpack.c.h.b16 %v1039
        %v1204 = vunpack.c.l.b16 %v1040
        %v1205 = vunpack.c.h.b16 %v1040
        %v1206 = vunpack.c.l.b16 %v1041
        %v1207 = vunpack.c.h.b16 %v1041
        %v1208 = vunpack.c.l.b16 %v1042
        %v1209 = vunpack.c.h.b16 %v1042
        %v1210 = vunpack.c.l.b16 %v1043
        %v1211 = vunpack.c.h.b16 %v1043
        %v1212 = vunpack.c.l.b16 %v1044
        %v1213 = vunpack.c.h.b16 %v1044
        %v1214 = vunpack.c.l.b16 %v1045
        %v1215 = vunpack.c.h.b16 %v1045
        %v1216 = vunpack.c.l.b16 %v1046
        %v1217 = vunpack.c.h.b16 %v1046
        %v1218 = vunpack.c.l.b16 %v1047
        %v1219 = vunpack.c.h.b16 %v1047
        %v1220 = vunpack.c.l.b16 %v1048
        %v1221 = vunpack.c.h.b16 %v1048
        %v1222 = vunpack.c.l.b16 %v1049
        %v1223 = vunpack.c.h.b16 %v1049
        %v1224 = vunpack.c.l.b16 %v1050
        %v1225 = vunpack.c.h.b16 %v1050
        %v1226 = vunpack.c.l.b16 %v1051
        %v1227 = vunpack.c.h.b16 %v1051
        %v1228 = vunpack.c.l.b16 %v1052
        %v1229 = vunpack.c.h.b16 %v1052
        %v1230 = vunpack.c.l.b16 %v1053
        %v1231 = vunpack.c.h.b16 %v1053
        %v1232 = vunpack.c.l.b16 %v1054
        %v1233 = vunpack.c.h.b16 %v1054
        %v1234 = vunpack.c.l.b16 %v1055
        %v1235 = vunpack.c.h.b16 %v1055
        %v1236 = vunpack.c.l.b16 %v1056
        %v1237 = vunpack.c.h.b16 %v1056
        %v1238 = vunpack.c.l.b16 %v1057
        %v1239 = vunpack.c.h.b16 %v1057
        %v1240 = vunpack.c.l.b16 %v1058
        %v1241 = vunpack.c.h.b16 %v1058
        %v1242 = vunpack.c.l.b16 %v1059
        %v1243 = vunpack.c.h.b16 %v1059
        %v1244 = vunpack.c.l.b16 %v1060
        %v1245 = vunpack.c.h.b16 %v1060
        %v1246 = vunpack.c.l.b16 %v1061
        %v1247 = vunpack.c.h.b16 %v1061
        %v1248 = vunpack.c.l.b16 %v1062
        %v1249 = vunpack.c.h.b16 %v1062
        %v1250 = vunpack.c.l.b16 %v1063
        %v1251 = vunpack.c.h.b16 %v1063
        %v1252 = vunpack.c.l.b16 %v1064
        %v1253 = vunpack.c.h.b16 %v1064
        %v1254 = vunpack.c.l.b16 %v1065
        %v1255 = vunpack.c.h.b16 %v1065
        %v1256 = vunpack.c.l.b16 %v1066
        %v1257 = vunpack.c.h.b16 %v1066
        %v1258 = vunpack.c.l.b16 %v1067
        %v1259 = vunpack.c.h.b16 %v1067
        %v1260 = vunpack.c.l.b16 %v1068
        %v1261 = vunpack.c.h.b16 %v1068
        %v1262 = vunpack.c.l.b16 %v1069
        %v1263 = vunpack.c.h.b16 %v1069
        %v1264 = vunpack.c.l.b16 %v1070
        %v1265 = vunpack.c.h.b16 %v1070
        %v1266 = vunpack.c.l.b16 %v1071
        %v1267 = vunpack.c.h.b16 %v1071
        %v1268 = vunpack.c.l.b16 %v1072
        %v1269 = vunpack.c.h.b16 %v1072
        %v1270 = vunpack.c.l.b16 %v1073
        %v1271 = vunpack.c.h.b16 %v1073
        %v1272 = vpack.c.b16 %v1146, %v1144
        %v1273 = vpack.c.b16 %v1147, %v1145
        %v1274 = vpack.c.b16 %v1150, %v1148
        %v1275 = vpack.c.b16 %v1151, %v1149
        %v1276 = vpack.c.b16 %v1154, %v1152
        %v1277 = vpack.c.b16 %v1155, %v1153
        %v1278 = vpack.c.b16 %v1158, %v1156
        %v1279 = vpack.c.b16 %v1159, %v1157
        %v1280 = vpack.c.b16 %v1162, %v1160
        %v1281 = vpack.c.b16 %v1163, %v1161
        %v1282 = vpack.c.b16 %v1166, %v1164
        %v1283 = vpack.c.b16 %v1167, %v1165
        %v1284 = vpack.c.b16 %v1170, %v1168
        %v1285 = vpack.c.b16 %v1171, %v1169
        %v1286 = vpack.c.b16 %v1174, %v1172
        %v1287 = vpack.c.b16 %v1175, %v1173
        %v1288 = vpack.c.b16 %v1178, %v1176
        %v1289 = vpack.c.b16 %v1179, %v1177
        %v1290 = vpack.c.b16 %v1182, %v1180
        %v1291 = vpack.c.b16 %v1183, %v1181
        %v1292 = vpack.c.b16 %v1186, %v1184
        %v1293 = vpack.c.b16 %v1187, %v1185
        %v1294 = vpack.c.b16 %v1190, %v1188
        %v1295 = vpack.c.b16 %v1191, %v1189
        %v1296 = vpack.c.b16 %v1194, %v1192
        %v1297 = vpack.c.b16 %v1195, %v1193
        %v1298 = vpack.c.b16 %v1198, %v1196
        %v1299 = vpack.c.b16 %v1199, %v1197
        %v1300 = vpack.c.b16 %v1202, %v1200
        %v1301 = vpack.c.b16 %v1203, %v1201
        %v1302 = vpack.c.b16 %v1206, %v1204
        %v1303 = vpack.c.b16 %v1207, %v1205
        %v1304 = vpack.c.b16 %v1210, %v1208
        %v1305 = vpack.c.b16 %v1211, %v1209
        %v1306 = vpack.c.b16 %v1214, %v1212
        %v1307 = vpack.c.b16 %v1215, %v1213
        %v1308 = vpack.c.b16 %v1218, %v1216
        %v1309 = vpack.c.b16 %v1219, %v1217
        %v1310 = vpack.c.b16 %v1222, %v1220
        %v1311 = vpack.c.b16 %v1223, %v1221
        %v1312 = vpack.c.b16 %v1226, %v1224
        %v1313 = vpack.c.b16 %v1227, %v1225
        %v1314 = vpack.c.b16 %v1230, %v1228
        %v1315 = vpack.c.b16 %v1231, %v1229
        %v1316 = vpack.c.b16 %v1234, %v1232
        %v1317 = vpack.c.b16 %v1235, %v1233
        %v1318 = vpack.c.b16 %v1238, %v1236
        %v1319 = vpack.c.b16 %v1239, %v1237
        %v1320 = vpack.c.b16 %v1242, %v1240
        %v1321 = vpack.c.b16 %v1243, %v1241
        %v1322 = vpack.c.b16 %v1246, %v1244
        %v1323 = vpack.c.b16 %v1247, %v1245
        %v1324 = vpack.c.b16 %v1250, %v1248
        %v1325 = vpack.c.b16 %v1251, %v1249
        %v1326 = vpack.c.b16 %v1254, %v1252
        %v1327 = vpack.c.b16 %v1255, %v1253
        %v1328 = vpack.c.b16 %v1258, %v1256
        %v1329 = vpack.c.b16 %v1259, %v1257
        %v1330 = vpack.c.b16 %v1262, %v1260
        %v1331 = vpack.c.b16 %v1263, %v1261
        %v1332 = vpack.c.b16 %v1266, %v1264
        %v1333 = vpack.c.b16 %v1267, %v1265
        %v1334 = vpack.c.b16 %v1270, %v1268
        %v1335 = vpack.c.b16 %v1271, %v1269
        %1400 = vmatpush.bf16.msra.mxu0 %v1286
        %1401 = vmatpush.bf16.msra.mxu0 %v1284
        %1402 = vmatpush.bf16.msra.mxu0 %v1282
        %1403 = vmatpush.bf16.msra.mxu0 %v1280
        %1404 = vmatpush.bf16.msra.mxu0 %v1278
        %1405 = vmatpush.bf16.msra.mxu0 %v1276
        %1406 = vmatpush.bf16.msra.mxu0 %v1274
        %1407 = vmatpush.bf16.msra.mxu0 %v1272
        %1408 = vmatmul.bf16.gmra.mxu0 %v1006
        %v1409 = vpop.f32.mrf.mxu0
        %v1410 = vadd.f32 %v1076, %v1409
        %v1411 = vpop.f32.mrf.mxu0
        %v1412 = vadd.f32 %v1076, %v1411
        %1413 = vdwg.mxu0
        %1414 = vmatpush.bf16.msra.mxu0 %v1302
        %1415 = vmatpush.bf16.msra.mxu0 %v1300
        %1416 = vmatpush.bf16.msra.mxu0 %v1298
        %1417 = vmatpush.bf16.msra.mxu0 %v1296
        %1418 = vmatpush.bf16.msra.mxu0 %v1294
        %1419 = vmatpush.bf16.msra.mxu0 %v1292
        %1420 = vmatpush.bf16.msra.mxu0 %v1290
        %1421 = vmatpush.bf16.msra.mxu0 %v1288
        %1422 = vmatmul.bf16.gmra.mxu0 %v1007
        %v1423 = vpop.f32.mrf.mxu0
        %v1424 = vadd.f32 %v1410, %v1423
        %v1425 = vpop.f32.mrf.mxu0
        %v1426 = vadd.f32 %v1412, %v1425
        %1427 = vdwg.mxu0
        %1428 = vmatpush.bf16.msra.mxu0 %v1318
        %1429 = vmatpush.bf16.msra.mxu0 %v1316
        %1430 = vmatpush.bf16.msra.mxu0 %v1314
        %1431 = vmatpush.bf16.msra.mxu0 %v1312
        %1432 = vmatpush.bf16.msra.mxu0 %v1310
        %1433 = vmatpush.bf16.msra.mxu0 %v1308
        %1434 = vmatpush.bf16.msra.mxu0 %v1306
        %1435 = vmatpush.bf16.msra.mxu0 %v1304
        %1436 = vmatmul.bf16.gmra.mxu0 %v1008
        %v1437 = vpop.f32.mrf.mxu0
        %v1438 = vadd.f32 %v1424, %v1437
        %v1439 = vpop.f32.mrf.mxu0
        %v1440 = vadd.f32 %v1426, %v1439
        %1441 = vdwg.mxu0
        %1442 = vmatpush.bf16.msra.mxu0 %v1334
        %1443 = vmatpush.bf16.msra.mxu0 %v1332
        %1444 = vmatpush.bf16.msra.mxu0 %v1330
        %1445 = vmatpush.bf16.msra.mxu0 %v1328
        %1446 = vmatpush.bf16.msra.mxu0 %v1326
        %1447 = vmatpush.bf16.msra.mxu0 %v1324
        %1448 = vmatpush.bf16.msra.mxu0 %v1322
        %1449 = vmatpush.bf16.msra.mxu0 %v1320
        %1450 = vmatmul.bf16.gmra.mxu0 %v1009
        %v1451 = vpop.f32.mrf.mxu0
        %v1452 = vadd.f32 %v1438, %v1451
        %v1453 = vpop.f32.mrf.mxu0
        %v1454 = vadd.f32 %v1440, %v1453
        %1455 = vdwg.mxu0
        %1456 = vmatpush.bf16.msra.mxu0 %v1287
        %1457 = vmatpush.bf16.msra.mxu0 %v1285
        %1458 = vmatpush.bf16.msra.mxu0 %v1283
        %1459 = vmatpush.bf16.msra.mxu0 %v1281
        %1460 = vmatpush.bf16.msra.mxu0 %v1279
        %1461 = vmatpush.bf16.msra.mxu0 %v1277
        %1462 = vmatpush.bf16.msra.mxu0 %v1275
        %1463 = vmatpush.bf16.msra.mxu0 %v1273
        %1464 = vmatmul.bf16.gmra.mxu0 %v1006
        %v1465 = vpop.f32.mrf.mxu0
        %v1466 = vadd.f32 %v1077, %v1465
        %v1467 = vpop.f32.mrf.mxu0
        %v1468 = vadd.f32 %v1077, %v1467
        %1469 = vdwg.mxu0
        %1470 = vmatpush.bf16.msra.mxu0 %v1303
        %1471 = vmatpush.bf16.msra.mxu0 %v1301
        %1472 = vmatpush.bf16.msra.mxu0 %v1299
        %1473 = vmatpush.bf16.msra.mxu0 %v1297
        %1474 = vmatpush.bf16.msra.mxu0 %v1295
        %1475 = vmatpush.bf16.msra.mxu0 %v1293
        %1476 = vmatpush.bf16.msra.mxu0 %v1291
        %1477 = vmatpush.bf16.msra.mxu0 %v1289
        %1478 = vmatmul.bf16.gmra.mxu0 %v1007
        %v1479 = vpop.f32.mrf.mxu0
        %v1480 = vadd.f32 %v1466, %v1479
        %v1481 = vpop.f32.mrf.mxu0
        %v1482 = vadd.f32 %v1468, %v1481
        %1483 = vdwg.mxu0
        %1484 = vmatpush.bf16.msra.mxu0 %v1319
        %1485 = vmatpush.bf16.msra.mxu0 %v1317
        %1486 = vmatpush.bf16.msra.mxu0 %v1315
        %1487 = vmatpush.bf16.msra.mxu0 %v1313
        %1488 = vmatpush.bf16.msra.mxu0 %v1311
        %1489 = vmatpush.bf16.msra.mxu0 %v1309
        %1490 = vmatpush.bf16.msra.mxu0 %v1307
        %1491 = vmatpush.bf16.msra.mxu0 %v1305
        %1492 = vmatmul.bf16.gmra.mxu0 %v1008
        %v1493 = vpop.f32.mrf.mxu0
        %v1494 = vadd.f32 %v1480, %v1493
        %v1495 = vpop.f32.mrf.mxu0
        %v1496 = vadd.f32 %v1482, %v1495
        %1497 = vdwg.mxu0
        %1498 = vmatpush.bf16.msra.mxu0 %v1335
        %1499 = vmatpush.bf16.msra.mxu0 %v1333
        %1500 = vmatpush.bf16.msra.mxu0 %v1331
        %1501 = vmatpush.bf16.msra.mxu0 %v1329
        %1502 = vmatpush.bf16.msra.mxu0 %v1327
        %1503 = vmatpush.bf16.msra.mxu0 %v1325
        %1504 = vmatpush.bf16.msra.mxu0 %v1323
        %1505 = vmatpush.bf16.msra.mxu0 %v1321
        %1506 = vmatmul.bf16.gmra.mxu0 %v1009
        %v1507 = vpop.f32.mrf.mxu0
        %v1508 = vadd.f32 %v1494, %v1507
        %v1509 = vpop.f32.mrf.mxu0
        %v1510 = vadd.f32 %v1496, %v1509
        %1511 = vdwg.mxu0
        %v1512 = vadd.f32 %v375, %v1452
        %v1513 = vadd.f32 %v376, %v1508
        %v1514 = vadd.f32 %v377, %v1454
        %v1515 = vadd.f32 %v378, %v1510
        %1516 = vst [vmem:[%s373] sm:$0xff] %v1512
        %1517 = vst [vmem:[%s373 + $0x8] sm:$0xff] %v1513
        %1518 = vst [vmem:[%s373 + $0x10] sm:$0xff] %v1514
        %1519 = vst [vmem:[%s373 + $0x18] sm:$0xff] %v1515
        %s1520 = smul.u32 2, %s22
        %p1521 = scmp.lt.s32.totalorder %s1520, 3
        %s1522 = scalar_select %p1521, %s1520, 3
        %s1523 = smul.addr %s1522, 2
        %s1524 = smul.addr %s1523, 8
        %s1525 = scalar_lea.vmem %s9, %s1524
        // Predicated region
        $region65: #{decoder_forward.14} parent=55 // pred_check
          %p1526 = pneg %p234
        $region66: #{decoder_forward.14} parent=55 // pred_check_branch
          %1528 = sbr.rel (%p1526) target = $region68
        $region67: #{decoder_forward.14} parent=55 // pred_region
          %s1529 = smul.u32 2, %s22
        $region68: #{decoder_forward.14} parent=55 // pred_fallthru
          _
      $region56: #{decoder_forward.14} parent=5 // pred_fallthru
        _
      %p1530 = scmp.le.s32.totalorder 2, %s17
      // Predicated region
      $region69: #{decoder_forward.14} parent=5 // pred_check
        %p1531 = pneg %p1530
      $region70: #{decoder_forward.14} parent=5 // pred_check_branch
        %1533 = sbr.rel (%p1531) target = $region72
      $region71: #{decoder_forward.14} parent=5 // pred_region
        %s1534 = ssub.s32 %s17, 2
        // Predicated region
        $region73: #{decoder_forward.14} parent=71 // pred_check
          %p1535 = pneg %p240
        $region74: #{decoder_forward.14} parent=71 // pred_check_branch
          %1537 = sbr.rel (%p1535) target = $region76
        $region75: #{decoder_forward.14} parent=71 // pred_region
          %s1538 = smul.u32 2, %s23
          %p1539 = scmp.lt.s32.totalorder %s1538, 3
          %s1540 = scalar_select %p1539, %s1538, 3
          %s1541 = smul.addr %s1540, 2
          %s1542 = smul.addr %s1541, 8
          %s1543 = scalar_lea.vmem %s9, %s1542
        $region76: #{decoder_forward.14} parent=71 // pred_fallthru
          _
      $region72: #{decoder_forward.14} parent=5 // pred_fallthru
        _
    $region6: #{decoder_forward.14} parent=1 // loop_footer
      %s21 = sadd.s32 1, %s17
    $region7: #{decoder_forward.14} parent=1 // loop_footer_branch
      %16 = sbr.rel target = $region3
    $region8: #{decoder_forward.14} parent=1 // loop_exit
      _
    %1544 = vsyncpa [#allocation3], 1
    %s1545 = scalar_lea.sflag [#allocation3], 1
    %1546 = vsyncpa %s1545, 1
    %1547 = vsyncpa [#allocation5], 1

// kernel: decoder_forward.19
$region0: #{decoder_forward.19}
  #allocation0 [shape = 'u32[]', space=smem, size = 0x4, offset = 0x4, fixed_abs, tag = 'smem constant byte address 0x4 - core index']
  #allocation1 [shape = 'u32[72,128]{1,0:T(1,128)}', space=vmem, size = 0x9000, scoped, tag = 'internal scratch']
  %s0 = inlined_call_operand.vmem [shape: f32[32,256], index: 0, kind: input, shape index: {}, may-alias: {0,9}]
  %s1 = inlined_call_operand.vmem [shape: f32[1,256], index: 1, kind: input, shape index: {}]
  %s2 = inlined_call_operand.vmem [shape: f32[1,256], index: 2, kind: input, shape index: {}]
  %s3 = inlined_call_operand.hbm [shape: bf16[256,512], index: 3, kind: input, shape index: {}]
  %s4 = inlined_call_operand.vmem [shape: f32[1,512], index: 4, kind: input, shape index: {}]
  %s5 = inlined_call_operand.hbm [shape: bf16[512,256], index: 5, kind: input, shape index: {}]
  %s6 = inlined_call_operand.vmem [shape: f32[1,256], index: 6, kind: input, shape index: {}]
  %s7 = inlined_call_operand.vmem [shape: f32[1,256], index: 7, kind: input, shape index: {}]
  %s8 = inlined_call_operand.vmem [shape: f32[1,256], index: 8, kind: input, shape index: {}]
  %s9 = inlined_call_operand.vmem [shape: f32[32,256], index: 9, kind: output, shape index: {}, may-alias: {0,9}]
  %s10 = sld [smem:[#allocation0]]
  $region77: #{decoder_forward.19} parent=0
    _
  %s12 = ssub.s32 1, %s10
  %s13 = scalar_select 0, %s12, %s10
  $region1: #{decoder_forward.19} parent=0
    #allocation2 [shape = 'u8[262144]{0}', space=vmem, size = 0x40000, scoped, tag = 'input window, operand 3, single buffered']
    #allocation3 [shape = 's32[2]{0}', space=sflag, size = 0x8, scoped, tag = 'scoped memory for decoder_forward.19']
    #allocation4 [shape = 'u8[262144]{0}', space=vmem, size = 0x40000, scoped, tag = 'input window, operand 5, single buffered']
    #allocation5 [shape = 's32[1]{0}', space=sflag, size = 0x4, scoped, tag = 'scoped memory for decoder_forward.19']
    %14 = vsyncpa [#allocation3], 0
    %15 = vsyncpa [#allocation5], 0
    loop: start=0, step=1, limit=4
    $region2: #{decoder_forward.19} parent=1 // loop_pre_header
      _
    $region3: #{decoder_forward.19} parent=1 // loop_header
      %s17 = sphi 0, %s21
      %p18 = scmp.ge.s32.totalorder %s17, 4
      %s27 = sphi 0, %s29
      %s30 = sphi 0, %s27
      %s31 = sphi 0, %s30
      %s47 = sphi 0, %s31
      %s51 = sphi 0, %s51
      %s53 = sphi 0, %s51
      %s54 = sphi 0, %s53
      %s68 = sphi 0, %s54
      %s72 = sphi 0, %s72
      %s74 = sphi 0, %s72
      %s75 = sphi 0, %s74
      %s89 = sphi 0, %s75
      %s93 = sphi 0, %s93
      %s95 = sphi 0, %s93
      %s96 = sphi 0, %s95
      %s110 = sphi 0, %s96
      %s114 = sphi 0, %s114
      %s116 = sphi 0, %s114
      %s117 = sphi 0, %s116
      %s131 = sphi 0, %s117
      %s135 = sphi 0, %s135
      %s137 = sphi 0, %s135
      %s138 = sphi 0, %s137
      %s152 = sphi 0, %s138
      %s156 = sphi 0, %s156
      %s158 = sphi 0, %s156
      %s159 = sphi 0, %s158
      %s173 = sphi 0, %s159
      %s177 = sphi 0, %s177
      %s179 = sphi 0, %s177
      %s180 = sphi 0, %s179
      %s194 = sphi 0, %s180
      %s198 = sphi 0, %s198
      %s200 = sphi 0, %s198
      %s201 = sphi 0, %s200
      %s215 = sphi 0, %s201
      %s221 = sphi 0, %s223
      %s224 = sphi 0, %s221
      %s225 = sphi 0, %s224
      %s241 = sphi 0, %s225
    $region4: #{decoder_forward.19} parent=1 // loop_header_branch
      %20 = sbr.rel (%p18) target = $region8
    $region5: #{decoder_forward.19} parent=1 // loop_body
      %s22 = ssub.s32 %s17, 1
      %s23 = ssub.s32 %s17, 2
      %s24 = sadd.s32 %s17, 1
      %s25 = ssub.s32 %s17, %s24
      %p26 = scmp.eq.s32.totalorder %s25, 0
      %s28 = sadd.s32 %s27, 1
      %s29 = scalar_select %p26, %s27, %s28
      %p32 = pneg %p26
      %p33 = scmp.eq.s32.totalorder %s17, 1
      %p34 = por %p32, %p33
      %p35 = scmp.ne.s32.totalorder %s27, %s30
      %p36 = scmp.eq.s32.totalorder %s17, 0
      %p37 = por %p35, %p36
      %p38 = scmp.ne.s32.totalorder %s27, %s30
      %p39 = scmp.eq.s32.totalorder %s22, 1
      %p40 = por %p38, %p39
      %p41 = scmp.ne.s32.totalorder %s30, %s31
      %p42 = scmp.eq.s32.totalorder %s22, 0
      %p43 = por %p41, %p42
      %p44 = scmp.ne.s32.totalorder %s30, %s31
      %p45 = scmp.eq.s32.totalorder %s23, 1
      %p46 = por %p44, %p45
      %p48 = scmp.ne.s32.totalorder %s31, %s47
      %p49 = scmp.eq.s32.totalorder %s23, 0
      %p50 = por %p48, %p49
      %s52 = sadd.s32 %s51, 1
      %p55 = scmp.eq.s32.totalorder %s17, 1
      %p56 = scmp.ne.s32.totalorder %s51, %s53
      %p57 = scmp.eq.s32.totalorder %s17, 0
      %p58 = por %p56, %p57
      %p59 = scmp.ne.s32.totalorder %s51, %s53
      %p60 = scmp.eq.s32.totalorder %s22, 1
      %p61 = por %p59, %p60
      %p62 = scmp.ne.s32.totalorder %s53, %s54
      %p63 = scmp.eq.s32.totalorder %s22, 0
      %p64 = por %p62, %p63
      %p65 = scmp.ne.s32.totalorder %s53, %s54
      %p66 = scmp.eq.s32.totalorder %s23, 1
      %p67 = por %p65, %p66
      %p69 = scmp.ne.s32.totalorder %s54, %s68
      %p70 = scmp.eq.s32.totalorder %s23, 0
      %p71 = por %p69, %p70
      %s73 = sadd.s32 %s72, 1
      %p76 = scmp.eq.s32.totalorder %s17, 1
      %p77 = scmp.ne.s32.totalorder %s72, %s74
      %p78 = scmp.eq.s32.totalorder %s17, 0
      %p79 = por %p77, %p78
      %p80 = scmp.ne.s32.totalorder %s72, %s74
      %p81 = scmp.eq.s32.totalorder %s22, 1
      %p82 = por %p80, %p81
      %p83 = scmp.ne.s32.totalorder %s74, %s75
      %p84 = scmp.eq.s32.totalorder %s22, 0
      %p85 = por %p83, %p84
      %p86 = scmp.ne.s32.totalorder %s74, %s75
      %p87 = scmp.eq.s32.totalorder %s23, 1
      %p88 = por %p86, %p87
      %p90 = scmp.ne.s32.totalorder %s75, %s89
      %p91 = scmp.eq.s32.totalorder %s23, 0
      %p92 = por %p90, %p91
      %s94 = sadd.s32 %s93, 1
      %p97 = scmp.eq.s32.totalorder %s17, 1
      %p98 = scmp.ne.s32.totalorder %s93, %s95
      %p99 = scmp.eq.s32.totalorder %s17, 0
      %p100 = por %p98, %p99
      %p101 = scmp.ne.s32.totalorder %s93, %s95
      %p102 = scmp.eq.s32.totalorder %s22, 1
      %p103 = por %p101, %p102
      %p104 = scmp.ne.s32.totalorder %s95, %s96
      %p105 = scmp.eq.s32.totalorder %s22, 0
      %p106 = por %p104, %p105
      %p107 = scmp.ne.s32.totalorder %s95, %s96
      %p108 = scmp.eq.s32.totalorder %s23, 1
      %p109 = por %p107, %p108
      %p111 = scmp.ne.s32.totalorder %s96, %s110
      %p112 = scmp.eq.s32.totalorder %s23, 0
      %p113 = por %p111, %p112
      %s115 = sadd.s32 %s114, 1
      %p118 = scmp.eq.s32.totalorder %s17, 1
      %p119 = scmp.ne.s32.totalorder %s114, %s116
      %p120 = scmp.eq.s32.totalorder %s17, 0
      %p121 = por %p119, %p120
      %p122 = scmp.ne.s32.totalorder %s114, %s116
      %p123 = scmp.eq.s32.totalorder %s22, 1
      %p124 = por %p122, %p123
      %p125 = scmp.ne.s32.totalorder %s116, %s117
      %p126 = scmp.eq.s32.totalorder %s22, 0
      %p127 = por %p125, %p126
      %p128 = scmp.ne.s32.totalorder %s116, %s117
      %p129 = scmp.eq.s32.totalorder %s23, 1
      %p130 = por %p128, %p129
      %p132 = scmp.ne.s32.totalorder %s117, %s131
      %p133 = scmp.eq.s32.totalorder %s23, 0
      %p134 = por %p132, %p133
      %s136 = sadd.s32 %s135, 1
      %p139 = scmp.eq.s32.totalorder %s17, 1
      %p140 = scmp.ne.s32.totalorder %s135, %s137
      %p141 = scmp.eq.s32.totalorder %s17, 0
      %p142 = por %p140, %p141
      %p143 = scmp.ne.s32.totalorder %s135, %s137
      %p144 = scmp.eq.s32.totalorder %s22, 1
      %p145 = por %p143, %p144
      %p146 = scmp.ne.s32.totalorder %s137, %s138
      %p147 = scmp.eq.s32.totalorder %s22, 0
      %p148 = por %p146, %p147
      %p149 = scmp.ne.s32.totalorder %s137, %s138
      %p150 = scmp.eq.s32.totalorder %s23, 1
      %p151 = por %p149, %p150
      %p153 = scmp.ne.s32.totalorder %s138, %s152
      %p154 = scmp.eq.s32.totalorder %s23, 0
      %p155 = por %p153, %p154
      %s157 = sadd.s32 %s156, 1
      %p160 = scmp.eq.s32.totalorder %s17, 1
      %p161 = scmp.ne.s32.totalorder %s156, %s158
      %p162 = scmp.eq.s32.totalorder %s17, 0
      %p163 = por %p161, %p162
      %p164 = scmp.ne.s32.totalorder %s156, %s158
      %p165 = scmp.eq.s32.totalorder %s22, 1
      %p166 = por %p164, %p165
      %p167 = scmp.ne.s32.totalorder %s158, %s159
      %p168 = scmp.eq.s32.totalorder %s22, 0
      %p169 = por %p167, %p168
      %p170 = scmp.ne.s32.totalorder %s158, %s159
      %p171 = scmp.eq.s32.totalorder %s23, 1
      %p172 = por %p170, %p171
      %p174 = scmp.ne.s32.totalorder %s159, %s173
      %p175 = scmp.eq.s32.totalorder %s23, 0
      %p176 = por %p174, %p175
      %s178 = sadd.s32 %s177, 1
      %p181 = scmp.eq.s32.totalorder %s17, 1
      %p182 = scmp.ne.s32.totalorder %s177, %s179
      %p183 = scmp.eq.s32.totalorder %s17, 0
      %p184 = por %p182, %p183
      %p185 = scmp.ne.s32.totalorder %s177, %s179
      %p186 = scmp.eq.s32.totalorder %s22, 1
      %p187 = por %p185, %p186
      %p188 = scmp.ne.s32.totalorder %s179, %s180
      %p189 = scmp.eq.s32.totalorder %s22, 0
      %p190 = por %p188, %p189
      %p191 = scmp.ne.s32.totalorder %s179, %s180
      %p192 = scmp.eq.s32.totalorder %s23, 1
      %p193 = por %p191, %p192
      %p195 = scmp.ne.s32.totalorder %s180, %s194
      %p196 = scmp.eq.s32.totalorder %s23, 0
      %p197 = por %p195, %p196
      %s199 = sadd.s32 %s198, 1
      %p202 = scmp.eq.s32.totalorder %s17, 1
      %p203 = scmp.ne.s32.totalorder %s198, %s200
      %p204 = scmp.eq.s32.totalorder %s17, 0
      %p205 = por %p203, %p204
      %p206 = scmp.ne.s32.totalorder %s198, %s200
      %p207 = scmp.eq.s32.totalorder %s22, 1
      %p208 = por %p206, %p207
      %p209 = scmp.ne.s32.totalorder %s200, %s201
      %p210 = scmp.eq.s32.totalorder %s22, 0
      %p211 = por %p209, %p210
      %p212 = scmp.ne.s32.totalorder %s200, %s201
      %p213 = scmp.eq.s32.totalorder %s23, 1
      %p214 = por %p212, %p213
      %p216 = scmp.ne.s32.totalorder %s201, %s215
      %p217 = scmp.eq.s32.totalorder %s23, 0
      %p218 = por %p216, %p217
      %s219 = ssub.s32 %s17, %s24
      %p220 = scmp.eq.s32.totalorder %s219, 0
      %s222 = sadd.s32 %s221, 1
      %s223 = scalar_select %p220, %s221, %s222
      %p226 = pneg %p220
      %p227 = scmp.eq.s32.totalorder %s17, 1
      %p228 = por %p226, %p227
      %p229 = scmp.ne.s32.totalorder %s221, %s224
      %p230 = scmp.eq.s32.totalorder %s17, 0
      %p231 = por %p229, %p230
      %p232 = scmp.ne.s32.totalorder %s221, %s224
      %p233 = scmp.eq.s32.totalorder %s22, 1
      %p234 = por %p232, %p233
      %p235 = scmp.ne.s32.totalorder %s224, %s225
      %p236 = scmp.eq.s32.totalorder %s22, 0
      %p237 = por %p235, %p236
      %p238 = scmp.ne.s32.totalorder %s224, %s225
      %p239 = scmp.eq.s32.totalorder %s23, 1
      %p240 = por %p238, %p239
      %p242 = scmp.ne.s32.totalorder %s225, %s241
      %p243 = scmp.eq.s32.totalorder %s23, 0
      %p244 = por %p242, %p243
      %p245 = scmp.le.s32.totalorder 1, %s17
      %p246 = scmp.lt.s32.totalorder %s17, 3
      %p247 = pnand %p245, %p246
      %p248 = pneg %p247
      // Predicated region
      $region9: #{decoder_forward.19} parent=5 // pred_check
        _
      $region10: #{decoder_forward.19} parent=5 // pred_check_branch
        %250 = sbr.rel (%p247) target = $region12
      $region11: #{decoder_forward.19} parent=5 // pred_region
        %s251 = ssub.s32 %s17, 1
        // Predicated region
        $region13: #{decoder_forward.19} parent=11 // pred_check
          %p252 = pneg %p64
        $region14: #{decoder_forward.19} parent=11 // pred_check_branch
          %254 = sbr.rel (%p252) target = $region16
        $region15: #{decoder_forward.19} parent=11 // pred_region
          _
        $region16: #{decoder_forward.19} parent=11 // pred_fallthru
          _
        // Predicated region
        $region17: #{decoder_forward.19} parent=11 // pred_check
          %p255 = pneg %p85
        $region18: #{decoder_forward.19} parent=11 // pred_check_branch
          %257 = sbr.rel (%p255) target = $region20
        $region19: #{decoder_forward.19} parent=11 // pred_region
          _
        $region20: #{decoder_forward.19} parent=11 // pred_fallthru
          _
        // Predicated region
        $region21: #{decoder_forward.19} parent=11 // pred_check
          %p258 = pneg %p106
        $region22: #{decoder_forward.19} parent=11 // pred_check_branch
          %260 = sbr.rel (%p258) target = $region24
        $region23: #{decoder_forward.19} parent=11 // pred_region
          %262 = vsyncadd [#allocation3], 0
          %s263 = sshll.u32 %s3, 4
          %s264 = int_to_ptr.hbm [resolvable:$true] %s263
          %s265 = sshll.u32 [#allocation2], 4
          %s266 = int_to_ptr.vmem [resolvable:$true] %s265
          %271 = dma.hbm_to_vmem [thread:$0]  %s264, 8192, %s266, [#allocation3], 256, 256, 16
        $region24: #{decoder_forward.19} parent=11 // pred_fallthru
          _
        // Predicated region
        $region25: #{decoder_forward.19} parent=11 // pred_check
          %p272 = pneg %p127
        $region26: #{decoder_forward.19} parent=11 // pred_check_branch
          %274 = sbr.rel (%p272) target = $region28
        $region27: #{decoder_forward.19} parent=11 // pred_region
          _
        $region28: #{decoder_forward.19} parent=11 // pred_fallthru
          _
        // Predicated region
        $region29: #{decoder_forward.19} parent=11 // pred_check
          %p275 = pneg %p148
        $region30: #{decoder_forward.19} parent=11 // pred_check_branch
          %277 = sbr.rel (%p275) target = $region32
        $region31: #{decoder_forward.19} parent=11 // pred_region
          %279 = vsyncadd [#allocation5], 0
          %s280 = sshll.u32 %s5, 4
          %s281 = int_to_ptr.hbm [resolvable:$true] %s280
          %s282 = sshll.u32 [#allocation4], 4
          %s283 = int_to_ptr.vmem [resolvable:$true] %s282
          %288 = dma.hbm_to_vmem [thread:$0]  %s281, 8192, %s283, [#allocation5], 128, 128, 8
        $region32: #{decoder_forward.19} parent=11 // pred_fallthru
          _
        // Predicated region
        $region33: #{decoder_forward.19} parent=11 // pred_check
          %p289 = pneg %p169
        $region34: #{decoder_forward.19} parent=11 // pred_check_branch
          %291 = sbr.rel (%p289) target = $region36
        $region35: #{decoder_forward.19} parent=11 // pred_region
          _
        $region36: #{decoder_forward.19} parent=11 // pred_fallthru
          _
        // Predicated region
        $region37: #{decoder_forward.19} parent=11 // pred_check
          %p292 = pneg %p190
        $region38: #{decoder_forward.19} parent=11 // pred_check_branch
          %294 = sbr.rel (%p292) target = $region40
        $region39: #{decoder_forward.19} parent=11 // pred_region
          _
        $region40: #{decoder_forward.19} parent=11 // pred_fallthru
          _
        // Predicated region
        $region41: #{decoder_forward.19} parent=11 // pred_check
          %p295 = pneg %p211
        $region42: #{decoder_forward.19} parent=11 // pred_check_branch
          %297 = sbr.rel (%p295) target = $region44
        $region43: #{decoder_forward.19} parent=11 // pred_region
          _
        $region44: #{decoder_forward.19} parent=11 // pred_fallthru
          _
      $region12: #{decoder_forward.19} parent=5 // pred_fallthru
        _
      %p298 = scmp.lt.s32.totalorder %s17, 2
      // Predicated region
      $region45: #{decoder_forward.19} parent=5 // pred_check
        %p299 = pneg %p298
      $region46: #{decoder_forward.19} parent=5 // pred_check_branch
        %301 = sbr.rel (%p299) target = $region48
      $region47: #{decoder_forward.19} parent=5 // pred_region
        // Predicated region
        $region49: #{decoder_forward.19} parent=47 // pred_check
          %p302 = pneg %p37
        $region50: #{decoder_forward.19} parent=47 // pred_check_branch
          %304 = sbr.rel (%p302) target = $region52
        $region51: #{decoder_forward.19} parent=47 // pred_region
          %s305 = smul.u32 2, %s17
          %p306 = scmp.lt.s32.totalorder %s305, 3
          %s307 = scalar_select %p306, %s305, 3
          %s308 = smul.addr %s307, 2
          %s309 = smul.addr %s308, 8
          %s310 = scalar_lea.vmem %s0, %s309
          %s311 = smul.u32 2, %s17
        $region52: #{decoder_forward.19} parent=47 // pred_fallthru
          _
      $region48: #{decoder_forward.19} parent=5 // pred_fallthru
        _
      %p312 = scmp.le.s32.totalorder 1, %s17
      %p313 = scmp.lt.s32.totalorder %s17, 3
      %p314 = pnand %p312, %p313
      %p315 = pneg %p314
      // Predicated region
      $region53: #{decoder_forward.19} parent=5 // pred_check
        _
      $region54: #{decoder_forward.19} parent=5 // pred_check_branch
        %317 = sbr.rel (%p314) target = $region56
      $region55: #{decoder_forward.19} parent=5 // pred_region
        %s318 = ssub.s32 %s17, 1
        // Predicated region
        $region57: #{decoder_forward.19} parent=55 // pred_check
          %p319 = pneg %p106
        $region58: #{decoder_forward.19} parent=55 // pred_check_branch
          %321 = sbr.rel (%p319) target = $region60
        $region59: #{decoder_forward.19} parent=55 // pred_region
          %323 = dma.done [#allocation3], 8192
        $region60: #{decoder_forward.19} parent=55 // pred_fallthru
          _
        // Predicated region
        $region61: #{decoder_forward.19} parent=55 // pred_check
          %p324 = pneg %p148
        $region62: #{decoder_forward.19} parent=55 // pred_check_branch
          %326 = sbr.rel (%p324) target = $region64
        $region63: #{decoder_forward.19} parent=55 // pred_region
          %328 = dma.done [#allocation5], 8192
        $region64: #{decoder_forward.19} parent=55 // pred_fallthru
          _
        %s329 = smul.u32 2, %s22
        %p330 = scmp.lt.s32.totalorder %s329, 3
        %s331 = scalar_select %p330, %s329, 3
        %s332 = smul.addr %s331, 2
        %s333 = smul.addr %s332, 8
        %s334 = scalar_lea.vmem %s0, %s333
        %p335 = pneg %p43
        %p336 = pneg %p40
        %p337 = pneg %p64
        %p338 = pneg %p61
        %p339 = pneg %p85
        %p340 = pneg %p82
        %p341 = pneg %p106
        %p342 = pneg %p103
        %p343 = pneg %p127
        %p344 = pneg %p124
        %p345 = pneg %p148
        %p346 = pneg %p145
        %p347 = pneg %p169
        %p348 = pneg %p166
        %p349 = pneg %p190
        %p350 = pneg %p187
        %p351 = pneg %p211
        %p352 = pneg %p208
        %p353 = pneg %p237
        %p354 = pneg %p234
        %s355 = smul.u32 2, %s22
        %p356 = scmp.lt.s32.totalorder %s355, 3
        %s357 = scalar_select %p356, %s355, 3
        %s358 = smul.addr %s357, 2
        %s359 = smul.addr %s358, 8
        %s360 = scalar_lea.vmem %s9, %s359
        %s361 = smul.u32 2, %s22
        %p362 = scmp.lt.s32.totalorder %s361, 3
        %s363 = scalar_select %p362, %s361, 3
        %s364 = smul.addr %s363, 2
        %s365 = smul.addr %s364, 8
        %s366 = scalar_lea.vmem %s0, %s365
        %s367 = smul.u32 2, %s22
        %s368 = smul.u32 2, %s22
        %p369 = scmp.lt.s32.totalorder %s368, 3
        %s370 = scalar_select %p369, %s368, 3
        %s371 = smul.addr %s370, 2
        %s372 = smul.addr %s371, 8
        %s373 = scalar_lea.vmem %s9, %s372
        %s374 = smul.u32 2, %s22
        %v375 = vld [vmem:[%s366] sm:$0xff]
        %v376 = vld [vmem:[%s366 + $0x8] sm:$0xff]
        %v377 = vld [vmem:[%s366 + $0x10] sm:$0xff]
        %v378 = vld [vmem:[%s366 + $0x18] sm:$0xff]
        %v379 = vld [vmem:[%s1] sm:$0x3]
        %v380 = vld [vmem:[%s2] sm:$0x3]
        %v381 = vadd.f32 %v375, %v376
        %382 = vadd.xlane.f32.xlu0 %v381
        %v383 = vpop.xlane.xlu0 %382
        %v384 = vadd.f32 %v377, %v378
        %385 = vadd.xlane.f32.xlu0 %v384
        %v386 = vpop.xlane.xlu0 %385
        %v387 = vrcp.pop 256.0
        %v388 = vmul.f32 256.0, %v387
        %v389 = vsub.f32 1.0, %v388
        %v390 = vmul.f32 %v387, %v389
        %v391 = vadd.f32 %v387, %v390
        %vm392 = vweird.f32 %v387
        %v393 = vsel %vm392, %v387, %v391
        %v394 = vmul.f32 %v383, %v393
        %v395 = vmul.f32 %v386, %v393
        %v396 = vsub.f32 %v375, %v394
        %v397 = vsub.f32 %v376, %v394
        %v398 = vsub.f32 %v377, %v395
        %v399 = vsub.f32 %v378, %v395
        %v400 = vmul.f32 %v396, %v396
        %v401 = vmul.f32 %v397, %v397
        %v402 = vmul.f32 %v398, %v398
        %v403 = vmul.f32 %v399, %v399
        %v404 = vadd.f32 %v400, %v401
        %405 = vadd.xlane.f32.xlu0 %v404
        %v406 = vpop.xlane.xlu0 %405
        %v407 = vadd.f32 %v402, %v403
        %408 = vadd.xlane.f32.xlu0 %v407
        %v409 = vpop.xlane.xlu0 %408
        %v410 = vmul.f32 %v406, 0.003921569
        %v411 = vmul.f32 %v409, 0.003921569
        %v412 = vrsqrt.pop %v410
        %v413 = vmul.f32 %v412, %v410
        %v414 = vmul.f32 %v413, %v412
        %v415 = vmul.f32 0.5, %v414
        %v416 = vsub.f32 1.5, %v415
        %v417 = vmul.f32 %v412, %v416
        %v418 = vmul.f32 %v410, %v417
        %vm419 = vcmp.eq.f32.partialorder %v410, inf
        %v420 = vsel %vm419, %v410, %v418
        %vm421 = vcmp.eq.f32.partialorder %v410, 0.0
        %v422 = vand.u32 %v410, 2147483648
        %v423 = vsel %vm421, %v422, %v420
        %v424 = vrsqrt.pop %v411
        %v425 = vmul.f32 %v424, %v411
        %v426 = vmul.f32 %v425, %v424
        %v427 = vmul.f32 0.5, %v426
        %v428 = vsub.f32 1.5, %v427
        %v429 = vmul.f32 %v424, %v428
        %v430 = vmul.f32 %v411, %v429
        %vm431 = vcmp.eq.f32.partialorder %v411, inf
        %v432 = vsel %vm431, %v411, %v430
        %vm433 = vcmp.eq.f32.partialorder %v411, 0.0
        %v434 = vand.u32 %v411, 2147483648
        %v435 = vsel %vm433, %v434, %v432
        %v436 = vadd.f32 %v423, 1e-06
        %v437 = vadd.f32 %v435, 1e-06
        %v438 = vrcp.pop %v436
        %v439 = vmul.f32 %v436, %v438
        %v440 = vsub.f32 1.0, %v439
        %v441 = vmul.f32 %v438, %v440
        %v442 = vadd.f32 %v438, %v441
        %vm443 = vweird.f32 %v436
        %vm444 = vweird.f32 %v438
        %vm445 = vmor %vm443, %vm444
        %v446 = vsel %vm445, %v438, %v442
        %v447 = vand.u32 2147483647, %v436
        %vm448 = vcmp.eq.f32.partialorder %v447, 8.507059e+37
        %v449 = vand.u32 %v436, 2147483648
        %v450 = vor.u32 1.1754944e-38, %v449
        %v451 = vsel %vm448, %v450, %v446
        %v452 = vmul.f32 1.0, %v451
        %v453 = vrcp.pop %v437
        %v454 = vmul.f32 %v437, %v453
        %v455 = vsub.f32 1.0, %v454
        %v456 = vmul.f32 %v453, %v455
        %v457 = vadd.f32 %v453, %v456
        %vm458 = vweird.f32 %v437
        %vm459 = vweird.f32 %v453
        %vm460 = vmor %vm458, %vm459
        %v461 = vsel %vm460, %v453, %v457
        %v462 = vand.u32 2147483647, %v437
        %vm463 = vcmp.eq.f32.partialorder %v462, 8.507059e+37
        %v464 = vand.u32 %v437, 2147483648
        %v465 = vor.u32 1.1754944e-38, %v464
        %v466 = vsel %vm463, %v465, %v461
        %v467 = vmul.f32 1.0, %v466
        %v468 = vmul.f32 %v396, %v452
        %v469 = vmul.f32 %v397, %v452
        %v470 = vmul.f32 %v398, %v467
        %v471 = vmul.f32 %v399, %v467
        %v473 = vperm.slane %v379, 0
        %v474 = vperm.slane %v379, 1
        %v477 = vmul.f32 %v473, %v468
        %v478 = vmul.f32 %v474, %v469
        %v479 = vmul.f32 %v473, %v470
        %v480 = vmul.f32 %v474, %v471
        %v482 = vperm.slane %v380, 0
        %v483 = vperm.slane %v380, 1
        %v486 = vadd.f32 %v477, %v482
        %v487 = vadd.f32 %v478, %v483
        %v488 = vadd.f32 %v479, %v482
        %v489 = vadd.f32 %v480, %v483
        %v490 = vpack.c.bf16 %v488, %v486
        %v491 = vpack.c.bf16 %v489, %v487
        %v492 = vld [vmem:[#allocation2] sm:$0xff]
        %v493 = vld [vmem:[#allocation2 + $0x8] sm:$0xff]
        %v494 = vld [vmem:[#allocation2 + $0x10] sm:$0xff]
        %v495 = vld [vmem:[#allocation2 + $0x18] sm:$0xff]
        %v496 = vld [vmem:[#allocation2 + $0x20] sm:$0xff]
        %v497 = vld [vmem:[#allocation2 + $0x28] sm:$0xff]
        %v498 = vld [vmem:[#allocation2 + $0x30] sm:$0xff]
        %v499 = vld [vmem:[#allocation2 + $0x38] sm:$0xff]
        %v500 = vld [vmem:[#allocation2 + $0x40] sm:$0xff]
        %v501 = vld [vmem:[#allocation2 + $0x48] sm:$0xff]
        %v502 = vld [vmem:[#allocation2 + $0x50] sm:$0xff]
        %v503 = vld [vmem:[#allocation2 + $0x58] sm:$0xff]
        %v504 = vld [vmem:[#allocation2 + $0x60] sm:$0xff]
        %v505 = vld [vmem:[#allocation2 + $0x68] sm:$0xff]
        %v506 = vld [vmem:[#allocation2 + $0x70] sm:$0xff]
        %v507 = vld [vmem:[#allocation2 + $0x78] sm:$0xff]
        %v508 = vld [vmem:[#allocation2 + $0x80] sm:$0xff]
        %v509 = vld [vmem:[#allocation2 + $0x88] sm:$0xff]
        %v510 = vld [vmem:[#allocation2 + $0x90] sm:$0xff]
        %v511 = vld [vmem:[#allocation2 + $0x98] sm:$0xff]
        %v512 = vld [vmem:[#allocation2 + $0xa0] sm:$0xff]
        %v513 = vld [vmem:[#allocation2 + $0xa8] sm:$0xff]
        %v514 = vld [vmem:[#allocation2 + $0xb0] sm:$0xff]
        %v515 = vld [vmem:[#allocation2 + $0xb8] sm:$0xff]
        %v516 = vld [vmem:[#allocation2 + $0xc0] sm:$0xff]
        %v517 = vld [vmem:[#allocation2 + $0xc8] sm:$0xff]
        %v518 = vld [vmem:[#allocation2 + $0xd0] sm:$0xff]
        %v519 = vld [vmem:[#allocation2 + $0xd8] sm:$0xff]
        %v520 = vld [vmem:[#allocation2 + $0xe0] sm:$0xff]
        %v521 = vld [vmem:[#allocation2 + $0xe8] sm:$0xff]
        %v522 = vld [vmem:[#allocation2 + $0xf0] sm:$0xff]
        %v523 = vld [vmem:[#allocation2 + $0xf8] sm:$0xff]
        %v524 = vld [vmem:[#allocation2 + $0x100] sm:$0xff]
        %v525 = vld [vmem:[#allocation2 + $0x108] sm:$0xff]
        %v526 = vld [vmem:[#allocation2 + $0x110] sm:$0xff]
        %v527 = vld [vmem:[#allocation2 + $0x118] sm:$0xff]
        %v528 = vld [vmem:[#allocation2 + $0x120] sm:$0xff]
        %v529 = vld [vmem:[#allocation2 + $0x128] sm:$0xff]
        %v530 = vld [vmem:[#allocation2 + $0x130] sm:$0xff]
        %v531 = vld [vmem:[#allocation2 + $0x138] sm:$0xff]
        %v532 = vld [vmem:[#allocation2 + $0x140] sm:$0xff]
        %v533 = vld [vmem:[#allocation2 + $0x148] sm:$0xff]
        %v534 = vld [vmem:[#allocation2 + $0x150] sm:$0xff]
        %v535 = vld [vmem:[#allocation2 + $0x158] sm:$0xff]
        %v536 = vld [vmem:[#allocation2 + $0x160] sm:$0xff]
        %v537 = vld [vmem:[#allocation2 + $0x168] sm:$0xff]
        %v538 = vld [vmem:[#allocation2 + $0x170] sm:$0xff]
        %v539 = vld [vmem:[#allocation2 + $0x178] sm:$0xff]
        %v540 = vld [vmem:[#allocation2 + $0x180] sm:$0xff]
        %v541 = vld [vmem:[#allocation2 + $0x188] sm:$0xff]
        %v542 = vld [vmem:[#allocation2 + $0x190] sm:$0xff]
        %v543 = vld [vmem:[#allocation2 + $0x198] sm:$0xff]
        %v544 = vld [vmem:[#allocation2 + $0x1a0] sm:$0xff]
        %v545 = vld [vmem:[#allocation2 + $0x1a8] sm:$0xff]
        %v546 = vld [vmem:[#allocation2 + $0x1b0] sm:$0xff]
        %v547 = vld [vmem:[#allocation2 + $0x1b8] sm:$0xff]
        %v548 = vld [vmem:[#allocation2 + $0x1c0] sm:$0xff]
        %v549 = vld [vmem:[#allocation2 + $0x1c8] sm:$0xff]
        %v550 = vld [vmem:[#allocation2 + $0x1d0] sm:$0xff]
        %v551 = vld [vmem:[#allocation2 + $0x1d8] sm:$0xff]
        %v552 = vld [vmem:[#allocation2 + $0x1e0] sm:$0xff]
        %v553 = vld [vmem:[#allocation2 + $0x1e8] sm:$0xff]
        %v554 = vld [vmem:[#allocation2 + $0x1f0] sm:$0xff]
        %v555 = vld [vmem:[#allocation2 + $0x1f8] sm:$0xff]
        %v556 = vld [vmem:[%s4] sm:$0xf]
        %v558 = vperm.slane %v556, 0
        %v559 = vperm.slane %v556, 1
        %v560 = vperm.slane %v556, 2
        %v561 = vperm.slane %v556, 3
        %v630 = vunpack.c.l.b16 %v492
        %v631 = vunpack.c.h.b16 %v492
        %v632 = vunpack.c.l.b16 %v493
        %v633 = vunpack.c.h.b16 %v493
        %v634 = vunpack.c.l.b16 %v494
        %v635 = vunpack.c.h.b16 %v494
        %v636 = vunpack.c.l.b16 %v495
        %v637 = vunpack.c.h.b16 %v495
        %v638 = vunpack.c.l.b16 %v496
        %v639 = vunpack.c.h.b16 %v496
        %v640 = vunpack.c.l.b16 %v497
        %v641 = vunpack.c.h.b16 %v497
        %v642 = vunpack.c.l.b16 %v498
        %v643 = vunpack.c.h.b16 %v498
        %v644 = vunpack.c.l.b16 %v499
        %v645 = vunpack.c.h.b16 %v499
        %v646 = vunpack.c.l.b16 %v500
        %v647 = vunpack.c.h.b16 %v500
        %v648 = vunpack.c.l.b16 %v501
        %v649 = vunpack.c.h.b16 %v501
        %v650 = vunpack.c.l.b16 %v502
        %v651 = vunpack.c.h.b16 %v502
        %v652 = vunpack.c.l.b16 %v503
        %v653 = vunpack.c.h.b16 %v503
        %v654 = vunpack.c.l.b16 %v504
        %v655 = vunpack.c.h.b16 %v504
        %v656 = vunpack.c.l.b16 %v505
        %v657 = vunpack.c.h.b16 %v505
        %v658 = vunpack.c.l.b16 %v506
        %v659 = vunpack.c.h.b16 %v506
        %v660 = vunpack.c.l.b16 %v507
        %v661 = vunpack.c.h.b16 %v507
        %v662 = vunpack.c.l.b16 %v508
        %v663 = vunpack.c.h.b16 %v508
        %v664 = vunpack.c.l.b16 %v509
        %v665 = vunpack.c.h.b16 %v509
        %v666 = vunpack.c.l.b16 %v510
        %v667 = vunpack.c.h.b16 %v510
        %v668 = vunpack.c.l.b16 %v511
        %v669 = vunpack.c.h.b16 %v511
        %v670 = vunpack.c.l.b16 %v512
        %v671 = vunpack.c.h.b16 %v512
        %v672 = vunpack.c.l.b16 %v513
        %v673 = vunpack.c.h.b16 %v513
        %v674 = vunpack.c.l.b16 %v514
        %v675 = vunpack.c.h.b16 %v514
        %v676 = vunpack.c.l.b16 %v515
        %v677 = vunpack.c.h.b16 %v515
        %v678 = vunpack.c.l.b16 %v516
        %v679 = vunpack.c.h.b16 %v516
        %v680 = vunpack.c.l.b16 %v517
        %v681 = vunpack.c.h.b16 %v517
        %v682 = vunpack.c.l.b16 %v518
        %v683 = vunpack.c.h.b16 %v518
        %v684 = vunpack.c.l.b16 %v519
        %v685 = vunpack.c.h.b16 %v519
        %v686 = vunpack.c.l.b16 %v520
        %v687 = vunpack.c.h.b16 %v520
        %v688 = vunpack.c.l.b16 %v521
        %v689 = vunpack.c.h.b16 %v521
        %v690 = vunpack.c.l.b16 %v522
        %v691 = vunpack.c.h.b16 %v522
        %v692 = vunpack.c.l.b16 %v523
        %v693 = vunpack.c.h.b16 %v523
        %v694 = vunpack.c.l.b16 %v524
        %v695 = vunpack.c.h.b16 %v524
        %v696 = vunpack.c.l.b16 %v525
        %v697 = vunpack.c.h.b16 %v525
        %v698 = vunpack.c.l.b16 %v526
        %v699 = vunpack.c.h.b16 %v526
        %v700 = vunpack.c.l.b16 %v527
        %v701 = vunpack.c.h.b16 %v527
        %v702 = vunpack.c.l.b16 %v528
        %v703 = vunpack.c.h.b16 %v528
        %v704 = vunpack.c.l.b16 %v529
        %v705 = vunpack.c.h.b16 %v529
        %v706 = vunpack.c.l.b16 %v530
        %v707 = vunpack.c.h.b16 %v530
        %v708 = vunpack.c.l.b16 %v531
        %v709 = vunpack.c.h.b16 %v531
        %v710 = vunpack.c.l.b16 %v532
        %v711 = vunpack.c.h.b16 %v532
        %v712 = vunpack.c.l.b16 %v533
        %v713 = vunpack.c.h.b16 %v533
        %v714 = vunpack.c.l.b16 %v534
        %v715 = vunpack.c.h.b16 %v534
        %v716 = vunpack.c.l.b16 %v535
        %v717 = vunpack.c.h.b16 %v535
        %v718 = vunpack.c.l.b16 %v536
        %v719 = vunpack.c.h.b16 %v536
        %v720 = vunpack.c.l.b16 %v537
        %v721 = vunpack.c.h.b16 %v537
        %v722 = vunpack.c.l.b16 %v538
        %v723 = vunpack.c.h.b16 %v538
        %v724 = vunpack.c.l.b16 %v539
        %v725 = vunpack.c.h.b16 %v539
        %v726 = vunpack.c.l.b16 %v540
        %v727 = vunpack.c.h.b16 %v540
        %v728 = vunpack.c.l.b16 %v541
        %v729 = vunpack.c.h.b16 %v541
        %v730 = vunpack.c.l.b16 %v542
        %v731 = vunpack.c.h.b16 %v542
        %v732 = vunpack.c.l.b16 %v543
        %v733 = vunpack.c.h.b16 %v543
        %v734 = vunpack.c.l.b16 %v544
        %v735 = vunpack.c.h.b16 %v544
        %v736 = vunpack.c.l.b16 %v545
        %v737 = vunpack.c.h.b16 %v545
        %v738 = vunpack.c.l.b16 %v546
        %v739 = vunpack.c.h.b16 %v546
        %v740 = vunpack.c.l.b16 %v547
        %v741 = vunpack.c.h.b16 %v547
        %v742 = vunpack.c.l.b16 %v548
        %v743 = vunpack.c.h.b16 %v548
        %v744 = vunpack.c.l.b16 %v549
        %v745 = vunpack.c.h.b16 %v549
        %v746 = vunpack.c.l.b16 %v550
        %v747 = vunpack.c.h.b16 %v550
        %v748 = vunpack.c.l.b16 %v551
        %v749 = vunpack.c.h.b16 %v551
        %v750 = vunpack.c.l.b16 %v552
        %v751 = vunpack.c.h.b16 %v552
        %v752 = vunpack.c.l.b16 %v553
        %v753 = vunpack.c.h.b16 %v553
        %v754 = vunpack.c.l.b16 %v554
        %v755 = vunpack.c.h.b16 %v554
        %v756 = vunpack.c.l.b16 %v555
        %v757 = vunpack.c.h.b16 %v555
        %v758 = vpack.c.b16 %v634, %v630
        %v759 = vpack.c.b16 %v635, %v631
        %v760 = vpack.c.b16 %v636, %v632
        %v761 = vpack.c.b16 %v637, %v633
        %v762 = vpack.c.b16 %v642, %v638
        %v763 = vpack.c.b16 %v643, %v639
        %v764 = vpack.c.b16 %v644, %v640
        %v765 = vpack.c.b16 %v645, %v641
        %v766 = vpack.c.b16 %v650, %v646
        %v767 = vpack.c.b16 %v651, %v647
        %v768 = vpack.c.b16 %v652, %v648
        %v769 = vpack.c.b16 %v653, %v649
        %v770 = vpack.c.b16 %v658, %v654
        %v771 = vpack.c.b16 %v659, %v655
        %v772 = vpack.c.b16 %v660, %v656
        %v773 = vpack.c.b16 %v661, %v657
        %v774 = vpack.c.b16 %v666, %v662
        %v775 = vpack.c.b16 %v667, %v663
        %v776 = vpack.c.b16 %v668, %v664
        %v777 = vpack.c.b16 %v669, %v665
        %v778 = vpack.c.b16 %v674, %v670
        %v779 = vpack.c.b16 %v675, %v671
        %v780 = vpack.c.b16 %v676, %v672
        %v781 = vpack.c.b16 %v677, %v673
        %v782 = vpack.c.b16 %v682, %v678
        %v783 = vpack.c.b16 %v683, %v679
        %v784 = vpack.c.b16 %v684, %v680
        %v785 = vpack.c.b16 %v685, %v681
        %v786 = vpack.c.b16 %v690, %v686
        %v787 = vpack.c.b16 %v691, %v687
        %v788 = vpack.c.b16 %v692, %v688
        %v789 = vpack.c.b16 %v693, %v689
        %v790 = vpack.c.b16 %v698, %v694
        %v791 = vpack.c.b16 %v699, %v695
        %v792 = vpack.c.b16 %v700, %v696
        %v793 = vpack.c.b16 %v701, %v697
        %v794 = vpack.c.b16 %v706, %v702
        %v795 = vpack.c.b16 %v707, %v703
        %v796 = vpack.c.b16 %v708, %v704
        %v797 = vpack.c.b16 %v709, %v705
        %v798 = vpack.c.b16 %v714, %v710
        %v799 = vpack.c.b16 %v715, %v711
        %v800 = vpack.c.b16 %v716, %v712
        %v801 = vpack.c.b16 %v717, %v713
        %v802 = vpack.c.b16 %v722, %v718
        %v803 = vpack.c.b16 %v723, %v719
        %v804 = vpack.c.b16 %v724, %v720
        %v805 = vpack.c.b16 %v725, %v721
        %v806 = vpack.c.b16 %v730, %v726
        %v807 = vpack.c.b16 %v731, %v727
        %v808 = vpack.c.b16 %v732, %v728
        %v809 = vpack.c.b16 %v733, %v729
        %v810 = vpack.c.b16 %v738, %v734
        %v811 = vpack.c.b16 %v739, %v735
        %v812 = vpack.c.b16 %v740, %v736
        %v813 = vpack.c.b16 %v741, %v737
        %v814 = vpack.c.b16 %v746, %v742
        %v815 = vpack.c.b16 %v747, %v743
        %v816 = vpack.c.b16 %v748, %v744
        %v817 = vpack.c.b16 %v749, %v745
        %v818 = vpack.c.b16 %v754, %v750
        %v819 = vpack.c.b16 %v755, %v751
        %v820 = vpack.c.b16 %v756, %v752
        %v821 = vpack.c.b16 %v757, %v753
        %886 = vmatpush.bf16.msra.mxu0 %v786
        %887 = vmatpush.bf16.msra.mxu0 %v782
        %888 = vmatpush.bf16.msra.mxu0 %v778
        %889 = vmatpush.bf16.msra.mxu0 %v774
        %890 = vmatpush.bf16.msra.mxu0 %v770
        %891 = vmatpush.bf16.msra.mxu0 %v766
        %892 = vmatpush.bf16.msra.mxu0 %v762
        %893 = vmatpush.bf16.msra.mxu0 %v758
        %894 = vmatmul.bf16.gmra.mxu0 %v490
        %v895 = vpop.f32.mrf.mxu0
        %v896 = vadd.f32 %v558, %v895
        %v897 = vpop.f32.mrf.mxu0
        %v898 = vadd.f32 %v558, %v897
        %899 = vdwg.mxu0
        %900 = vmatpush.bf16.msra.mxu0 %v818
        %901 = vmatpush.bf16.msra.mxu0 %v814
        %902 = vmatpush.bf16.msra.mxu0 %v810
        %903 = vmatpush.bf16.msra.mxu0 %v806
        %904 = vmatpush.bf16.msra.mxu0 %v802
        %905 = vmatpush.bf16.msra.mxu0 %v798
        %906 = vmatpush.bf16.msra.mxu0 %v794
        %907 = vmatpush.bf16.msra.mxu0 %v790
        %908 = vmatmul.bf16.gmra.mxu0 %v491
        %v909 = vpop.f32.mrf.mxu0
        %v910 = vadd.f32 %v896, %v909
        %v911 = vpop.f32.mrf.mxu0
        %v912 = vadd.f32 %v898, %v911
        %913 = vdwg.mxu0
        %914 = vmatpush.bf16.msra.mxu0 %v787
        %915 = vmatpush.bf16.msra.mxu0 %v783
        %916 = vmatpush.bf16.msra.mxu0 %v779
        %917 = vmatpush.bf16.msra.mxu0 %v775
        %918 = vmatpush.bf16.msra.mxu0 %v771
        %919 = vmatpush.bf16.msra.mxu0 %v767
        %920 = vmatpush.bf16.msra.mxu0 %v763
        %921 = vmatpush.bf16.msra.mxu0 %v759
        %922 = vmatmul.bf16.gmra.mxu0 %v490
        %v923 = vpop.f32.mrf.mxu0
        %v924 = vadd.f32 %v559, %v923
        %v925 = vpop.f32.mrf.mxu0
        %v926 = vadd.f32 %v559, %v925
        %927 = vdwg.mxu0
        %928 = vmatpush.bf16.msra.mxu0 %v819
        %929 = vmatpush.bf16.msra.mxu0 %v815
        %930 = vmatpush.bf16.msra.mxu0 %v811
        %931 = vmatpush.bf16.msra.mxu0 %v807
        %932 = vmatpush.bf16.msra.mxu0 %v803
        %933 = vmatpush.bf16.msra.mxu0 %v799
        %934 = vmatpush.bf16.msra.mxu0 %v795
        %935 = vmatpush.bf16.msra.mxu0 %v791
        %936 = vmatmul.bf16.gmra.mxu0 %v491
        %v937 = vpop.f32.mrf.mxu0
        %v938 = vadd.f32 %v924, %v937
        %v939 = vpop.f32.mrf.mxu0
        %v940 = vadd.f32 %v926, %v939
        %941 = vdwg.mxu0
        %942 = vmatpush.bf16.msra.mxu0 %v788
        %943 = vmatpush.bf16.msra.mxu0 %v784
        %944 = vmatpush.bf16.msra.mxu0 %v780
        %945 = vmatpush.bf16.msra.mxu0 %v776
        %946 = vmatpush.bf16.msra.mxu0 %v772
        %947 = vmatpush.bf16.msra.mxu0 %v768
        %948 = vmatpush.bf16.msra.mxu0 %v764
        %949 = vmatpush.bf16.msra.mxu0 %v760
        %950 = vmatmul.bf16.gmra.mxu0 %v490
        %v951 = vpop.f32.mrf.mxu0
        %v952 = vadd.f32 %v560, %v951
        %v953 = vpop.f32.mrf.mxu0
        %v954 = vadd.f32 %v560, %v953
        %955 = vdwg.mxu0
        %956 = vmatpush.bf16.msra.mxu0 %v820
        %957 = vmatpush.bf16.msra.mxu0 %v816
        %958 = vmatpush.bf16.msra.mxu0 %v812
        %959 = vmatpush.bf16.msra.mxu0 %v808
        %960 = vmatpush.bf16.msra.mxu0 %v804
        %961 = vmatpush.bf16.msra.mxu0 %v800
        %962 = vmatpush.bf16.msra.mxu0 %v796
        %963 = vmatpush.bf16.msra.mxu0 %v792
        %964 = vmatmul.bf16.gmra.mxu0 %v491
        %v965 = vpop.f32.mrf.mxu0
        %v966 = vadd.f32 %v952, %v965
        %v967 = vpop.f32.mrf.mxu0
        %v968 = vadd.f32 %v954, %v967
        %969 = vdwg.mxu0
        %970 = vmatpush.bf16.msra.mxu0 %v789
        %971 = vmatpush.bf16.msra.mxu0 %v785
        %972 = vmatpush.bf16.msra.mxu0 %v781
        %973 = vmatpush.bf16.msra.mxu0 %v777
        %974 = vmatpush.bf16.msra.mxu0 %v773
        %975 = vmatpush.bf16.msra.mxu0 %v769
        %976 = vmatpush.bf16.msra.mxu0 %v765
        %977 = vmatpush.bf16.msra.mxu0 %v761
        %978 = vmatmul.bf16.gmra.mxu0 %v490
        %v979 = vpop.f32.mrf.mxu0
        %v980 = vadd.f32 %v561, %v979
        %v981 = vpop.f32.mrf.mxu0
        %v982 = vadd.f32 %v561, %v981
        %983 = vdwg.mxu0
        %984 = vmatpush.bf16.msra.mxu0 %v821
        %985 = vmatpush.bf16.msra.mxu0 %v817
        %986 = vmatpush.bf16.msra.mxu0 %v813
        %987 = vmatpush.bf16.msra.mxu0 %v809
        %988 = vmatpush.bf16.msra.mxu0 %v805
        %989 = vmatpush.bf16.msra.mxu0 %v801
        %990 = vmatpush.bf16.msra.mxu0 %v797
        %991 = vmatpush.bf16.msra.mxu0 %v793
        %992 = vmatmul.bf16.gmra.mxu0 %v491
        %v993 = vpop.f32.mrf.mxu0
        %v994 = vadd.f32 %v980, %v993
        %v995 = vpop.f32.mrf.mxu0
        %v996 = vadd.f32 %v982, %v995
        %997 = vdwg.mxu0
        %v998 = vmax.f32 %v910, 0.0
        %v999 = vmax.f32 %v938, 0.0
        %v1000 = vmax.f32 %v966, 0.0
        %v1001 = vmax.f32 %v994, 0.0
        %v1002 = vmax.f32 %v912, 0.0
        %v1003 = vmax.f32 %v940, 0.0
        %v1004 = vmax.f32 %v968, 0.0
        %v1005 = vmax.f32 %v996, 0.0
        %v1006 = vpack.c.bf16 %v1002, %v998
        %v1007 = vpack.c.bf16 %v1003, %v999
        %v1008 = vpack.c.bf16 %v1004, %v1000
        %v1009 = vpack.c.bf16 %v1005, %v1001
        %v1010 = vld [vmem:[#allocation4] sm:$0xff]
        %v1011 = vld [vmem:[#allocation4 + $0x8] sm:$0xff]
        %v1012 = vld [vmem:[#allocation4 + $0x10] sm:$0xff]
        %v1013 = vld [vmem:[#allocation4 + $0x18] sm:$0xff]
        %v1014 = vld [vmem:[#allocation4 + $0x20] sm:$0xff]
        %v1015 = vld [vmem:[#allocation4 + $0x28] sm:$0xff]
        %v1016 = vld [vmem:[#allocation4 + $0x30] sm:$0xff]
        %v1017 = vld [vmem:[#allocation4 + $0x38] sm:$0xff]
        %v1018 = vld [vmem:[#allocation4 + $0x40] sm:$0xff]
        %v1019 = vld [vmem:[#allocation4 + $0x48] sm:$0xff]
        %v1020 = vld [vmem:[#allocation4 + $0x50] sm:$0xff]
        %v1021 = vld [vmem:[#allocation4 + $0x58] sm:$0xff]
        %v1022 = vld [vmem:[#allocation4 + $0x60] sm:$0xff]
        %v1023 = vld [vmem:[#allocation4 + $0x68] sm:$0xff]
        %v1024 = vld [vmem:[#allocation4 + $0x70] sm:$0xff]
        %v1025 = vld [vmem:[#allocation4 + $0x78] sm:$0xff]
        %v1026 = vld [vmem:[#allocation4 + $0x80] sm:$0xff]
        %v1027 = vld [vmem:[#allocation4 + $0x88] sm:$0xff]
        %v1028 = vld [vmem:[#allocation4 + $0x90] sm:$0xff]
        %v1029 = vld [vmem:[#allocation4 + $0x98] sm:$0xff]
        %v1030 = vld [vmem:[#allocation4 + $0xa0] sm:$0xff]
        %v1031 = vld [vmem:[#allocation4 + $0xa8] sm:$0xff]
        %v1032 = vld [vmem:[#allocation4 + $0xb0] sm:$0xff]
        %v1033 = vld [vmem:[#allocation4 + $0xb8] sm:$0xff]
        %v1034 = vld [vmem:[#allocation4 + $0xc0] sm:$0xff]
        %v1035 = vld [vmem:[#allocation4 + $0xc8] sm:$0xff]
        %v1036 = vld [vmem:[#allocation4 + $0xd0] sm:$0xff]
        %v1037 = vld [vmem:[#allocation4 + $0xd8] sm:$0xff]
        %v1038 = vld [vmem:[#allocation4 + $0xe0] sm:$0xff]
        %v1039 = vld [vmem:[#allocation4 + $0xe8] sm:$0xff]
        %v1040 = vld [vmem:[#allocation4 + $0xf0] sm:$0xff]
        %v1041 = vld [vmem:[#allocation4 + $0xf8] sm:$0xff]
        %v1042 = vld [vmem:[#allocation4 + $0x100] sm:$0xff]
        %v1043 = vld [vmem:[#allocation4 + $0x108] sm:$0xff]
        %v1044 = vld [vmem:[#allocation4 + $0x110] sm:$0xff]
        %v1045 = vld [vmem:[#allocation4 + $0x118] sm:$0xff]
        %v1046 = vld [vmem:[#allocation4 + $0x120] sm:$0xff]
        %v1047 = vld [vmem:[#allocation4 + $0x128] sm:$0xff]
        %v1048 = vld [vmem:[#allocation4 + $0x130] sm:$0xff]
        %v1049 = vld [vmem:[#allocation4 + $0x138] sm:$0xff]
        %v1050 = vld [vmem:[#allocation4 + $0x140] sm:$0xff]
        %v1051 = vld [vmem:[#allocation4 + $0x148] sm:$0xff]
        %v1052 = vld [vmem:[#allocation4 + $0x150] sm:$0xff]
        %v1053 = vld [vmem:[#allocation4 + $0x158] sm:$0xff]
        %v1054 = vld [vmem:[#allocation4 + $0x160] sm:$0xff]
        %v1055 = vld [vmem:[#allocation4 + $0x168] sm:$0xff]
        %v1056 = vld [vmem:[#allocation4 + $0x170] sm:$0xff]
        %v1057 = vld [vmem:[#allocation4 + $0x178] sm:$0xff]
        %v1058 = vld [vmem:[#allocation4 + $0x180] sm:$0xff]
        %v1059 = vld [vmem:[#allocation4 + $0x188] sm:$0xff]
        %v1060 = vld [vmem:[#allocation4 + $0x190] sm:$0xff]
        %v1061 = vld [vmem:[#allocation4 + $0x198] sm:$0xff]
        %v1062 = vld [vmem:[#allocation4 + $0x1a0] sm:$0xff]
        %v1063 = vld [vmem:[#allocation4 + $0x1a8] sm:$0xff]
        %v1064 = vld [vmem:[#allocation4 + $0x1b0] sm:$0xff]
        %v1065 = vld [vmem:[#allocation4 + $0x1b8] sm:$0xff]
        %v1066 = vld [vmem:[#allocation4 + $0x1c0] sm:$0xff]
        %v1067 = vld [vmem:[#allocation4 + $0x1c8] sm:$0xff]
        %v1068 = vld [vmem:[#allocation4 + $0x1d0] sm:$0xff]
        %v1069 = vld [vmem:[#allocation4 + $0x1d8] sm:$0xff]
        %v1070 = vld [vmem:[#allocation4 + $0x1e0] sm:$0xff]
        %v1071 = vld [vmem:[#allocation4 + $0x1e8] sm:$0xff]
        %v1072 = vld [vmem:[#allocation4 + $0x1f0] sm:$0xff]
        %v1073 = vld [vmem:[#allocation4 + $0x1f8] sm:$0xff]
        %v1074 = vld [vmem:[%s6] sm:$0x3]
        %v1076 = vperm.slane %v1074, 0
        %v1077 = vperm.slane %v1074, 1
        %v1144 = vunpack.c.l.b16 %v1010
        %v1145 = vunpack.c.h.b16 %v1010
        %v1146 = vunpack.c.l.b16 %v1011
        %v1147 = vunpack.c.h.b16 %v1011
        %v1148 = vunpack.c.l.b16 %v1012
        %v1149 = vunpack.c.h.b16 %v1012
        %v1150 = vunpack.c.l.b16 %v1013
        %v1151 = vunpack.c.h.b16 %v1013
        %v1152 = vunpack.c.l.b16 %v1014
        %v1153 = vunpack.c.h.b16 %v1014
        %v1154 = vunpack.c.l.b16 %v1015
        %v1155 = vunpack.c.h.b16 %v1015
        %v1156 = vunpack.c.l.b16 %v1016
        %v1157 = vunpack.c.h.b16 %v1016
        %v1158 = vunpack.c.l.b16 %v1017
        %v1159 = vunpack.c.h.b16 %v1017
        %v1160 = vunpack.c.l.b16 %v1018
        %v1161 = vunpack.c.h.b16 %v1018
        %v1162 = vunpack.c.l.b16 %v1019
        %v1163 = vunpack.c.h.b16 %v1019
        %v1164 = vunpack.c.l.b16 %v1020
        %v1165 = vunpack.c.h.b16 %v1020
        %v1166 = vunpack.c.l.b16 %v1021
        %v1167 = vunpack.c.h.b16 %v1021
        %v1168 = vunpack.c.l.b16 %v1022
        %v1169 = vunpack.c.h.b16 %v1022
        %v1170 = vunpack.c.l.b16 %v1023
        %v1171 = vunpack.c.h.b16 %v1023
        %v1172 = vunpack.c.l.b16 %v1024
        %v1173 = vunpack.c.h.b16 %v1024
        %v1174 = vunpack.c.l.b16 %v1025
        %v1175 = vunpack.c.h.b16 %v1025
        %v1176 = vunpack.c.l.b16 %v1026
        %v1177 = vunpack.c.h.b16 %v1026
        %v1178 = vunpack.c.l.b16 %v1027
        %v1179 = vunpack.c.h.b16 %v1027
        %v1180 = vunpack.c.l.b16 %v1028
        %v1181 = vunpack.c.h.b16 %v1028
        %v1182 = vunpack.c.l.b16 %v1029
        %v1183 = vunpack.c.h.b16 %v1029
        %v1184 = vunpack.c.l.b16 %v1030
        %v1185 = vunpack.c.h.b16 %v1030
        %v1186 = vunpack.c.l.b16 %v1031
        %v1187 = vunpack.c.h.b16 %v1031
        %v1188 = vunpack.c.l.b16 %v1032
        %v1189 = vunpack.c.h.b16 %v1032
        %v1190 = vunpack.c.l.b16 %v1033
        %v1191 = vunpack.c.h.b16 %v1033
        %v1192 = vunpack.c.l.b16 %v1034
        %v1193 = vunpack.c.h.b16 %v1034
        %v1194 = vunpack.c.l.b16 %v1035
        %v1195 = vunpack.c.h.b16 %v1035
        %v1196 = vunpack.c.l.b16 %v1036
        %v1197 = vunpack.c.h.b16 %v1036
        %v1198 = vunpack.c.l.b16 %v1037
        %v1199 = vunpack.c.h.b16 %v1037
        %v1200 = vunpack.c.l.b16 %v1038
        %v1201 = vunpack.c.h.b16 %v1038
        %v1202 = vunpack.c.l.b16 %v1039
        %v1203 = vunpack.c.h.b16 %v1039
        %v1204 = vunpack.c.l.b16 %v1040
        %v1205 = vunpack.c.h.b16 %v1040
        %v1206 = vunpack.c.l.b16 %v1041
        %v1207 = vunpack.c.h.b16 %v1041
        %v1208 = vunpack.c.l.b16 %v1042
        %v1209 = vunpack.c.h.b16 %v1042
        %v1210 = vunpack.c.l.b16 %v1043
        %v1211 = vunpack.c.h.b16 %v1043
        %v1212 = vunpack.c.l.b16 %v1044
        %v1213 = vunpack.c.h.b16 %v1044
        %v1214 = vunpack.c.l.b16 %v1045
        %v1215 = vunpack.c.h.b16 %v1045
        %v1216 = vunpack.c.l.b16 %v1046
        %v1217 = vunpack.c.h.b16 %v1046
        %v1218 = vunpack.c.l.b16 %v1047
        %v1219 = vunpack.c.h.b16 %v1047
        %v1220 = vunpack.c.l.b16 %v1048
        %v1221 = vunpack.c.h.b16 %v1048
        %v1222 = vunpack.c.l.b16 %v1049
        %v1223 = vunpack.c.h.b16 %v1049
        %v1224 = vunpack.c.l.b16 %v1050
        %v1225 = vunpack.c.h.b16 %v1050
        %v1226 = vunpack.c.l.b16 %v1051
        %v1227 = vunpack.c.h.b16 %v1051
        %v1228 = vunpack.c.l.b16 %v1052
        %v1229 = vunpack.c.h.b16 %v1052
        %v1230 = vunpack.c.l.b16 %v1053
        %v1231 = vunpack.c.h.b16 %v1053
        %v1232 = vunpack.c.l.b16 %v1054
        %v1233 = vunpack.c.h.b16 %v1054
        %v1234 = vunpack.c.l.b16 %v1055
        %v1235 = vunpack.c.h.b16 %v1055
        %v1236 = vunpack.c.l.b16 %v1056
        %v1237 = vunpack.c.h.b16 %v1056
        %v1238 = vunpack.c.l.b16 %v1057
        %v1239 = vunpack.c.h.b16 %v1057
        %v1240 = vunpack.c.l.b16 %v1058
        %v1241 = vunpack.c.h.b16 %v1058
        %v1242 = vunpack.c.l.b16 %v1059
        %v1243 = vunpack.c.h.b16 %v1059
        %v1244 = vunpack.c.l.b16 %v1060
        %v1245 = vunpack.c.h.b16 %v1060
        %v1246 = vunpack.c.l.b16 %v1061
        %v1247 = vunpack.c.h.b16 %v1061
        %v1248 = vunpack.c.l.b16 %v1062
        %v1249 = vunpack.c.h.b16 %v1062
        %v1250 = vunpack.c.l.b16 %v1063
        %v1251 = vunpack.c.h.b16 %v1063
        %v1252 = vunpack.c.l.b16 %v1064
        %v1253 = vunpack.c.h.b16 %v1064
        %v1254 = vunpack.c.l.b16 %v1065
        %v1255 = vunpack.c.h.b16 %v1065
        %v1256 = vunpack.c.l.b16 %v1066
        %v1257 = vunpack.c.h.b16 %v1066
        %v1258 = vunpack.c.l.b16 %v1067
        %v1259 = vunpack.c.h.b16 %v1067
        %v1260 = vunpack.c.l.b16 %v1068
        %v1261 = vunpack.c.h.b16 %v1068
        %v1262 = vunpack.c.l.b16 %v1069
        %v1263 = vunpack.c.h.b16 %v1069
        %v1264 = vunpack.c.l.b16 %v1070
        %v1265 = vunpack.c.h.b16 %v1070
        %v1266 = vunpack.c.l.b16 %v1071
        %v1267 = vunpack.c.h.b16 %v1071
        %v1268 = vunpack.c.l.b16 %v1072
        %v1269 = vunpack.c.h.b16 %v1072
        %v1270 = vunpack.c.l.b16 %v1073
        %v1271 = vunpack.c.h.b16 %v1073
        %v1272 = vpack.c.b16 %v1146, %v1144
        %v1273 = vpack.c.b16 %v1147, %v1145
        %v1274 = vpack.c.b16 %v1150, %v1148
        %v1275 = vpack.c.b16 %v1151, %v1149
        %v1276 = vpack.c.b16 %v1154, %v1152
        %v1277 = vpack.c.b16 %v1155, %v1153
        %v1278 = vpack.c.b16 %v1158, %v1156
        %v1279 = vpack.c.b16 %v1159, %v1157
        %v1280 = vpack.c.b16 %v1162, %v1160
        %v1281 = vpack.c.b16 %v1163, %v1161
        %v1282 = vpack.c.b16 %v1166, %v1164
        %v1283 = vpack.c.b16 %v1167, %v1165
        %v1284 = vpack.c.b16 %v1170, %v1168
        %v1285 = vpack.c.b16 %v1171, %v1169
        %v1286 = vpack.c.b16 %v1174, %v1172
        %v1287 = vpack.c.b16 %v1175, %v1173
        %v1288 = vpack.c.b16 %v1178, %v1176
        %v1289 = vpack.c.b16 %v1179, %v1177
        %v1290 = vpack.c.b16 %v1182, %v1180
        %v1291 = vpack.c.b16 %v1183, %v1181
        %v1292 = vpack.c.b16 %v1186, %v1184
        %v1293 = vpack.c.b16 %v1187, %v1185
        %v1294 = vpack.c.b16 %v1190, %v1188
        %v1295 = vpack.c.b16 %v1191, %v1189
        %v1296 = vpack.c.b16 %v1194, %v1192
        %v1297 = vpack.c.b16 %v1195, %v1193
        %v1298 = vpack.c.b16 %v1198, %v1196
        %v1299 = vpack.c.b16 %v1199, %v1197
        %v1300 = vpack.c.b16 %v1202, %v1200
        %v1301 = vpack.c.b16 %v1203, %v1201
        %v1302 = vpack.c.b16 %v1206, %v1204
        %v1303 = vpack.c.b16 %v1207, %v1205
        %v1304 = vpack.c.b16 %v1210, %v1208
        %v1305 = vpack.c.b16 %v1211, %v1209
        %v1306 = vpack.c.b16 %v1214, %v1212
        %v1307 = vpack.c.b16 %v1215, %v1213
        %v1308 = vpack.c.b16 %v1218, %v1216
        %v1309 = vpack.c.b16 %v1219, %v1217
        %v1310 = vpack.c.b16 %v1222, %v1220
        %v1311 = vpack.c.b16 %v1223, %v1221
        %v1312 = vpack.c.b16 %v1226, %v1224
        %v1313 = vpack.c.b16 %v1227, %v1225
        %v1314 = vpack.c.b16 %v1230, %v1228
        %v1315 = vpack.c.b16 %v1231, %v1229
        %v1316 = vpack.c.b16 %v1234, %v1232
        %v1317 = vpack.c.b16 %v1235, %v1233
        %v1318 = vpack.c.b16 %v1238, %v1236
        %v1319 = vpack.c.b16 %v1239, %v1237
        %v1320 = vpack.c.b16 %v1242, %v1240
        %v1321 = vpack.c.b16 %v1243, %v1241
        %v1322 = vpack.c.b16 %v1246, %v1244
        %v1323 = vpack.c.b16 %v1247, %v1245
        %v1324 = vpack.c.b16 %v1250, %v1248
        %v1325 = vpack.c.b16 %v1251, %v1249
        %v1326 = vpack.c.b16 %v1254, %v1252
        %v1327 = vpack.c.b16 %v1255, %v1253
        %v1328 = vpack.c.b16 %v1258, %v1256
        %v1329 = vpack.c.b16 %v1259, %v1257
        %v1330 = vpack.c.b16 %v1262, %v1260
        %v1331 = vpack.c.b16 %v1263, %v1261
        %v1332 = vpack.c.b16 %v1266, %v1264
        %v1333 = vpack.c.b16 %v1267, %v1265
        %v1334 = vpack.c.b16 %v1270, %v1268
        %v1335 = vpack.c.b16 %v1271, %v1269
        %1400 = vmatpush.bf16.msra.mxu0 %v1286
        %1401 = vmatpush.bf16.msra.mxu0 %v1284
        %1402 = vmatpush.bf16.msra.mxu0 %v1282
        %1403 = vmatpush.bf16.msra.mxu0 %v1280
        %1404 = vmatpush.bf16.msra.mxu0 %v1278
        %1405 = vmatpush.bf16.msra.mxu0 %v1276
        %1406 = vmatpush.bf16.msra.mxu0 %v1274
        %1407 = vmatpush.bf16.msra.mxu0 %v1272
        %1408 = vmatmul.bf16.gmra.mxu0 %v1006
        %v1409 = vpop.f32.mrf.mxu0
        %v1410 = vadd.f32 %v1076, %v1409
        %v1411 = vpop.f32.mrf.mxu0
        %v1412 = vadd.f32 %v1076, %v1411
        %1413 = vdwg.mxu0
        %1414 = vmatpush.bf16.msra.mxu0 %v1302
        %1415 = vmatpush.bf16.msra.mxu0 %v1300
        %1416 = vmatpush.bf16.msra.mxu0 %v1298
        %1417 = vmatpush.bf16.msra.mxu0 %v1296
        %1418 = vmatpush.bf16.msra.mxu0 %v1294
        %1419 = vmatpush.bf16.msra.mxu0 %v1292
        %1420 = vmatpush.bf16.msra.mxu0 %v1290
        %1421 = vmatpush.bf16.msra.mxu0 %v1288
        %1422 = vmatmul.bf16.gmra.mxu0 %v1007
        %v1423 = vpop.f32.mrf.mxu0
        %v1424 = vadd.f32 %v1410, %v1423
        %v1425 = vpop.f32.mrf.mxu0
        %v1426 = vadd.f32 %v1412, %v1425
        %1427 = vdwg.mxu0
        %1428 = vmatpush.bf16.msra.mxu0 %v1318
        %1429 = vmatpush.bf16.msra.mxu0 %v1316
        %1430 = vmatpush.bf16.msra.mxu0 %v1314
        %1431 = vmatpush.bf16.msra.mxu0 %v1312
        %1432 = vmatpush.bf16.msra.mxu0 %v1310
        %1433 = vmatpush.bf16.msra.mxu0 %v1308
        %1434 = vmatpush.bf16.msra.mxu0 %v1306
        %1435 = vmatpush.bf16.msra.mxu0 %v1304
        %1436 = vmatmul.bf16.gmra.mxu0 %v1008
        %v1437 = vpop.f32.mrf.mxu0
        %v1438 = vadd.f32 %v1424, %v1437
        %v1439 = vpop.f32.mrf.mxu0
        %v1440 = vadd.f32 %v1426, %v1439
        %1441 = vdwg.mxu0
        %1442 = vmatpush.bf16.msra.mxu0 %v1334
        %1443 = vmatpush.bf16.msra.mxu0 %v1332
        %1444 = vmatpush.bf16.msra.mxu0 %v1330
        %1445 = vmatpush.bf16.msra.mxu0 %v1328
        %1446 = vmatpush.bf16.msra.mxu0 %v1326
        %1447 = vmatpush.bf16.msra.mxu0 %v1324
        %1448 = vmatpush.bf16.msra.mxu0 %v1322
        %1449 = vmatpush.bf16.msra.mxu0 %v1320
        %1450 = vmatmul.bf16.gmra.mxu0 %v1009
        %v1451 = vpop.f32.mrf.mxu0
        %v1452 = vadd.f32 %v1438, %v1451
        %v1453 = vpop.f32.mrf.mxu0
        %v1454 = vadd.f32 %v1440, %v1453
        %1455 = vdwg.mxu0
        %1456 = vmatpush.bf16.msra.mxu0 %v1287
        %1457 = vmatpush.bf16.msra.mxu0 %v1285
        %1458 = vmatpush.bf16.msra.mxu0 %v1283
        %1459 = vmatpush.bf16.msra.mxu0 %v1281
        %1460 = vmatpush.bf16.msra.mxu0 %v1279
        %1461 = vmatpush.bf16.msra.mxu0 %v1277
        %1462 = vmatpush.bf16.msra.mxu0 %v1275
        %1463 = vmatpush.bf16.msra.mxu0 %v1273
        %1464 = vmatmul.bf16.gmra.mxu0 %v1006
        %v1465 = vpop.f32.mrf.mxu0
        %v1466 = vadd.f32 %v1077, %v1465
        %v1467 = vpop.f32.mrf.mxu0
        %v1468 = vadd.f32 %v1077, %v1467
        %1469 = vdwg.mxu0
        %1470 = vmatpush.bf16.msra.mxu0 %v1303
        %1471 = vmatpush.bf16.msra.mxu0 %v1301
        %1472 = vmatpush.bf16.msra.mxu0 %v1299
        %1473 = vmatpush.bf16.msra.mxu0 %v1297
        %1474 = vmatpush.bf16.msra.mxu0 %v1295
        %1475 = vmatpush.bf16.msra.mxu0 %v1293
        %1476 = vmatpush.bf16.msra.mxu0 %v1291
        %1477 = vmatpush.bf16.msra.mxu0 %v1289
        %1478 = vmatmul.bf16.gmra.mxu0 %v1007
        %v1479 = vpop.f32.mrf.mxu0
        %v1480 = vadd.f32 %v1466, %v1479
        %v1481 = vpop.f32.mrf.mxu0
        %v1482 = vadd.f32 %v1468, %v1481
        %1483 = vdwg.mxu0
        %1484 = vmatpush.bf16.msra.mxu0 %v1319
        %1485 = vmatpush.bf16.msra.mxu0 %v1317
        %1486 = vmatpush.bf16.msra.mxu0 %v1315
        %1487 = vmatpush.bf16.msra.mxu0 %v1313
        %1488 = vmatpush.bf16.msra.mxu0 %v1311
        %1489 = vmatpush.bf16.msra.mxu0 %v1309
        %1490 = vmatpush.bf16.msra.mxu0 %v1307
        %1491 = vmatpush.bf16.msra.mxu0 %v1305
        %1492 = vmatmul.bf16.gmra.mxu0 %v1008
        %v1493 = vpop.f32.mrf.mxu0
        %v1494 = vadd.f32 %v1480, %v1493
        %v1495 = vpop.f32.mrf.mxu0
        %v1496 = vadd.f32 %v1482, %v1495
        %1497 = vdwg.mxu0
        %1498 = vmatpush.bf16.msra.mxu0 %v1335
        %1499 = vmatpush.bf16.msra.mxu0 %v1333
        %1500 = vmatpush.bf16.msra.mxu0 %v1331
        %1501 = vmatpush.bf16.msra.mxu0 %v1329
        %1502 = vmatpush.bf16.msra.mxu0 %v1327
        %1503 = vmatpush.bf16.msra.mxu0 %v1325
        %1504 = vmatpush.bf16.msra.mxu0 %v1323
        %1505 = vmatpush.bf16.msra.mxu0 %v1321
        %1506 = vmatmul.bf16.gmra.mxu0 %v1009
        %v1507 = vpop.f32.mrf.mxu0
        %v1508 = vadd.f32 %v1494, %v1507
        %v1509 = vpop.f32.mrf.mxu0
        %v1510 = vadd.f32 %v1496, %v1509
        %1511 = vdwg.mxu0
        %v1512 = vadd.f32 %v375, %v1452
        %v1513 = vadd.f32 %v376, %v1508
        %v1514 = vadd.f32 %v377, %v1454
        %v1515 = vadd.f32 %v378, %v1510
        %v1516 = vld [vmem:[%s7] sm:$0x3]
        %v1517 = vld [vmem:[%s8] sm:$0x3]
        %v1518 = vadd.f32 %v1512, %v1513
        %1519 = vadd.xlane.f32.xlu0 %v1518
        %v1520 = vpop.xlane.xlu0 %1519
        %v1521 = vadd.f32 %v1514, %v1515
        %1522 = vadd.xlane.f32.xlu0 %v1521
        %v1523 = vpop.xlane.xlu0 %1522
        %v1524 = vmul.f32 %v1520, %v393
        %v1525 = vmul.f32 %v1523, %v393
        %v1526 = vsub.f32 %v1512, %v1524
        %v1527 = vsub.f32 %v1513, %v1524
        %v1528 = vsub.f32 %v1514, %v1525
        %v1529 = vsub.f32 %v1515, %v1525
        %v1530 = vmul.f32 %v1526, %v1526
        %v1531 = vmul.f32 %v1527, %v1527
        %v1532 = vmul.f32 %v1528, %v1528
        %v1533 = vmul.f32 %v1529, %v1529
        %v1534 = vadd.f32 %v1530, %v1531
        %1535 = vadd.xlane.f32.xlu0 %v1534
        %v1536 = vpop.xlane.xlu0 %1535
        %v1537 = vadd.f32 %v1532, %v1533
        %1538 = vadd.xlane.f32.xlu0 %v1537
        %v1539 = vpop.xlane.xlu0 %1538
        %v1540 = vmul.f32 %v1536, 0.003921569
        %v1541 = vmul.f32 %v1539, 0.003921569
        %v1542 = vrsqrt.pop %v1540
        %v1543 = vmul.f32 %v1542, %v1540
        %v1544 = vmul.f32 %v1543, %v1542
        %v1545 = vmul.f32 0.5, %v1544
        %v1546 = vsub.f32 1.5, %v1545
        %v1547 = vmul.f32 %v1542, %v1546
        %v1548 = vmul.f32 %v1540, %v1547
        %vm1549 = vcmp.eq.f32.partialorder %v1540, inf
        %v1550 = vsel %vm1549, %v1540, %v1548
        %vm1551 = vcmp.eq.f32.partialorder %v1540, 0.0
        %v1552 = vand.u32 %v1540, 2147483648
        %v1553 = vsel %vm1551, %v1552, %v1550
        %v1554 = vrsqrt.pop %v1541
        %v1555 = vmul.f32 %v1554, %v1541
        %v1556 = vmul.f32 %v1555, %v1554
        %v1557 = vmul.f32 0.5, %v1556
        %v1558 = vsub.f32 1.5, %v1557
        %v1559 = vmul.f32 %v1554, %v1558
        %v1560 = vmul.f32 %v1541, %v1559
        %vm1561 = vcmp.eq.f32.partialorder %v1541, inf
        %v1562 = vsel %vm1561, %v1541, %v1560
        %vm1563 = vcmp.eq.f32.partialorder %v1541, 0.0
        %v1564 = vand.u32 %v1541, 2147483648
        %v1565 = vsel %vm1563, %v1564, %v1562
        %v1566 = vadd.f32 %v1553, 1e-06
        %v1567 = vadd.f32 %v1565, 1e-06
        %v1568 = vrcp.pop %v1566
        %v1569 = vmul.f32 %v1566, %v1568
        %v1570 = vsub.f32 1.0, %v1569
        %v1571 = vmul.f32 %v1568, %v1570
        %v1572 = vadd.f32 %v1568, %v1571
        %vm1573 = vweird.f32 %v1566
        %vm1574 = vweird.f32 %v1568
        %vm1575 = vmor %vm1573, %vm1574
        %v1576 = vsel %vm1575, %v1568, %v1572
        %v1577 = vand.u32 2147483647, %v1566
        %vm1578 = vcmp.eq.f32.partialorder %v1577, 8.507059e+37
        %v1579 = vand.u32 %v1566, 2147483648
        %v1580 = vor.u32 1.1754944e-38, %v1579
        %v1581 = vsel %vm1578, %v1580, %v1576
        %v1582 = vmul.f32 1.0, %v1581
        %v1583 = vrcp.pop %v1567
        %v1584 = vmul.f32 %v1567, %v1583
        %v1585 = vsub.f32 1.0, %v1584
        %v1586 = vmul.f32 %v1583, %v1585
        %v1587 = vadd.f32 %v1583, %v1586
        %vm1588 = vweird.f32 %v1567
        %vm1589 = vweird.f32 %v1583
        %vm1590 = vmor %vm1588, %vm1589
        %v1591 = vsel %vm1590, %v1583, %v1587
        %v1592 = vand.u32 2147483647, %v1567
        %vm1593 = vcmp.eq.f32.partialorder %v1592, 8.507059e+37
        %v1594 = vand.u32 %v1567, 2147483648
        %v1595 = vor.u32 1.1754944e-38, %v1594
        %v1596 = vsel %vm1593, %v1595, %v1591
        %v1597 = vmul.f32 1.0, %v1596
        %v1598 = vmul.f32 %v1526, %v1582
        %v1599 = vmul.f32 %v1527, %v1582
        %v1600 = vmul.f32 %v1528, %v1597
        %v1601 = vmul.f32 %v1529, %v1597
        %v1603 = vperm.slane %v1516, 0
        %v1604 = vperm.slane %v1516, 1
        %v1607 = vmul.f32 %v1603, %v1598
        %v1608 = vmul.f32 %v1604, %v1599
        %v1609 = vmul.f32 %v1603, %v1600
        %v1610 = vmul.f32 %v1604, %v1601
        %v1612 = vperm.slane %v1517, 0
        %v1613 = vperm.slane %v1517, 1
        %v1616 = vadd.f32 %v1607, %v1612
        %v1617 = vadd.f32 %v1608, %v1613
        %v1618 = vadd.f32 %v1609, %v1612
        %v1619 = vadd.f32 %v1610, %v1613
        %1620 = vst [vmem:[%s373] sm:$0xff] %v1616
        %1621 = vst [vmem:[%s373 + $0x8] sm:$0xff] %v1617
        %1622 = vst [vmem:[%s373 + $0x10] sm:$0xff] %v1618
        %1623 = vst [vmem:[%s373 + $0x18] sm:$0xff] %v1619
        %s1624 = smul.u32 2, %s22
        %p1625 = scmp.lt.s32.totalorder %s1624, 3
        %s1626 = scalar_select %p1625, %s1624, 3
        %s1627 = smul.addr %s1626, 2
        %s1628 = smul.addr %s1627, 8
        %s1629 = scalar_lea.vmem %s9, %s1628
        // Predicated region
        $region65: #{decoder_forward.19} parent=55 // pred_check
          %p1630 = pneg %p234
        $region66: #{decoder_forward.19} parent=55 // pred_check_branch
          %1632 = sbr.rel (%p1630) target = $region68
        $region67: #{decoder_forward.19} parent=55 // pred_region
          %s1633 = smul.u32 2, %s22
        $region68: #{decoder_forward.19} parent=55 // pred_fallthru
          _
      $region56: #{decoder_forward.19} parent=5 // pred_fallthru
        _
      %p1634 = scmp.le.s32.totalorder 2, %s17
      // Predicated region
      $region69: #{decoder_forward.19} parent=5 // pred_check
        %p1635 = pneg %p1634
      $region70: #{decoder_forward.19} parent=5 // pred_check_branch
        %1637 = sbr.rel (%p1635) target = $region72
      $region71: #{decoder_forward.19} parent=5 // pred_region
        %s1638 = ssub.s32 %s17, 2
        // Predicated region
        $region73: #{decoder_forward.19} parent=71 // pred_check
          %p1639 = pneg %p240
        $region74: #{decoder_forward.19} parent=71 // pred_check_branch
          %1641 = sbr.rel (%p1639) target = $region76
        $region75: #{decoder_forward.19} parent=71 // pred_region
          %s1642 = smul.u32 2, %s23
          %p1643 = scmp.lt.s32.totalorder %s1642, 3
          %s1644 = scalar_select %p1643, %s1642, 3
          %s1645 = smul.addr %s1644, 2
          %s1646 = smul.addr %s1645, 8
          %s1647 = scalar_lea.vmem %s9, %s1646
        $region76: #{decoder_forward.19} parent=71 // pred_fallthru
          _
      $region72: #{decoder_forward.19} parent=5 // pred_fallthru
        _
    $region6: #{decoder_forward.19} parent=1 // loop_footer
      %s21 = sadd.s32 1, %s17
    $region7: #{decoder_forward.19} parent=1 // loop_footer_branch
      %16 = sbr.rel target = $region3
    $region8: #{decoder_forward.19} parent=1 // loop_exit
      _
    %1648 = vsyncpa [#allocation3], 1
    %s1649 = scalar_lea.sflag [#allocation3], 1
    %1650 = vsyncpa %s1649, 1
    %1651 = vsyncpa [#allocation5], 1

</llo_original>
